<compile_context>
chip_gen: v7x
topology: tpu7x:2x2x1
jax: 0.10.0
libtpu: 0.0.40
codegen_flags: <defaults>
</compile_context>

<pallas_src>
import jax
import jax.numpy as jnp
from jax.experimental import pallas as pl
from jax.experimental.pallas import tpu as pltpu


def _deconv2x2_relu_kernel(x_ref, w_ref, o_ref):
    """One kh tap-row of ConvTranspose2d(k=2, s=2, p=0, bias=False) + ReLU.

    Grid is (2,) over kh.  Per grid step:
      x_ref: (M, Cin)         rows ordered (n, h, w);  M = N*H*W
      w_ref: (Cin, 2*Cout)    this kh's taps, columns ordered (kw, cout)
      o_ref: (nb, W, 2*Cout)  kh slice of the (nb, 2, W, 2*Cout) output
                              (nb = N*H); the full output flattens row-major
                              to NHWC (N, 2H, 2W, Cout).
    """
    nb, w_in, c2 = o_ref.shape
    a = jnp.maximum(
        jnp.dot(x_ref[...], w_ref[...], preferred_element_type=jnp.float32),
        0.0)
    if w_in % 8 == 0:
        # Sublane-aligned split of the row dim: free relayout, one full store.
        o_ref[...] = a.reshape(nb, w_in, c2).astype(o_ref.dtype)
    else:
        # Tiny early layers only (W = 2 or 4): per-(n,h) row-slab stores.
        for b in range(nb):
            o_ref[b, :, :] = a[b * w_in:(b + 1) * w_in, :].astype(o_ref.dtype)


def deconv2x2_relu(x2d, w_stacked, *, n, h, w):
    """x2d: (N*H*W, Cin), rows in (n, h, w) order.
    w_stacked: (2, Cin, 2*Cout) with [kh, ci, kw*Cout + co] ordering.
    Returns (N*H, 2, W, 2*Cout), which reshapes (for free) to NHWC
    (N, 2H, 2W, Cout)."""
    m, cin = x2d.shape
    c2 = w_stacked.shape[-1]
    nb = n * h
    return pl.pallas_call(
        _deconv2x2_relu_kernel,
        out_shape=jax.ShapeDtypeStruct((nb, 2, w, c2), jnp.float32),
        grid=(2,),
        in_specs=[
            pl.BlockSpec((m, cin), lambda kh: (0, 0)),          # fetched once
            pl.BlockSpec((None, cin, c2), lambda kh: (kh, 0, 0)),
        ],
        out_specs=pl.BlockSpec((nb, None, w, c2), lambda kh: (0, kh, 0, 0)),
        compiler_params=pltpu.CompilerParams(
            dimension_semantics=("parallel",),   # v7x: one kh slab per core
            vmem_limit_bytes=32 * 1024 * 1024,
        ),
    )(x2d, w_stacked)


def prepare_weight(wt):
    """(Cin, Cout, 2, 2) PyTorch ConvTranspose2d weight ->
    stacked per-kh slabs (2, Cin, 2*Cout) with columns ordered (kw, cout)."""
    cin, cout = wt.shape[0], wt.shape[1]
    return jnp.transpose(wt, (2, 0, 3, 1)).reshape(2, cin, 2 * cout)


def init_params(key):
    """Deterministic init of the 6 ConvTranspose2d weights (deConv6 is unused
    in forward).  Bound matches PyTorch's default kaiming-uniform:
    1/sqrt(fan_in) with fan_in = Cout * kH * kW for ConvTranspose2d."""
    chans = [(512, 256), (256, 128), (128, 64), (64, 32), (32, 16), (16, 8)]
    params = []
    for i, (cin, cout) in enumerate(chans):
        k = jax.random.fold_in(key, i)
        bound = 1.0 / jnp.sqrt(jnp.float32(cout * 4))
        params.append(
            jax.random.uniform(k, (cin, cout, 2, 2), jnp.float32, -bound, bound))
    return params


@jax.jit
def vgg_decode_forward(x_nchw, prepared):
    """Matches VGGdecode.forward: returns (x3, x3_1, x3_2, x3_3, x3_4, x3_5), all NCHW.

    prepared: tuple of 5 stacked (2, Cin, 2*Cout) weight slabs from prepare_weight().
    """
    n, c0, h, w = x_nchw.shape
    cur = jnp.transpose(x_nchw, (0, 2, 3, 1)).reshape(n * h * w, c0)  # NHWC slab
    outs_nchw = []
    for w_st in prepared:
        cout = w_st.shape[-1] // 2
        o = deconv2x2_relu(cur, w_st, n=n, h=h, w=w)    # (n*h, 2, w, 2*cout)
        h, w = 2 * h, 2 * w
        nhwc = o.reshape(n, h, w, cout)                 # free reshape (row-major match)
        outs_nchw.append(jnp.transpose(nhwc, (0, 3, 1, 2)))
        cur = o.reshape(n * h * w, cout)                # free reshape -> next layer input
    return (x_nchw,) + tuple(outs_nchw)


def _reference_layer(x_nhwc, wt):
    # Pure-JAX reference for the same math (sanity check only).
    N, H, W, Cin = x_nhwc.shape
    Cout = wt.shape[1]
    y = jnp.einsum("nhwc,cokl->nhkwlo", x_nhwc, wt)  # (N, H, kh, W, kw, Cout)
    y = y.reshape(N, 2 * H, 2 * W, Cout)
    return jnp.maximum(y, 0.0)


if __name__ == "__main__":
    key = jax.random.PRNGKey(0)
    kx, kw_key = jax.random.split(key)

    # Small spatial input consistent with the module's fixed 512-channel entry point.
    x = jax.random.normal(kx, (2, 512, 2, 2), jnp.float32)  # NCHW, like PyTorch
    params = init_params(kw_key)

    # One-time weight repack (outside the jitted forward).
    prepared = tuple(prepare_weight(p) for p in params[:5])

    outs = vgg_decode_forward(x, prepared)
    outs = jax.block_until_ready(outs)

    # Sanity check against a pure-JAX reference of the same transposed-conv math.
    h_ref = jnp.transpose(x, (0, 2, 3, 1))
    ok = True
    for i in range(5):
        h_ref = _reference_layer(h_ref, params[i])
        got = jnp.transpose(outs[i + 1], (0, 2, 3, 1))
        ok = ok and bool(jnp.allclose(got, h_ref, atol=1e-4, rtol=1e-4))

    expected_shapes = [
        (2, 512, 2, 2),
        (2, 256, 4, 4),
        (2, 128, 8, 8),
        (2, 64, 16, 16),
        (2, 32, 32, 32),
        (2, 16, 64, 64),
    ]
    ok = ok and all(tuple(o.shape) == s for o, s in zip(outs, expected_shapes))

    if ok:
        print("KERNEL_OK")
    else:
        print("KERNEL_MISMATCH")
</pallas_src>

<mosaic_0001>
module attributes {stable_mosaic.version = 11 : i64} {
  func.func @_deconv2x2_relu_kernel(%arg0: i32, %arg1: memref<8x512xf32, #tpu.memory_space<vmem>>, %arg2: memref<1x512x512xf32, #tpu.memory_space<vmem>>, %arg3: memref<4x1x2x512xf32, #tpu.memory_space<vmem>>) attributes {dimension_semantics = [#tpu.dimension_semantics<parallel>], iteration_bounds = array<i64: 2>, scalar_prefetch = 0 : i64, scratch_operands = 0 : i64, tpu.core_type = #tpu.core_type<tc>, window_params = [{pipeline_mode = #tpu.pipeline_mode<synchronous>, transform_indices = @transform_0, window_bounds = array<i64: 8, 512>}, {transform_indices = @transform_1, window_bounds = array<i64: 1, 512, 512>}, {transform_indices = @transform_2, window_bounds = array<i64: 4, 1, 2, 512>}]} {
    %c0 = arith.constant 0 : index
    %c0_0 = arith.constant 0 : index
    %0 = vector.load %arg1[%c0, %c0_0] : memref<8x512xf32, #tpu.memory_space<vmem>>, vector<8x512xf32>
    %c0_1 = arith.constant 0 : index
    %c0_2 = arith.constant 0 : index
    %c0_3 = arith.constant 0 : index
    %1 = vector.load %arg2[%c0_1, %c0_2, %c0_3] : memref<1x512x512xf32, #tpu.memory_space<vmem>>, vector<1x512x512xf32>
    %2 = vector.shape_cast %1 : vector<1x512x512xf32> to vector<512x512xf32>
    %cst = arith.constant dense<0.000000e+00> : vector<8x512xf32>
    %3 = tpu.matmul %0, %2, %cst {dimension_numbers = #tpu.dot_dimension_numbers<[1], [0], [0], [1], [0, 0, 1, 1], [], []>} : vector<8x512xf32>, vector<512x512xf32>, vector<8x512xf32> -> vector<8x512xf32>
    %cst_4 = arith.constant 0.000000e+00 : f32
    %4 = vector.broadcast %cst_4 : f32 to vector<8x512xf32>
    %5 = arith.maximumf %3, %4 : vector<8x512xf32>
    %6 = vector.extract_strided_slice %5 {offsets = [0, 0], sizes = [2, 512], strides = [1, 1]} : vector<8x512xf32> to vector<2x512xf32>
    %c0_5 = arith.constant 0 : index
    %c0_6 = arith.constant 0 : index
    %c0_7 = arith.constant 0 : index
    %c0_8 = arith.constant 0 : index
    %7 = vector.load %arg3[%c0_5, %c0_6, %c0_7, %c0_8] : memref<4x1x2x512xf32, #tpu.memory_space<vmem>>, vector<1x1x2x512xf32>
    %8 = vector.shape_cast %7 : vector<1x1x2x512xf32> to vector<2x512xf32>
    %9 = vector.shape_cast %6 : vector<2x512xf32> to vector<1x1x2x512xf32>
    tpu.vector_store %arg3[%c0_5, %c0_6, %c0_7, %c0_8], %9 {strides = array<i32>} : memref<4x1x2x512xf32, #tpu.memory_space<vmem>>, vector<1x1x2x512xf32>,
    %10 = vector.extract_strided_slice %5 {offsets = [2, 0], sizes = [2, 512], strides = [1, 1]} : vector<8x512xf32> to vector<2x512xf32>
    %c1 = arith.constant 1 : index
    %c0_9 = arith.constant 0 : index
    %c0_10 = arith.constant 0 : index
    %c0_11 = arith.constant 0 : index
    %11 = vector.load %arg3[%c1, %c0_9, %c0_10, %c0_11] : memref<4x1x2x512xf32, #tpu.memory_space<vmem>>, vector<1x1x2x512xf32>
    %12 = vector.shape_cast %11 : vector<1x1x2x512xf32> to vector<2x512xf32>
    %13 = vector.shape_cast %10 : vector<2x512xf32> to vector<1x1x2x512xf32>
    tpu.vector_store %arg3[%c1, %c0_9, %c0_10, %c0_11], %13 {strides = array<i32>} : memref<4x1x2x512xf32, #tpu.memory_space<vmem>>, vector<1x1x2x512xf32>,
    %14 = vector.extract_strided_slice %5 {offsets = [4, 0], sizes = [2, 512], strides = [1, 1]} : vector<8x512xf32> to vector<2x512xf32>
    %c2 = arith.constant 2 : index
    %c0_12 = arith.constant 0 : index
    %c0_13 = arith.constant 0 : index
    %c0_14 = arith.constant 0 : index
    %15 = vector.load %arg3[%c2, %c0_12, %c0_13, %c0_14] : memref<4x1x2x512xf32, #tpu.memory_space<vmem>>, vector<1x1x2x512xf32>
    %16 = vector.shape_cast %15 : vector<1x1x2x512xf32> to vector<2x512xf32>
    %17 = vector.shape_cast %14 : vector<2x512xf32> to vector<1x1x2x512xf32>
    tpu.vector_store %arg3[%c2, %c0_12, %c0_13, %c0_14], %17 {strides = array<i32>} : memref<4x1x2x512xf32, #tpu.memory_space<vmem>>, vector<1x1x2x512xf32>,
    %18 = vector.extract_strided_slice %5 {offsets = [6, 0], sizes = [2, 512], strides = [1, 1]} : vector<8x512xf32> to vector<2x512xf32>
    %c3 = arith.constant 3 : index
    %c0_15 = arith.constant 0 : index
    %c0_16 = arith.constant 0 : index
    %c0_17 = arith.constant 0 : index
    %19 = vector.load %arg3[%c3, %c0_15, %c0_16, %c0_17] : memref<4x1x2x512xf32, #tpu.memory_space<vmem>>, vector<1x1x2x512xf32>
    %20 = vector.shape_cast %19 : vector<1x1x2x512xf32> to vector<2x512xf32>
    %21 = vector.shape_cast %18 : vector<2x512xf32> to vector<1x1x2x512xf32>
    tpu.vector_store %arg3[%c3, %c0_15, %c0_16, %c0_17], %21 {strides = array<i32>} : memref<4x1x2x512xf32, #tpu.memory_space<vmem>>, vector<1x1x2x512xf32>,
    return
  }
  func.func @transform_0(%arg0: i32) -> (i32, i32) {
    %c0_i32 = arith.constant 0 : i32
    %c0_i32_0 = arith.constant 0 : i32
    %c0_i32_1 = arith.constant 0 : i32
    return %c0_i32, %c0_i32_0 : i32, i32
  }
  func.func @transform_1(%arg0: i32) -> (i32, i32, i32) {
    %c0_i32 = arith.constant 0 : i32
    %c0_i32_0 = arith.constant 0 : i32
    %c0_i32_1 = arith.constant 0 : i32
    return %arg0, %c0_i32, %c0_i32_0 : i32, i32, i32
  }
  func.func @transform_2(%arg0: i32) -> (i32, i32, i32, i32) {
    %c0_i32 = arith.constant 0 : i32
    %c0_i32_0 = arith.constant 0 : i32
    %c0_i32_1 = arith.constant 0 : i32
    %c0_i32_2 = arith.constant 0 : i32
    return %c0_i32, %arg0, %c0_i32_0, %c0_i32_1 : i32, i32, i32, i32
  }
}

module attributes {stable_mosaic.version = 11 : i64} {
  func.func @_deconv2x2_relu_kernel(%arg0: i32, %arg1: memref<32x256xf32, #tpu.memory_space<vmem>>, %arg2: memref<1x256x256xf32, #tpu.memory_space<vmem>>, %arg3: memref<8x1x4x256xf32, #tpu.memory_space<vmem>>) attributes {dimension_semantics = [#tpu.dimension_semantics<parallel>], iteration_bounds = array<i64: 2>, scalar_prefetch = 0 : i64, scratch_operands = 0 : i64, tpu.core_type = #tpu.core_type<tc>, window_params = [{pipeline_mode = #tpu.pipeline_mode<synchronous>, transform_indices = @transform_0, window_bounds = array<i64: 32, 256>}, {transform_indices = @transform_1, window_bounds = array<i64: 1, 256, 256>}, {transform_indices = @transform_2, window_bounds = array<i64: 8, 1, 4, 256>}]} {
    %c0 = arith.constant 0 : index
    %c0_0 = arith.constant 0 : index
    %0 = vector.load %arg1[%c0, %c0_0] : memref<32x256xf32, #tpu.memory_space<vmem>>, vector<32x256xf32>
    %c0_1 = arith.constant 0 : index
    %c0_2 = arith.constant 0 : index
    %c0_3 = arith.constant 0 : index
    %1 = vector.load %arg2[%c0_1, %c0_2, %c0_3] : memref<1x256x256xf32, #tpu.memory_space<vmem>>, vector<1x256x256xf32>
    %2 = vector.shape_cast %1 : vector<1x256x256xf32> to vector<256x256xf32>
    %cst = arith.constant dense<0.000000e+00> : vector<32x256xf32>
    %3 = tpu.matmul %0, %2, %cst {dimension_numbers = #tpu.dot_dimension_numbers<[1], [0], [0], [1], [0, 0, 1, 1], [], []>} : vector<32x256xf32>, vector<256x256xf32>, vector<32x256xf32> -> vector<32x256xf32>
    %cst_4 = arith.constant 0.000000e+00 : f32
    %4 = vector.broadcast %cst_4 : f32 to vector<32x256xf32>
    %5 = arith.maximumf %3, %4 : vector<32x256xf32>
    %6 = vector.extract_strided_slice %5 {offsets = [0, 0], sizes = [4, 256], strides = [1, 1]} : vector<32x256xf32> to vector<4x256xf32>
    %c0_5 = arith.constant 0 : index
    %c0_6 = arith.constant 0 : index
    %c0_7 = arith.constant 0 : index
    %c0_8 = arith.constant 0 : index
    %7 = vector.load %arg3[%c0_5, %c0_6, %c0_7, %c0_8] : memref<8x1x4x256xf32, #tpu.memory_space<vmem>>, vector<1x1x4x256xf32>
    %8 = vector.shape_cast %7 : vector<1x1x4x256xf32> to vector<4x256xf32>
    %9 = vector.shape_cast %6 : vector<4x256xf32> to vector<1x1x4x256xf32>
    tpu.vector_store %arg3[%c0_5, %c0_6, %c0_7, %c0_8], %9 {strides = array<i32>} : memref<8x1x4x256xf32, #tpu.memory_space<vmem>>, vector<1x1x4x256xf32>,
    %10 = vector.extract_strided_slice %5 {offsets = [4, 0], sizes = [4, 256], strides = [1, 1]} : vector<32x256xf32> to vector<4x256xf32>
    %c1 = arith.constant 1 : index
    %c0_9 = arith.constant 0 : index
    %c0_10 = arith.constant 0 : index
    %c0_11 = arith.constant 0 : index
    %11 = vector.load %arg3[%c1, %c0_9, %c0_10, %c0_11] : memref<8x1x4x256xf32, #tpu.memory_space<vmem>>, vector<1x1x4x256xf32>
    %12 = vector.shape_cast %11 : vector<1x1x4x256xf32> to vector<4x256xf32>
    %13 = vector.shape_cast %10 : vector<4x256xf32> to vector<1x1x4x256xf32>
    tpu.vector_store %arg3[%c1, %c0_9, %c0_10, %c0_11], %13 {strides = array<i32>} : memref<8x1x4x256xf32, #tpu.memory_space<vmem>>, vector<1x1x4x256xf32>,
    %14 = vector.extract_strided_slice %5 {offsets = [8, 0], sizes = [4, 256], strides = [1, 1]} : vector<32x256xf32> to vector<4x256xf32>
    %c2 = arith.constant 2 : index
    %c0_12 = arith.constant 0 : index
    %c0_13 = arith.constant 0 : index
    %c0_14 = arith.constant 0 : index
    %15 = vector.load %arg3[%c2, %c0_12, %c0_13, %c0_14] : memref<8x1x4x256xf32, #tpu.memory_space<vmem>>, vector<1x1x4x256xf32>
    %16 = vector.shape_cast %15 : vector<1x1x4x256xf32> to vector<4x256xf32>
    %17 = vector.shape_cast %14 : vector<4x256xf32> to vector<1x1x4x256xf32>
    tpu.vector_store %arg3[%c2, %c0_12, %c0_13, %c0_14], %17 {strides = array<i32>} : memref<8x1x4x256xf32, #tpu.memory_space<vmem>>, vector<1x1x4x256xf32>,
    %18 = vector.extract_strided_slice %5 {offsets = [12, 0], sizes = [4, 256], strides = [1, 1]} : vector<32x256xf32> to vector<4x256xf32>
    %c3 = arith.constant 3 : index
    %c0_15 = arith.constant 0 : index
    %c0_16 = arith.constant 0 : index
    %c0_17 = arith.constant 0 : index
    %19 = vector.load %arg3[%c3, %c0_15, %c0_16, %c0_17] : memref<8x1x4x256xf32, #tpu.memory_space<vmem>>, vector<1x1x4x256xf32>
    %20 = vector.shape_cast %19 : vector<1x1x4x256xf32> to vector<4x256xf32>
    %21 = vector.shape_cast %18 : vector<4x256xf32> to vector<1x1x4x256xf32>
    tpu.vector_store %arg3[%c3, %c0_15, %c0_16, %c0_17], %21 {strides = array<i32>} : memref<8x1x4x256xf32, #tpu.memory_space<vmem>>, vector<1x1x4x256xf32>,
    %22 = vector.extract_strided_slice %5 {offsets = [16, 0], sizes = [4, 256], strides = [1, 1]} : vector<32x256xf32> to vector<4x256xf32>
    %c4 = arith.constant 4 : index
    %c0_18 = arith.constant 0 : index
    %c0_19 = arith.constant 0 : index
    %c0_20 = arith.constant 0 : index
    %23 = vector.load %arg3[%c4, %c0_18, %c0_19, %c0_20] : memref<8x1x4x256xf32, #tpu.memory_space<vmem>>, vector<1x1x4x256xf32>
    %24 = vector.shape_cast %23 : vector<1x1x4x256xf32> to vector<4x256xf32>
    %25 = vector.shape_cast %22 : vector<4x256xf32> to vector<1x1x4x256xf32>
    tpu.vector_store %arg3[%c4, %c0_18, %c0_19, %c0_20], %25 {strides = array<i32>} : memref<8x1x4x256xf32, #tpu.memory_space<vmem>>, vector<1x1x4x256xf32>,
    %26 = vector.extract_strided_slice %5 {offsets = [20, 0], sizes = [4, 256], strides = [1, 1]} : vector<32x256xf32> to vector<4x256xf32>
    %c5 = arith.constant 5 : index
    %c0_21 = arith.constant 0 : index
    %c0_22 = arith.constant 0 : index
    %c0_23 = arith.constant 0 : index
    %27 = vector.load %arg3[%c5, %c0_21, %c0_22, %c0_23] : memref<8x1x4x256xf32, #tpu.memory_space<vmem>>, vector<1x1x4x256xf32>
    %28 = vector.shape_cast %27 : vector<1x1x4x256xf32> to vector<4x256xf32>
    %29 = vector.shape_cast %26 : vector<4x256xf32> to vector<1x1x4x256xf32>
    tpu.vector_store %arg3[%c5, %c0_21, %c0_22, %c0_23], %29 {strides = array<i32>} : memref<8x1x4x256xf32, #tpu.memory_space<vmem>>, vector<1x1x4x256xf32>,
    %30 = vector.extract_strided_slice %5 {offsets = [24, 0], sizes = [4, 256], strides = [1, 1]} : vector<32x256xf32> to vector<4x256xf32>
    %c6 = arith.constant 6 : index
    %c0_24 = arith.constant 0 : index
    %c0_25 = arith.constant 0 : index
    %c0_26 = arith.constant 0 : index
    %31 = vector.load %arg3[%c6, %c0_24, %c0_25, %c0_26] : memref<8x1x4x256xf32, #tpu.memory_space<vmem>>, vector<1x1x4x256xf32>
    %32 = vector.shape_cast %31 : vector<1x1x4x256xf32> to vector<4x256xf32>
    %33 = vector.shape_cast %30 : vector<4x256xf32> to vector<1x1x4x256xf32>
    tpu.vector_store %arg3[%c6, %c0_24, %c0_25, %c0_26], %33 {strides = array<i32>} : memref<8x1x4x256xf32, #tpu.memory_space<vmem>>, vector<1x1x4x256xf32>,
    %34 = vector.extract_strided_slice %5 {offsets = [28, 0], sizes = [4, 256], strides = [1, 1]} : vector<32x256xf32> to vector<4x256xf32>
    %c7 = arith.constant 7 : index
    %c0_27 = arith.constant 0 : index
    %c0_28 = arith.constant 0 : index
    %c0_29 = arith.constant 0 : index
    %35 = vector.load %arg3[%c7, %c0_27, %c0_28, %c0_29] : memref<8x1x4x256xf32, #tpu.memory_space<vmem>>, vector<1x1x4x256xf32>
    %36 = vector.shape_cast %35 : vector<1x1x4x256xf32> to vector<4x256xf32>
    %37 = vector.shape_cast %34 : vector<4x256xf32> to vector<1x1x4x256xf32>
    tpu.vector_store %arg3[%c7, %c0_27, %c0_28, %c0_29], %37 {strides = array<i32>} : memref<8x1x4x256xf32, #tpu.memory_space<vmem>>, vector<1x1x4x256xf32>,
    return
  }
  func.func @transform_0(%arg0: i32) -> (i32, i32) {
    %c0_i32 = arith.constant 0 : i32
    %c0_i32_0 = arith.constant 0 : i32
    %c0_i32_1 = arith.constant 0 : i32
    return %c0_i32, %c0_i32_0 : i32, i32
  }
  func.func @transform_1(%arg0: i32) -> (i32, i32, i32) {
    %c0_i32 = arith.constant 0 : i32
    %c0_i32_0 = arith.constant 0 : i32
    %c0_i32_1 = arith.constant 0 : i32
    return %arg0, %c0_i32, %c0_i32_0 : i32, i32, i32
  }
  func.func @transform_2(%arg0: i32) -> (i32, i32, i32, i32) {
    %c0_i32 = arith.constant 0 : i32
    %c0_i32_0 = arith.constant 0 : i32
    %c0_i32_1 = arith.constant 0 : i32
    %c0_i32_2 = arith.constant 0 : i32
    return %c0_i32, %arg0, %c0_i32_0, %c0_i32_1 : i32, i32, i32, i32
  }
}

module attributes {stable_mosaic.version = 11 : i64} {
  func.func @_deconv2x2_relu_kernel(%arg0: i32, %arg1: memref<128x128xf32, #tpu.memory_space<vmem>>, %arg2: memref<1x128x128xf32, #tpu.memory_space<vmem>>, %arg3: memref<16x1x8x128xf32, #tpu.memory_space<vmem>>) attributes {dimension_semantics = [#tpu.dimension_semantics<parallel>], iteration_bounds = array<i64: 2>, scalar_prefetch = 0 : i64, scratch_operands = 0 : i64, tpu.core_type = #tpu.core_type<tc>, window_params = [{pipeline_mode = #tpu.pipeline_mode<synchronous>, transform_indices = @transform_0, window_bounds = array<i64: 128, 128>}, {transform_indices = @transform_1, window_bounds = array<i64: 1, 128, 128>}, {transform_indices = @transform_2, window_bounds = array<i64: 16, 1, 8, 128>}]} {
    %c0 = arith.constant 0 : index
    %c0_0 = arith.constant 0 : index
    %0 = vector.load %arg1[%c0, %c0_0] : memref<128x128xf32, #tpu.memory_space<vmem>>, vector<128x128xf32>
    %c0_1 = arith.constant 0 : index
    %c0_2 = arith.constant 0 : index
    %c0_3 = arith.constant 0 : index
    %1 = vector.load %arg2[%c0_1, %c0_2, %c0_3] : memref<1x128x128xf32, #tpu.memory_space<vmem>>, vector<1x128x128xf32>
    %2 = vector.shape_cast %1 : vector<1x128x128xf32> to vector<128x128xf32>
    %cst = arith.constant dense<0.000000e+00> : vector<128x128xf32>
    %3 = tpu.matmul %0, %2, %cst {dimension_numbers = #tpu.dot_dimension_numbers<[1], [0], [0], [1], [0, 0, 1, 1], [], []>} : vector<128x128xf32>, vector<128x128xf32>, vector<128x128xf32> -> vector<128x128xf32>
    %cst_4 = arith.constant 0.000000e+00 : f32
    %4 = vector.broadcast %cst_4 : f32 to vector<128x128xf32>
    %5 = arith.maximumf %3, %4 : vector<128x128xf32>
    %6 = vector.shape_cast %5 : vector<128x128xf32> to vector<16x8x128xf32>
    %c0_5 = arith.constant 0 : index
    %c0_6 = arith.constant 0 : index
    %c0_7 = arith.constant 0 : index
    %c0_8 = arith.constant 0 : index
    %7 = vector.load %arg3[%c0_5, %c0_6, %c0_7, %c0_8] : memref<16x1x8x128xf32, #tpu.memory_space<vmem>>, vector<16x1x8x128xf32>
    %8 = vector.shape_cast %7 : vector<16x1x8x128xf32> to vector<16x8x128xf32>
    %9 = vector.shape_cast %6 : vector<16x8x128xf32> to vector<16x1x8x128xf32>
    tpu.vector_store %arg3[%c0_5, %c0_6, %c0_7, %c0_8], %9 {strides = array<i32>} : memref<16x1x8x128xf32, #tpu.memory_space<vmem>>, vector<16x1x8x128xf32>,
    return
  }
  func.func @transform_0(%arg0: i32) -> (i32, i32) {
    %c0_i32 = arith.constant 0 : i32
    %c0_i32_0 = arith.constant 0 : i32
    %c0_i32_1 = arith.constant 0 : i32
    return %c0_i32, %c0_i32_0 : i32, i32
  }
  func.func @transform_1(%arg0: i32) -> (i32, i32, i32) {
    %c0_i32 = arith.constant 0 : i32
    %c0_i32_0 = arith.constant 0 : i32
    %c0_i32_1 = arith.constant 0 : i32
    return %arg0, %c0_i32, %c0_i32_0 : i32, i32, i32
  }
  func.func @transform_2(%arg0: i32) -> (i32, i32, i32, i32) {
    %c0_i32 = arith.constant 0 : i32
    %c0_i32_0 = arith.constant 0 : i32
    %c0_i32_1 = arith.constant 0 : i32
    %c0_i32_2 = arith.constant 0 : i32
    return %c0_i32, %arg0, %c0_i32_0, %c0_i32_1 : i32, i32, i32, i32
  }
}

module attributes {stable_mosaic.version = 11 : i64} {
  func.func @_deconv2x2_relu_kernel(%arg0: i32, %arg1: memref<512x64xf32, #tpu.memory_space<vmem>>, %arg2: memref<1x64x64xf32, #tpu.memory_space<vmem>>, %arg3: memref<32x1x16x64xf32, #tpu.memory_space<vmem>>) attributes {dimension_semantics = [#tpu.dimension_semantics<parallel>], iteration_bounds = array<i64: 2>, scalar_prefetch = 0 : i64, scratch_operands = 0 : i64, tpu.core_type = #tpu.core_type<tc>, window_params = [{pipeline_mode = #tpu.pipeline_mode<synchronous>, transform_indices = @transform_0, window_bounds = array<i64: 512, 64>}, {transform_indices = @transform_1, window_bounds = array<i64: 1, 64, 64>}, {transform_indices = @transform_2, window_bounds = array<i64: 32, 1, 16, 64>}]} {
    %c0 = arith.constant 0 : index
    %c0_0 = arith.constant 0 : index
    %0 = vector.load %arg1[%c0, %c0_0] : memref<512x64xf32, #tpu.memory_space<vmem>>, vector<512x64xf32>
    %c0_1 = arith.constant 0 : index
    %c0_2 = arith.constant 0 : index
    %c0_3 = arith.constant 0 : index
    %1 = vector.load %arg2[%c0_1, %c0_2, %c0_3] : memref<1x64x64xf32, #tpu.memory_space<vmem>>, vector<1x64x64xf32>
    %2 = vector.shape_cast %1 : vector<1x64x64xf32> to vector<64x64xf32>
    %cst = arith.constant dense<0.000000e+00> : vector<512x64xf32>
    %3 = tpu.matmul %0, %2, %cst {dimension_numbers = #tpu.dot_dimension_numbers<[1], [0], [0], [1], [0, 0, 1, 1], [], []>} : vector<512x64xf32>, vector<64x64xf32>, vector<512x64xf32> -> vector<512x64xf32>
    %cst_4 = arith.constant 0.000000e+00 : f32
    %4 = vector.broadcast %cst_4 : f32 to vector<512x64xf32>
    %5 = arith.maximumf %3, %4 : vector<512x64xf32>
    %6 = vector.shape_cast %5 : vector<512x64xf32> to vector<32x16x64xf32>
    %c0_5 = arith.constant 0 : index
    %c0_6 = arith.constant 0 : index
    %c0_7 = arith.constant 0 : index
    %c0_8 = arith.constant 0 : index
    %7 = vector.load %arg3[%c0_5, %c0_6, %c0_7, %c0_8] : memref<32x1x16x64xf32, #tpu.memory_space<vmem>>, vector<32x1x16x64xf32>
    %8 = vector.shape_cast %7 : vector<32x1x16x64xf32> to vector<32x16x64xf32>
    %9 = vector.shape_cast %6 : vector<32x16x64xf32> to vector<32x1x16x64xf32>
    tpu.vector_store %arg3[%c0_5, %c0_6, %c0_7, %c0_8], %9 {strides = array<i32>} : memref<32x1x16x64xf32, #tpu.memory_space<vmem>>, vector<32x1x16x64xf32>,
    return
  }
  func.func @transform_0(%arg0: i32) -> (i32, i32) {
    %c0_i32 = arith.constant 0 : i32
    %c0_i32_0 = arith.constant 0 : i32
    %c0_i32_1 = arith.constant 0 : i32
    return %c0_i32, %c0_i32_0 : i32, i32
  }
  func.func @transform_1(%arg0: i32) -> (i32, i32, i32) {
    %c0_i32 = arith.constant 0 : i32
    %c0_i32_0 = arith.constant 0 : i32
    %c0_i32_1 = arith.constant 0 : i32
    return %arg0, %c0_i32, %c0_i32_0 : i32, i32, i32
  }
  func.func @transform_2(%arg0: i32) -> (i32, i32, i32, i32) {
    %c0_i32 = arith.constant 0 : i32
    %c0_i32_0 = arith.constant 0 : i32
    %c0_i32_1 = arith.constant 0 : i32
    %c0_i32_2 = arith.constant 0 : i32
    return %c0_i32, %arg0, %c0_i32_0, %c0_i32_1 : i32, i32, i32, i32
  }
}

module attributes {stable_mosaic.version = 11 : i64} {
  func.func @_deconv2x2_relu_kernel(%arg0: i32, %arg1: memref<2048x32xf32, #tpu.memory_space<vmem>>, %arg2: memref<1x32x32xf32, #tpu.memory_space<vmem>>, %arg3: memref<64x1x32x32xf32, #tpu.memory_space<vmem>>) attributes {dimension_semantics = [#tpu.dimension_semantics<parallel>], iteration_bounds = array<i64: 2>, scalar_prefetch = 0 : i64, scratch_operands = 0 : i64, tpu.core_type = #tpu.core_type<tc>, window_params = [{pipeline_mode = #tpu.pipeline_mode<synchronous>, transform_indices = @transform_0, window_bounds = array<i64: 2048, 32>}, {transform_indices = @transform_1, window_bounds = array<i64: 1, 32, 32>}, {transform_indices = @transform_2, window_bounds = array<i64: 64, 1, 32, 32>}]} {
    %c0 = arith.constant 0 : index
    %c0_0 = arith.constant 0 : index
    %0 = vector.load %arg1[%c0, %c0_0] : memref<2048x32xf32, #tpu.memory_space<vmem>>, vector<2048x32xf32>
    %c0_1 = arith.constant 0 : index
    %c0_2 = arith.constant 0 : index
    %c0_3 = arith.constant 0 : index
    %1 = vector.load %arg2[%c0_1, %c0_2, %c0_3] : memref<1x32x32xf32, #tpu.memory_space<vmem>>, vector<1x32x32xf32>
    %2 = vector.shape_cast %1 : vector<1x32x32xf32> to vector<32x32xf32>
    %cst = arith.constant dense<0.000000e+00> : vector<2048x32xf32>
    %3 = tpu.matmul %0, %2, %cst {dimension_numbers = #tpu.dot_dimension_numbers<[1], [0], [0], [1], [0, 0, 1, 1], [], []>} : vector<2048x32xf32>, vector<32x32xf32>, vector<2048x32xf32> -> vector<2048x32xf32>
    %cst_4 = arith.constant 0.000000e+00 : f32
    %4 = vector.broadcast %cst_4 : f32 to vector<2048x32xf32>
    %5 = arith.maximumf %3, %4 : vector<2048x32xf32>
    %6 = vector.shape_cast %5 : vector<2048x32xf32> to vector<64x32x32xf32>
    %c0_5 = arith.constant 0 : index
    %c0_6 = arith.constant 0 : index
    %c0_7 = arith.constant 0 : index
    %c0_8 = arith.constant 0 : index
    %7 = vector.load %arg3[%c0_5, %c0_6, %c0_7, %c0_8] : memref<64x1x32x32xf32, #tpu.memory_space<vmem>>, vector<64x1x32x32xf32>
    %8 = vector.shape_cast %7 : vector<64x1x32x32xf32> to vector<64x32x32xf32>
    %9 = vector.shape_cast %6 : vector<64x32x32xf32> to vector<64x1x32x32xf32>
    tpu.vector_store %arg3[%c0_5, %c0_6, %c0_7, %c0_8], %9 {strides = array<i32>} : memref<64x1x32x32xf32, #tpu.memory_space<vmem>>, vector<64x1x32x32xf32>,
    return
  }
  func.func @transform_0(%arg0: i32) -> (i32, i32) {
    %c0_i32 = arith.constant 0 : i32
    %c0_i32_0 = arith.constant 0 : i32
    %c0_i32_1 = arith.constant 0 : i32
    return %c0_i32, %c0_i32_0 : i32, i32
  }
  func.func @transform_1(%arg0: i32) -> (i32, i32, i32) {
    %c0_i32 = arith.constant 0 : i32
    %c0_i32_0 = arith.constant 0 : i32
    %c0_i32_1 = arith.constant 0 : i32
    return %arg0, %c0_i32, %c0_i32_0 : i32, i32, i32
  }
  func.func @transform_2(%arg0: i32) -> (i32, i32, i32, i32) {
    %c0_i32 = arith.constant 0 : i32
    %c0_i32_0 = arith.constant 0 : i32
    %c0_i32_1 = arith.constant 0 : i32
    %c0_i32_2 = arith.constant 0 : i32
    return %c0_i32, %arg0, %c0_i32_0, %c0_i32_1 : i32, i32, i32, i32
  }
}

</mosaic_0001>

<llo_original>
// kernel: vgg_decode_forward.6
$region0: #{vgg_decode_forward.6}
  #allocation0 [shape = 'u32[]', space=smem, size = 0x4, offset = 0x4, fixed_abs, tag = 'smem constant byte address 0x4 - core index']
  #allocation1 [shape = 'u32[144,128]{1,0:T(1,128)}', space=vmem, size = 0x12000, scoped, tag = 'internal scratch']
  %s0 = inlined_call_operand.vmem [shape: f32[32,256], index: 0, kind: input, shape index: {}]
  %s1 = inlined_call_operand.vmem [shape: f32[2,256,256], index: 1, kind: input, shape index: {}]
  %s2 = inlined_call_operand.vmem [shape: f32[8,2,4,256], index: 2, kind: output, shape index: {}]
  %s3 = sld [smem:[#allocation0]]
  $region75: #{vgg_decode_forward.6} parent=0
    _
  %s5 = ssub.s32 1, %s3
  %s6 = scalar_select 0, %s5, %s3
  $region1: #{vgg_decode_forward.6} parent=0
    #allocation2 [shape = 'u8[65536]{0}', space=vmem, size = 0x10000, scoped, tag = 'output window, operand 0']
    loop: start=0, step=1, limit=4
    $region2: #{vgg_decode_forward.6} parent=1 // loop_pre_header
      _
    $region3: #{vgg_decode_forward.6} parent=1 // loop_header
      %s8 = sphi 0, %s12
      %p9 = scmp.ge.s32.totalorder %s8, 4
      %s16 = sphi 0, %s16
      %s18 = sphi 0, %s16
      %s19 = sphi 0, %s18
      %s33 = sphi 0, %s19
      %s39 = sphi 0, %s41
      %s42 = sphi 0, %s39
      %s43 = sphi 0, %s42
      %s59 = sphi 0, %s43
      %s65 = sphi 0, %s67
      %s68 = sphi 0, %s65
      %s69 = sphi 0, %s68
      %s85 = sphi 0, %s69
    $region4: #{vgg_decode_forward.6} parent=1 // loop_header_branch
      %11 = sbr.rel (%p9) target = $region8
    $region5: #{vgg_decode_forward.6} parent=1 // loop_body
      %s13 = ssub.s32 %s8, 1
      %s14 = ssub.s32 %s8, 2
      %s15 = sadd.s32 %s8, 1
      %s17 = sadd.s32 %s16, 1
      %p20 = scmp.eq.s32.totalorder %s8, 1
      %p21 = scmp.ne.s32.totalorder %s16, %s18
      %p22 = scmp.eq.s32.totalorder %s8, 0
      %p23 = por %p21, %p22
      %p24 = scmp.ne.s32.totalorder %s16, %s18
      %p25 = scmp.eq.s32.totalorder %s13, 1
      %p26 = por %p24, %p25
      %p27 = scmp.ne.s32.totalorder %s18, %s19
      %p28 = scmp.eq.s32.totalorder %s13, 0
      %p29 = por %p27, %p28
      %p30 = scmp.ne.s32.totalorder %s18, %s19
      %p31 = scmp.eq.s32.totalorder %s14, 1
      %p32 = por %p30, %p31
      %p34 = scmp.ne.s32.totalorder %s19, %s33
      %p35 = scmp.eq.s32.totalorder %s14, 0
      %p36 = por %p34, %p35
      %s37 = ssub.s32 %s8, %s15
      %p38 = scmp.eq.s32.totalorder %s37, 0
      %s40 = sadd.s32 %s39, 1
      %s41 = scalar_select %p38, %s39, %s40
      %p44 = pneg %p38
      %p45 = scmp.eq.s32.totalorder %s8, 1
      %p46 = por %p44, %p45
      %p47 = scmp.ne.s32.totalorder %s39, %s42
      %p48 = scmp.eq.s32.totalorder %s8, 0
      %p49 = por %p47, %p48
      %p50 = scmp.ne.s32.totalorder %s39, %s42
      %p51 = scmp.eq.s32.totalorder %s13, 1
      %p52 = por %p50, %p51
      %p53 = scmp.ne.s32.totalorder %s42, %s43
      %p54 = scmp.eq.s32.totalorder %s13, 0
      %p55 = por %p53, %p54
      %p56 = scmp.ne.s32.totalorder %s42, %s43
      %p57 = scmp.eq.s32.totalorder %s14, 1
      %p58 = por %p56, %p57
      %p60 = scmp.ne.s32.totalorder %s43, %s59
      %p61 = scmp.eq.s32.totalorder %s14, 0
      %p62 = por %p60, %p61
      %s63 = ssub.s32 %s8, %s15
      %p64 = scmp.eq.s32.totalorder %s63, 0
      %s66 = sadd.s32 %s65, 1
      %s67 = scalar_select %p64, %s65, %s66
      %p70 = pneg %p64
      %p71 = scmp.eq.s32.totalorder %s8, 1
      %p72 = por %p70, %p71
      %p73 = scmp.ne.s32.totalorder %s65, %s68
      %p74 = scmp.eq.s32.totalorder %s8, 0
      %p75 = por %p73, %p74
      %p76 = scmp.ne.s32.totalorder %s65, %s68
      %p77 = scmp.eq.s32.totalorder %s13, 1
      %p78 = por %p76, %p77
      %p79 = scmp.ne.s32.totalorder %s68, %s69
      %p80 = scmp.eq.s32.totalorder %s13, 0
      %p81 = por %p79, %p80
      %p82 = scmp.ne.s32.totalorder %s68, %s69
      %p83 = scmp.eq.s32.totalorder %s14, 1
      %p84 = por %p82, %p83
      %p86 = scmp.ne.s32.totalorder %s69, %s85
      %p87 = scmp.eq.s32.totalorder %s14, 0
      %p88 = por %p86, %p87
      %p89 = scmp.le.s32.totalorder 1, %s8
      %p90 = scmp.lt.s32.totalorder %s8, 3
      %p91 = pnand %p89, %p90
      %p92 = pneg %p91
      // Predicated region
      $region9: #{vgg_decode_forward.6} parent=5 // pred_check
        _
      $region10: #{vgg_decode_forward.6} parent=5 // pred_check_branch
        %94 = sbr.rel (%p91) target = $region12
      $region11: #{vgg_decode_forward.6} parent=5 // pred_region
        %s95 = ssub.s32 %s8, 1
        // Predicated region
        $region13: #{vgg_decode_forward.6} parent=11 // pred_check
          %p96 = pneg %p29
        $region14: #{vgg_decode_forward.6} parent=11 // pred_check_branch
          %98 = sbr.rel (%p96) target = $region16
        $region15: #{vgg_decode_forward.6} parent=11 // pred_region
          _
        $region16: #{vgg_decode_forward.6} parent=11 // pred_fallthru
          _
      $region12: #{vgg_decode_forward.6} parent=5 // pred_fallthru
        _
      %p99 = scmp.lt.s32.totalorder %s8, 2
      // Predicated region
      $region17: #{vgg_decode_forward.6} parent=5 // pred_check
        %p100 = pneg %p99
      $region18: #{vgg_decode_forward.6} parent=5 // pred_check_branch
        %102 = sbr.rel (%p100) target = $region20
      $region19: #{vgg_decode_forward.6} parent=5 // pred_region
        // Predicated region
        $region21: #{vgg_decode_forward.6} parent=19 // pred_check
          %p103 = pneg %p49
        $region22: #{vgg_decode_forward.6} parent=19 // pred_check_branch
          %105 = sbr.rel (%p103) target = $region24
        $region23: #{vgg_decode_forward.6} parent=19 // pred_region
          %p106 = scmp.lt.s32.totalorder %s8, 1
          %s107 = scalar_select %p106, %s8, 1
          %s108 = smul.addr %s107, 64
          %s109 = smul.addr %s108, 8
          %s110 = scalar_lea.vmem %s1, %s109
        $region24: #{vgg_decode_forward.6} parent=19 // pred_fallthru
          _
      $region20: #{vgg_decode_forward.6} parent=5 // pred_fallthru
        _
      %p111 = scmp.le.s32.totalorder 1, %s8
      %p112 = scmp.lt.s32.totalorder %s8, 3
      %p113 = pnand %p111, %p112
      %p114 = pneg %p113
      // Predicated region
      $region25: #{vgg_decode_forward.6} parent=5 // pred_check
        _
      $region26: #{vgg_decode_forward.6} parent=5 // pred_check_branch
        %116 = sbr.rel (%p113) target = $region28
      $region27: #{vgg_decode_forward.6} parent=5 // pred_region
        %s117 = ssub.s32 %s8, 1
        %p118 = pneg %p29
        %p119 = pneg %p26
        %p120 = scmp.lt.s32.totalorder %s13, 1
        %s121 = scalar_select %p120, %s13, 1
        %s122 = smul.addr %s121, 64
        %s123 = smul.addr %s122, 8
        %s124 = scalar_lea.vmem %s1, %s123
        %p125 = pneg %p55
        %p126 = pneg %p52
        %p127 = pneg %p81
        %p128 = pneg %p78
        %s129 = sand.u32 %s68, 1
        %s130 = sand.u32 %s68, 1
        %s131 = smul.addr %s130, 64
        %s132 = scalar_lea.vmem [#allocation2], %s131
        %p133 = scmp.lt.s32.totalorder %s13, 1
        %s134 = scalar_select %p133, %s13, 1
        %s135 = smul.addr %s134, 64
        %s136 = smul.addr %s135, 8
        %s137 = scalar_lea.vmem %s1, %s136
        %v138 = vld [vmem:[%s0] sm:$0xff]
        %v139 = vld [vmem:[%s0 + $0x8] sm:$0xff]
        %v140 = vld [vmem:[%s0 + $0x10] sm:$0xff]
        %v141 = vld [vmem:[%s0 + $0x18] sm:$0xff]
        %v142 = vld [vmem:[%s0 + $0x20] sm:$0xff]
        %v143 = vld [vmem:[%s0 + $0x28] sm:$0xff]
        %v144 = vld [vmem:[%s0 + $0x30] sm:$0xff]
        %v145 = vld [vmem:[%s0 + $0x38] sm:$0xff]
        %v146 = vld [vmem:[%s137] sm:$0xff]
        %v147 = vld [vmem:[%s137 + $0x8] sm:$0xff]
        %v148 = vld [vmem:[%s137 + $0x10] sm:$0xff]
        %v149 = vld [vmem:[%s137 + $0x18] sm:$0xff]
        %v150 = vld [vmem:[%s137 + $0x20] sm:$0xff]
        %v151 = vld [vmem:[%s137 + $0x28] sm:$0xff]
        %v152 = vld [vmem:[%s137 + $0x30] sm:$0xff]
        %v153 = vld [vmem:[%s137 + $0x38] sm:$0xff]
        %v154 = vld [vmem:[%s137 + $0x40] sm:$0xff]
        %v155 = vld [vmem:[%s137 + $0x48] sm:$0xff]
        %v156 = vld [vmem:[%s137 + $0x50] sm:$0xff]
        %v157 = vld [vmem:[%s137 + $0x58] sm:$0xff]
        %v158 = vld [vmem:[%s137 + $0x60] sm:$0xff]
        %v159 = vld [vmem:[%s137 + $0x68] sm:$0xff]
        %v160 = vld [vmem:[%s137 + $0x70] sm:$0xff]
        %v161 = vld [vmem:[%s137 + $0x78] sm:$0xff]
        %v162 = vld [vmem:[%s137 + $0x80] sm:$0xff]
        %v163 = vld [vmem:[%s137 + $0x88] sm:$0xff]
        %v164 = vld [vmem:[%s137 + $0x90] sm:$0xff]
        %v165 = vld [vmem:[%s137 + $0x98] sm:$0xff]
        %v166 = vld [vmem:[%s137 + $0xa0] sm:$0xff]
        %v167 = vld [vmem:[%s137 + $0xa8] sm:$0xff]
        %v168 = vld [vmem:[%s137 + $0xb0] sm:$0xff]
        %v169 = vld [vmem:[%s137 + $0xb8] sm:$0xff]
        %v170 = vld [vmem:[%s137 + $0xc0] sm:$0xff]
        %v171 = vld [vmem:[%s137 + $0xc8] sm:$0xff]
        %v172 = vld [vmem:[%s137 + $0xd0] sm:$0xff]
        %v173 = vld [vmem:[%s137 + $0xd8] sm:$0xff]
        %v174 = vld [vmem:[%s137 + $0xe0] sm:$0xff]
        %v175 = vld [vmem:[%s137 + $0xe8] sm:$0xff]
        %v176 = vld [vmem:[%s137 + $0xf0] sm:$0xff]
        %v177 = vld [vmem:[%s137 + $0xf8] sm:$0xff]
        %v178 = vld [vmem:[%s137 + $0x100] sm:$0xff]
        %v179 = vld [vmem:[%s137 + $0x108] sm:$0xff]
        %v180 = vld [vmem:[%s137 + $0x110] sm:$0xff]
        %v181 = vld [vmem:[%s137 + $0x118] sm:$0xff]
        %v182 = vld [vmem:[%s137 + $0x120] sm:$0xff]
        %v183 = vld [vmem:[%s137 + $0x128] sm:$0xff]
        %v184 = vld [vmem:[%s137 + $0x130] sm:$0xff]
        %v185 = vld [vmem:[%s137 + $0x138] sm:$0xff]
        %v186 = vld [vmem:[%s137 + $0x140] sm:$0xff]
        %v187 = vld [vmem:[%s137 + $0x148] sm:$0xff]
        %v188 = vld [vmem:[%s137 + $0x150] sm:$0xff]
        %v189 = vld [vmem:[%s137 + $0x158] sm:$0xff]
        %v190 = vld [vmem:[%s137 + $0x160] sm:$0xff]
        %v191 = vld [vmem:[%s137 + $0x168] sm:$0xff]
        %v192 = vld [vmem:[%s137 + $0x170] sm:$0xff]
        %v193 = vld [vmem:[%s137 + $0x178] sm:$0xff]
        %v194 = vld [vmem:[%s137 + $0x180] sm:$0xff]
        %v195 = vld [vmem:[%s137 + $0x188] sm:$0xff]
        %v196 = vld [vmem:[%s137 + $0x190] sm:$0xff]
        %v197 = vld [vmem:[%s137 + $0x198] sm:$0xff]
        %v198 = vld [vmem:[%s137 + $0x1a0] sm:$0xff]
        %v199 = vld [vmem:[%s137 + $0x1a8] sm:$0xff]
        %v200 = vld [vmem:[%s137 + $0x1b0] sm:$0xff]
        %v201 = vld [vmem:[%s137 + $0x1b8] sm:$0xff]
        %v202 = vld [vmem:[%s137 + $0x1c0] sm:$0xff]
        %v203 = vld [vmem:[%s137 + $0x1c8] sm:$0xff]
        %v204 = vld [vmem:[%s137 + $0x1d0] sm:$0xff]
        %v205 = vld [vmem:[%s137 + $0x1d8] sm:$0xff]
        %v206 = vld [vmem:[%s137 + $0x1e0] sm:$0xff]
        %v207 = vld [vmem:[%s137 + $0x1e8] sm:$0xff]
        %v208 = vld [vmem:[%s137 + $0x1f0] sm:$0xff]
        %v209 = vld [vmem:[%s137 + $0x1f8] sm:$0xff]
        %210 = vmatprep.subr.mxu0 %v147
        %211 = vmatpush1.msra.mxu0 %v146
        %212 = vmatprep.subr.mxu0 %v149
        %213 = vmatpush1.msra.mxu0 %v148
        %214 = vmatprep.subr.mxu0 %v151
        %215 = vmatpush1.msra.mxu0 %v150
        %216 = vmatprep.subr.mxu0 %v153
        %217 = vmatpush1.msra.mxu0 %v152
        %218 = vmatprep.subr.mxu0 %v155
        %219 = vmatpush1.msra.mxu0 %v154
        %220 = vmatprep.subr.mxu0 %v157
        %221 = vmatpush1.msra.mxu0 %v156
        %222 = vmatprep.subr.mxu0 %v159
        %223 = vmatpush1.msra.mxu0 %v158
        %224 = vmatprep.subr.mxu0 %v161
        %225 = vmatpush1.msra.mxu0 %v160
        %226 = vmatprep.subr.mxu0 %v163
        %227 = vmatpush1.msra.mxu0 %v162
        %228 = vmatprep.subr.mxu0 %v165
        %229 = vmatpush1.msra.mxu0 %v164
        %230 = vmatprep.subr.mxu0 %v167
        %231 = vmatpush1.msra.mxu0 %v166
        %232 = vmatprep.subr.mxu0 %v169
        %233 = vmatpush1.msra.mxu0 %v168
        %234 = vmatprep.subr.mxu0 %v171
        %235 = vmatpush1.msra.mxu0 %v170
        %236 = vmatprep.subr.mxu0 %v173
        %237 = vmatpush1.msra.mxu0 %v172
        %238 = vmatprep.subr.mxu0 %v175
        %239 = vmatpush1.msra.mxu0 %v174
        %240 = vmatprep.subr.mxu0 %v177
        %241 = vmatpush1.msra.mxu0 %v176
        %242 = vmatprep.subr.mxu0 %v179
        %243 = vmatpush1.msra.mxu0 %v178
        %244 = vmatprep.subr.mxu0 %v181
        %245 = vmatpush1.msra.mxu0 %v180
        %246 = vmatprep.subr.mxu0 %v183
        %247 = vmatpush1.msra.mxu0 %v182
        %248 = vmatprep.subr.mxu0 %v185
        %249 = vmatpush1.msra.mxu0 %v184
        %250 = vmatprep.subr.mxu0 %v187
        %251 = vmatpush1.msra.mxu0 %v186
        %252 = vmatprep.subr.mxu0 %v189
        %253 = vmatpush1.msra.mxu0 %v188
        %254 = vmatprep.subr.mxu0 %v191
        %255 = vmatpush1.msra.mxu0 %v190
        %256 = vmatprep.subr.mxu0 %v193
        %257 = vmatpush1.msra.mxu0 %v192
        %258 = vmatprep.subr.mxu0 %v195
        %259 = vmatpush1.msra.mxu0 %v194
        %260 = vmatprep.subr.mxu0 %v197
        %261 = vmatpush1.msra.mxu0 %v196
        %262 = vmatprep.subr.mxu0 %v199
        %263 = vmatpush1.msra.mxu0 %v198
        %264 = vmatprep.subr.mxu0 %v201
        %265 = vmatpush1.msra.mxu0 %v200
        %266 = vmatprep.subr.mxu0 %v203
        %267 = vmatpush1.msra.mxu0 %v202
        %268 = vmatprep.subr.mxu0 %v205
        %269 = vmatpush1.msra.mxu0 %v204
        %270 = vmatprep.subr.mxu0 %v207
        %271 = vmatpush1.msra.mxu0 %v206
        %272 = vmatprep.subr.mxu0 %v209
        %273 = vmatpush1.msra.mxu0 %v208
        %274 = vmatprep.mubr.f32.mxu0 %v139
        %275 = vmatmul.mubr.f32.gmra.mrb[0].mxu0 %v138
        %v276 = vpop.f32.mrb[0].mxu0
        %v277 = vadd.f32 0.0, %v276
        %v278 = vpop.f32.mrb[0].mxu0
        %v279 = vadd.f32 0.0, %v278
        %280 = vmatprep.mubr.f32.mxu0 %v141
        %281 = vmatmul.mubr.f32.gmra.mrb[0].mxu0 %v140
        %v282 = vpop.f32.mrb[0].mxu0
        %v283 = vadd.f32 0.0, %v282
        %v284 = vpop.f32.mrb[0].mxu0
        %v285 = vadd.f32 0.0, %v284
        %286 = vmatprep.mubr.f32.mxu0 %v143
        %287 = vmatmul.mubr.f32.gmra.mrb[0].mxu0 %v142
        %v288 = vpop.f32.mrb[0].mxu0
        %v289 = vadd.f32 0.0, %v288
        %v290 = vpop.f32.mrb[0].mxu0
        %v291 = vadd.f32 0.0, %v290
        %292 = vmatprep.mubr.f32.mxu0 %v145
        %293 = vmatmul.mubr.f32.gmra.mrb[0].mxu0 %v144
        %v294 = vpop.f32.mrb[0].mxu0
        %v295 = vadd.f32 0.0, %v294
        %v296 = vpop.f32.mrb[0].mxu0
        %v297 = vadd.f32 0.0, %v296
        %298 = vdwg.mxu0
        %v299 = vmax.f32 %v277, 0.0
        %v300 = vmax.f32 %v279, 0.0
        %v301 = vmax.f32 %v283, 0.0
        %v302 = vmax.f32 %v285, 0.0
        %v303 = vmax.f32 %v289, 0.0
        %v304 = vmax.f32 %v291, 0.0
        %v305 = vmax.f32 %v295, 0.0
        %v306 = vmax.f32 %v297, 0.0
        %v309 = vcombine.low %v299, %v300
        %311 = vst [vmem:[%s132] sm:$0xff] %v309
        %v312 = vcombine.high %v299, %v300
        %s314 = scalar_lea.vmem %s132, 8 [#allocation2]
        %315 = vst [vmem:[%s314] sm:$0xff] %v312
        %v318 = vcombine.low %v301, %v302
        %s320 = scalar_lea.vmem %s132, 16 [#allocation2]
        %321 = vst [vmem:[%s320] sm:$0xff] %v318
        %v322 = vcombine.high %v301, %v302
        %s324 = scalar_lea.vmem %s132, 24 [#allocation2]
        %325 = vst [vmem:[%s324] sm:$0xff] %v322
        %v328 = vcombine.low %v303, %v304
        %s330 = scalar_lea.vmem %s132, 32 [#allocation2]
        %331 = vst [vmem:[%s330] sm:$0xff] %v328
        %v332 = vcombine.high %v303, %v304
        %s334 = scalar_lea.vmem %s132, 40 [#allocation2]
        %335 = vst [vmem:[%s334] sm:$0xff] %v332
        %v338 = vcombine.low %v305, %v306
        %s340 = scalar_lea.vmem %s132, 48 [#allocation2]
        %341 = vst [vmem:[%s340] sm:$0xff] %v338
        %v342 = vcombine.high %v305, %v306
        %s344 = scalar_lea.vmem %s132, 56 [#allocation2]
        %345 = vst [vmem:[%s344] sm:$0xff] %v342
        %s346 = sand.u32 %s68, 1
        %s347 = sand.u32 %s68, 1
        %s348 = smul.addr %s347, 64
        %s349 = scalar_lea.vmem [#allocation2], %s348
        // Predicated region
        $region29: #{vgg_decode_forward.6} parent=27 // pred_check
          %p350 = pneg %p78
        $region30: #{vgg_decode_forward.6} parent=27 // pred_check_branch
          %352 = sbr.rel (%p350) target = $region32
        $region31: #{vgg_decode_forward.6} parent=27 // pred_region
          %s353 = smul.addr %s13, 2
          %s354 = smul.addr %s353, 4
          %s355 = scalar_lea.vmem %s2, %s354
          // Predicated region
          $region33: #{vgg_decode_forward.6} parent=31 // pred_check
            _
          $region34: #{vgg_decode_forward.6} parent=31 // pred_check_branch
            %357 = sbr.rel (0) target = $region36
          $region35: #{vgg_decode_forward.6} parent=31 // pred_region
            // Predicated region
            $region37: #{vgg_decode_forward.6} parent=35 // pred_check
              _
            $region38: #{vgg_decode_forward.6} parent=35 // pred_check_branch
              %359 = sbr.rel (0) target = $region40
            $region39: #{vgg_decode_forward.6} parent=35 // pred_region
              // Predicated region
              $region52: #{vgg_decode_forward.6} parent=39 // pred_check
                _
              $region53: #{vgg_decode_forward.6} parent=39 // pred_check_branch
                %388 = sbr.rel (0) target = $region55
              $region54: #{vgg_decode_forward.6} parent=39 // pred_region
                loop: start=0, step=1, limit=1
                $region56: #{vgg_decode_forward.6} parent=54 // loop_pre_header
                  _
                $region57: #{vgg_decode_forward.6} parent=54 // loop_header
                  %s390 = sphi 0, %s394
                  %p391 = scmp.ge.s32.totalorder %s390, 1
                  %s395 = sphi %s349, %s349
                  %s396 = sphi %s355, %s355
                $region58: #{vgg_decode_forward.6} parent=54 // loop_header_branch
                  %393 = sbr.rel (%p391) target = $region62
                $region59: #{vgg_decode_forward.6} parent=54 // loop_body
                  %v397 = vld [vmem:[%s395] sm:$0xff]
                  %398 = vst [vmem:[%s396] sm:$0xff] %v397
                  %v399 = vld [vmem:[%s395 + $0x8] sm:$0xff]
                  %400 = vst [vmem:[%s396 + $0x10] sm:$0xff] %v399
                  %v401 = vld [vmem:[%s395 + $0x10] sm:$0xff]
                  %402 = vst [vmem:[%s396 + $0x20] sm:$0xff] %v401
                  %v403 = vld [vmem:[%s395 + $0x18] sm:$0xff]
                  %404 = vst [vmem:[%s396 + $0x30] sm:$0xff] %v403
                  %v405 = vld [vmem:[%s395 + $0x20] sm:$0xff]
                  %406 = vst [vmem:[%s396 + $0x40] sm:$0xff] %v405
                  %v407 = vld [vmem:[%s395 + $0x28] sm:$0xff]
                  %408 = vst [vmem:[%s396 + $0x50] sm:$0xff] %v407
                  %v409 = vld [vmem:[%s395 + $0x30] sm:$0xff]
                  %410 = vst [vmem:[%s396 + $0x60] sm:$0xff] %v409
                  %v411 = vld [vmem:[%s395 + $0x38] sm:$0xff]
                  %412 = vst [vmem:[%s396 + $0x70] sm:$0xff] %v411
                $region60: #{vgg_decode_forward.6} parent=54 // loop_footer
                  %s394 = sadd.s32 1, %s390
                $region61: #{vgg_decode_forward.6} parent=54 // loop_footer_branch
                  %389 = sbr.rel target = $region57
                $region62: #{vgg_decode_forward.6} parent=54 // loop_exit
                  _
              $region55: #{vgg_decode_forward.6} parent=39 // pred_fallthru
                _
              // Predicated region
              $region63: #{vgg_decode_forward.6} parent=39 // pred_check
                _
              $region64: #{vgg_decode_forward.6} parent=39 // pred_check_branch
                %414 = sbr.rel target = $region66
              $region65: #{vgg_decode_forward.6} parent=39 // pred_region
                _
              $region66: #{vgg_decode_forward.6} parent=39 // pred_fallthru
                _
            $region40: #{vgg_decode_forward.6} parent=35 // pred_fallthru
              _
            // Predicated region
            $region41: #{vgg_decode_forward.6} parent=35 // pred_check
              _
            $region42: #{vgg_decode_forward.6} parent=35 // pred_check_branch
              %361 = sbr.rel target = $region44
            $region43: #{vgg_decode_forward.6} parent=35 // pred_region
              loop: start=0, step=1, limit=1
              $region45: #{vgg_decode_forward.6} parent=43 // loop_pre_header
                _
              $region46: #{vgg_decode_forward.6} parent=43 // loop_header
                %s364 = sphi 0, %s368
                %p365 = scmp.ge.s32.totalorder %s364, 1
                %s369 = sphi %s349, %s349
                %s370 = sphi %s355, %s355
              $region47: #{vgg_decode_forward.6} parent=43 // loop_header_branch
                %367 = sbr.rel (%p365) target = $region51
              $region48: #{vgg_decode_forward.6} parent=43 // loop_body
                %v371 = vld [vmem:[%s369] sm:$0xff]
                %372 = vst [vmem:[%s370] sm:$0xff] %v371
                %v373 = vld [vmem:[%s369 + $0x8] sm:$0xff]
                %374 = vst [vmem:[%s370 + $0x10] sm:$0xff] %v373
                %v375 = vld [vmem:[%s369 + $0x10] sm:$0xff]
                %376 = vst [vmem:[%s370 + $0x20] sm:$0xff] %v375
                %v377 = vld [vmem:[%s369 + $0x18] sm:$0xff]
                %378 = vst [vmem:[%s370 + $0x30] sm:$0xff] %v377
                %v379 = vld [vmem:[%s369 + $0x20] sm:$0xff]
                %380 = vst [vmem:[%s370 + $0x40] sm:$0xff] %v379
                %v381 = vld [vmem:[%s369 + $0x28] sm:$0xff]
                %382 = vst [vmem:[%s370 + $0x50] sm:$0xff] %v381
                %v383 = vld [vmem:[%s369 + $0x30] sm:$0xff]
                %384 = vst [vmem:[%s370 + $0x60] sm:$0xff] %v383
                %v385 = vld [vmem:[%s369 + $0x38] sm:$0xff]
                %386 = vst [vmem:[%s370 + $0x70] sm:$0xff] %v385
              $region49: #{vgg_decode_forward.6} parent=43 // loop_footer
                %s368 = sadd.s32 1, %s364
              $region50: #{vgg_decode_forward.6} parent=43 // loop_footer_branch
                %363 = sbr.rel target = $region46
              $region51: #{vgg_decode_forward.6} parent=43 // loop_exit
                _
            $region44: #{vgg_decode_forward.6} parent=35 // pred_fallthru
              _
          $region36: #{vgg_decode_forward.6} parent=31 // pred_fallthru
            _
          %415 = vnop
        $region32: #{vgg_decode_forward.6} parent=27 // pred_fallthru
          _
      $region28: #{vgg_decode_forward.6} parent=5 // pred_fallthru
        _
      %p416 = scmp.le.s32.totalorder 2, %s8
      // Predicated region
      $region67: #{vgg_decode_forward.6} parent=5 // pred_check
        %p417 = pneg %p416
      $region68: #{vgg_decode_forward.6} parent=5 // pred_check_branch
        %419 = sbr.rel (%p417) target = $region70
      $region69: #{vgg_decode_forward.6} parent=5 // pred_region
        %s420 = ssub.s32 %s8, 2
        // Predicated region
        $region71: #{vgg_decode_forward.6} parent=69 // pred_check
          %p421 = pneg %p84
        $region72: #{vgg_decode_forward.6} parent=69 // pred_check_branch
          %423 = sbr.rel (%p421) target = $region74
        $region73: #{vgg_decode_forward.6} parent=69 // pred_region
          %s424 = sand.u32 %s69, 1
          %s425 = sand.u32 %s69, 1
          %s426 = smul.addr %s425, 64
          %s427 = scalar_lea.vmem [#allocation2], %s426
        $region74: #{vgg_decode_forward.6} parent=69 // pred_fallthru
          _
      $region70: #{vgg_decode_forward.6} parent=5 // pred_fallthru
        _
    $region6: #{vgg_decode_forward.6} parent=1 // loop_footer
      %s12 = sadd.s32 1, %s8
    $region7: #{vgg_decode_forward.6} parent=1 // loop_footer_branch
      %7 = sbr.rel target = $region3
    $region8: #{vgg_decode_forward.6} parent=1 // loop_exit
      _

// kernel: vgg_decode_forward.7
$region0: #{vgg_decode_forward.7}
  #allocation0 [shape = 'u32[]', space=smem, size = 0x4, offset = 0x4, fixed_abs, tag = 'smem constant byte address 0x4 - core index']
  #allocation1 [shape = 'u32[144,128]{1,0:T(1,128)}', space=vmem, size = 0x12000, scoped, tag = 'internal scratch']
  %s0 = inlined_call_operand.vmem [shape: f32[128,128], index: 0, kind: input, shape index: {}]
  %s1 = inlined_call_operand.vmem [shape: f32[2,128,128], index: 1, kind: input, shape index: {}]
  %s2 = inlined_call_operand.vmem [shape: f32[16,2,8,128], index: 2, kind: output, shape index: {}]
  %s3 = sld [smem:[#allocation0]]
  $region75: #{vgg_decode_forward.7} parent=0
    _
  %s5 = ssub.s32 1, %s3
  %s6 = scalar_select 0, %s5, %s3
  $region1: #{vgg_decode_forward.7} parent=0
    #allocation2 [shape = 'u8[131072]{0}', space=vmem, size = 0x20000, scoped, tag = 'output window, operand 0']
    loop: start=0, step=1, limit=4
    $region2: #{vgg_decode_forward.7} parent=1 // loop_pre_header
      _
    $region3: #{vgg_decode_forward.7} parent=1 // loop_header
      %s8 = sphi 0, %s12
      %p9 = scmp.ge.s32.totalorder %s8, 4
      %s16 = sphi 0, %s16
      %s18 = sphi 0, %s16
      %s19 = sphi 0, %s18
      %s33 = sphi 0, %s19
      %s39 = sphi 0, %s41
      %s42 = sphi 0, %s39
      %s43 = sphi 0, %s42
      %s59 = sphi 0, %s43
      %s65 = sphi 0, %s67
      %s68 = sphi 0, %s65
      %s69 = sphi 0, %s68
      %s85 = sphi 0, %s69
    $region4: #{vgg_decode_forward.7} parent=1 // loop_header_branch
      %11 = sbr.rel (%p9) target = $region8
    $region5: #{vgg_decode_forward.7} parent=1 // loop_body
      %s13 = ssub.s32 %s8, 1
      %s14 = ssub.s32 %s8, 2
      %s15 = sadd.s32 %s8, 1
      %s17 = sadd.s32 %s16, 1
      %p20 = scmp.eq.s32.totalorder %s8, 1
      %p21 = scmp.ne.s32.totalorder %s16, %s18
      %p22 = scmp.eq.s32.totalorder %s8, 0
      %p23 = por %p21, %p22
      %p24 = scmp.ne.s32.totalorder %s16, %s18
      %p25 = scmp.eq.s32.totalorder %s13, 1
      %p26 = por %p24, %p25
      %p27 = scmp.ne.s32.totalorder %s18, %s19
      %p28 = scmp.eq.s32.totalorder %s13, 0
      %p29 = por %p27, %p28
      %p30 = scmp.ne.s32.totalorder %s18, %s19
      %p31 = scmp.eq.s32.totalorder %s14, 1
      %p32 = por %p30, %p31
      %p34 = scmp.ne.s32.totalorder %s19, %s33
      %p35 = scmp.eq.s32.totalorder %s14, 0
      %p36 = por %p34, %p35
      %s37 = ssub.s32 %s8, %s15
      %p38 = scmp.eq.s32.totalorder %s37, 0
      %s40 = sadd.s32 %s39, 1
      %s41 = scalar_select %p38, %s39, %s40
      %p44 = pneg %p38
      %p45 = scmp.eq.s32.totalorder %s8, 1
      %p46 = por %p44, %p45
      %p47 = scmp.ne.s32.totalorder %s39, %s42
      %p48 = scmp.eq.s32.totalorder %s8, 0
      %p49 = por %p47, %p48
      %p50 = scmp.ne.s32.totalorder %s39, %s42
      %p51 = scmp.eq.s32.totalorder %s13, 1
      %p52 = por %p50, %p51
      %p53 = scmp.ne.s32.totalorder %s42, %s43
      %p54 = scmp.eq.s32.totalorder %s13, 0
      %p55 = por %p53, %p54
      %p56 = scmp.ne.s32.totalorder %s42, %s43
      %p57 = scmp.eq.s32.totalorder %s14, 1
      %p58 = por %p56, %p57
      %p60 = scmp.ne.s32.totalorder %s43, %s59
      %p61 = scmp.eq.s32.totalorder %s14, 0
      %p62 = por %p60, %p61
      %s63 = ssub.s32 %s8, %s15
      %p64 = scmp.eq.s32.totalorder %s63, 0
      %s66 = sadd.s32 %s65, 1
      %s67 = scalar_select %p64, %s65, %s66
      %p70 = pneg %p64
      %p71 = scmp.eq.s32.totalorder %s8, 1
      %p72 = por %p70, %p71
      %p73 = scmp.ne.s32.totalorder %s65, %s68
      %p74 = scmp.eq.s32.totalorder %s8, 0
      %p75 = por %p73, %p74
      %p76 = scmp.ne.s32.totalorder %s65, %s68
      %p77 = scmp.eq.s32.totalorder %s13, 1
      %p78 = por %p76, %p77
      %p79 = scmp.ne.s32.totalorder %s68, %s69
      %p80 = scmp.eq.s32.totalorder %s13, 0
      %p81 = por %p79, %p80
      %p82 = scmp.ne.s32.totalorder %s68, %s69
      %p83 = scmp.eq.s32.totalorder %s14, 1
      %p84 = por %p82, %p83
      %p86 = scmp.ne.s32.totalorder %s69, %s85
      %p87 = scmp.eq.s32.totalorder %s14, 0
      %p88 = por %p86, %p87
      %p89 = scmp.le.s32.totalorder 1, %s8
      %p90 = scmp.lt.s32.totalorder %s8, 3
      %p91 = pnand %p89, %p90
      %p92 = pneg %p91
      // Predicated region
      $region9: #{vgg_decode_forward.7} parent=5 // pred_check
        _
      $region10: #{vgg_decode_forward.7} parent=5 // pred_check_branch
        %94 = sbr.rel (%p91) target = $region12
      $region11: #{vgg_decode_forward.7} parent=5 // pred_region
        %s95 = ssub.s32 %s8, 1
        // Predicated region
        $region13: #{vgg_decode_forward.7} parent=11 // pred_check
          %p96 = pneg %p29
        $region14: #{vgg_decode_forward.7} parent=11 // pred_check_branch
          %98 = sbr.rel (%p96) target = $region16
        $region15: #{vgg_decode_forward.7} parent=11 // pred_region
          _
        $region16: #{vgg_decode_forward.7} parent=11 // pred_fallthru
          _
      $region12: #{vgg_decode_forward.7} parent=5 // pred_fallthru
        _
      %p99 = scmp.lt.s32.totalorder %s8, 2
      // Predicated region
      $region17: #{vgg_decode_forward.7} parent=5 // pred_check
        %p100 = pneg %p99
      $region18: #{vgg_decode_forward.7} parent=5 // pred_check_branch
        %102 = sbr.rel (%p100) target = $region20
      $region19: #{vgg_decode_forward.7} parent=5 // pred_region
        // Predicated region
        $region21: #{vgg_decode_forward.7} parent=19 // pred_check
          %p103 = pneg %p49
        $region22: #{vgg_decode_forward.7} parent=19 // pred_check_branch
          %105 = sbr.rel (%p103) target = $region24
        $region23: #{vgg_decode_forward.7} parent=19 // pred_region
          %p106 = scmp.lt.s32.totalorder %s8, 1
          %s107 = scalar_select %p106, %s8, 1
          %s108 = smul.addr %s107, 16
          %s109 = smul.addr %s108, 8
          %s110 = scalar_lea.vmem %s1, %s109
        $region24: #{vgg_decode_forward.7} parent=19 // pred_fallthru
          _
      $region20: #{vgg_decode_forward.7} parent=5 // pred_fallthru
        _
      %p111 = scmp.le.s32.totalorder 1, %s8
      %p112 = scmp.lt.s32.totalorder %s8, 3
      %p113 = pnand %p111, %p112
      %p114 = pneg %p113
      // Predicated region
      $region25: #{vgg_decode_forward.7} parent=5 // pred_check
        _
      $region26: #{vgg_decode_forward.7} parent=5 // pred_check_branch
        %116 = sbr.rel (%p113) target = $region28
      $region27: #{vgg_decode_forward.7} parent=5 // pred_region
        %s117 = ssub.s32 %s8, 1
        %p118 = pneg %p29
        %p119 = pneg %p26
        %p120 = scmp.lt.s32.totalorder %s13, 1
        %s121 = scalar_select %p120, %s13, 1
        %s122 = smul.addr %s121, 16
        %s123 = smul.addr %s122, 8
        %s124 = scalar_lea.vmem %s1, %s123
        %p125 = pneg %p55
        %p126 = pneg %p52
        %p127 = pneg %p81
        %p128 = pneg %p78
        %s129 = sand.u32 %s68, 1
        %s130 = sand.u32 %s68, 1
        %s131 = smul.addr %s130, 128
        %s132 = scalar_lea.vmem [#allocation2], %s131
        %p133 = scmp.lt.s32.totalorder %s13, 1
        %s134 = scalar_select %p133, %s13, 1
        %s135 = smul.addr %s134, 16
        %s136 = smul.addr %s135, 8
        %s137 = scalar_lea.vmem %s1, %s136
        %v138 = vld [vmem:[%s0] sm:$0xff]
        %v139 = vld [vmem:[%s0 + $0x8] sm:$0xff]
        %v140 = vld [vmem:[%s0 + $0x10] sm:$0xff]
        %v141 = vld [vmem:[%s0 + $0x18] sm:$0xff]
        %v142 = vld [vmem:[%s0 + $0x20] sm:$0xff]
        %v143 = vld [vmem:[%s0 + $0x28] sm:$0xff]
        %v144 = vld [vmem:[%s0 + $0x30] sm:$0xff]
        %v145 = vld [vmem:[%s0 + $0x38] sm:$0xff]
        %v146 = vld [vmem:[%s0 + $0x40] sm:$0xff]
        %v147 = vld [vmem:[%s0 + $0x48] sm:$0xff]
        %v148 = vld [vmem:[%s0 + $0x50] sm:$0xff]
        %v149 = vld [vmem:[%s0 + $0x58] sm:$0xff]
        %v150 = vld [vmem:[%s0 + $0x60] sm:$0xff]
        %v151 = vld [vmem:[%s0 + $0x68] sm:$0xff]
        %v152 = vld [vmem:[%s0 + $0x70] sm:$0xff]
        %v153 = vld [vmem:[%s0 + $0x78] sm:$0xff]
        %v154 = vld [vmem:[%s137] sm:$0xff]
        %v155 = vld [vmem:[%s137 + $0x8] sm:$0xff]
        %v156 = vld [vmem:[%s137 + $0x10] sm:$0xff]
        %v157 = vld [vmem:[%s137 + $0x18] sm:$0xff]
        %v158 = vld [vmem:[%s137 + $0x20] sm:$0xff]
        %v159 = vld [vmem:[%s137 + $0x28] sm:$0xff]
        %v160 = vld [vmem:[%s137 + $0x30] sm:$0xff]
        %v161 = vld [vmem:[%s137 + $0x38] sm:$0xff]
        %v162 = vld [vmem:[%s137 + $0x40] sm:$0xff]
        %v163 = vld [vmem:[%s137 + $0x48] sm:$0xff]
        %v164 = vld [vmem:[%s137 + $0x50] sm:$0xff]
        %v165 = vld [vmem:[%s137 + $0x58] sm:$0xff]
        %v166 = vld [vmem:[%s137 + $0x60] sm:$0xff]
        %v167 = vld [vmem:[%s137 + $0x68] sm:$0xff]
        %v168 = vld [vmem:[%s137 + $0x70] sm:$0xff]
        %v169 = vld [vmem:[%s137 + $0x78] sm:$0xff]
        %170 = vmatprep.subr.mxu0 0.0
        %171 = vmatpush1.msra.mxu0 %v154
        %172 = vmatprep.subr.mxu0 0.0
        %173 = vmatpush1.msra.mxu0 %v155
        %174 = vmatprep.subr.mxu0 0.0
        %175 = vmatpush1.msra.mxu0 %v156
        %176 = vmatprep.subr.mxu0 0.0
        %177 = vmatpush1.msra.mxu0 %v157
        %178 = vmatprep.subr.mxu0 0.0
        %179 = vmatpush1.msra.mxu0 %v158
        %180 = vmatprep.subr.mxu0 0.0
        %181 = vmatpush1.msra.mxu0 %v159
        %182 = vmatprep.subr.mxu0 0.0
        %183 = vmatpush1.msra.mxu0 %v160
        %184 = vmatprep.subr.mxu0 0.0
        %185 = vmatpush1.msra.mxu0 %v161
        %186 = vmatprep.subr.mxu0 0.0
        %187 = vmatpush1.msra.mxu0 %v162
        %188 = vmatprep.subr.mxu0 0.0
        %189 = vmatpush1.msra.mxu0 %v163
        %190 = vmatprep.subr.mxu0 0.0
        %191 = vmatpush1.msra.mxu0 %v164
        %192 = vmatprep.subr.mxu0 0.0
        %193 = vmatpush1.msra.mxu0 %v165
        %194 = vmatprep.subr.mxu0 0.0
        %195 = vmatpush1.msra.mxu0 %v166
        %196 = vmatprep.subr.mxu0 0.0
        %197 = vmatpush1.msra.mxu0 %v167
        %198 = vmatprep.subr.mxu0 0.0
        %199 = vmatpush1.msra.mxu0 %v168
        %200 = vmatprep.subr.mxu0 0.0
        %201 = vmatpush1.msra.mxu0 %v169
        %202 = vmatprep.subr.mxu0 0.0
        %203 = vmatpush1.msra.mxu0 0.0
        %204 = vmatprep.subr.mxu0 0.0
        %205 = vmatpush1.msra.mxu0 0.0
        %206 = vmatprep.subr.mxu0 0.0
        %207 = vmatpush1.msra.mxu0 0.0
        %208 = vmatprep.subr.mxu0 0.0
        %209 = vmatpush1.msra.mxu0 0.0
        %210 = vmatprep.subr.mxu0 0.0
        %211 = vmatpush1.msra.mxu0 0.0
        %212 = vmatprep.subr.mxu0 0.0
        %213 = vmatpush1.msra.mxu0 0.0
        %214 = vmatprep.subr.mxu0 0.0
        %215 = vmatpush1.msra.mxu0 0.0
        %216 = vmatprep.subr.mxu0 0.0
        %217 = vmatpush1.msra.mxu0 0.0
        %218 = vmatprep.subr.mxu0 0.0
        %219 = vmatpush1.msra.mxu0 0.0
        %220 = vmatprep.subr.mxu0 0.0
        %221 = vmatpush1.msra.mxu0 0.0
        %222 = vmatprep.subr.mxu0 0.0
        %223 = vmatpush1.msra.mxu0 0.0
        %224 = vmatprep.subr.mxu0 0.0
        %225 = vmatpush1.msra.mxu0 0.0
        %226 = vmatprep.subr.mxu0 0.0
        %227 = vmatpush1.msra.mxu0 0.0
        %228 = vmatprep.subr.mxu0 0.0
        %229 = vmatpush1.msra.mxu0 0.0
        %230 = vmatprep.subr.mxu0 0.0
        %231 = vmatpush1.msra.mxu0 0.0
        %232 = vmatprep.subr.mxu0 0.0
        %233 = vmatpush1.msra.mxu0 0.0
        %234 = vmatprep.mubr.f32.mxu0 0.0
        %235 = vmatmul.mubr.f32.gmra.mrb[0].mxu0 %v138
        %v236 = vpop.f32.mrb[0].mxu0
        %v237 = vadd.f32 0.0, %v236
        %v238 = vpop.f32.mrb[0].mxu0
        %239 = vmatprep.mubr.f32.mxu0 0.0
        %240 = vmatmul.mubr.f32.gmra.mrb[0].mxu0 %v139
        %v241 = vpop.f32.mrb[0].mxu0
        %v242 = vadd.f32 0.0, %v241
        %v243 = vpop.f32.mrb[0].mxu0
        %244 = vmatprep.mubr.f32.mxu0 0.0
        %245 = vmatmul.mubr.f32.gmra.mrb[0].mxu0 %v140
        %v246 = vpop.f32.mrb[0].mxu0
        %v247 = vadd.f32 0.0, %v246
        %v248 = vpop.f32.mrb[0].mxu0
        %249 = vmatprep.mubr.f32.mxu0 0.0
        %250 = vmatmul.mubr.f32.gmra.mrb[0].mxu0 %v141
        %v251 = vpop.f32.mrb[0].mxu0
        %v252 = vadd.f32 0.0, %v251
        %v253 = vpop.f32.mrb[0].mxu0
        %254 = vmatprep.mubr.f32.mxu0 0.0
        %255 = vmatmul.mubr.f32.gmra.mrb[0].mxu0 %v142
        %v256 = vpop.f32.mrb[0].mxu0
        %v257 = vadd.f32 0.0, %v256
        %v258 = vpop.f32.mrb[0].mxu0
        %259 = vmatprep.mubr.f32.mxu0 0.0
        %260 = vmatmul.mubr.f32.gmra.mrb[0].mxu0 %v143
        %v261 = vpop.f32.mrb[0].mxu0
        %v262 = vadd.f32 0.0, %v261
        %v263 = vpop.f32.mrb[0].mxu0
        %264 = vmatprep.mubr.f32.mxu0 0.0
        %265 = vmatmul.mubr.f32.gmra.mrb[0].mxu0 %v144
        %v266 = vpop.f32.mrb[0].mxu0
        %v267 = vadd.f32 0.0, %v266
        %v268 = vpop.f32.mrb[0].mxu0
        %269 = vmatprep.mubr.f32.mxu0 0.0
        %270 = vmatmul.mubr.f32.gmra.mrb[0].mxu0 %v145
        %v271 = vpop.f32.mrb[0].mxu0
        %v272 = vadd.f32 0.0, %v271
        %v273 = vpop.f32.mrb[0].mxu0
        %274 = vmatprep.mubr.f32.mxu0 0.0
        %275 = vmatmul.mubr.f32.gmra.mrb[0].mxu0 %v146
        %v276 = vpop.f32.mrb[0].mxu0
        %v277 = vadd.f32 0.0, %v276
        %v278 = vpop.f32.mrb[0].mxu0
        %279 = vmatprep.mubr.f32.mxu0 0.0
        %280 = vmatmul.mubr.f32.gmra.mrb[0].mxu0 %v147
        %v281 = vpop.f32.mrb[0].mxu0
        %v282 = vadd.f32 0.0, %v281
        %v283 = vpop.f32.mrb[0].mxu0
        %284 = vmatprep.mubr.f32.mxu0 0.0
        %285 = vmatmul.mubr.f32.gmra.mrb[0].mxu0 %v148
        %v286 = vpop.f32.mrb[0].mxu0
        %v287 = vadd.f32 0.0, %v286
        %v288 = vpop.f32.mrb[0].mxu0
        %289 = vmatprep.mubr.f32.mxu0 0.0
        %290 = vmatmul.mubr.f32.gmra.mrb[0].mxu0 %v149
        %v291 = vpop.f32.mrb[0].mxu0
        %v292 = vadd.f32 0.0, %v291
        %v293 = vpop.f32.mrb[0].mxu0
        %294 = vmatprep.mubr.f32.mxu0 0.0
        %295 = vmatmul.mubr.f32.gmra.mrb[0].mxu0 %v150
        %v296 = vpop.f32.mrb[0].mxu0
        %v297 = vadd.f32 0.0, %v296
        %v298 = vpop.f32.mrb[0].mxu0
        %299 = vmatprep.mubr.f32.mxu0 0.0
        %300 = vmatmul.mubr.f32.gmra.mrb[0].mxu0 %v151
        %v301 = vpop.f32.mrb[0].mxu0
        %v302 = vadd.f32 0.0, %v301
        %v303 = vpop.f32.mrb[0].mxu0
        %304 = vmatprep.mubr.f32.mxu0 0.0
        %305 = vmatmul.mubr.f32.gmra.mrb[0].mxu0 %v152
        %v306 = vpop.f32.mrb[0].mxu0
        %v307 = vadd.f32 0.0, %v306
        %v308 = vpop.f32.mrb[0].mxu0
        %309 = vmatprep.mubr.f32.mxu0 0.0
        %310 = vmatmul.mubr.f32.gmra.mrb[0].mxu0 %v153
        %v311 = vpop.f32.mrb[0].mxu0
        %v312 = vadd.f32 0.0, %v311
        %v313 = vpop.f32.mrb[0].mxu0
        %314 = vdwg.mxu0
        %v315 = vmax.f32 %v237, 0.0
        %v316 = vmax.f32 %v242, 0.0
        %v317 = vmax.f32 %v247, 0.0
        %v318 = vmax.f32 %v252, 0.0
        %v319 = vmax.f32 %v257, 0.0
        %v320 = vmax.f32 %v262, 0.0
        %v321 = vmax.f32 %v267, 0.0
        %v322 = vmax.f32 %v272, 0.0
        %v323 = vmax.f32 %v277, 0.0
        %v324 = vmax.f32 %v282, 0.0
        %v325 = vmax.f32 %v287, 0.0
        %v326 = vmax.f32 %v292, 0.0
        %v327 = vmax.f32 %v297, 0.0
        %v328 = vmax.f32 %v302, 0.0
        %v329 = vmax.f32 %v307, 0.0
        %v330 = vmax.f32 %v312, 0.0
        %331 = vst [vmem:[%s132] sm:$0xff] %v315
        %332 = vst [vmem:[%s132 + $0x8] sm:$0xff] %v316
        %333 = vst [vmem:[%s132 + $0x10] sm:$0xff] %v317
        %334 = vst [vmem:[%s132 + $0x18] sm:$0xff] %v318
        %335 = vst [vmem:[%s132 + $0x20] sm:$0xff] %v319
        %336 = vst [vmem:[%s132 + $0x28] sm:$0xff] %v320
        %337 = vst [vmem:[%s132 + $0x30] sm:$0xff] %v321
        %338 = vst [vmem:[%s132 + $0x38] sm:$0xff] %v322
        %339 = vst [vmem:[%s132 + $0x40] sm:$0xff] %v323
        %340 = vst [vmem:[%s132 + $0x48] sm:$0xff] %v324
        %341 = vst [vmem:[%s132 + $0x50] sm:$0xff] %v325
        %342 = vst [vmem:[%s132 + $0x58] sm:$0xff] %v326
        %343 = vst [vmem:[%s132 + $0x60] sm:$0xff] %v327
        %344 = vst [vmem:[%s132 + $0x68] sm:$0xff] %v328
        %345 = vst [vmem:[%s132 + $0x70] sm:$0xff] %v329
        %346 = vst [vmem:[%s132 + $0x78] sm:$0xff] %v330
        %s347 = sand.u32 %s68, 1
        %s348 = sand.u32 %s68, 1
        %s349 = smul.addr %s348, 128
        %s350 = scalar_lea.vmem [#allocation2], %s349
        // Predicated region
        $region29: #{vgg_decode_forward.7} parent=27 // pred_check
          %p351 = pneg %p78
        $region30: #{vgg_decode_forward.7} parent=27 // pred_check_branch
          %353 = sbr.rel (%p351) target = $region32
        $region31: #{vgg_decode_forward.7} parent=27 // pred_region
          %s354 = smul.addr %s13, 8
          %s355 = scalar_lea.vmem %s2, %s354
          // Predicated region
          $region33: #{vgg_decode_forward.7} parent=31 // pred_check
            _
          $region34: #{vgg_decode_forward.7} parent=31 // pred_check_branch
            %357 = sbr.rel (0) target = $region36
          $region35: #{vgg_decode_forward.7} parent=31 // pred_region
            // Predicated region
            $region37: #{vgg_decode_forward.7} parent=35 // pred_check
              _
            $region38: #{vgg_decode_forward.7} parent=35 // pred_check_branch
              %359 = sbr.rel (0) target = $region40
            $region39: #{vgg_decode_forward.7} parent=35 // pred_region
              // Predicated region
              $region52: #{vgg_decode_forward.7} parent=39 // pred_check
                _
              $region53: #{vgg_decode_forward.7} parent=39 // pred_check_branch
                %404 = sbr.rel (0) target = $region55
              $region54: #{vgg_decode_forward.7} parent=39 // pred_region
                loop: start=0, step=1, limit=1
                $region56: #{vgg_decode_forward.7} parent=54 // loop_pre_header
                  _
                $region57: #{vgg_decode_forward.7} parent=54 // loop_header
                  %s406 = sphi 0, %s410
                  %p407 = scmp.ge.s32.totalorder %s406, 1
                  %s411 = sphi %s350, %s350
                  %s412 = sphi %s355, %s355
                $region58: #{vgg_decode_forward.7} parent=54 // loop_header_branch
                  %409 = sbr.rel (%p407) target = $region62
                $region59: #{vgg_decode_forward.7} parent=54 // loop_body
                  %v413 = vld [vmem:[%s411] sm:$0xff]
                  %414 = vst [vmem:[%s412] sm:$0xff] %v413
                  %v415 = vld [vmem:[%s411 + $0x8] sm:$0xff]
                  %416 = vst [vmem:[%s412 + $0x10] sm:$0xff] %v415
                  %v417 = vld [vmem:[%s411 + $0x10] sm:$0xff]
                  %418 = vst [vmem:[%s412 + $0x20] sm:$0xff] %v417
                  %v419 = vld [vmem:[%s411 + $0x18] sm:$0xff]
                  %420 = vst [vmem:[%s412 + $0x30] sm:$0xff] %v419
                  %v421 = vld [vmem:[%s411 + $0x20] sm:$0xff]
                  %422 = vst [vmem:[%s412 + $0x40] sm:$0xff] %v421
                  %v423 = vld [vmem:[%s411 + $0x28] sm:$0xff]
                  %424 = vst [vmem:[%s412 + $0x50] sm:$0xff] %v423
                  %v425 = vld [vmem:[%s411 + $0x30] sm:$0xff]
                  %426 = vst [vmem:[%s412 + $0x60] sm:$0xff] %v425
                  %v427 = vld [vmem:[%s411 + $0x38] sm:$0xff]
                  %428 = vst [vmem:[%s412 + $0x70] sm:$0xff] %v427
                  %v429 = vld [vmem:[%s411 + $0x40] sm:$0xff]
                  %430 = vst [vmem:[%s412 + $0x80] sm:$0xff] %v429
                  %v431 = vld [vmem:[%s411 + $0x48] sm:$0xff]
                  %432 = vst [vmem:[%s412 + $0x90] sm:$0xff] %v431
                  %v433 = vld [vmem:[%s411 + $0x50] sm:$0xff]
                  %434 = vst [vmem:[%s412 + $0xa0] sm:$0xff] %v433
                  %v435 = vld [vmem:[%s411 + $0x58] sm:$0xff]
                  %436 = vst [vmem:[%s412 + $0xb0] sm:$0xff] %v435
                  %v437 = vld [vmem:[%s411 + $0x60] sm:$0xff]
                  %438 = vst [vmem:[%s412 + $0xc0] sm:$0xff] %v437
                  %v439 = vld [vmem:[%s411 + $0x68] sm:$0xff]
                  %440 = vst [vmem:[%s412 + $0xd0] sm:$0xff] %v439
                  %v441 = vld [vmem:[%s411 + $0x70] sm:$0xff]
                  %442 = vst [vmem:[%s412 + $0xe0] sm:$0xff] %v441
                  %v443 = vld [vmem:[%s411 + $0x78] sm:$0xff]
                  %444 = vst [vmem:[%s412 + $0xf0] sm:$0xff] %v443
                $region60: #{vgg_decode_forward.7} parent=54 // loop_footer
                  %s410 = sadd.s32 1, %s406
                $region61: #{vgg_decode_forward.7} parent=54 // loop_footer_branch
                  %405 = sbr.rel target = $region57
                $region62: #{vgg_decode_forward.7} parent=54 // loop_exit
                  _
              $region55: #{vgg_decode_forward.7} parent=39 // pred_fallthru
                _
              // Predicated region
              $region63: #{vgg_decode_forward.7} parent=39 // pred_check
                _
              $region64: #{vgg_decode_forward.7} parent=39 // pred_check_branch
                %446 = sbr.rel target = $region66
              $region65: #{vgg_decode_forward.7} parent=39 // pred_region
                _
              $region66: #{vgg_decode_forward.7} parent=39 // pred_fallthru
                _
            $region40: #{vgg_decode_forward.7} parent=35 // pred_fallthru
              _
            // Predicated region
            $region41: #{vgg_decode_forward.7} parent=35 // pred_check
              _
            $region42: #{vgg_decode_forward.7} parent=35 // pred_check_branch
              %361 = sbr.rel target = $region44
            $region43: #{vgg_decode_forward.7} parent=35 // pred_region
              loop: start=0, step=1, limit=1
              $region45: #{vgg_decode_forward.7} parent=43 // loop_pre_header
                _
              $region46: #{vgg_decode_forward.7} parent=43 // loop_header
                %s364 = sphi 0, %s368
                %p365 = scmp.ge.s32.totalorder %s364, 1
                %s369 = sphi %s350, %s350
                %s370 = sphi %s355, %s355
              $region47: #{vgg_decode_forward.7} parent=43 // loop_header_branch
                %367 = sbr.rel (%p365) target = $region51
              $region48: #{vgg_decode_forward.7} parent=43 // loop_body
                %v371 = vld [vmem:[%s369] sm:$0xff]
                %372 = vst [vmem:[%s370] sm:$0xff] %v371
                %v373 = vld [vmem:[%s369 + $0x8] sm:$0xff]
                %374 = vst [vmem:[%s370 + $0x10] sm:$0xff] %v373
                %v375 = vld [vmem:[%s369 + $0x10] sm:$0xff]
                %376 = vst [vmem:[%s370 + $0x20] sm:$0xff] %v375
                %v377 = vld [vmem:[%s369 + $0x18] sm:$0xff]
                %378 = vst [vmem:[%s370 + $0x30] sm:$0xff] %v377
                %v379 = vld [vmem:[%s369 + $0x20] sm:$0xff]
                %380 = vst [vmem:[%s370 + $0x40] sm:$0xff] %v379
                %v381 = vld [vmem:[%s369 + $0x28] sm:$0xff]
                %382 = vst [vmem:[%s370 + $0x50] sm:$0xff] %v381
                %v383 = vld [vmem:[%s369 + $0x30] sm:$0xff]
                %384 = vst [vmem:[%s370 + $0x60] sm:$0xff] %v383
                %v385 = vld [vmem:[%s369 + $0x38] sm:$0xff]
                %386 = vst [vmem:[%s370 + $0x70] sm:$0xff] %v385
                %v387 = vld [vmem:[%s369 + $0x40] sm:$0xff]
                %388 = vst [vmem:[%s370 + $0x80] sm:$0xff] %v387
                %v389 = vld [vmem:[%s369 + $0x48] sm:$0xff]
                %390 = vst [vmem:[%s370 + $0x90] sm:$0xff] %v389
                %v391 = vld [vmem:[%s369 + $0x50] sm:$0xff]
                %392 = vst [vmem:[%s370 + $0xa0] sm:$0xff] %v391
                %v393 = vld [vmem:[%s369 + $0x58] sm:$0xff]
                %394 = vst [vmem:[%s370 + $0xb0] sm:$0xff] %v393
                %v395 = vld [vmem:[%s369 + $0x60] sm:$0xff]
                %396 = vst [vmem:[%s370 + $0xc0] sm:$0xff] %v395
                %v397 = vld [vmem:[%s369 + $0x68] sm:$0xff]
                %398 = vst [vmem:[%s370 + $0xd0] sm:$0xff] %v397
                %v399 = vld [vmem:[%s369 + $0x70] sm:$0xff]
                %400 = vst [vmem:[%s370 + $0xe0] sm:$0xff] %v399
                %v401 = vld [vmem:[%s369 + $0x78] sm:$0xff]
                %402 = vst [vmem:[%s370 + $0xf0] sm:$0xff] %v401
              $region49: #{vgg_decode_forward.7} parent=43 // loop_footer
                %s368 = sadd.s32 1, %s364
              $region50: #{vgg_decode_forward.7} parent=43 // loop_footer_branch
                %363 = sbr.rel target = $region46
              $region51: #{vgg_decode_forward.7} parent=43 // loop_exit
                _
            $region44: #{vgg_decode_forward.7} parent=35 // pred_fallthru
              _
          $region36: #{vgg_decode_forward.7} parent=31 // pred_fallthru
            _
          %447 = vnop
        $region32: #{vgg_decode_forward.7} parent=27 // pred_fallthru
          _
      $region28: #{vgg_decode_forward.7} parent=5 // pred_fallthru
        _
      %p448 = scmp.le.s32.totalorder 2, %s8
      // Predicated region
      $region67: #{vgg_decode_forward.7} parent=5 // pred_check
        %p449 = pneg %p448
      $region68: #{vgg_decode_forward.7} parent=5 // pred_check_branch
        %451 = sbr.rel (%p449) target = $region70
      $region69: #{vgg_decode_forward.7} parent=5 // pred_region
        %s452 = ssub.s32 %s8, 2
        // Predicated region
        $region71: #{vgg_decode_forward.7} parent=69 // pred_check
          %p453 = pneg %p84
        $region72: #{vgg_decode_forward.7} parent=69 // pred_check_branch
          %455 = sbr.rel (%p453) target = $region74
        $region73: #{vgg_decode_forward.7} parent=69 // pred_region
          %s456 = sand.u32 %s69, 1
          %s457 = sand.u32 %s69, 1
          %s458 = smul.addr %s457, 128
          %s459 = scalar_lea.vmem [#allocation2], %s458
        $region74: #{vgg_decode_forward.7} parent=69 // pred_fallthru
          _
      $region70: #{vgg_decode_forward.7} parent=5 // pred_fallthru
        _
    $region6: #{vgg_decode_forward.7} parent=1 // loop_footer
      %s12 = sadd.s32 1, %s8
    $region7: #{vgg_decode_forward.7} parent=1 // loop_footer_branch
      %7 = sbr.rel target = $region3
    $region8: #{vgg_decode_forward.7} parent=1 // loop_exit
      _

// kernel: vgg_decode_forward.5
$region0: #{vgg_decode_forward.5}
  #allocation0 [shape = 'u32[]', space=smem, size = 0x4, offset = 0x4, fixed_abs, tag = 'smem constant byte address 0x4 - core index']
  #allocation1 [shape = 'u32[144,128]{1,0:T(1,128)}', space=vmem, size = 0x12000, scoped, tag = 'internal scratch']
  %s0 = inlined_call_operand.vmem [shape: f32[8,512], index: 0, kind: input, shape index: {}]
  %s1 = inlined_call_operand.hbm [shape: f32[2,512,512], index: 1, kind: input, shape index: {}]
  %s2 = inlined_call_operand.vmem [shape: f32[4,2,2,512], index: 2, kind: output, shape index: {}]
  %s3 = sld [smem:[#allocation0]]
  $region79: #{vgg_decode_forward.5} parent=0
    _
  %s5 = ssub.s32 1, %s3
  %s6 = scalar_select 0, %s5, %s3
  $region1: #{vgg_decode_forward.5} parent=0
    #allocation2 [shape = 'u8[2097152]{0}', space=vmem, size = 0x200000, scoped, tag = 'input window, operand 1']
    #allocation3 [shape = 's32[2]{0}', space=sflag, size = 0x8, scoped, tag = 'scoped memory for vgg_decode_forward.5']
    #allocation4 [shape = 'u8[32768]{0}', space=vmem, size = 0x8000, scoped, tag = 'output window, operand 0']
    %7 = vsyncpa [#allocation3], 0
    %s8 = scalar_lea.sflag [#allocation3], 1
    %9 = vsyncpa %s8, 0
    loop: start=0, step=1, limit=4
    $region2: #{vgg_decode_forward.5} parent=1 // loop_pre_header
      _
    $region3: #{vgg_decode_forward.5} parent=1 // loop_header
      %s11 = sphi 0, %s15
      %p12 = scmp.ge.s32.totalorder %s11, 4
      %s19 = sphi 0, %s19
      %s21 = sphi 0, %s19
      %s22 = sphi 0, %s21
      %s36 = sphi 0, %s22
      %s42 = sphi 0, %s44
      %s45 = sphi 0, %s42
      %s46 = sphi 0, %s45
      %s62 = sphi 0, %s46
      %s68 = sphi 0, %s70
      %s71 = sphi 0, %s68
      %s72 = sphi 0, %s71
      %s88 = sphi 0, %s72
    $region4: #{vgg_decode_forward.5} parent=1 // loop_header_branch
      %14 = sbr.rel (%p12) target = $region8
    $region5: #{vgg_decode_forward.5} parent=1 // loop_body
      %s16 = ssub.s32 %s11, 1
      %s17 = ssub.s32 %s11, 2
      %s18 = sadd.s32 %s11, 1
      %s20 = sadd.s32 %s19, 1
      %p23 = scmp.eq.s32.totalorder %s11, 1
      %p24 = scmp.ne.s32.totalorder %s19, %s21
      %p25 = scmp.eq.s32.totalorder %s11, 0
      %p26 = por %p24, %p25
      %p27 = scmp.ne.s32.totalorder %s19, %s21
      %p28 = scmp.eq.s32.totalorder %s16, 1
      %p29 = por %p27, %p28
      %p30 = scmp.ne.s32.totalorder %s21, %s22
      %p31 = scmp.eq.s32.totalorder %s16, 0
      %p32 = por %p30, %p31
      %p33 = scmp.ne.s32.totalorder %s21, %s22
      %p34 = scmp.eq.s32.totalorder %s17, 1
      %p35 = por %p33, %p34
      %p37 = scmp.ne.s32.totalorder %s22, %s36
      %p38 = scmp.eq.s32.totalorder %s17, 0
      %p39 = por %p37, %p38
      %s40 = ssub.s32 %s11, %s18
      %p41 = scmp.eq.s32.totalorder %s40, 0
      %s43 = sadd.s32 %s42, 1
      %s44 = scalar_select %p41, %s42, %s43
      %p47 = pneg %p41
      %p48 = scmp.eq.s32.totalorder %s11, 1
      %p49 = por %p47, %p48
      %p50 = scmp.ne.s32.totalorder %s42, %s45
      %p51 = scmp.eq.s32.totalorder %s11, 0
      %p52 = por %p50, %p51
      %p53 = scmp.ne.s32.totalorder %s42, %s45
      %p54 = scmp.eq.s32.totalorder %s16, 1
      %p55 = por %p53, %p54
      %p56 = scmp.ne.s32.totalorder %s45, %s46
      %p57 = scmp.eq.s32.totalorder %s16, 0
      %p58 = por %p56, %p57
      %p59 = scmp.ne.s32.totalorder %s45, %s46
      %p60 = scmp.eq.s32.totalorder %s17, 1
      %p61 = por %p59, %p60
      %p63 = scmp.ne.s32.totalorder %s46, %s62
      %p64 = scmp.eq.s32.totalorder %s17, 0
      %p65 = por %p63, %p64
      %s66 = ssub.s32 %s11, %s18
      %p67 = scmp.eq.s32.totalorder %s66, 0
      %s69 = sadd.s32 %s68, 1
      %s70 = scalar_select %p67, %s68, %s69
      %p73 = pneg %p67
      %p74 = scmp.eq.s32.totalorder %s11, 1
      %p75 = por %p73, %p74
      %p76 = scmp.ne.s32.totalorder %s68, %s71
      %p77 = scmp.eq.s32.totalorder %s11, 0
      %p78 = por %p76, %p77
      %p79 = scmp.ne.s32.totalorder %s68, %s71
      %p80 = scmp.eq.s32.totalorder %s16, 1
      %p81 = por %p79, %p80
      %p82 = scmp.ne.s32.totalorder %s71, %s72
      %p83 = scmp.eq.s32.totalorder %s16, 0
      %p84 = por %p82, %p83
      %p85 = scmp.ne.s32.totalorder %s71, %s72
      %p86 = scmp.eq.s32.totalorder %s17, 1
      %p87 = por %p85, %p86
      %p89 = scmp.ne.s32.totalorder %s72, %s88
      %p90 = scmp.eq.s32.totalorder %s17, 0
      %p91 = por %p89, %p90
      %p92 = scmp.le.s32.totalorder 1, %s11
      %p93 = scmp.lt.s32.totalorder %s11, 3
      %p94 = pnand %p92, %p93
      %p95 = pneg %p94
      // Predicated region
      $region9: #{vgg_decode_forward.5} parent=5 // pred_check
        _
      $region10: #{vgg_decode_forward.5} parent=5 // pred_check_branch
        %97 = sbr.rel (%p94) target = $region12
      $region11: #{vgg_decode_forward.5} parent=5 // pred_region
        %s98 = ssub.s32 %s11, 1
        // Predicated region
        $region13: #{vgg_decode_forward.5} parent=11 // pred_check
          %p99 = pneg %p32
        $region14: #{vgg_decode_forward.5} parent=11 // pred_check_branch
          %101 = sbr.rel (%p99) target = $region16
        $region15: #{vgg_decode_forward.5} parent=11 // pred_region
          _
        $region16: #{vgg_decode_forward.5} parent=11 // pred_fallthru
          _
      $region12: #{vgg_decode_forward.5} parent=5 // pred_fallthru
        _
      %p102 = scmp.lt.s32.totalorder %s11, 2
      // Predicated region
      $region17: #{vgg_decode_forward.5} parent=5 // pred_check
        %p103 = pneg %p102
      $region18: #{vgg_decode_forward.5} parent=5 // pred_check_branch
        %105 = sbr.rel (%p103) target = $region20
      $region19: #{vgg_decode_forward.5} parent=5 // pred_region
        // Predicated region
        $region21: #{vgg_decode_forward.5} parent=19 // pred_check
          %p106 = pneg %p52
        $region22: #{vgg_decode_forward.5} parent=19 // pred_check_branch
          %108 = sbr.rel (%p106) target = $region24
        $region23: #{vgg_decode_forward.5} parent=19 // pred_region
          %s109 = sand.u32 %s42, 1
          %s110 = scalar_lea.sflag [#allocation3], %s109
          %s111 = sand.u32 %s42, 1
          %s112 = smul.addr %s111, 2048
          %s113 = scalar_lea.vmem [#allocation2], %s112
          %s115 = ssub.s32 32768, 32768
          %116 = vsyncadd %s110, %s115
          %s117 = smul.addr %s11, 256
          %s118 = smul.addr %s117, 128
          %s119 = scalar_lea.hbm %s1, %s118
          %s120 = sshll.u32 %s113, 4
          %s121 = int_to_ptr.vmem [resolvable:$true] %s120
          %126 = dma.hbm_to_vmem [thread:$0]  %s119, 32768, %s121, %s110, 512, 512, 32
        $region24: #{vgg_decode_forward.5} parent=19 // pred_fallthru
          _
      $region20: #{vgg_decode_forward.5} parent=5 // pred_fallthru
        _
      %p127 = scmp.le.s32.totalorder 1, %s11
      %p128 = scmp.lt.s32.totalorder %s11, 3
      %p129 = pnand %p127, %p128
      %p130 = pneg %p129
      // Predicated region
      $region25: #{vgg_decode_forward.5} parent=5 // pred_check
        _
      $region26: #{vgg_decode_forward.5} parent=5 // pred_check_branch
        %132 = sbr.rel (%p129) target = $region28
      $region27: #{vgg_decode_forward.5} parent=5 // pred_region
        %s133 = ssub.s32 %s11, 1
        %s134 = sand.u32 %s45, 1
        %s135 = scalar_lea.sflag [#allocation3], %s134
        %s136 = sand.u32 %s45, 1
        %s137 = smul.addr %s136, 2048
        %s138 = scalar_lea.vmem [#allocation2], %s137
        // Predicated region
        $region29: #{vgg_decode_forward.5} parent=27 // pred_check
          %p139 = pneg %p58
        $region30: #{vgg_decode_forward.5} parent=27 // pred_check_branch
          %141 = sbr.rel (%p139) target = $region32
        $region31: #{vgg_decode_forward.5} parent=27 // pred_region
          %142 = dma.done %s135, 32768
        $region32: #{vgg_decode_forward.5} parent=27 // pred_fallthru
          _
        %p143 = pneg %p32
        %p144 = pneg %p29
        %s145 = sand.u32 %s45, 1
        %s146 = scalar_lea.sflag [#allocation3], %s145
        %s147 = sand.u32 %s45, 1
        %s148 = smul.addr %s147, 2048
        %s149 = scalar_lea.vmem [#allocation2], %s148
        %p150 = pneg %p58
        %p151 = pneg %p55
        %p152 = pneg %p84
        %p153 = pneg %p81
        %s154 = sand.u32 %s71, 1
        %s155 = sand.u32 %s71, 1
        %s156 = smul.addr %s155, 32
        %s157 = scalar_lea.vmem [#allocation4], %s156
        %v158 = vld [vmem:[%s0] sm:$0xff]
        %v159 = vld [vmem:[%s0 + $0x8] sm:$0xff]
        %v160 = vld [vmem:[%s0 + $0x10] sm:$0xff]
        %v161 = vld [vmem:[%s0 + $0x18] sm:$0xff]
        %v162 = vld [vmem:[%s138] sm:$0xff]
        %v163 = vld [vmem:[%s138 + $0x8] sm:$0xff]
        %v164 = vld [vmem:[%s138 + $0x10] sm:$0xff]
        %v165 = vld [vmem:[%s138 + $0x18] sm:$0xff]
        %v166 = vld [vmem:[%s138 + $0x20] sm:$0xff]
        %v167 = vld [vmem:[%s138 + $0x28] sm:$0xff]
        %v168 = vld [vmem:[%s138 + $0x30] sm:$0xff]
        %v169 = vld [vmem:[%s138 + $0x38] sm:$0xff]
        %v170 = vld [vmem:[%s138 + $0x40] sm:$0xff]
        %v171 = vld [vmem:[%s138 + $0x48] sm:$0xff]
        %v172 = vld [vmem:[%s138 + $0x50] sm:$0xff]
        %v173 = vld [vmem:[%s138 + $0x58] sm:$0xff]
        %v174 = vld [vmem:[%s138 + $0x60] sm:$0xff]
        %v175 = vld [vmem:[%s138 + $0x68] sm:$0xff]
        %v176 = vld [vmem:[%s138 + $0x70] sm:$0xff]
        %v177 = vld [vmem:[%s138 + $0x78] sm:$0xff]
        %v178 = vld [vmem:[%s138 + $0x80] sm:$0xff]
        %v179 = vld [vmem:[%s138 + $0x88] sm:$0xff]
        %v180 = vld [vmem:[%s138 + $0x90] sm:$0xff]
        %v181 = vld [vmem:[%s138 + $0x98] sm:$0xff]
        %v182 = vld [vmem:[%s138 + $0xa0] sm:$0xff]
        %v183 = vld [vmem:[%s138 + $0xa8] sm:$0xff]
        %v184 = vld [vmem:[%s138 + $0xb0] sm:$0xff]
        %v185 = vld [vmem:[%s138 + $0xb8] sm:$0xff]
        %v186 = vld [vmem:[%s138 + $0xc0] sm:$0xff]
        %v187 = vld [vmem:[%s138 + $0xc8] sm:$0xff]
        %v188 = vld [vmem:[%s138 + $0xd0] sm:$0xff]
        %v189 = vld [vmem:[%s138 + $0xd8] sm:$0xff]
        %v190 = vld [vmem:[%s138 + $0xe0] sm:$0xff]
        %v191 = vld [vmem:[%s138 + $0xe8] sm:$0xff]
        %v192 = vld [vmem:[%s138 + $0xf0] sm:$0xff]
        %v193 = vld [vmem:[%s138 + $0xf8] sm:$0xff]
        %v194 = vld [vmem:[%s138 + $0x100] sm:$0xff]
        %v195 = vld [vmem:[%s138 + $0x108] sm:$0xff]
        %v196 = vld [vmem:[%s138 + $0x110] sm:$0xff]
        %v197 = vld [vmem:[%s138 + $0x118] sm:$0xff]
        %v198 = vld [vmem:[%s138 + $0x120] sm:$0xff]
        %v199 = vld [vmem:[%s138 + $0x128] sm:$0xff]
        %v200 = vld [vmem:[%s138 + $0x130] sm:$0xff]
        %v201 = vld [vmem:[%s138 + $0x138] sm:$0xff]
        %v202 = vld [vmem:[%s138 + $0x140] sm:$0xff]
        %v203 = vld [vmem:[%s138 + $0x148] sm:$0xff]
        %v204 = vld [vmem:[%s138 + $0x150] sm:$0xff]
        %v205 = vld [vmem:[%s138 + $0x158] sm:$0xff]
        %v206 = vld [vmem:[%s138 + $0x160] sm:$0xff]
        %v207 = vld [vmem:[%s138 + $0x168] sm:$0xff]
        %v208 = vld [vmem:[%s138 + $0x170] sm:$0xff]
        %v209 = vld [vmem:[%s138 + $0x178] sm:$0xff]
        %v210 = vld [vmem:[%s138 + $0x180] sm:$0xff]
        %v211 = vld [vmem:[%s138 + $0x188] sm:$0xff]
        %v212 = vld [vmem:[%s138 + $0x190] sm:$0xff]
        %v213 = vld [vmem:[%s138 + $0x198] sm:$0xff]
        %v214 = vld [vmem:[%s138 + $0x1a0] sm:$0xff]
        %v215 = vld [vmem:[%s138 + $0x1a8] sm:$0xff]
        %v216 = vld [vmem:[%s138 + $0x1b0] sm:$0xff]
        %v217 = vld [vmem:[%s138 + $0x1b8] sm:$0xff]
        %v218 = vld [vmem:[%s138 + $0x1c0] sm:$0xff]
        %v219 = vld [vmem:[%s138 + $0x1c8] sm:$0xff]
        %v220 = vld [vmem:[%s138 + $0x1d0] sm:$0xff]
        %v221 = vld [vmem:[%s138 + $0x1d8] sm:$0xff]
        %v222 = vld [vmem:[%s138 + $0x1e0] sm:$0xff]
        %v223 = vld [vmem:[%s138 + $0x1e8] sm:$0xff]
        %v224 = vld [vmem:[%s138 + $0x1f0] sm:$0xff]
        %v225 = vld [vmem:[%s138 + $0x1f8] sm:$0xff]
        %v226 = vld [vmem:[%s138 + $0x200] sm:$0xff]
        %v227 = vld [vmem:[%s138 + $0x208] sm:$0xff]
        %v228 = vld [vmem:[%s138 + $0x210] sm:$0xff]
        %v229 = vld [vmem:[%s138 + $0x218] sm:$0xff]
        %v230 = vld [vmem:[%s138 + $0x220] sm:$0xff]
        %v231 = vld [vmem:[%s138 + $0x228] sm:$0xff]
        %v232 = vld [vmem:[%s138 + $0x230] sm:$0xff]
        %v233 = vld [vmem:[%s138 + $0x238] sm:$0xff]
        %v234 = vld [vmem:[%s138 + $0x240] sm:$0xff]
        %v235 = vld [vmem:[%s138 + $0x248] sm:$0xff]
        %v236 = vld [vmem:[%s138 + $0x250] sm:$0xff]
        %v237 = vld [vmem:[%s138 + $0x258] sm:$0xff]
        %v238 = vld [vmem:[%s138 + $0x260] sm:$0xff]
        %v239 = vld [vmem:[%s138 + $0x268] sm:$0xff]
        %v240 = vld [vmem:[%s138 + $0x270] sm:$0xff]
        %v241 = vld [vmem:[%s138 + $0x278] sm:$0xff]
        %v242 = vld [vmem:[%s138 + $0x280] sm:$0xff]
        %v243 = vld [vmem:[%s138 + $0x288] sm:$0xff]
        %v244 = vld [vmem:[%s138 + $0x290] sm:$0xff]
        %v245 = vld [vmem:[%s138 + $0x298] sm:$0xff]
        %v246 = vld [vmem:[%s138 + $0x2a0] sm:$0xff]
        %v247 = vld [vmem:[%s138 + $0x2a8] sm:$0xff]
        %v248 = vld [vmem:[%s138 + $0x2b0] sm:$0xff]
        %v249 = vld [vmem:[%s138 + $0x2b8] sm:$0xff]
        %v250 = vld [vmem:[%s138 + $0x2c0] sm:$0xff]
        %v251 = vld [vmem:[%s138 + $0x2c8] sm:$0xff]
        %v252 = vld [vmem:[%s138 + $0x2d0] sm:$0xff]
        %v253 = vld [vmem:[%s138 + $0x2d8] sm:$0xff]
        %v254 = vld [vmem:[%s138 + $0x2e0] sm:$0xff]
        %v255 = vld [vmem:[%s138 + $0x2e8] sm:$0xff]
        %v256 = vld [vmem:[%s138 + $0x2f0] sm:$0xff]
        %v257 = vld [vmem:[%s138 + $0x2f8] sm:$0xff]
        %v258 = vld [vmem:[%s138 + $0x300] sm:$0xff]
        %v259 = vld [vmem:[%s138 + $0x308] sm:$0xff]
        %v260 = vld [vmem:[%s138 + $0x310] sm:$0xff]
        %v261 = vld [vmem:[%s138 + $0x318] sm:$0xff]
        %v262 = vld [vmem:[%s138 + $0x320] sm:$0xff]
        %v263 = vld [vmem:[%s138 + $0x328] sm:$0xff]
        %v264 = vld [vmem:[%s138 + $0x330] sm:$0xff]
        %v265 = vld [vmem:[%s138 + $0x338] sm:$0xff]
        %v266 = vld [vmem:[%s138 + $0x340] sm:$0xff]
        %v267 = vld [vmem:[%s138 + $0x348] sm:$0xff]
        %v268 = vld [vmem:[%s138 + $0x350] sm:$0xff]
        %v269 = vld [vmem:[%s138 + $0x358] sm:$0xff]
        %v270 = vld [vmem:[%s138 + $0x360] sm:$0xff]
        %v271 = vld [vmem:[%s138 + $0x368] sm:$0xff]
        %v272 = vld [vmem:[%s138 + $0x370] sm:$0xff]
        %v273 = vld [vmem:[%s138 + $0x378] sm:$0xff]
        %v274 = vld [vmem:[%s138 + $0x380] sm:$0xff]
        %v275 = vld [vmem:[%s138 + $0x388] sm:$0xff]
        %v276 = vld [vmem:[%s138 + $0x390] sm:$0xff]
        %v277 = vld [vmem:[%s138 + $0x398] sm:$0xff]
        %v278 = vld [vmem:[%s138 + $0x3a0] sm:$0xff]
        %v279 = vld [vmem:[%s138 + $0x3a8] sm:$0xff]
        %v280 = vld [vmem:[%s138 + $0x3b0] sm:$0xff]
        %v281 = vld [vmem:[%s138 + $0x3b8] sm:$0xff]
        %v282 = vld [vmem:[%s138 + $0x3c0] sm:$0xff]
        %v283 = vld [vmem:[%s138 + $0x3c8] sm:$0xff]
        %v284 = vld [vmem:[%s138 + $0x3d0] sm:$0xff]
        %v285 = vld [vmem:[%s138 + $0x3d8] sm:$0xff]
        %v286 = vld [vmem:[%s138 + $0x3e0] sm:$0xff]
        %v287 = vld [vmem:[%s138 + $0x3e8] sm:$0xff]
        %v288 = vld [vmem:[%s138 + $0x3f0] sm:$0xff]
        %v289 = vld [vmem:[%s138 + $0x3f8] sm:$0xff]
        %v290 = vld [vmem:[%s138 + $0x400] sm:$0xff]
        %v291 = vld [vmem:[%s138 + $0x408] sm:$0xff]
        %v292 = vld [vmem:[%s138 + $0x410] sm:$0xff]
        %v293 = vld [vmem:[%s138 + $0x418] sm:$0xff]
        %v294 = vld [vmem:[%s138 + $0x420] sm:$0xff]
        %v295 = vld [vmem:[%s138 + $0x428] sm:$0xff]
        %v296 = vld [vmem:[%s138 + $0x430] sm:$0xff]
        %v297 = vld [vmem:[%s138 + $0x438] sm:$0xff]
        %v298 = vld [vmem:[%s138 + $0x440] sm:$0xff]
        %v299 = vld [vmem:[%s138 + $0x448] sm:$0xff]
        %v300 = vld [vmem:[%s138 + $0x450] sm:$0xff]
        %v301 = vld [vmem:[%s138 + $0x458] sm:$0xff]
        %v302 = vld [vmem:[%s138 + $0x460] sm:$0xff]
        %v303 = vld [vmem:[%s138 + $0x468] sm:$0xff]
        %v304 = vld [vmem:[%s138 + $0x470] sm:$0xff]
        %v305 = vld [vmem:[%s138 + $0x478] sm:$0xff]
        %v306 = vld [vmem:[%s138 + $0x480] sm:$0xff]
        %v307 = vld [vmem:[%s138 + $0x488] sm:$0xff]
        %v308 = vld [vmem:[%s138 + $0x490] sm:$0xff]
        %v309 = vld [vmem:[%s138 + $0x498] sm:$0xff]
        %v310 = vld [vmem:[%s138 + $0x4a0] sm:$0xff]
        %v311 = vld [vmem:[%s138 + $0x4a8] sm:$0xff]
        %v312 = vld [vmem:[%s138 + $0x4b0] sm:$0xff]
        %v313 = vld [vmem:[%s138 + $0x4b8] sm:$0xff]
        %v314 = vld [vmem:[%s138 + $0x4c0] sm:$0xff]
        %v315 = vld [vmem:[%s138 + $0x4c8] sm:$0xff]
        %v316 = vld [vmem:[%s138 + $0x4d0] sm:$0xff]
        %v317 = vld [vmem:[%s138 + $0x4d8] sm:$0xff]
        %v318 = vld [vmem:[%s138 + $0x4e0] sm:$0xff]
        %v319 = vld [vmem:[%s138 + $0x4e8] sm:$0xff]
        %v320 = vld [vmem:[%s138 + $0x4f0] sm:$0xff]
        %v321 = vld [vmem:[%s138 + $0x4f8] sm:$0xff]
        %v322 = vld [vmem:[%s138 + $0x500] sm:$0xff]
        %v323 = vld [vmem:[%s138 + $0x508] sm:$0xff]
        %v324 = vld [vmem:[%s138 + $0x510] sm:$0xff]
        %v325 = vld [vmem:[%s138 + $0x518] sm:$0xff]
        %v326 = vld [vmem:[%s138 + $0x520] sm:$0xff]
        %v327 = vld [vmem:[%s138 + $0x528] sm:$0xff]
        %v328 = vld [vmem:[%s138 + $0x530] sm:$0xff]
        %v329 = vld [vmem:[%s138 + $0x538] sm:$0xff]
        %v330 = vld [vmem:[%s138 + $0x540] sm:$0xff]
        %v331 = vld [vmem:[%s138 + $0x548] sm:$0xff]
        %v332 = vld [vmem:[%s138 + $0x550] sm:$0xff]
        %v333 = vld [vmem:[%s138 + $0x558] sm:$0xff]
        %v334 = vld [vmem:[%s138 + $0x560] sm:$0xff]
        %v335 = vld [vmem:[%s138 + $0x568] sm:$0xff]
        %v336 = vld [vmem:[%s138 + $0x570] sm:$0xff]
        %v337 = vld [vmem:[%s138 + $0x578] sm:$0xff]
        %v338 = vld [vmem:[%s138 + $0x580] sm:$0xff]
        %v339 = vld [vmem:[%s138 + $0x588] sm:$0xff]
        %v340 = vld [vmem:[%s138 + $0x590] sm:$0xff]
        %v341 = vld [vmem:[%s138 + $0x598] sm:$0xff]
        %v342 = vld [vmem:[%s138 + $0x5a0] sm:$0xff]
        %v343 = vld [vmem:[%s138 + $0x5a8] sm:$0xff]
        %v344 = vld [vmem:[%s138 + $0x5b0] sm:$0xff]
        %v345 = vld [vmem:[%s138 + $0x5b8] sm:$0xff]
        %v346 = vld [vmem:[%s138 + $0x5c0] sm:$0xff]
        %v347 = vld [vmem:[%s138 + $0x5c8] sm:$0xff]
        %v348 = vld [vmem:[%s138 + $0x5d0] sm:$0xff]
        %v349 = vld [vmem:[%s138 + $0x5d8] sm:$0xff]
        %v350 = vld [vmem:[%s138 + $0x5e0] sm:$0xff]
        %v351 = vld [vmem:[%s138 + $0x5e8] sm:$0xff]
        %v352 = vld [vmem:[%s138 + $0x5f0] sm:$0xff]
        %v353 = vld [vmem:[%s138 + $0x5f8] sm:$0xff]
        %v354 = vld [vmem:[%s138 + $0x600] sm:$0xff]
        %v355 = vld [vmem:[%s138 + $0x608] sm:$0xff]
        %v356 = vld [vmem:[%s138 + $0x610] sm:$0xff]
        %v357 = vld [vmem:[%s138 + $0x618] sm:$0xff]
        %v358 = vld [vmem:[%s138 + $0x620] sm:$0xff]
        %v359 = vld [vmem:[%s138 + $0x628] sm:$0xff]
        %v360 = vld [vmem:[%s138 + $0x630] sm:$0xff]
        %v361 = vld [vmem:[%s138 + $0x638] sm:$0xff]
        %v362 = vld [vmem:[%s138 + $0x640] sm:$0xff]
        %v363 = vld [vmem:[%s138 + $0x648] sm:$0xff]
        %v364 = vld [vmem:[%s138 + $0x650] sm:$0xff]
        %v365 = vld [vmem:[%s138 + $0x658] sm:$0xff]
        %v366 = vld [vmem:[%s138 + $0x660] sm:$0xff]
        %v367 = vld [vmem:[%s138 + $0x668] sm:$0xff]
        %v368 = vld [vmem:[%s138 + $0x670] sm:$0xff]
        %v369 = vld [vmem:[%s138 + $0x678] sm:$0xff]
        %v370 = vld [vmem:[%s138 + $0x680] sm:$0xff]
        %v371 = vld [vmem:[%s138 + $0x688] sm:$0xff]
        %v372 = vld [vmem:[%s138 + $0x690] sm:$0xff]
        %v373 = vld [vmem:[%s138 + $0x698] sm:$0xff]
        %v374 = vld [vmem:[%s138 + $0x6a0] sm:$0xff]
        %v375 = vld [vmem:[%s138 + $0x6a8] sm:$0xff]
        %v376 = vld [vmem:[%s138 + $0x6b0] sm:$0xff]
        %v377 = vld [vmem:[%s138 + $0x6b8] sm:$0xff]
        %v378 = vld [vmem:[%s138 + $0x6c0] sm:$0xff]
        %v379 = vld [vmem:[%s138 + $0x6c8] sm:$0xff]
        %v380 = vld [vmem:[%s138 + $0x6d0] sm:$0xff]
        %v381 = vld [vmem:[%s138 + $0x6d8] sm:$0xff]
        %v382 = vld [vmem:[%s138 + $0x6e0] sm:$0xff]
        %v383 = vld [vmem:[%s138 + $0x6e8] sm:$0xff]
        %v384 = vld [vmem:[%s138 + $0x6f0] sm:$0xff]
        %v385 = vld [vmem:[%s138 + $0x6f8] sm:$0xff]
        %v386 = vld [vmem:[%s138 + $0x700] sm:$0xff]
        %v387 = vld [vmem:[%s138 + $0x708] sm:$0xff]
        %v388 = vld [vmem:[%s138 + $0x710] sm:$0xff]
        %v389 = vld [vmem:[%s138 + $0x718] sm:$0xff]
        %v390 = vld [vmem:[%s138 + $0x720] sm:$0xff]
        %v391 = vld [vmem:[%s138 + $0x728] sm:$0xff]
        %v392 = vld [vmem:[%s138 + $0x730] sm:$0xff]
        %v393 = vld [vmem:[%s138 + $0x738] sm:$0xff]
        %v394 = vld [vmem:[%s138 + $0x740] sm:$0xff]
        %v395 = vld [vmem:[%s138 + $0x748] sm:$0xff]
        %v396 = vld [vmem:[%s138 + $0x750] sm:$0xff]
        %v397 = vld [vmem:[%s138 + $0x758] sm:$0xff]
        %v398 = vld [vmem:[%s138 + $0x760] sm:$0xff]
        %v399 = vld [vmem:[%s138 + $0x768] sm:$0xff]
        %v400 = vld [vmem:[%s138 + $0x770] sm:$0xff]
        %v401 = vld [vmem:[%s138 + $0x778] sm:$0xff]
        %v402 = vld [vmem:[%s138 + $0x780] sm:$0xff]
        %v403 = vld [vmem:[%s138 + $0x788] sm:$0xff]
        %v404 = vld [vmem:[%s138 + $0x790] sm:$0xff]
        %v405 = vld [vmem:[%s138 + $0x798] sm:$0xff]
        %v406 = vld [vmem:[%s138 + $0x7a0] sm:$0xff]
        %v407 = vld [vmem:[%s138 + $0x7a8] sm:$0xff]
        %v408 = vld [vmem:[%s138 + $0x7b0] sm:$0xff]
        %v409 = vld [vmem:[%s138 + $0x7b8] sm:$0xff]
        %v410 = vld [vmem:[%s138 + $0x7c0] sm:$0xff]
        %v411 = vld [vmem:[%s138 + $0x7c8] sm:$0xff]
        %v412 = vld [vmem:[%s138 + $0x7d0] sm:$0xff]
        %v413 = vld [vmem:[%s138 + $0x7d8] sm:$0xff]
        %v414 = vld [vmem:[%s138 + $0x7e0] sm:$0xff]
        %v415 = vld [vmem:[%s138 + $0x7e8] sm:$0xff]
        %v416 = vld [vmem:[%s138 + $0x7f0] sm:$0xff]
        %v417 = vld [vmem:[%s138 + $0x7f8] sm:$0xff]
        %418 = vmatprep.subr.mxu0 %v163
        %419 = vmatpush1.msra.mxu0 %v162
        %420 = vmatprep.subr.mxu0 %v167
        %421 = vmatpush1.msra.mxu0 %v166
        %422 = vmatprep.subr.mxu0 %v171
        %423 = vmatpush1.msra.mxu0 %v170
        %424 = vmatprep.subr.mxu0 %v175
        %425 = vmatpush1.msra.mxu0 %v174
        %426 = vmatprep.subr.mxu0 %v179
        %427 = vmatpush1.msra.mxu0 %v178
        %428 = vmatprep.subr.mxu0 %v183
        %429 = vmatpush1.msra.mxu0 %v182
        %430 = vmatprep.subr.mxu0 %v187
        %431 = vmatpush1.msra.mxu0 %v186
        %432 = vmatprep.subr.mxu0 %v191
        %433 = vmatpush1.msra.mxu0 %v190
        %434 = vmatprep.subr.mxu0 %v195
        %435 = vmatpush1.msra.mxu0 %v194
        %436 = vmatprep.subr.mxu0 %v199
        %437 = vmatpush1.msra.mxu0 %v198
        %438 = vmatprep.subr.mxu0 %v203
        %439 = vmatpush1.msra.mxu0 %v202
        %440 = vmatprep.subr.mxu0 %v207
        %441 = vmatpush1.msra.mxu0 %v206
        %442 = vmatprep.subr.mxu0 %v211
        %443 = vmatpush1.msra.mxu0 %v210
        %444 = vmatprep.subr.mxu0 %v215
        %445 = vmatpush1.msra.mxu0 %v214
        %446 = vmatprep.subr.mxu0 %v219
        %447 = vmatpush1.msra.mxu0 %v218
        %448 = vmatprep.subr.mxu0 %v223
        %449 = vmatpush1.msra.mxu0 %v222
        %450 = vmatprep.subr.mxu0 %v227
        %451 = vmatpush1.msra.mxu0 %v226
        %452 = vmatprep.subr.mxu0 %v231
        %453 = vmatpush1.msra.mxu0 %v230
        %454 = vmatprep.subr.mxu0 %v235
        %455 = vmatpush1.msra.mxu0 %v234
        %456 = vmatprep.subr.mxu0 %v239
        %457 = vmatpush1.msra.mxu0 %v238
        %458 = vmatprep.subr.mxu0 %v243
        %459 = vmatpush1.msra.mxu0 %v242
        %460 = vmatprep.subr.mxu0 %v247
        %461 = vmatpush1.msra.mxu0 %v246
        %462 = vmatprep.subr.mxu0 %v251
        %463 = vmatpush1.msra.mxu0 %v250
        %464 = vmatprep.subr.mxu0 %v255
        %465 = vmatpush1.msra.mxu0 %v254
        %466 = vmatprep.subr.mxu0 %v259
        %467 = vmatpush1.msra.mxu0 %v258
        %468 = vmatprep.subr.mxu0 %v263
        %469 = vmatpush1.msra.mxu0 %v262
        %470 = vmatprep.subr.mxu0 %v267
        %471 = vmatpush1.msra.mxu0 %v266
        %472 = vmatprep.subr.mxu0 %v271
        %473 = vmatpush1.msra.mxu0 %v270
        %474 = vmatprep.subr.mxu0 %v275
        %475 = vmatpush1.msra.mxu0 %v274
        %476 = vmatprep.subr.mxu0 %v279
        %477 = vmatpush1.msra.mxu0 %v278
        %478 = vmatprep.subr.mxu0 %v283
        %479 = vmatpush1.msra.mxu0 %v282
        %480 = vmatprep.subr.mxu0 %v287
        %481 = vmatpush1.msra.mxu0 %v286
        %482 = vmatprep.mubr.f32.mxu0 %v159
        %483 = vmatmul.mubr.f32.gmra.mrb[0].mxu0 %v158
        %v484 = vpop.f32.mrb[0].mxu0
        %v485 = vadd.f32 0.0, %v484
        %v486 = vpop.f32.mrb[0].mxu0
        %v487 = vadd.f32 0.0, %v486
        %488 = vdwg.mxu0
        %489 = vmatprep.subr.mxu0 %v291
        %490 = vmatpush1.msra.mxu0 %v290
        %491 = vmatprep.subr.mxu0 %v295
        %492 = vmatpush1.msra.mxu0 %v294
        %493 = vmatprep.subr.mxu0 %v299
        %494 = vmatpush1.msra.mxu0 %v298
        %495 = vmatprep.subr.mxu0 %v303
        %496 = vmatpush1.msra.mxu0 %v302
        %497 = vmatprep.subr.mxu0 %v307
        %498 = vmatpush1.msra.mxu0 %v306
        %499 = vmatprep.subr.mxu0 %v311
        %500 = vmatpush1.msra.mxu0 %v310
        %501 = vmatprep.subr.mxu0 %v315
        %502 = vmatpush1.msra.mxu0 %v314
        %503 = vmatprep.subr.mxu0 %v319
        %504 = vmatpush1.msra.mxu0 %v318
        %505 = vmatprep.subr.mxu0 %v323
        %506 = vmatpush1.msra.mxu0 %v322
        %507 = vmatprep.subr.mxu0 %v327
        %508 = vmatpush1.msra.mxu0 %v326
        %509 = vmatprep.subr.mxu0 %v331
        %510 = vmatpush1.msra.mxu0 %v330
        %511 = vmatprep.subr.mxu0 %v335
        %512 = vmatpush1.msra.mxu0 %v334
        %513 = vmatprep.subr.mxu0 %v339
        %514 = vmatpush1.msra.mxu0 %v338
        %515 = vmatprep.subr.mxu0 %v343
        %516 = vmatpush1.msra.mxu0 %v342
        %517 = vmatprep.subr.mxu0 %v347
        %518 = vmatpush1.msra.mxu0 %v346
        %519 = vmatprep.subr.mxu0 %v351
        %520 = vmatpush1.msra.mxu0 %v350
        %521 = vmatprep.subr.mxu0 %v355
        %522 = vmatpush1.msra.mxu0 %v354
        %523 = vmatprep.subr.mxu0 %v359
        %524 = vmatpush1.msra.mxu0 %v358
        %525 = vmatprep.subr.mxu0 %v363
        %526 = vmatpush1.msra.mxu0 %v362
        %527 = vmatprep.subr.mxu0 %v367
        %528 = vmatpush1.msra.mxu0 %v366
        %529 = vmatprep.subr.mxu0 %v371
        %530 = vmatpush1.msra.mxu0 %v370
        %531 = vmatprep.subr.mxu0 %v375
        %532 = vmatpush1.msra.mxu0 %v374
        %533 = vmatprep.subr.mxu0 %v379
        %534 = vmatpush1.msra.mxu0 %v378
        %535 = vmatprep.subr.mxu0 %v383
        %536 = vmatpush1.msra.mxu0 %v382
        %537 = vmatprep.subr.mxu0 %v387
        %538 = vmatpush1.msra.mxu0 %v386
        %539 = vmatprep.subr.mxu0 %v391
        %540 = vmatpush1.msra.mxu0 %v390
        %541 = vmatprep.subr.mxu0 %v395
        %542 = vmatpush1.msra.mxu0 %v394
        %543 = vmatprep.subr.mxu0 %v399
        %544 = vmatpush1.msra.mxu0 %v398
        %545 = vmatprep.subr.mxu0 %v403
        %546 = vmatpush1.msra.mxu0 %v402
        %547 = vmatprep.subr.mxu0 %v407
        %548 = vmatpush1.msra.mxu0 %v406
        %549 = vmatprep.subr.mxu0 %v411
        %550 = vmatpush1.msra.mxu0 %v410
        %551 = vmatprep.subr.mxu0 %v415
        %552 = vmatpush1.msra.mxu0 %v414
        %553 = vmatprep.mubr.f32.mxu0 %v161
        %554 = vmatmul.mubr.f32.gmra.mrb[0].mxu0 %v160
        %v555 = vpop.f32.mrb[0].mxu0
        %v556 = vadd.f32 %v485, %v555
        %v557 = vpop.f32.mrb[0].mxu0
        %v558 = vadd.f32 %v487, %v557
        %559 = vdwg.mxu0
        %560 = vmatprep.subr.mxu0 %v165
        %561 = vmatpush1.msra.mxu0 %v164
        %562 = vmatprep.subr.mxu0 %v169
        %563 = vmatpush1.msra.mxu0 %v168
        %564 = vmatprep.subr.mxu0 %v173
        %565 = vmatpush1.msra.mxu0 %v172
        %566 = vmatprep.subr.mxu0 %v177
        %567 = vmatpush1.msra.mxu0 %v176
        %568 = vmatprep.subr.mxu0 %v181
        %569 = vmatpush1.msra.mxu0 %v180
        %570 = vmatprep.subr.mxu0 %v185
        %571 = vmatpush1.msra.mxu0 %v184
        %572 = vmatprep.subr.mxu0 %v189
        %573 = vmatpush1.msra.mxu0 %v188
        %574 = vmatprep.subr.mxu0 %v193
        %575 = vmatpush1.msra.mxu0 %v192
        %576 = vmatprep.subr.mxu0 %v197
        %577 = vmatpush1.msra.mxu0 %v196
        %578 = vmatprep.subr.mxu0 %v201
        %579 = vmatpush1.msra.mxu0 %v200
        %580 = vmatprep.subr.mxu0 %v205
        %581 = vmatpush1.msra.mxu0 %v204
        %582 = vmatprep.subr.mxu0 %v209
        %583 = vmatpush1.msra.mxu0 %v208
        %584 = vmatprep.subr.mxu0 %v213
        %585 = vmatpush1.msra.mxu0 %v212
        %586 = vmatprep.subr.mxu0 %v217
        %587 = vmatpush1.msra.mxu0 %v216
        %588 = vmatprep.subr.mxu0 %v221
        %589 = vmatpush1.msra.mxu0 %v220
        %590 = vmatprep.subr.mxu0 %v225
        %591 = vmatpush1.msra.mxu0 %v224
        %592 = vmatprep.subr.mxu0 %v229
        %593 = vmatpush1.msra.mxu0 %v228
        %594 = vmatprep.subr.mxu0 %v233
        %595 = vmatpush1.msra.mxu0 %v232
        %596 = vmatprep.subr.mxu0 %v237
        %597 = vmatpush1.msra.mxu0 %v236
        %598 = vmatprep.subr.mxu0 %v241
        %599 = vmatpush1.msra.mxu0 %v240
        %600 = vmatprep.subr.mxu0 %v245
        %601 = vmatpush1.msra.mxu0 %v244
        %602 = vmatprep.subr.mxu0 %v249
        %603 = vmatpush1.msra.mxu0 %v248
        %604 = vmatprep.subr.mxu0 %v253
        %605 = vmatpush1.msra.mxu0 %v252
        %606 = vmatprep.subr.mxu0 %v257
        %607 = vmatpush1.msra.mxu0 %v256
        %608 = vmatprep.subr.mxu0 %v261
        %609 = vmatpush1.msra.mxu0 %v260
        %610 = vmatprep.subr.mxu0 %v265
        %611 = vmatpush1.msra.mxu0 %v264
        %612 = vmatprep.subr.mxu0 %v269
        %613 = vmatpush1.msra.mxu0 %v268
        %614 = vmatprep.subr.mxu0 %v273
        %615 = vmatpush1.msra.mxu0 %v272
        %616 = vmatprep.subr.mxu0 %v277
        %617 = vmatpush1.msra.mxu0 %v276
        %618 = vmatprep.subr.mxu0 %v281
        %619 = vmatpush1.msra.mxu0 %v280
        %620 = vmatprep.subr.mxu0 %v285
        %621 = vmatpush1.msra.mxu0 %v284
        %622 = vmatprep.subr.mxu0 %v289
        %623 = vmatpush1.msra.mxu0 %v288
        %624 = vmatprep.mubr.f32.mxu0 %v159
        %625 = vmatmul.mubr.f32.gmra.mrb[0].mxu0 %v158
        %v626 = vpop.f32.mrb[0].mxu0
        %v627 = vadd.f32 0.0, %v626
        %v628 = vpop.f32.mrb[0].mxu0
        %v629 = vadd.f32 0.0, %v628
        %630 = vdwg.mxu0
        %631 = vmatprep.subr.mxu0 %v293
        %632 = vmatpush1.msra.mxu0 %v292
        %633 = vmatprep.subr.mxu0 %v297
        %634 = vmatpush1.msra.mxu0 %v296
        %635 = vmatprep.subr.mxu0 %v301
        %636 = vmatpush1.msra.mxu0 %v300
        %637 = vmatprep.subr.mxu0 %v305
        %638 = vmatpush1.msra.mxu0 %v304
        %639 = vmatprep.subr.mxu0 %v309
        %640 = vmatpush1.msra.mxu0 %v308
        %641 = vmatprep.subr.mxu0 %v313
        %642 = vmatpush1.msra.mxu0 %v312
        %643 = vmatprep.subr.mxu0 %v317
        %644 = vmatpush1.msra.mxu0 %v316
        %645 = vmatprep.subr.mxu0 %v321
        %646 = vmatpush1.msra.mxu0 %v320
        %647 = vmatprep.subr.mxu0 %v325
        %648 = vmatpush1.msra.mxu0 %v324
        %649 = vmatprep.subr.mxu0 %v329
        %650 = vmatpush1.msra.mxu0 %v328
        %651 = vmatprep.subr.mxu0 %v333
        %652 = vmatpush1.msra.mxu0 %v332
        %653 = vmatprep.subr.mxu0 %v337
        %654 = vmatpush1.msra.mxu0 %v336
        %655 = vmatprep.subr.mxu0 %v341
        %656 = vmatpush1.msra.mxu0 %v340
        %657 = vmatprep.subr.mxu0 %v345
        %658 = vmatpush1.msra.mxu0 %v344
        %659 = vmatprep.subr.mxu0 %v349
        %660 = vmatpush1.msra.mxu0 %v348
        %661 = vmatprep.subr.mxu0 %v353
        %662 = vmatpush1.msra.mxu0 %v352
        %663 = vmatprep.subr.mxu0 %v357
        %664 = vmatpush1.msra.mxu0 %v356
        %665 = vmatprep.subr.mxu0 %v361
        %666 = vmatpush1.msra.mxu0 %v360
        %667 = vmatprep.subr.mxu0 %v365
        %668 = vmatpush1.msra.mxu0 %v364
        %669 = vmatprep.subr.mxu0 %v369
        %670 = vmatpush1.msra.mxu0 %v368
        %671 = vmatprep.subr.mxu0 %v373
        %672 = vmatpush1.msra.mxu0 %v372
        %673 = vmatprep.subr.mxu0 %v377
        %674 = vmatpush1.msra.mxu0 %v376
        %675 = vmatprep.subr.mxu0 %v381
        %676 = vmatpush1.msra.mxu0 %v380
        %677 = vmatprep.subr.mxu0 %v385
        %678 = vmatpush1.msra.mxu0 %v384
        %679 = vmatprep.subr.mxu0 %v389
        %680 = vmatpush1.msra.mxu0 %v388
        %681 = vmatprep.subr.mxu0 %v393
        %682 = vmatpush1.msra.mxu0 %v392
        %683 = vmatprep.subr.mxu0 %v397
        %684 = vmatpush1.msra.mxu0 %v396
        %685 = vmatprep.subr.mxu0 %v401
        %686 = vmatpush1.msra.mxu0 %v400
        %687 = vmatprep.subr.mxu0 %v405
        %688 = vmatpush1.msra.mxu0 %v404
        %689 = vmatprep.subr.mxu0 %v409
        %690 = vmatpush1.msra.mxu0 %v408
        %691 = vmatprep.subr.mxu0 %v413
        %692 = vmatpush1.msra.mxu0 %v412
        %693 = vmatprep.subr.mxu0 %v417
        %694 = vmatpush1.msra.mxu0 %v416
        %695 = vmatprep.mubr.f32.mxu0 %v161
        %696 = vmatmul.mubr.f32.gmra.mrb[0].mxu0 %v160
        %v697 = vpop.f32.mrb[0].mxu0
        %v698 = vadd.f32 %v627, %v697
        %v699 = vpop.f32.mrb[0].mxu0
        %v700 = vadd.f32 %v629, %v699
        %701 = vdwg.mxu0
        %v702 = vmax.f32 %v556, 0.0
        %v703 = vmax.f32 %v558, 0.0
        %v704 = vmax.f32 %v698, 0.0
        %v705 = vmax.f32 %v700, 0.0
        %v710 = vcombine.low %v702, %v703
        %v711 = vcombine.low %v704, %v705
        %v713 = vunpack.c.l.s4 1983009808
        %v714 = vunpack.c.0.s8 %v713
        %v715 = vlaneseq
        %v716 = vshrl.u32 %v715, 7
        %v717 = vsub.s32 %v714, %v716
        %v718 = vrot.slane %v710, %v717
        %v720 = vunpack.c.l.s4 1983009808
        %v721 = vunpack.c.0.s8 %v720
        %v722 = vlaneseq
        %v723 = vshrl.u32 %v722, 7
        %v724 = vsub.s32 %v721, %v723
        %v725 = vrot.slane %v711, %v724
        %v726 = vcombine.low %v718, %v725
        %728 = vst [vmem:[%s157] sm:$0xff] %v726
        %v729 = vcombine.high %v718, %v725
        %s731 = scalar_lea.vmem %s157, 8 [#allocation4]
        %732 = vst [vmem:[%s731] sm:$0xff] %v729
        %v733 = vcombine.high %v702, %v703
        %v734 = vcombine.high %v704, %v705
        %v736 = vunpack.c.l.s4 1983009808
        %v737 = vunpack.c.0.s8 %v736
        %v738 = vlaneseq
        %v739 = vshrl.u32 %v738, 7
        %v740 = vsub.s32 %v737, %v739
        %v741 = vrot.slane %v733, %v740
        %v743 = vunpack.c.l.s4 1983009808
        %v744 = vunpack.c.0.s8 %v743
        %v745 = vlaneseq
        %v746 = vshrl.u32 %v745, 7
        %v747 = vsub.s32 %v744, %v746
        %v748 = vrot.slane %v734, %v747
        %v749 = vcombine.low %v741, %v748
        %s751 = scalar_lea.vmem %s157, 16 [#allocation4]
        %752 = vst [vmem:[%s751] sm:$0xff] %v749
        %v753 = vcombine.high %v741, %v748
        %s755 = scalar_lea.vmem %s157, 24 [#allocation4]
        %756 = vst [vmem:[%s755] sm:$0xff] %v753
        %s757 = sand.u32 %s71, 1
        %s758 = sand.u32 %s71, 1
        %s759 = smul.addr %s758, 32
        %s760 = scalar_lea.vmem [#allocation4], %s759
        // Predicated region
        $region33: #{vgg_decode_forward.5} parent=27 // pred_check
          %p761 = pneg %p81
        $region34: #{vgg_decode_forward.5} parent=27 // pred_check_branch
          %763 = sbr.rel (%p761) target = $region36
        $region35: #{vgg_decode_forward.5} parent=27 // pred_region
          %s764 = smul.addr %s16, 4
          %s765 = smul.addr %s764, 2
          %s766 = scalar_lea.vmem %s2, %s765
          // Predicated region
          $region37: #{vgg_decode_forward.5} parent=35 // pred_check
            _
          $region38: #{vgg_decode_forward.5} parent=35 // pred_check_branch
            %768 = sbr.rel (0) target = $region40
          $region39: #{vgg_decode_forward.5} parent=35 // pred_region
            // Predicated region
            $region41: #{vgg_decode_forward.5} parent=39 // pred_check
              _
            $region42: #{vgg_decode_forward.5} parent=39 // pred_check_branch
              %770 = sbr.rel (0) target = $region44
            $region43: #{vgg_decode_forward.5} parent=39 // pred_region
              // Predicated region
              $region56: #{vgg_decode_forward.5} parent=43 // pred_check
                _
              $region57: #{vgg_decode_forward.5} parent=43 // pred_check_branch
                %791 = sbr.rel (0) target = $region59
              $region58: #{vgg_decode_forward.5} parent=43 // pred_region
                loop: start=0, step=1, limit=1
                $region60: #{vgg_decode_forward.5} parent=58 // loop_pre_header
                  _
                $region61: #{vgg_decode_forward.5} parent=58 // loop_header
                  %s793 = sphi 0, %s797
                  %p794 = scmp.ge.s32.totalorder %s793, 1
                  %s798 = sphi %s760, %s760
                  %s799 = sphi %s766, %s766
                $region62: #{vgg_decode_forward.5} parent=58 // loop_header_branch
                  %796 = sbr.rel (%p794) target = $region66
                $region63: #{vgg_decode_forward.5} parent=58 // loop_body
                  %v800 = vld [vmem:[%s798] sm:$0xff]
                  %801 = vst [vmem:[%s799] sm:$0xff] %v800
                  %v802 = vld [vmem:[%s798 + $0x8] sm:$0xff]
                  %803 = vst [vmem:[%s799 + $0x10] sm:$0xff] %v802
                  %v804 = vld [vmem:[%s798 + $0x10] sm:$0xff]
                  %805 = vst [vmem:[%s799 + $0x20] sm:$0xff] %v804
                  %v806 = vld [vmem:[%s798 + $0x18] sm:$0xff]
                  %807 = vst [vmem:[%s799 + $0x30] sm:$0xff] %v806
                $region64: #{vgg_decode_forward.5} parent=58 // loop_footer
                  %s797 = sadd.s32 1, %s793
                $region65: #{vgg_decode_forward.5} parent=58 // loop_footer_branch
                  %792 = sbr.rel target = $region61
                $region66: #{vgg_decode_forward.5} parent=58 // loop_exit
                  _
              $region59: #{vgg_decode_forward.5} parent=43 // pred_fallthru
                _
              // Predicated region
              $region67: #{vgg_decode_forward.5} parent=43 // pred_check
                _
              $region68: #{vgg_decode_forward.5} parent=43 // pred_check_branch
                %809 = sbr.rel target = $region70
              $region69: #{vgg_decode_forward.5} parent=43 // pred_region
                _
              $region70: #{vgg_decode_forward.5} parent=43 // pred_fallthru
                _
            $region44: #{vgg_decode_forward.5} parent=39 // pred_fallthru
              _
            // Predicated region
            $region45: #{vgg_decode_forward.5} parent=39 // pred_check
              _
            $region46: #{vgg_decode_forward.5} parent=39 // pred_check_branch
              %772 = sbr.rel target = $region48
            $region47: #{vgg_decode_forward.5} parent=39 // pred_region
              loop: start=0, step=1, limit=1
              $region49: #{vgg_decode_forward.5} parent=47 // loop_pre_header
                _
              $region50: #{vgg_decode_forward.5} parent=47 // loop_header
                %s775 = sphi 0, %s779
                %p776 = scmp.ge.s32.totalorder %s775, 1
                %s780 = sphi %s760, %s760
                %s781 = sphi %s766, %s766
              $region51: #{vgg_decode_forward.5} parent=47 // loop_header_branch
                %778 = sbr.rel (%p776) target = $region55
              $region52: #{vgg_decode_forward.5} parent=47 // loop_body
                %v782 = vld [vmem:[%s780] sm:$0xff]
                %783 = vst [vmem:[%s781] sm:$0xff] %v782
                %v784 = vld [vmem:[%s780 + $0x8] sm:$0xff]
                %785 = vst [vmem:[%s781 + $0x10] sm:$0xff] %v784
                %v786 = vld [vmem:[%s780 + $0x10] sm:$0xff]
                %787 = vst [vmem:[%s781 + $0x20] sm:$0xff] %v786
                %v788 = vld [vmem:[%s780 + $0x18] sm:$0xff]
                %789 = vst [vmem:[%s781 + $0x30] sm:$0xff] %v788
              $region53: #{vgg_decode_forward.5} parent=47 // loop_footer
                %s779 = sadd.s32 1, %s775
              $region54: #{vgg_decode_forward.5} parent=47 // loop_footer_branch
                %774 = sbr.rel target = $region50
              $region55: #{vgg_decode_forward.5} parent=47 // loop_exit
                _
            $region48: #{vgg_decode_forward.5} parent=39 // pred_fallthru
              _
          $region40: #{vgg_decode_forward.5} parent=35 // pred_fallthru
            _
          %810 = vnop
        $region36: #{vgg_decode_forward.5} parent=27 // pred_fallthru
          _
      $region28: #{vgg_decode_forward.5} parent=5 // pred_fallthru
        _
      %p811 = scmp.le.s32.totalorder 2, %s11
      // Predicated region
      $region71: #{vgg_decode_forward.5} parent=5 // pred_check
        %p812 = pneg %p811
      $region72: #{vgg_decode_forward.5} parent=5 // pred_check_branch
        %814 = sbr.rel (%p812) target = $region74
      $region73: #{vgg_decode_forward.5} parent=5 // pred_region
        %s815 = ssub.s32 %s11, 2
        // Predicated region
        $region75: #{vgg_decode_forward.5} parent=73 // pred_check
          %p816 = pneg %p87
        $region76: #{vgg_decode_forward.5} parent=73 // pred_check_branch
          %818 = sbr.rel (%p816) target = $region78
        $region77: #{vgg_decode_forward.5} parent=73 // pred_region
          %s819 = sand.u32 %s72, 1
          %s820 = sand.u32 %s72, 1
          %s821 = smul.addr %s820, 32
          %s822 = scalar_lea.vmem [#allocation4], %s821
        $region78: #{vgg_decode_forward.5} parent=73 // pred_fallthru
          _
      $region74: #{vgg_decode_forward.5} parent=5 // pred_fallthru
        _
    $region6: #{vgg_decode_forward.5} parent=1 // loop_footer
      %s15 = sadd.s32 1, %s11
    $region7: #{vgg_decode_forward.5} parent=1 // loop_footer_branch
      %10 = sbr.rel target = $region3
    $region8: #{vgg_decode_forward.5} parent=1 // loop_exit
      _
    %823 = vsyncpa [#allocation3], 1
    %s824 = scalar_lea.sflag [#allocation3], 1
    %825 = vsyncpa %s824, 1

// kernel: vgg_decode_forward.8
$region0: #{vgg_decode_forward.8}
  #allocation0 [shape = 'u32[]', space=smem, size = 0x4, offset = 0x4, fixed_abs, tag = 'smem constant byte address 0x4 - core index']
  #allocation1 [shape = 'u32[144,128]{1,0:T(1,128)}', space=vmem, size = 0x12000, scoped, tag = 'internal scratch']
  %s0 = inlined_call_operand.vmem [shape: f32[512,64], index: 0, kind: input, shape index: {}]
  %s1 = inlined_call_operand.vmem [shape: f32[2,64,64], index: 1, kind: input, shape index: {}]
  %s2 = inlined_call_operand.vmem [shape: f32[32,2,16,64], index: 2, kind: output, shape index: {}]
  %s3 = sld [smem:[#allocation0]]
  $region75: #{vgg_decode_forward.8} parent=0
    _
  %s5 = ssub.s32 1, %s3
  %s6 = scalar_select 0, %s5, %s3
  $region1: #{vgg_decode_forward.8} parent=0
    #allocation2 [shape = 'u8[524288]{0}', space=vmem, size = 0x80000, scoped, tag = 'output window, operand 0']
    loop: start=0, step=1, limit=4
    $region2: #{vgg_decode_forward.8} parent=1 // loop_pre_header
      _
    $region3: #{vgg_decode_forward.8} parent=1 // loop_header
      %s8 = sphi 0, %s12
      %p9 = scmp.ge.s32.totalorder %s8, 4
      %s16 = sphi 0, %s16
      %s18 = sphi 0, %s16
      %s19 = sphi 0, %s18
      %s33 = sphi 0, %s19
      %s39 = sphi 0, %s41
      %s42 = sphi 0, %s39
      %s43 = sphi 0, %s42
      %s59 = sphi 0, %s43
      %s65 = sphi 0, %s67
      %s68 = sphi 0, %s65
      %s69 = sphi 0, %s68
      %s85 = sphi 0, %s69
    $region4: #{vgg_decode_forward.8} parent=1 // loop_header_branch
      %11 = sbr.rel (%p9) target = $region8
    $region5: #{vgg_decode_forward.8} parent=1 // loop_body
      %s13 = ssub.s32 %s8, 1
      %s14 = ssub.s32 %s8, 2
      %s15 = sadd.s32 %s8, 1
      %s17 = sadd.s32 %s16, 1
      %p20 = scmp.eq.s32.totalorder %s8, 1
      %p21 = scmp.ne.s32.totalorder %s16, %s18
      %p22 = scmp.eq.s32.totalorder %s8, 0
      %p23 = por %p21, %p22
      %p24 = scmp.ne.s32.totalorder %s16, %s18
      %p25 = scmp.eq.s32.totalorder %s13, 1
      %p26 = por %p24, %p25
      %p27 = scmp.ne.s32.totalorder %s18, %s19
      %p28 = scmp.eq.s32.totalorder %s13, 0
      %p29 = por %p27, %p28
      %p30 = scmp.ne.s32.totalorder %s18, %s19
      %p31 = scmp.eq.s32.totalorder %s14, 1
      %p32 = por %p30, %p31
      %p34 = scmp.ne.s32.totalorder %s19, %s33
      %p35 = scmp.eq.s32.totalorder %s14, 0
      %p36 = por %p34, %p35
      %s37 = ssub.s32 %s8, %s15
      %p38 = scmp.eq.s32.totalorder %s37, 0
      %s40 = sadd.s32 %s39, 1
      %s41 = scalar_select %p38, %s39, %s40
      %p44 = pneg %p38
      %p45 = scmp.eq.s32.totalorder %s8, 1
      %p46 = por %p44, %p45
      %p47 = scmp.ne.s32.totalorder %s39, %s42
      %p48 = scmp.eq.s32.totalorder %s8, 0
      %p49 = por %p47, %p48
      %p50 = scmp.ne.s32.totalorder %s39, %s42
      %p51 = scmp.eq.s32.totalorder %s13, 1
      %p52 = por %p50, %p51
      %p53 = scmp.ne.s32.totalorder %s42, %s43
      %p54 = scmp.eq.s32.totalorder %s13, 0
      %p55 = por %p53, %p54
      %p56 = scmp.ne.s32.totalorder %s42, %s43
      %p57 = scmp.eq.s32.totalorder %s14, 1
      %p58 = por %p56, %p57
      %p60 = scmp.ne.s32.totalorder %s43, %s59
      %p61 = scmp.eq.s32.totalorder %s14, 0
      %p62 = por %p60, %p61
      %s63 = ssub.s32 %s8, %s15
      %p64 = scmp.eq.s32.totalorder %s63, 0
      %s66 = sadd.s32 %s65, 1
      %s67 = scalar_select %p64, %s65, %s66
      %p70 = pneg %p64
      %p71 = scmp.eq.s32.totalorder %s8, 1
      %p72 = por %p70, %p71
      %p73 = scmp.ne.s32.totalorder %s65, %s68
      %p74 = scmp.eq.s32.totalorder %s8, 0
      %p75 = por %p73, %p74
      %p76 = scmp.ne.s32.totalorder %s65, %s68
      %p77 = scmp.eq.s32.totalorder %s13, 1
      %p78 = por %p76, %p77
      %p79 = scmp.ne.s32.totalorder %s68, %s69
      %p80 = scmp.eq.s32.totalorder %s13, 0
      %p81 = por %p79, %p80
      %p82 = scmp.ne.s32.totalorder %s68, %s69
      %p83 = scmp.eq.s32.totalorder %s14, 1
      %p84 = por %p82, %p83
      %p86 = scmp.ne.s32.totalorder %s69, %s85
      %p87 = scmp.eq.s32.totalorder %s14, 0
      %p88 = por %p86, %p87
      %p89 = scmp.le.s32.totalorder 1, %s8
      %p90 = scmp.lt.s32.totalorder %s8, 3
      %p91 = pnand %p89, %p90
      %p92 = pneg %p91
      // Predicated region
      $region9: #{vgg_decode_forward.8} parent=5 // pred_check
        _
      $region10: #{vgg_decode_forward.8} parent=5 // pred_check_branch
        %94 = sbr.rel (%p91) target = $region12
      $region11: #{vgg_decode_forward.8} parent=5 // pred_region
        %s95 = ssub.s32 %s8, 1
        // Predicated region
        $region13: #{vgg_decode_forward.8} parent=11 // pred_check
          %p96 = pneg %p29
        $region14: #{vgg_decode_forward.8} parent=11 // pred_check_branch
          %98 = sbr.rel (%p96) target = $region16
        $region15: #{vgg_decode_forward.8} parent=11 // pred_region
          _
        $region16: #{vgg_decode_forward.8} parent=11 // pred_fallthru
          _
      $region12: #{vgg_decode_forward.8} parent=5 // pred_fallthru
        _
      %p99 = scmp.lt.s32.totalorder %s8, 2
      // Predicated region
      $region17: #{vgg_decode_forward.8} parent=5 // pred_check
        %p100 = pneg %p99
      $region18: #{vgg_decode_forward.8} parent=5 // pred_check_branch
        %102 = sbr.rel (%p100) target = $region20
      $region19: #{vgg_decode_forward.8} parent=5 // pred_region
        // Predicated region
        $region21: #{vgg_decode_forward.8} parent=19 // pred_check
          %p103 = pneg %p49
        $region22: #{vgg_decode_forward.8} parent=19 // pred_check_branch
          %105 = sbr.rel (%p103) target = $region24
        $region23: #{vgg_decode_forward.8} parent=19 // pred_region
          %p106 = scmp.lt.s32.totalorder %s8, 1
          %s107 = scalar_select %p106, %s8, 1
          %s108 = smul.addr %s107, 8
          %s109 = smul.addr %s108, 8
          %s110 = scalar_lea.vmem %s1, %s109
        $region24: #{vgg_decode_forward.8} parent=19 // pred_fallthru
          _
      $region20: #{vgg_decode_forward.8} parent=5 // pred_fallthru
        _
      %p111 = scmp.le.s32.totalorder 1, %s8
      %p112 = scmp.lt.s32.totalorder %s8, 3
      %p113 = pnand %p111, %p112
      %p114 = pneg %p113
      // Predicated region
      $region25: #{vgg_decode_forward.8} parent=5 // pred_check
        _
      $region26: #{vgg_decode_forward.8} parent=5 // pred_check_branch
        %116 = sbr.rel (%p113) target = $region28
      $region27: #{vgg_decode_forward.8} parent=5 // pred_region
        %s117 = ssub.s32 %s8, 1
        %p118 = pneg %p29
        %p119 = pneg %p26
        %p120 = scmp.lt.s32.totalorder %s13, 1
        %s121 = scalar_select %p120, %s13, 1
        %s122 = smul.addr %s121, 8
        %s123 = smul.addr %s122, 8
        %s124 = scalar_lea.vmem %s1, %s123
        %p125 = pneg %p55
        %p126 = pneg %p52
        %p127 = pneg %p81
        %p128 = pneg %p78
        %s129 = sand.u32 %s68, 1
        %s130 = sand.u32 %s68, 1
        %s131 = smul.addr %s130, 512
        %s132 = scalar_lea.vmem [#allocation2], %s131
        %p133 = scmp.lt.s32.totalorder %s13, 1
        %s134 = scalar_select %p133, %s13, 1
        %s135 = smul.addr %s134, 8
        %s136 = smul.addr %s135, 8
        %s137 = scalar_lea.vmem %s1, %s136
        %v138 = vld [vmem:[%s0] sm:$0xff]
        %v139 = vld [vmem:[%s0 + $0x8] sm:$0xff]
        %v140 = vld [vmem:[%s0 + $0x10] sm:$0xff]
        %v141 = vld [vmem:[%s0 + $0x18] sm:$0xff]
        %v142 = vld [vmem:[%s0 + $0x20] sm:$0xff]
        %v143 = vld [vmem:[%s0 + $0x28] sm:$0xff]
        %v144 = vld [vmem:[%s0 + $0x30] sm:$0xff]
        %v145 = vld [vmem:[%s0 + $0x38] sm:$0xff]
        %v146 = vld [vmem:[%s0 + $0x40] sm:$0xff]
        %v147 = vld [vmem:[%s0 + $0x48] sm:$0xff]
        %v148 = vld [vmem:[%s0 + $0x50] sm:$0xff]
        %v149 = vld [vmem:[%s0 + $0x58] sm:$0xff]
        %v150 = vld [vmem:[%s0 + $0x60] sm:$0xff]
        %v151 = vld [vmem:[%s0 + $0x68] sm:$0xff]
        %v152 = vld [vmem:[%s0 + $0x70] sm:$0xff]
        %v153 = vld [vmem:[%s0 + $0x78] sm:$0xff]
        %v154 = vld [vmem:[%s0 + $0x80] sm:$0xff]
        %v155 = vld [vmem:[%s0 + $0x88] sm:$0xff]
        %v156 = vld [vmem:[%s0 + $0x90] sm:$0xff]
        %v157 = vld [vmem:[%s0 + $0x98] sm:$0xff]
        %v158 = vld [vmem:[%s0 + $0xa0] sm:$0xff]
        %v159 = vld [vmem:[%s0 + $0xa8] sm:$0xff]
        %v160 = vld [vmem:[%s0 + $0xb0] sm:$0xff]
        %v161 = vld [vmem:[%s0 + $0xb8] sm:$0xff]
        %v162 = vld [vmem:[%s0 + $0xc0] sm:$0xff]
        %v163 = vld [vmem:[%s0 + $0xc8] sm:$0xff]
        %v164 = vld [vmem:[%s0 + $0xd0] sm:$0xff]
        %v165 = vld [vmem:[%s0 + $0xd8] sm:$0xff]
        %v166 = vld [vmem:[%s0 + $0xe0] sm:$0xff]
        %v167 = vld [vmem:[%s0 + $0xe8] sm:$0xff]
        %v168 = vld [vmem:[%s0 + $0xf0] sm:$0xff]
        %v169 = vld [vmem:[%s0 + $0xf8] sm:$0xff]
        %v170 = vld [vmem:[%s0 + $0x100] sm:$0xff]
        %v171 = vld [vmem:[%s0 + $0x108] sm:$0xff]
        %v172 = vld [vmem:[%s0 + $0x110] sm:$0xff]
        %v173 = vld [vmem:[%s0 + $0x118] sm:$0xff]
        %v174 = vld [vmem:[%s0 + $0x120] sm:$0xff]
        %v175 = vld [vmem:[%s0 + $0x128] sm:$0xff]
        %v176 = vld [vmem:[%s0 + $0x130] sm:$0xff]
        %v177 = vld [vmem:[%s0 + $0x138] sm:$0xff]
        %v178 = vld [vmem:[%s0 + $0x140] sm:$0xff]
        %v179 = vld [vmem:[%s0 + $0x148] sm:$0xff]
        %v180 = vld [vmem:[%s0 + $0x150] sm:$0xff]
        %v181 = vld [vmem:[%s0 + $0x158] sm:$0xff]
        %v182 = vld [vmem:[%s0 + $0x160] sm:$0xff]
        %v183 = vld [vmem:[%s0 + $0x168] sm:$0xff]
        %v184 = vld [vmem:[%s0 + $0x170] sm:$0xff]
        %v185 = vld [vmem:[%s0 + $0x178] sm:$0xff]
        %v186 = vld [vmem:[%s0 + $0x180] sm:$0xff]
        %v187 = vld [vmem:[%s0 + $0x188] sm:$0xff]
        %v188 = vld [vmem:[%s0 + $0x190] sm:$0xff]
        %v189 = vld [vmem:[%s0 + $0x198] sm:$0xff]
        %v190 = vld [vmem:[%s0 + $0x1a0] sm:$0xff]
        %v191 = vld [vmem:[%s0 + $0x1a8] sm:$0xff]
        %v192 = vld [vmem:[%s0 + $0x1b0] sm:$0xff]
        %v193 = vld [vmem:[%s0 + $0x1b8] sm:$0xff]
        %v194 = vld [vmem:[%s0 + $0x1c0] sm:$0xff]
        %v195 = vld [vmem:[%s0 + $0x1c8] sm:$0xff]
        %v196 = vld [vmem:[%s0 + $0x1d0] sm:$0xff]
        %v197 = vld [vmem:[%s0 + $0x1d8] sm:$0xff]
        %v198 = vld [vmem:[%s0 + $0x1e0] sm:$0xff]
        %v199 = vld [vmem:[%s0 + $0x1e8] sm:$0xff]
        %v200 = vld [vmem:[%s0 + $0x1f0] sm:$0xff]
        %v201 = vld [vmem:[%s0 + $0x1f8] sm:$0xff]
        %v202 = vld [vmem:[%s137] sm:$0xff]
        %v203 = vld [vmem:[%s137 + $0x8] sm:$0xff]
        %v204 = vld [vmem:[%s137 + $0x10] sm:$0xff]
        %v205 = vld [vmem:[%s137 + $0x18] sm:$0xff]
        %v206 = vld [vmem:[%s137 + $0x20] sm:$0xff]
        %v207 = vld [vmem:[%s137 + $0x28] sm:$0xff]
        %v208 = vld [vmem:[%s137 + $0x30] sm:$0xff]
        %v209 = vld [vmem:[%s137 + $0x38] sm:$0xff]
        %vm210 = vcmask 523264
        %v212 = vsel %vm210, %v138, 0
        %v215 = vsel %vm210, %v139, 0
        %v218 = vsel %vm210, %v140, 0
        %v221 = vsel %vm210, %v141, 0
        %v224 = vsel %vm210, %v142, 0
        %v227 = vsel %vm210, %v143, 0
        %v230 = vsel %vm210, %v144, 0
        %v233 = vsel %vm210, %v145, 0
        %v236 = vsel %vm210, %v146, 0
        %v239 = vsel %vm210, %v147, 0
        %v242 = vsel %vm210, %v148, 0
        %v245 = vsel %vm210, %v149, 0
        %v248 = vsel %vm210, %v150, 0
        %v251 = vsel %vm210, %v151, 0
        %v254 = vsel %vm210, %v152, 0
        %v257 = vsel %vm210, %v153, 0
        %v260 = vsel %vm210, %v154, 0
        %v263 = vsel %vm210, %v155, 0
        %v266 = vsel %vm210, %v156, 0
        %v269 = vsel %vm210, %v157, 0
        %v272 = vsel %vm210, %v158, 0
        %v275 = vsel %vm210, %v159, 0
        %v278 = vsel %vm210, %v160, 0
        %v281 = vsel %vm210, %v161, 0
        %v284 = vsel %vm210, %v162, 0
        %v287 = vsel %vm210, %v163, 0
        %v290 = vsel %vm210, %v164, 0
        %v293 = vsel %vm210, %v165, 0
        %v296 = vsel %vm210, %v166, 0
        %v299 = vsel %vm210, %v167, 0
        %v302 = vsel %vm210, %v168, 0
        %v305 = vsel %vm210, %v169, 0
        %v308 = vsel %vm210, %v170, 0
        %v311 = vsel %vm210, %v171, 0
        %v314 = vsel %vm210, %v172, 0
        %v317 = vsel %vm210, %v173, 0
        %v320 = vsel %vm210, %v174, 0
        %v323 = vsel %vm210, %v175, 0
        %v326 = vsel %vm210, %v176, 0
        %v329 = vsel %vm210, %v177, 0
        %v332 = vsel %vm210, %v178, 0
        %v335 = vsel %vm210, %v179, 0
        %v338 = vsel %vm210, %v180, 0
        %v341 = vsel %vm210, %v181, 0
        %v344 = vsel %vm210, %v182, 0
        %v347 = vsel %vm210, %v183, 0
        %v350 = vsel %vm210, %v184, 0
        %v353 = vsel %vm210, %v185, 0
        %v356 = vsel %vm210, %v186, 0
        %v359 = vsel %vm210, %v187, 0
        %v362 = vsel %vm210, %v188, 0
        %v365 = vsel %vm210, %v189, 0
        %v368 = vsel %vm210, %v190, 0
        %v371 = vsel %vm210, %v191, 0
        %v374 = vsel %vm210, %v192, 0
        %v377 = vsel %vm210, %v193, 0
        %v380 = vsel %vm210, %v194, 0
        %v383 = vsel %vm210, %v195, 0
        %v386 = vsel %vm210, %v196, 0
        %v389 = vsel %vm210, %v197, 0
        %v392 = vsel %vm210, %v198, 0
        %v395 = vsel %vm210, %v199, 0
        %v398 = vsel %vm210, %v200, 0
        %v401 = vsel %vm210, %v201, 0
        %403 = vmatprep.subr.mxu0 0.0
        %404 = vmatpush1.msra.mxu0 %v202
        %405 = vmatprep.subr.mxu0 0.0
        %406 = vmatpush1.msra.mxu0 %v203
        %407 = vmatprep.subr.mxu0 0.0
        %408 = vmatpush1.msra.mxu0 %v204
        %409 = vmatprep.subr.mxu0 0.0
        %410 = vmatpush1.msra.mxu0 %v205
        %411 = vmatprep.subr.mxu0 0.0
        %412 = vmatpush1.msra.mxu0 %v206
        %413 = vmatprep.subr.mxu0 0.0
        %414 = vmatpush1.msra.mxu0 %v207
        %415 = vmatprep.subr.mxu0 0.0
        %416 = vmatpush1.msra.mxu0 %v208
        %417 = vmatprep.subr.mxu0 0.0
        %418 = vmatpush1.msra.mxu0 %v209
        %419 = vmatprep.subr.mxu0 0.0
        %420 = vmatpush1.msra.mxu0 0.0
        %421 = vmatprep.subr.mxu0 0.0
        %422 = vmatpush1.msra.mxu0 0.0
        %423 = vmatprep.subr.mxu0 0.0
        %424 = vmatpush1.msra.mxu0 0.0
        %425 = vmatprep.subr.mxu0 0.0
        %426 = vmatpush1.msra.mxu0 0.0
        %427 = vmatprep.subr.mxu0 0.0
        %428 = vmatpush1.msra.mxu0 0.0
        %429 = vmatprep.subr.mxu0 0.0
        %430 = vmatpush1.msra.mxu0 0.0
        %431 = vmatprep.subr.mxu0 0.0
        %432 = vmatpush1.msra.mxu0 0.0
        %433 = vmatprep.subr.mxu0 0.0
        %434 = vmatpush1.msra.mxu0 0.0
        %435 = vmatprep.subr.mxu0 0.0
        %436 = vmatpush1.msra.mxu0 0.0
        %437 = vmatprep.subr.mxu0 0.0
        %438 = vmatpush1.msra.mxu0 0.0
        %439 = vmatprep.subr.mxu0 0.0
        %440 = vmatpush1.msra.mxu0 0.0
        %441 = vmatprep.subr.mxu0 0.0
        %442 = vmatpush1.msra.mxu0 0.0
        %443 = vmatprep.subr.mxu0 0.0
        %444 = vmatpush1.msra.mxu0 0.0
        %445 = vmatprep.subr.mxu0 0.0
        %446 = vmatpush1.msra.mxu0 0.0
        %447 = vmatprep.subr.mxu0 0.0
        %448 = vmatpush1.msra.mxu0 0.0
        %449 = vmatprep.subr.mxu0 0.0
        %450 = vmatpush1.msra.mxu0 0.0
        %451 = vmatprep.subr.mxu0 0.0
        %452 = vmatpush1.msra.mxu0 0.0
        %453 = vmatprep.subr.mxu0 0.0
        %454 = vmatpush1.msra.mxu0 0.0
        %455 = vmatprep.subr.mxu0 0.0
        %456 = vmatpush1.msra.mxu0 0.0
        %457 = vmatprep.subr.mxu0 0.0
        %458 = vmatpush1.msra.mxu0 0.0
        %459 = vmatprep.subr.mxu0 0.0
        %460 = vmatpush1.msra.mxu0 0.0
        %461 = vmatprep.subr.mxu0 0.0
        %462 = vmatpush1.msra.mxu0 0.0
        %463 = vmatprep.subr.mxu0 0.0
        %464 = vmatpush1.msra.mxu0 0.0
        %465 = vmatprep.subr.mxu0 0.0
        %466 = vmatpush1.msra.mxu0 0.0
        %467 = vmatprep.mubr.f32.mxu0 0.0
        %468 = vmatmul.mubr.f32.gmra.mrb[0].mxu0 %v212
        %v469 = vpop.f32.mrb[0].mxu0
        %v470 = vadd.f32 0.0, %v469
        %v471 = vpop.f32.mrb[0].mxu0
        %472 = vmatprep.mubr.f32.mxu0 0.0
        %473 = vmatmul.mubr.f32.gmra.mrb[0].mxu0 %v215
        %v474 = vpop.f32.mrb[0].mxu0
        %v475 = vadd.f32 0.0, %v474
        %v476 = vpop.f32.mrb[0].mxu0
        %477 = vmatprep.mubr.f32.mxu0 0.0
        %478 = vmatmul.mubr.f32.gmra.mrb[0].mxu0 %v218
        %v479 = vpop.f32.mrb[0].mxu0
        %v480 = vadd.f32 0.0, %v479
        %v481 = vpop.f32.mrb[0].mxu0
        %482 = vmatprep.mubr.f32.mxu0 0.0
        %483 = vmatmul.mubr.f32.gmra.mrb[0].mxu0 %v221
        %v484 = vpop.f32.mrb[0].mxu0
        %v485 = vadd.f32 0.0, %v484
        %v486 = vpop.f32.mrb[0].mxu0
        %487 = vmatprep.mubr.f32.mxu0 0.0
        %488 = vmatmul.mubr.f32.gmra.mrb[0].mxu0 %v224
        %v489 = vpop.f32.mrb[0].mxu0
        %v490 = vadd.f32 0.0, %v489
        %v491 = vpop.f32.mrb[0].mxu0
        %492 = vmatprep.mubr.f32.mxu0 0.0
        %493 = vmatmul.mubr.f32.gmra.mrb[0].mxu0 %v227
        %v494 = vpop.f32.mrb[0].mxu0
        %v495 = vadd.f32 0.0, %v494
        %v496 = vpop.f32.mrb[0].mxu0
        %497 = vmatprep.mubr.f32.mxu0 0.0
        %498 = vmatmul.mubr.f32.gmra.mrb[0].mxu0 %v230
        %v499 = vpop.f32.mrb[0].mxu0
        %v500 = vadd.f32 0.0, %v499
        %v501 = vpop.f32.mrb[0].mxu0
        %502 = vmatprep.mubr.f32.mxu0 0.0
        %503 = vmatmul.mubr.f32.gmra.mrb[0].mxu0 %v233
        %v504 = vpop.f32.mrb[0].mxu0
        %v505 = vadd.f32 0.0, %v504
        %v506 = vpop.f32.mrb[0].mxu0
        %507 = vmatprep.mubr.f32.mxu0 0.0
        %508 = vmatmul.mubr.f32.gmra.mrb[0].mxu0 %v236
        %v509 = vpop.f32.mrb[0].mxu0
        %v510 = vadd.f32 0.0, %v509
        %v511 = vpop.f32.mrb[0].mxu0
        %512 = vmatprep.mubr.f32.mxu0 0.0
        %513 = vmatmul.mubr.f32.gmra.mrb[0].mxu0 %v239
        %v514 = vpop.f32.mrb[0].mxu0
        %v515 = vadd.f32 0.0, %v514
        %v516 = vpop.f32.mrb[0].mxu0
        %517 = vmatprep.mubr.f32.mxu0 0.0
        %518 = vmatmul.mubr.f32.gmra.mrb[0].mxu0 %v242
        %v519 = vpop.f32.mrb[0].mxu0
        %v520 = vadd.f32 0.0, %v519
        %v521 = vpop.f32.mrb[0].mxu0
        %522 = vmatprep.mubr.f32.mxu0 0.0
        %523 = vmatmul.mubr.f32.gmra.mrb[0].mxu0 %v245
        %v524 = vpop.f32.mrb[0].mxu0
        %v525 = vadd.f32 0.0, %v524
        %v526 = vpop.f32.mrb[0].mxu0
        %527 = vmatprep.mubr.f32.mxu0 0.0
        %528 = vmatmul.mubr.f32.gmra.mrb[0].mxu0 %v248
        %v529 = vpop.f32.mrb[0].mxu0
        %v530 = vadd.f32 0.0, %v529
        %v531 = vpop.f32.mrb[0].mxu0
        %532 = vmatprep.mubr.f32.mxu0 0.0
        %533 = vmatmul.mubr.f32.gmra.mrb[0].mxu0 %v251
        %v534 = vpop.f32.mrb[0].mxu0
        %v535 = vadd.f32 0.0, %v534
        %v536 = vpop.f32.mrb[0].mxu0
        %537 = vmatprep.mubr.f32.mxu0 0.0
        %538 = vmatmul.mubr.f32.gmra.mrb[0].mxu0 %v254
        %v539 = vpop.f32.mrb[0].mxu0
        %v540 = vadd.f32 0.0, %v539
        %v541 = vpop.f32.mrb[0].mxu0
        %542 = vmatprep.mubr.f32.mxu0 0.0
        %543 = vmatmul.mubr.f32.gmra.mrb[0].mxu0 %v257
        %v544 = vpop.f32.mrb[0].mxu0
        %v545 = vadd.f32 0.0, %v544
        %v546 = vpop.f32.mrb[0].mxu0
        %547 = vmatprep.mubr.f32.mxu0 0.0
        %548 = vmatmul.mubr.f32.gmra.mrb[0].mxu0 %v260
        %v549 = vpop.f32.mrb[0].mxu0
        %v550 = vadd.f32 0.0, %v549
        %v551 = vpop.f32.mrb[0].mxu0
        %552 = vmatprep.mubr.f32.mxu0 0.0
        %553 = vmatmul.mubr.f32.gmra.mrb[0].mxu0 %v263
        %v554 = vpop.f32.mrb[0].mxu0
        %v555 = vadd.f32 0.0, %v554
        %v556 = vpop.f32.mrb[0].mxu0
        %557 = vmatprep.mubr.f32.mxu0 0.0
        %558 = vmatmul.mubr.f32.gmra.mrb[0].mxu0 %v266
        %v559 = vpop.f32.mrb[0].mxu0
        %v560 = vadd.f32 0.0, %v559
        %v561 = vpop.f32.mrb[0].mxu0
        %562 = vmatprep.mubr.f32.mxu0 0.0
        %563 = vmatmul.mubr.f32.gmra.mrb[0].mxu0 %v269
        %v564 = vpop.f32.mrb[0].mxu0
        %v565 = vadd.f32 0.0, %v564
        %v566 = vpop.f32.mrb[0].mxu0
        %567 = vmatprep.mubr.f32.mxu0 0.0
        %568 = vmatmul.mubr.f32.gmra.mrb[0].mxu0 %v272
        %v569 = vpop.f32.mrb[0].mxu0
        %v570 = vadd.f32 0.0, %v569
        %v571 = vpop.f32.mrb[0].mxu0
        %572 = vmatprep.mubr.f32.mxu0 0.0
        %573 = vmatmul.mubr.f32.gmra.mrb[0].mxu0 %v275
        %v574 = vpop.f32.mrb[0].mxu0
        %v575 = vadd.f32 0.0, %v574
        %v576 = vpop.f32.mrb[0].mxu0
        %577 = vmatprep.mubr.f32.mxu0 0.0
        %578 = vmatmul.mubr.f32.gmra.mrb[0].mxu0 %v278
        %v579 = vpop.f32.mrb[0].mxu0
        %v580 = vadd.f32 0.0, %v579
        %v581 = vpop.f32.mrb[0].mxu0
        %582 = vmatprep.mubr.f32.mxu0 0.0
        %583 = vmatmul.mubr.f32.gmra.mrb[0].mxu0 %v281
        %v584 = vpop.f32.mrb[0].mxu0
        %v585 = vadd.f32 0.0, %v584
        %v586 = vpop.f32.mrb[0].mxu0
        %587 = vmatprep.mubr.f32.mxu0 0.0
        %588 = vmatmul.mubr.f32.gmra.mrb[0].mxu0 %v284
        %v589 = vpop.f32.mrb[0].mxu0
        %v590 = vadd.f32 0.0, %v589
        %v591 = vpop.f32.mrb[0].mxu0
        %592 = vmatprep.mubr.f32.mxu0 0.0
        %593 = vmatmul.mubr.f32.gmra.mrb[0].mxu0 %v287
        %v594 = vpop.f32.mrb[0].mxu0
        %v595 = vadd.f32 0.0, %v594
        %v596 = vpop.f32.mrb[0].mxu0
        %597 = vmatprep.mubr.f32.mxu0 0.0
        %598 = vmatmul.mubr.f32.gmra.mrb[0].mxu0 %v290
        %v599 = vpop.f32.mrb[0].mxu0
        %v600 = vadd.f32 0.0, %v599
        %v601 = vpop.f32.mrb[0].mxu0
        %602 = vmatprep.mubr.f32.mxu0 0.0
        %603 = vmatmul.mubr.f32.gmra.mrb[0].mxu0 %v293
        %v604 = vpop.f32.mrb[0].mxu0
        %v605 = vadd.f32 0.0, %v604
        %v606 = vpop.f32.mrb[0].mxu0
        %607 = vmatprep.mubr.f32.mxu0 0.0
        %608 = vmatmul.mubr.f32.gmra.mrb[0].mxu0 %v296
        %v609 = vpop.f32.mrb[0].mxu0
        %v610 = vadd.f32 0.0, %v609
        %v611 = vpop.f32.mrb[0].mxu0
        %612 = vmatprep.mubr.f32.mxu0 0.0
        %613 = vmatmul.mubr.f32.gmra.mrb[0].mxu0 %v299
        %v614 = vpop.f32.mrb[0].mxu0
        %v615 = vadd.f32 0.0, %v614
        %v616 = vpop.f32.mrb[0].mxu0
        %617 = vmatprep.mubr.f32.mxu0 0.0
        %618 = vmatmul.mubr.f32.gmra.mrb[0].mxu0 %v302
        %v619 = vpop.f32.mrb[0].mxu0
        %v620 = vadd.f32 0.0, %v619
        %v621 = vpop.f32.mrb[0].mxu0
        %622 = vmatprep.mubr.f32.mxu0 0.0
        %623 = vmatmul.mubr.f32.gmra.mrb[0].mxu0 %v305
        %v624 = vpop.f32.mrb[0].mxu0
        %v625 = vadd.f32 0.0, %v624
        %v626 = vpop.f32.mrb[0].mxu0
        %627 = vmatprep.mubr.f32.mxu0 0.0
        %628 = vmatmul.mubr.f32.gmra.mrb[0].mxu0 %v308
        %v629 = vpop.f32.mrb[0].mxu0
        %v630 = vadd.f32 0.0, %v629
        %v631 = vpop.f32.mrb[0].mxu0
        %632 = vmatprep.mubr.f32.mxu0 0.0
        %633 = vmatmul.mubr.f32.gmra.mrb[0].mxu0 %v311
        %v634 = vpop.f32.mrb[0].mxu0
        %v635 = vadd.f32 0.0, %v634
        %v636 = vpop.f32.mrb[0].mxu0
        %637 = vmatprep.mubr.f32.mxu0 0.0
        %638 = vmatmul.mubr.f32.gmra.mrb[0].mxu0 %v314
        %v639 = vpop.f32.mrb[0].mxu0
        %v640 = vadd.f32 0.0, %v639
        %v641 = vpop.f32.mrb[0].mxu0
        %642 = vmatprep.mubr.f32.mxu0 0.0
        %643 = vmatmul.mubr.f32.gmra.mrb[0].mxu0 %v317
        %v644 = vpop.f32.mrb[0].mxu0
        %v645 = vadd.f32 0.0, %v644
        %v646 = vpop.f32.mrb[0].mxu0
        %647 = vmatprep.mubr.f32.mxu0 0.0
        %648 = vmatmul.mubr.f32.gmra.mrb[0].mxu0 %v320
        %v649 = vpop.f32.mrb[0].mxu0
        %v650 = vadd.f32 0.0, %v649
        %v651 = vpop.f32.mrb[0].mxu0
        %652 = vmatprep.mubr.f32.mxu0 0.0
        %653 = vmatmul.mubr.f32.gmra.mrb[0].mxu0 %v323
        %v654 = vpop.f32.mrb[0].mxu0
        %v655 = vadd.f32 0.0, %v654
        %v656 = vpop.f32.mrb[0].mxu0
        %657 = vmatprep.mubr.f32.mxu0 0.0
        %658 = vmatmul.mubr.f32.gmra.mrb[0].mxu0 %v326
        %v659 = vpop.f32.mrb[0].mxu0
        %v660 = vadd.f32 0.0, %v659
        %v661 = vpop.f32.mrb[0].mxu0
        %662 = vmatprep.mubr.f32.mxu0 0.0
        %663 = vmatmul.mubr.f32.gmra.mrb[0].mxu0 %v329
        %v664 = vpop.f32.mrb[0].mxu0
        %v665 = vadd.f32 0.0, %v664
        %v666 = vpop.f32.mrb[0].mxu0
        %667 = vmatprep.mubr.f32.mxu0 0.0
        %668 = vmatmul.mubr.f32.gmra.mrb[0].mxu0 %v332
        %v669 = vpop.f32.mrb[0].mxu0
        %v670 = vadd.f32 0.0, %v669
        %v671 = vpop.f32.mrb[0].mxu0
        %672 = vmatprep.mubr.f32.mxu0 0.0
        %673 = vmatmul.mubr.f32.gmra.mrb[0].mxu0 %v335
        %v674 = vpop.f32.mrb[0].mxu0
        %v675 = vadd.f32 0.0, %v674
        %v676 = vpop.f32.mrb[0].mxu0
        %677 = vmatprep.mubr.f32.mxu0 0.0
        %678 = vmatmul.mubr.f32.gmra.mrb[0].mxu0 %v338
        %v679 = vpop.f32.mrb[0].mxu0
        %v680 = vadd.f32 0.0, %v679
        %v681 = vpop.f32.mrb[0].mxu0
        %682 = vmatprep.mubr.f32.mxu0 0.0
        %683 = vmatmul.mubr.f32.gmra.mrb[0].mxu0 %v341
        %v684 = vpop.f32.mrb[0].mxu0
        %v685 = vadd.f32 0.0, %v684
        %v686 = vpop.f32.mrb[0].mxu0
        %687 = vmatprep.mubr.f32.mxu0 0.0
        %688 = vmatmul.mubr.f32.gmra.mrb[0].mxu0 %v344
        %v689 = vpop.f32.mrb[0].mxu0
        %v690 = vadd.f32 0.0, %v689
        %v691 = vpop.f32.mrb[0].mxu0
        %692 = vmatprep.mubr.f32.mxu0 0.0
        %693 = vmatmul.mubr.f32.gmra.mrb[0].mxu0 %v347
        %v694 = vpop.f32.mrb[0].mxu0
        %v695 = vadd.f32 0.0, %v694
        %v696 = vpop.f32.mrb[0].mxu0
        %697 = vmatprep.mubr.f32.mxu0 0.0
        %698 = vmatmul.mubr.f32.gmra.mrb[0].mxu0 %v350
        %v699 = vpop.f32.mrb[0].mxu0
        %v700 = vadd.f32 0.0, %v699
        %v701 = vpop.f32.mrb[0].mxu0
        %702 = vmatprep.mubr.f32.mxu0 0.0
        %703 = vmatmul.mubr.f32.gmra.mrb[0].mxu0 %v353
        %v704 = vpop.f32.mrb[0].mxu0
        %v705 = vadd.f32 0.0, %v704
        %v706 = vpop.f32.mrb[0].mxu0
        %707 = vmatprep.mubr.f32.mxu0 0.0
        %708 = vmatmul.mubr.f32.gmra.mrb[0].mxu0 %v356
        %v709 = vpop.f32.mrb[0].mxu0
        %v710 = vadd.f32 0.0, %v709
        %v711 = vpop.f32.mrb[0].mxu0
        %712 = vmatprep.mubr.f32.mxu0 0.0
        %713 = vmatmul.mubr.f32.gmra.mrb[0].mxu0 %v359
        %v714 = vpop.f32.mrb[0].mxu0
        %v715 = vadd.f32 0.0, %v714
        %v716 = vpop.f32.mrb[0].mxu0
        %717 = vmatprep.mubr.f32.mxu0 0.0
        %718 = vmatmul.mubr.f32.gmra.mrb[0].mxu0 %v362
        %v719 = vpop.f32.mrb[0].mxu0
        %v720 = vadd.f32 0.0, %v719
        %v721 = vpop.f32.mrb[0].mxu0
        %722 = vmatprep.mubr.f32.mxu0 0.0
        %723 = vmatmul.mubr.f32.gmra.mrb[0].mxu0 %v365
        %v724 = vpop.f32.mrb[0].mxu0
        %v725 = vadd.f32 0.0, %v724
        %v726 = vpop.f32.mrb[0].mxu0
        %727 = vmatprep.mubr.f32.mxu0 0.0
        %728 = vmatmul.mubr.f32.gmra.mrb[0].mxu0 %v368
        %v729 = vpop.f32.mrb[0].mxu0
        %v730 = vadd.f32 0.0, %v729
        %v731 = vpop.f32.mrb[0].mxu0
        %732 = vmatprep.mubr.f32.mxu0 0.0
        %733 = vmatmul.mubr.f32.gmra.mrb[0].mxu0 %v371
        %v734 = vpop.f32.mrb[0].mxu0
        %v735 = vadd.f32 0.0, %v734
        %v736 = vpop.f32.mrb[0].mxu0
        %737 = vmatprep.mubr.f32.mxu0 0.0
        %738 = vmatmul.mubr.f32.gmra.mrb[0].mxu0 %v374
        %v739 = vpop.f32.mrb[0].mxu0
        %v740 = vadd.f32 0.0, %v739
        %v741 = vpop.f32.mrb[0].mxu0
        %742 = vmatprep.mubr.f32.mxu0 0.0
        %743 = vmatmul.mubr.f32.gmra.mrb[0].mxu0 %v377
        %v744 = vpop.f32.mrb[0].mxu0
        %v745 = vadd.f32 0.0, %v744
        %v746 = vpop.f32.mrb[0].mxu0
        %747 = vmatprep.mubr.f32.mxu0 0.0
        %748 = vmatmul.mubr.f32.gmra.mrb[0].mxu0 %v380
        %v749 = vpop.f32.mrb[0].mxu0
        %v750 = vadd.f32 0.0, %v749
        %v751 = vpop.f32.mrb[0].mxu0
        %752 = vmatprep.mubr.f32.mxu0 0.0
        %753 = vmatmul.mubr.f32.gmra.mrb[0].mxu0 %v383
        %v754 = vpop.f32.mrb[0].mxu0
        %v755 = vadd.f32 0.0, %v754
        %v756 = vpop.f32.mrb[0].mxu0
        %757 = vmatprep.mubr.f32.mxu0 0.0
        %758 = vmatmul.mubr.f32.gmra.mrb[0].mxu0 %v386
        %v759 = vpop.f32.mrb[0].mxu0
        %v760 = vadd.f32 0.0, %v759
        %v761 = vpop.f32.mrb[0].mxu0
        %762 = vmatprep.mubr.f32.mxu0 0.0
        %763 = vmatmul.mubr.f32.gmra.mrb[0].mxu0 %v389
        %v764 = vpop.f32.mrb[0].mxu0
        %v765 = vadd.f32 0.0, %v764
        %v766 = vpop.f32.mrb[0].mxu0
        %767 = vmatprep.mubr.f32.mxu0 0.0
        %768 = vmatmul.mubr.f32.gmra.mrb[0].mxu0 %v392
        %v769 = vpop.f32.mrb[0].mxu0
        %v770 = vadd.f32 0.0, %v769
        %v771 = vpop.f32.mrb[0].mxu0
        %772 = vmatprep.mubr.f32.mxu0 0.0
        %773 = vmatmul.mubr.f32.gmra.mrb[0].mxu0 %v395
        %v774 = vpop.f32.mrb[0].mxu0
        %v775 = vadd.f32 0.0, %v774
        %v776 = vpop.f32.mrb[0].mxu0
        %777 = vmatprep.mubr.f32.mxu0 0.0
        %778 = vmatmul.mubr.f32.gmra.mrb[0].mxu0 %v398
        %v779 = vpop.f32.mrb[0].mxu0
        %v780 = vadd.f32 0.0, %v779
        %v781 = vpop.f32.mrb[0].mxu0
        %782 = vmatprep.mubr.f32.mxu0 0.0
        %783 = vmatmul.mubr.f32.gmra.mrb[0].mxu0 %v401
        %v784 = vpop.f32.mrb[0].mxu0
        %v785 = vadd.f32 0.0, %v784
        %v786 = vpop.f32.mrb[0].mxu0
        %787 = vdwg.mxu0
        %v788 = vmax.f32 %v470, 0.0
        %v789 = vmax.f32 %v475, 0.0
        %v790 = vmax.f32 %v480, 0.0
        %v791 = vmax.f32 %v485, 0.0
        %v792 = vmax.f32 %v490, 0.0
        %v793 = vmax.f32 %v495, 0.0
        %v794 = vmax.f32 %v500, 0.0
        %v795 = vmax.f32 %v505, 0.0
        %v796 = vmax.f32 %v510, 0.0
        %v797 = vmax.f32 %v515, 0.0
        %v798 = vmax.f32 %v520, 0.0
        %v799 = vmax.f32 %v525, 0.0
        %v800 = vmax.f32 %v530, 0.0
        %v801 = vmax.f32 %v535, 0.0
        %v802 = vmax.f32 %v540, 0.0
        %v803 = vmax.f32 %v545, 0.0
        %v804 = vmax.f32 %v550, 0.0
        %v805 = vmax.f32 %v555, 0.0
        %v806 = vmax.f32 %v560, 0.0
        %v807 = vmax.f32 %v565, 0.0
        %v808 = vmax.f32 %v570, 0.0
        %v809 = vmax.f32 %v575, 0.0
        %v810 = vmax.f32 %v580, 0.0
        %v811 = vmax.f32 %v585, 0.0
        %v812 = vmax.f32 %v590, 0.0
        %v813 = vmax.f32 %v595, 0.0
        %v814 = vmax.f32 %v600, 0.0
        %v815 = vmax.f32 %v605, 0.0
        %v816 = vmax.f32 %v610, 0.0
        %v817 = vmax.f32 %v615, 0.0
        %v818 = vmax.f32 %v620, 0.0
        %v819 = vmax.f32 %v625, 0.0
        %v820 = vmax.f32 %v630, 0.0
        %v821 = vmax.f32 %v635, 0.0
        %v822 = vmax.f32 %v640, 0.0
        %v823 = vmax.f32 %v645, 0.0
        %v824 = vmax.f32 %v650, 0.0
        %v825 = vmax.f32 %v655, 0.0
        %v826 = vmax.f32 %v660, 0.0
        %v827 = vmax.f32 %v665, 0.0
        %v828 = vmax.f32 %v670, 0.0
        %v829 = vmax.f32 %v675, 0.0
        %v830 = vmax.f32 %v680, 0.0
        %v831 = vmax.f32 %v685, 0.0
        %v832 = vmax.f32 %v690, 0.0
        %v833 = vmax.f32 %v695, 0.0
        %v834 = vmax.f32 %v700, 0.0
        %v835 = vmax.f32 %v705, 0.0
        %v836 = vmax.f32 %v710, 0.0
        %v837 = vmax.f32 %v715, 0.0
        %v838 = vmax.f32 %v720, 0.0
        %v839 = vmax.f32 %v725, 0.0
        %v840 = vmax.f32 %v730, 0.0
        %v841 = vmax.f32 %v735, 0.0
        %v842 = vmax.f32 %v740, 0.0
        %v843 = vmax.f32 %v745, 0.0
        %v844 = vmax.f32 %v750, 0.0
        %v845 = vmax.f32 %v755, 0.0
        %v846 = vmax.f32 %v760, 0.0
        %v847 = vmax.f32 %v765, 0.0
        %v848 = vmax.f32 %v770, 0.0
        %v849 = vmax.f32 %v775, 0.0
        %v850 = vmax.f32 %v780, 0.0
        %v851 = vmax.f32 %v785, 0.0
        %852 = vst.msk [vmem:[%s132] sm:$0xff] %vm210, %v788
        %853 = vst.msk [vmem:[%s132 + $0x8] sm:$0xff] %vm210, %v789
        %854 = vst.msk [vmem:[%s132 + $0x10] sm:$0xff] %vm210, %v790
        %855 = vst.msk [vmem:[%s132 + $0x18] sm:$0xff] %vm210, %v791
        %856 = vst.msk [vmem:[%s132 + $0x20] sm:$0xff] %vm210, %v792
        %857 = vst.msk [vmem:[%s132 + $0x28] sm:$0xff] %vm210, %v793
        %858 = vst.msk [vmem:[%s132 + $0x30] sm:$0xff] %vm210, %v794
        %859 = vst.msk [vmem:[%s132 + $0x38] sm:$0xff] %vm210, %v795
        %860 = vst.msk [vmem:[%s132 + $0x40] sm:$0xff] %vm210, %v796
        %861 = vst.msk [vmem:[%s132 + $0x48] sm:$0xff] %vm210, %v797
        %862 = vst.msk [vmem:[%s132 + $0x50] sm:$0xff] %vm210, %v798
        %863 = vst.msk [vmem:[%s132 + $0x58] sm:$0xff] %vm210, %v799
        %864 = vst.msk [vmem:[%s132 + $0x60] sm:$0xff] %vm210, %v800
        %865 = vst.msk [vmem:[%s132 + $0x68] sm:$0xff] %vm210, %v801
        %866 = vst.msk [vmem:[%s132 + $0x70] sm:$0xff] %vm210, %v802
        %867 = vst.msk [vmem:[%s132 + $0x78] sm:$0xff] %vm210, %v803
        %868 = vst.msk [vmem:[%s132 + $0x80] sm:$0xff] %vm210, %v804
        %869 = vst.msk [vmem:[%s132 + $0x88] sm:$0xff] %vm210, %v805
        %870 = vst.msk [vmem:[%s132 + $0x90] sm:$0xff] %vm210, %v806
        %871 = vst.msk [vmem:[%s132 + $0x98] sm:$0xff] %vm210, %v807
        %872 = vst.msk [vmem:[%s132 + $0xa0] sm:$0xff] %vm210, %v808
        %873 = vst.msk [vmem:[%s132 + $0xa8] sm:$0xff] %vm210, %v809
        %874 = vst.msk [vmem:[%s132 + $0xb0] sm:$0xff] %vm210, %v810
        %875 = vst.msk [vmem:[%s132 + $0xb8] sm:$0xff] %vm210, %v811
        %876 = vst.msk [vmem:[%s132 + $0xc0] sm:$0xff] %vm210, %v812
        %877 = vst.msk [vmem:[%s132 + $0xc8] sm:$0xff] %vm210, %v813
        %878 = vst.msk [vmem:[%s132 + $0xd0] sm:$0xff] %vm210, %v814
        %879 = vst.msk [vmem:[%s132 + $0xd8] sm:$0xff] %vm210, %v815
        %880 = vst.msk [vmem:[%s132 + $0xe0] sm:$0xff] %vm210, %v816
        %881 = vst.msk [vmem:[%s132 + $0xe8] sm:$0xff] %vm210, %v817
        %882 = vst.msk [vmem:[%s132 + $0xf0] sm:$0xff] %vm210, %v818
        %883 = vst.msk [vmem:[%s132 + $0xf8] sm:$0xff] %vm210, %v819
        %884 = vst.msk [vmem:[%s132 + $0x100] sm:$0xff] %vm210, %v820
        %885 = vst.msk [vmem:[%s132 + $0x108] sm:$0xff] %vm210, %v821
        %886 = vst.msk [vmem:[%s132 + $0x110] sm:$0xff] %vm210, %v822
        %887 = vst.msk [vmem:[%s132 + $0x118] sm:$0xff] %vm210, %v823
        %888 = vst.msk [vmem:[%s132 + $0x120] sm:$0xff] %vm210, %v824
        %889 = vst.msk [vmem:[%s132 + $0x128] sm:$0xff] %vm210, %v825
        %890 = vst.msk [vmem:[%s132 + $0x130] sm:$0xff] %vm210, %v826
        %891 = vst.msk [vmem:[%s132 + $0x138] sm:$0xff] %vm210, %v827
        %892 = vst.msk [vmem:[%s132 + $0x140] sm:$0xff] %vm210, %v828
        %893 = vst.msk [vmem:[%s132 + $0x148] sm:$0xff] %vm210, %v829
        %894 = vst.msk [vmem:[%s132 + $0x150] sm:$0xff] %vm210, %v830
        %895 = vst.msk [vmem:[%s132 + $0x158] sm:$0xff] %vm210, %v831
        %896 = vst.msk [vmem:[%s132 + $0x160] sm:$0xff] %vm210, %v832
        %897 = vst.msk [vmem:[%s132 + $0x168] sm:$0xff] %vm210, %v833
        %898 = vst.msk [vmem:[%s132 + $0x170] sm:$0xff] %vm210, %v834
        %899 = vst.msk [vmem:[%s132 + $0x178] sm:$0xff] %vm210, %v835
        %900 = vst.msk [vmem:[%s132 + $0x180] sm:$0xff] %vm210, %v836
        %901 = vst.msk [vmem:[%s132 + $0x188] sm:$0xff] %vm210, %v837
        %902 = vst.msk [vmem:[%s132 + $0x190] sm:$0xff] %vm210, %v838
        %903 = vst.msk [vmem:[%s132 + $0x198] sm:$0xff] %vm210, %v839
        %904 = vst.msk [vmem:[%s132 + $0x1a0] sm:$0xff] %vm210, %v840
        %905 = vst.msk [vmem:[%s132 + $0x1a8] sm:$0xff] %vm210, %v841
        %906 = vst.msk [vmem:[%s132 + $0x1b0] sm:$0xff] %vm210, %v842
        %907 = vst.msk [vmem:[%s132 + $0x1b8] sm:$0xff] %vm210, %v843
        %908 = vst.msk [vmem:[%s132 + $0x1c0] sm:$0xff] %vm210, %v844
        %909 = vst.msk [vmem:[%s132 + $0x1c8] sm:$0xff] %vm210, %v845
        %910 = vst.msk [vmem:[%s132 + $0x1d0] sm:$0xff] %vm210, %v846
        %911 = vst.msk [vmem:[%s132 + $0x1d8] sm:$0xff] %vm210, %v847
        %912 = vst.msk [vmem:[%s132 + $0x1e0] sm:$0xff] %vm210, %v848
        %913 = vst.msk [vmem:[%s132 + $0x1e8] sm:$0xff] %vm210, %v849
        %914 = vst.msk [vmem:[%s132 + $0x1f0] sm:$0xff] %vm210, %v850
        %915 = vst.msk [vmem:[%s132 + $0x1f8] sm:$0xff] %vm210, %v851
        %s916 = sand.u32 %s68, 1
        %s917 = sand.u32 %s68, 1
        %s918 = smul.addr %s917, 512
        %s919 = scalar_lea.vmem [#allocation2], %s918
        // Predicated region
        $region29: #{vgg_decode_forward.8} parent=27 // pred_check
          %p920 = pneg %p78
        $region30: #{vgg_decode_forward.8} parent=27 // pred_check_branch
          %922 = sbr.rel (%p920) target = $region32
        $region31: #{vgg_decode_forward.8} parent=27 // pred_region
          %s923 = smul.addr %s13, 2
          %s924 = smul.addr %s923, 8
          %s925 = scalar_lea.vmem %s2, %s924
          // Predicated region
          $region33: #{vgg_decode_forward.8} parent=31 // pred_check
            _
          $region34: #{vgg_decode_forward.8} parent=31 // pred_check_branch
            %927 = sbr.rel (0) target = $region36
          $region35: #{vgg_decode_forward.8} parent=31 // pred_region
            // Predicated region
            $region37: #{vgg_decode_forward.8} parent=35 // pred_check
              _
            $region38: #{vgg_decode_forward.8} parent=35 // pred_check_branch
              %929 = sbr.rel (0) target = $region40
            $region39: #{vgg_decode_forward.8} parent=35 // pred_region
              // Predicated region
              $region52: #{vgg_decode_forward.8} parent=39 // pred_check
                _
              $region53: #{vgg_decode_forward.8} parent=39 // pred_check_branch
                %1070 = sbr.rel (0) target = $region55
              $region54: #{vgg_decode_forward.8} parent=39 // pred_region
                loop: start=0, step=1, limit=1
                $region56: #{vgg_decode_forward.8} parent=54 // loop_pre_header
                  _
                $region57: #{vgg_decode_forward.8} parent=54 // loop_header
                  %s1072 = sphi 0, %s1076
                  %p1073 = scmp.ge.s32.totalorder %s1072, 1
                  %s1077 = sphi %s919, %s919
                  %s1078 = sphi %s925, %s925
                $region58: #{vgg_decode_forward.8} parent=54 // loop_header_branch
                  %1075 = sbr.rel (%p1073) target = $region62
                $region59: #{vgg_decode_forward.8} parent=54 // loop_body
                  %v1079 = vld [vmem:[%s1077] sm:$0xff]
                  %1080 = vst [vmem:[%s1078] sm:$0xff] %v1079
                  %v1081 = vld [vmem:[%s1077 + $0x8] sm:$0xff]
                  %1082 = vst [vmem:[%s1078 + $0x8] sm:$0xff] %v1081
                  %v1083 = vld [vmem:[%s1077 + $0x10] sm:$0xff]
                  %1084 = vst [vmem:[%s1078 + $0x20] sm:$0xff] %v1083
                  %v1085 = vld [vmem:[%s1077 + $0x18] sm:$0xff]
                  %1086 = vst [vmem:[%s1078 + $0x28] sm:$0xff] %v1085
                  %v1087 = vld [vmem:[%s1077 + $0x20] sm:$0xff]
                  %1088 = vst [vmem:[%s1078 + $0x40] sm:$0xff] %v1087
                  %v1089 = vld [vmem:[%s1077 + $0x28] sm:$0xff]
                  %1090 = vst [vmem:[%s1078 + $0x48] sm:$0xff] %v1089
                  %v1091 = vld [vmem:[%s1077 + $0x30] sm:$0xff]
                  %1092 = vst [vmem:[%s1078 + $0x60] sm:$0xff] %v1091
                  %v1093 = vld [vmem:[%s1077 + $0x38] sm:$0xff]
                  %1094 = vst [vmem:[%s1078 + $0x68] sm:$0xff] %v1093
                  %v1095 = vld [vmem:[%s1077 + $0x40] sm:$0xff]
                  %1096 = vst [vmem:[%s1078 + $0x80] sm:$0xff] %v1095
                  %v1097 = vld [vmem:[%s1077 + $0x48] sm:$0xff]
                  %1098 = vst [vmem:[%s1078 + $0x88] sm:$0xff] %v1097
                  %v1099 = vld [vmem:[%s1077 + $0x50] sm:$0xff]
                  %1100 = vst [vmem:[%s1078 + $0xa0] sm:$0xff] %v1099
                  %v1101 = vld [vmem:[%s1077 + $0x58] sm:$0xff]
                  %1102 = vst [vmem:[%s1078 + $0xa8] sm:$0xff] %v1101
                  %v1103 = vld [vmem:[%s1077 + $0x60] sm:$0xff]
                  %1104 = vst [vmem:[%s1078 + $0xc0] sm:$0xff] %v1103
                  %v1105 = vld [vmem:[%s1077 + $0x68] sm:$0xff]
                  %1106 = vst [vmem:[%s1078 + $0xc8] sm:$0xff] %v1105
                  %v1107 = vld [vmem:[%s1077 + $0x70] sm:$0xff]
                  %1108 = vst [vmem:[%s1078 + $0xe0] sm:$0xff] %v1107
                  %v1109 = vld [vmem:[%s1077 + $0x78] sm:$0xff]
                  %1110 = vst [vmem:[%s1078 + $0xe8] sm:$0xff] %v1109
                  %v1111 = vld [vmem:[%s1077 + $0x80] sm:$0xff]
                  %1112 = vst [vmem:[%s1078 + $0x100] sm:$0xff] %v1111
                  %v1113 = vld [vmem:[%s1077 + $0x88] sm:$0xff]
                  %1114 = vst [vmem:[%s1078 + $0x108] sm:$0xff] %v1113
                  %v1115 = vld [vmem:[%s1077 + $0x90] sm:$0xff]
                  %1116 = vst [vmem:[%s1078 + $0x120] sm:$0xff] %v1115
                  %v1117 = vld [vmem:[%s1077 + $0x98] sm:$0xff]
                  %1118 = vst [vmem:[%s1078 + $0x128] sm:$0xff] %v1117
                  %v1119 = vld [vmem:[%s1077 + $0xa0] sm:$0xff]
                  %1120 = vst [vmem:[%s1078 + $0x140] sm:$0xff] %v1119
                  %v1121 = vld [vmem:[%s1077 + $0xa8] sm:$0xff]
                  %1122 = vst [vmem:[%s1078 + $0x148] sm:$0xff] %v1121
                  %v1123 = vld [vmem:[%s1077 + $0xb0] sm:$0xff]
                  %1124 = vst [vmem:[%s1078 + $0x160] sm:$0xff] %v1123
                  %v1125 = vld [vmem:[%s1077 + $0xb8] sm:$0xff]
                  %1126 = vst [vmem:[%s1078 + $0x168] sm:$0xff] %v1125
                  %v1127 = vld [vmem:[%s1077 + $0xc0] sm:$0xff]
                  %1128 = vst [vmem:[%s1078 + $0x180] sm:$0xff] %v1127
                  %v1129 = vld [vmem:[%s1077 + $0xc8] sm:$0xff]
                  %1130 = vst [vmem:[%s1078 + $0x188] sm:$0xff] %v1129
                  %v1131 = vld [vmem:[%s1077 + $0xd0] sm:$0xff]
                  %1132 = vst [vmem:[%s1078 + $0x1a0] sm:$0xff] %v1131
                  %v1133 = vld [vmem:[%s1077 + $0xd8] sm:$0xff]
                  %1134 = vst [vmem:[%s1078 + $0x1a8] sm:$0xff] %v1133
                  %v1135 = vld [vmem:[%s1077 + $0xe0] sm:$0xff]
                  %1136 = vst [vmem:[%s1078 + $0x1c0] sm:$0xff] %v1135
                  %v1137 = vld [vmem:[%s1077 + $0xe8] sm:$0xff]
                  %1138 = vst [vmem:[%s1078 + $0x1c8] sm:$0xff] %v1137
                  %v1139 = vld [vmem:[%s1077 + $0xf0] sm:$0xff]
                  %1140 = vst [vmem:[%s1078 + $0x1e0] sm:$0xff] %v1139
                  %v1141 = vld [vmem:[%s1077 + $0xf8] sm:$0xff]
                  %1142 = vst [vmem:[%s1078 + $0x1e8] sm:$0xff] %v1141
                  %v1143 = vld [vmem:[%s1077 + $0x100] sm:$0xff]
                  %1144 = vst [vmem:[%s1078 + $0x200] sm:$0xff] %v1143
                  %v1145 = vld [vmem:[%s1077 + $0x108] sm:$0xff]
                  %1146 = vst [vmem:[%s1078 + $0x208] sm:$0xff] %v1145
                  %v1147 = vld [vmem:[%s1077 + $0x110] sm:$0xff]
                  %1148 = vst [vmem:[%s1078 + $0x220] sm:$0xff] %v1147
                  %v1149 = vld [vmem:[%s1077 + $0x118] sm:$0xff]
                  %1150 = vst [vmem:[%s1078 + $0x228] sm:$0xff] %v1149
                  %v1151 = vld [vmem:[%s1077 + $0x120] sm:$0xff]
                  %1152 = vst [vmem:[%s1078 + $0x240] sm:$0xff] %v1151
                  %v1153 = vld [vmem:[%s1077 + $0x128] sm:$0xff]
                  %1154 = vst [vmem:[%s1078 + $0x248] sm:$0xff] %v1153
                  %v1155 = vld [vmem:[%s1077 + $0x130] sm:$0xff]
                  %1156 = vst [vmem:[%s1078 + $0x260] sm:$0xff] %v1155
                  %v1157 = vld [vmem:[%s1077 + $0x138] sm:$0xff]
                  %1158 = vst [vmem:[%s1078 + $0x268] sm:$0xff] %v1157
                  %v1159 = vld [vmem:[%s1077 + $0x140] sm:$0xff]
                  %1160 = vst [vmem:[%s1078 + $0x280] sm:$0xff] %v1159
                  %v1161 = vld [vmem:[%s1077 + $0x148] sm:$0xff]
                  %1162 = vst [vmem:[%s1078 + $0x288] sm:$0xff] %v1161
                  %v1163 = vld [vmem:[%s1077 + $0x150] sm:$0xff]
                  %1164 = vst [vmem:[%s1078 + $0x2a0] sm:$0xff] %v1163
                  %v1165 = vld [vmem:[%s1077 + $0x158] sm:$0xff]
                  %1166 = vst [vmem:[%s1078 + $0x2a8] sm:$0xff] %v1165
                  %v1167 = vld [vmem:[%s1077 + $0x160] sm:$0xff]
                  %1168 = vst [vmem:[%s1078 + $0x2c0] sm:$0xff] %v1167
                  %v1169 = vld [vmem:[%s1077 + $0x168] sm:$0xff]
                  %1170 = vst [vmem:[%s1078 + $0x2c8] sm:$0xff] %v1169
                  %v1171 = vld [vmem:[%s1077 + $0x170] sm:$0xff]
                  %1172 = vst [vmem:[%s1078 + $0x2e0] sm:$0xff] %v1171
                  %v1173 = vld [vmem:[%s1077 + $0x178] sm:$0xff]
                  %1174 = vst [vmem:[%s1078 + $0x2e8] sm:$0xff] %v1173
                  %v1175 = vld [vmem:[%s1077 + $0x180] sm:$0xff]
                  %1176 = vst [vmem:[%s1078 + $0x300] sm:$0xff] %v1175
                  %v1177 = vld [vmem:[%s1077 + $0x188] sm:$0xff]
                  %1178 = vst [vmem:[%s1078 + $0x308] sm:$0xff] %v1177
                  %v1179 = vld [vmem:[%s1077 + $0x190] sm:$0xff]
                  %1180 = vst [vmem:[%s1078 + $0x320] sm:$0xff] %v1179
                  %v1181 = vld [vmem:[%s1077 + $0x198] sm:$0xff]
                  %1182 = vst [vmem:[%s1078 + $0x328] sm:$0xff] %v1181
                  %v1183 = vld [vmem:[%s1077 + $0x1a0] sm:$0xff]
                  %1184 = vst [vmem:[%s1078 + $0x340] sm:$0xff] %v1183
                  %v1185 = vld [vmem:[%s1077 + $0x1a8] sm:$0xff]
                  %1186 = vst [vmem:[%s1078 + $0x348] sm:$0xff] %v1185
                  %v1187 = vld [vmem:[%s1077 + $0x1b0] sm:$0xff]
                  %1188 = vst [vmem:[%s1078 + $0x360] sm:$0xff] %v1187
                  %v1189 = vld [vmem:[%s1077 + $0x1b8] sm:$0xff]
                  %1190 = vst [vmem:[%s1078 + $0x368] sm:$0xff] %v1189
                  %v1191 = vld [vmem:[%s1077 + $0x1c0] sm:$0xff]
                  %1192 = vst [vmem:[%s1078 + $0x380] sm:$0xff] %v1191
                  %v1193 = vld [vmem:[%s1077 + $0x1c8] sm:$0xff]
                  %1194 = vst [vmem:[%s1078 + $0x388] sm:$0xff] %v1193
                  %v1195 = vld [vmem:[%s1077 + $0x1d0] sm:$0xff]
                  %1196 = vst [vmem:[%s1078 + $0x3a0] sm:$0xff] %v1195
                  %v1197 = vld [vmem:[%s1077 + $0x1d8] sm:$0xff]
                  %1198 = vst [vmem:[%s1078 + $0x3a8] sm:$0xff] %v1197
                  %v1199 = vld [vmem:[%s1077 + $0x1e0] sm:$0xff]
                  %1200 = vst [vmem:[%s1078 + $0x3c0] sm:$0xff] %v1199
                  %v1201 = vld [vmem:[%s1077 + $0x1e8] sm:$0xff]
                  %1202 = vst [vmem:[%s1078 + $0x3c8] sm:$0xff] %v1201
                  %v1203 = vld [vmem:[%s1077 + $0x1f0] sm:$0xff]
                  %1204 = vst [vmem:[%s1078 + $0x3e0] sm:$0xff] %v1203
                  %v1205 = vld [vmem:[%s1077 + $0x1f8] sm:$0xff]
                  %1206 = vst [vmem:[%s1078 + $0x3e8] sm:$0xff] %v1205
                $region60: #{vgg_decode_forward.8} parent=54 // loop_footer
                  %s1076 = sadd.s32 1, %s1072
                $region61: #{vgg_decode_forward.8} parent=54 // loop_footer_branch
                  %1071 = sbr.rel target = $region57
                $region62: #{vgg_decode_forward.8} parent=54 // loop_exit
                  _
              $region55: #{vgg_decode_forward.8} parent=39 // pred_fallthru
                _
              // Predicated region
              $region63: #{vgg_decode_forward.8} parent=39 // pred_check
                _
              $region64: #{vgg_decode_forward.8} parent=39 // pred_check_branch
                %1208 = sbr.rel target = $region66
              $region65: #{vgg_decode_forward.8} parent=39 // pred_region
                _
              $region66: #{vgg_decode_forward.8} parent=39 // pred_fallthru
                _
            $region40: #{vgg_decode_forward.8} parent=35 // pred_fallthru
              _
            // Predicated region
            $region41: #{vgg_decode_forward.8} parent=35 // pred_check
              _
            $region42: #{vgg_decode_forward.8} parent=35 // pred_check_branch
              %931 = sbr.rel target = $region44
            $region43: #{vgg_decode_forward.8} parent=35 // pred_region
              loop: start=0, step=1, limit=1
              $region45: #{vgg_decode_forward.8} parent=43 // loop_pre_header
                _
              $region46: #{vgg_decode_forward.8} parent=43 // loop_header
                %s934 = sphi 0, %s938
                %p935 = scmp.ge.s32.totalorder %s934, 1
                %s939 = sphi %s919, %s919
                %s940 = sphi %s925, %s925
              $region47: #{vgg_decode_forward.8} parent=43 // loop_header_branch
                %937 = sbr.rel (%p935) target = $region51
              $region48: #{vgg_decode_forward.8} parent=43 // loop_body
                %v941 = vld [vmem:[%s939] sm:$0xff]
                %942 = vst [vmem:[%s940] sm:$0xff] %v941
                %v943 = vld [vmem:[%s939 + $0x8] sm:$0xff]
                %944 = vst [vmem:[%s940 + $0x8] sm:$0xff] %v943
                %v945 = vld [vmem:[%s939 + $0x10] sm:$0xff]
                %946 = vst [vmem:[%s940 + $0x20] sm:$0xff] %v945
                %v947 = vld [vmem:[%s939 + $0x18] sm:$0xff]
                %948 = vst [vmem:[%s940 + $0x28] sm:$0xff] %v947
                %v949 = vld [vmem:[%s939 + $0x20] sm:$0xff]
                %950 = vst [vmem:[%s940 + $0x40] sm:$0xff] %v949
                %v951 = vld [vmem:[%s939 + $0x28] sm:$0xff]
                %952 = vst [vmem:[%s940 + $0x48] sm:$0xff] %v951
                %v953 = vld [vmem:[%s939 + $0x30] sm:$0xff]
                %954 = vst [vmem:[%s940 + $0x60] sm:$0xff] %v953
                %v955 = vld [vmem:[%s939 + $0x38] sm:$0xff]
                %956 = vst [vmem:[%s940 + $0x68] sm:$0xff] %v955
                %v957 = vld [vmem:[%s939 + $0x40] sm:$0xff]
                %958 = vst [vmem:[%s940 + $0x80] sm:$0xff] %v957
                %v959 = vld [vmem:[%s939 + $0x48] sm:$0xff]
                %960 = vst [vmem:[%s940 + $0x88] sm:$0xff] %v959
                %v961 = vld [vmem:[%s939 + $0x50] sm:$0xff]
                %962 = vst [vmem:[%s940 + $0xa0] sm:$0xff] %v961
                %v963 = vld [vmem:[%s939 + $0x58] sm:$0xff]
                %964 = vst [vmem:[%s940 + $0xa8] sm:$0xff] %v963
                %v965 = vld [vmem:[%s939 + $0x60] sm:$0xff]
                %966 = vst [vmem:[%s940 + $0xc0] sm:$0xff] %v965
                %v967 = vld [vmem:[%s939 + $0x68] sm:$0xff]
                %968 = vst [vmem:[%s940 + $0xc8] sm:$0xff] %v967
                %v969 = vld [vmem:[%s939 + $0x70] sm:$0xff]
                %970 = vst [vmem:[%s940 + $0xe0] sm:$0xff] %v969
                %v971 = vld [vmem:[%s939 + $0x78] sm:$0xff]
                %972 = vst [vmem:[%s940 + $0xe8] sm:$0xff] %v971
                %v973 = vld [vmem:[%s939 + $0x80] sm:$0xff]
                %974 = vst [vmem:[%s940 + $0x100] sm:$0xff] %v973
                %v975 = vld [vmem:[%s939 + $0x88] sm:$0xff]
                %976 = vst [vmem:[%s940 + $0x108] sm:$0xff] %v975
                %v977 = vld [vmem:[%s939 + $0x90] sm:$0xff]
                %978 = vst [vmem:[%s940 + $0x120] sm:$0xff] %v977
                %v979 = vld [vmem:[%s939 + $0x98] sm:$0xff]
                %980 = vst [vmem:[%s940 + $0x128] sm:$0xff] %v979
                %v981 = vld [vmem:[%s939 + $0xa0] sm:$0xff]
                %982 = vst [vmem:[%s940 + $0x140] sm:$0xff] %v981
                %v983 = vld [vmem:[%s939 + $0xa8] sm:$0xff]
                %984 = vst [vmem:[%s940 + $0x148] sm:$0xff] %v983
                %v985 = vld [vmem:[%s939 + $0xb0] sm:$0xff]
                %986 = vst [vmem:[%s940 + $0x160] sm:$0xff] %v985
                %v987 = vld [vmem:[%s939 + $0xb8] sm:$0xff]
                %988 = vst [vmem:[%s940 + $0x168] sm:$0xff] %v987
                %v989 = vld [vmem:[%s939 + $0xc0] sm:$0xff]
                %990 = vst [vmem:[%s940 + $0x180] sm:$0xff] %v989
                %v991 = vld [vmem:[%s939 + $0xc8] sm:$0xff]
                %992 = vst [vmem:[%s940 + $0x188] sm:$0xff] %v991
                %v993 = vld [vmem:[%s939 + $0xd0] sm:$0xff]
                %994 = vst [vmem:[%s940 + $0x1a0] sm:$0xff] %v993
                %v995 = vld [vmem:[%s939 + $0xd8] sm:$0xff]
                %996 = vst [vmem:[%s940 + $0x1a8] sm:$0xff] %v995
                %v997 = vld [vmem:[%s939 + $0xe0] sm:$0xff]
                %998 = vst [vmem:[%s940 + $0x1c0] sm:$0xff] %v997
                %v999 = vld [vmem:[%s939 + $0xe8] sm:$0xff]
                %1000 = vst [vmem:[%s940 + $0x1c8] sm:$0xff] %v999
                %v1001 = vld [vmem:[%s939 + $0xf0] sm:$0xff]
                %1002 = vst [vmem:[%s940 + $0x1e0] sm:$0xff] %v1001
                %v1003 = vld [vmem:[%s939 + $0xf8] sm:$0xff]
                %1004 = vst [vmem:[%s940 + $0x1e8] sm:$0xff] %v1003
                %v1005 = vld [vmem:[%s939 + $0x100] sm:$0xff]
                %1006 = vst [vmem:[%s940 + $0x200] sm:$0xff] %v1005
                %v1007 = vld [vmem:[%s939 + $0x108] sm:$0xff]
                %1008 = vst [vmem:[%s940 + $0x208] sm:$0xff] %v1007
                %v1009 = vld [vmem:[%s939 + $0x110] sm:$0xff]
                %1010 = vst [vmem:[%s940 + $0x220] sm:$0xff] %v1009
                %v1011 = vld [vmem:[%s939 + $0x118] sm:$0xff]
                %1012 = vst [vmem:[%s940 + $0x228] sm:$0xff] %v1011
                %v1013 = vld [vmem:[%s939 + $0x120] sm:$0xff]
                %1014 = vst [vmem:[%s940 + $0x240] sm:$0xff] %v1013
                %v1015 = vld [vmem:[%s939 + $0x128] sm:$0xff]
                %1016 = vst [vmem:[%s940 + $0x248] sm:$0xff] %v1015
                %v1017 = vld [vmem:[%s939 + $0x130] sm:$0xff]
                %1018 = vst [vmem:[%s940 + $0x260] sm:$0xff] %v1017
                %v1019 = vld [vmem:[%s939 + $0x138] sm:$0xff]
                %1020 = vst [vmem:[%s940 + $0x268] sm:$0xff] %v1019
                %v1021 = vld [vmem:[%s939 + $0x140] sm:$0xff]
                %1022 = vst [vmem:[%s940 + $0x280] sm:$0xff] %v1021
                %v1023 = vld [vmem:[%s939 + $0x148] sm:$0xff]
                %1024 = vst [vmem:[%s940 + $0x288] sm:$0xff] %v1023
                %v1025 = vld [vmem:[%s939 + $0x150] sm:$0xff]
                %1026 = vst [vmem:[%s940 + $0x2a0] sm:$0xff] %v1025
                %v1027 = vld [vmem:[%s939 + $0x158] sm:$0xff]
                %1028 = vst [vmem:[%s940 + $0x2a8] sm:$0xff] %v1027
                %v1029 = vld [vmem:[%s939 + $0x160] sm:$0xff]
                %1030 = vst [vmem:[%s940 + $0x2c0] sm:$0xff] %v1029
                %v1031 = vld [vmem:[%s939 + $0x168] sm:$0xff]
                %1032 = vst [vmem:[%s940 + $0x2c8] sm:$0xff] %v1031
                %v1033 = vld [vmem:[%s939 + $0x170] sm:$0xff]
                %1034 = vst [vmem:[%s940 + $0x2e0] sm:$0xff] %v1033
                %v1035 = vld [vmem:[%s939 + $0x178] sm:$0xff]
                %1036 = vst [vmem:[%s940 + $0x2e8] sm:$0xff] %v1035
                %v1037 = vld [vmem:[%s939 + $0x180] sm:$0xff]
                %1038 = vst [vmem:[%s940 + $0x300] sm:$0xff] %v1037
                %v1039 = vld [vmem:[%s939 + $0x188] sm:$0xff]
                %1040 = vst [vmem:[%s940 + $0x308] sm:$0xff] %v1039
                %v1041 = vld [vmem:[%s939 + $0x190] sm:$0xff]
                %1042 = vst [vmem:[%s940 + $0x320] sm:$0xff] %v1041
                %v1043 = vld [vmem:[%s939 + $0x198] sm:$0xff]
                %1044 = vst [vmem:[%s940 + $0x328] sm:$0xff] %v1043
                %v1045 = vld [vmem:[%s939 + $0x1a0] sm:$0xff]
                %1046 = vst [vmem:[%s940 + $0x340] sm:$0xff] %v1045
                %v1047 = vld [vmem:[%s939 + $0x1a8] sm:$0xff]
                %1048 = vst [vmem:[%s940 + $0x348] sm:$0xff] %v1047
                %v1049 = vld [vmem:[%s939 + $0x1b0] sm:$0xff]
                %1050 = vst [vmem:[%s940 + $0x360] sm:$0xff] %v1049
                %v1051 = vld [vmem:[%s939 + $0x1b8] sm:$0xff]
                %1052 = vst [vmem:[%s940 + $0x368] sm:$0xff] %v1051
                %v1053 = vld [vmem:[%s939 + $0x1c0] sm:$0xff]
                %1054 = vst [vmem:[%s940 + $0x380] sm:$0xff] %v1053
                %v1055 = vld [vmem:[%s939 + $0x1c8] sm:$0xff]
                %1056 = vst [vmem:[%s940 + $0x388] sm:$0xff] %v1055
                %v1057 = vld [vmem:[%s939 + $0x1d0] sm:$0xff]
                %1058 = vst [vmem:[%s940 + $0x3a0] sm:$0xff] %v1057
                %v1059 = vld [vmem:[%s939 + $0x1d8] sm:$0xff]
                %1060 = vst [vmem:[%s940 + $0x3a8] sm:$0xff] %v1059
                %v1061 = vld [vmem:[%s939 + $0x1e0] sm:$0xff]
                %1062 = vst [vmem:[%s940 + $0x3c0] sm:$0xff] %v1061
                %v1063 = vld [vmem:[%s939 + $0x1e8] sm:$0xff]
                %1064 = vst [vmem:[%s940 + $0x3c8] sm:$0xff] %v1063
                %v1065 = vld [vmem:[%s939 + $0x1f0] sm:$0xff]
                %1066 = vst [vmem:[%s940 + $0x3e0] sm:$0xff] %v1065
                %v1067 = vld [vmem:[%s939 + $0x1f8] sm:$0xff]
                %1068 = vst [vmem:[%s940 + $0x3e8] sm:$0xff] %v1067
              $region49: #{vgg_decode_forward.8} parent=43 // loop_footer
                %s938 = sadd.s32 1, %s934
              $region50: #{vgg_decode_forward.8} parent=43 // loop_footer_branch
                %933 = sbr.rel target = $region46
              $region51: #{vgg_decode_forward.8} parent=43 // loop_exit
                _
            $region44: #{vgg_decode_forward.8} parent=35 // pred_fallthru
              _
          $region36: #{vgg_decode_forward.8} parent=31 // pred_fallthru
            _
          %1209 = vnop
        $region32: #{vgg_decode_forward.8} parent=27 // pred_fallthru
          _
      $region28: #{vgg_decode_forward.8} parent=5 // pred_fallthru
        _
      %p1210 = scmp.le.s32.totalorder 2, %s8
      // Predicated region
      $region67: #{vgg_decode_forward.8} parent=5 // pred_check
        %p1211 = pneg %p1210
      $region68: #{vgg_decode_forward.8} parent=5 // pred_check_branch
        %1213 = sbr.rel (%p1211) target = $region70
      $region69: #{vgg_decode_forward.8} parent=5 // pred_region
        %s1214 = ssub.s32 %s8, 2
        // Predicated region
        $region71: #{vgg_decode_forward.8} parent=69 // pred_check
          %p1215 = pneg %p84
        $region72: #{vgg_decode_forward.8} parent=69 // pred_check_branch
          %1217 = sbr.rel (%p1215) target = $region74
        $region73: #{vgg_decode_forward.8} parent=69 // pred_region
          %s1218 = sand.u32 %s69, 1
          %s1219 = sand.u32 %s69, 1
          %s1220 = smul.addr %s1219, 512
          %s1221 = scalar_lea.vmem [#allocation2], %s1220
        $region74: #{vgg_decode_forward.8} parent=69 // pred_fallthru
          _
      $region70: #{vgg_decode_forward.8} parent=5 // pred_fallthru
        _
    $region6: #{vgg_decode_forward.8} parent=1 // loop_footer
      %s12 = sadd.s32 1, %s8
    $region7: #{vgg_decode_forward.8} parent=1 // loop_footer_branch
      %7 = sbr.rel target = $region3
    $region8: #{vgg_decode_forward.8} parent=1 // loop_exit
      _

// kernel: vgg_decode_forward.9
$region0: #{vgg_decode_forward.9}
  #allocation0 [shape = 'u32[]', space=smem, size = 0x4, offset = 0x4, fixed_abs, tag = 'smem constant byte address 0x4 - core index']
  #allocation1 [shape = 'u32[144,128]{1,0:T(1,128)}', space=vmem, size = 0x12000, scoped, tag = 'internal scratch']
  %s0 = inlined_call_operand.vmem [shape: f32[2048,32], index: 0, kind: input, shape index: {}]
  %s1 = inlined_call_operand.vmem [shape: f32[2,32,32], index: 1, kind: input, shape index: {}]
  %s2 = inlined_call_operand.vmem [shape: f32[64,2,32,32], index: 2, kind: output, shape index: {}]
  %s3 = sld [smem:[#allocation0]]
  $region75: #{vgg_decode_forward.9} parent=0
    _
  %s5 = ssub.s32 1, %s3
  %s6 = scalar_select 0, %s5, %s3
  $region1: #{vgg_decode_forward.9} parent=0
    #allocation2 [shape = 'u8[2097152]{0}', space=vmem, size = 0x200000, scoped, tag = 'output window, operand 0']
    loop: start=0, step=1, limit=4
    $region2: #{vgg_decode_forward.9} parent=1 // loop_pre_header
      _
    $region3: #{vgg_decode_forward.9} parent=1 // loop_header
      %s8 = sphi 0, %s12
      %p9 = scmp.ge.s32.totalorder %s8, 4
      %s16 = sphi 0, %s16
      %s18 = sphi 0, %s16
      %s19 = sphi 0, %s18
      %s33 = sphi 0, %s19
      %s39 = sphi 0, %s41
      %s42 = sphi 0, %s39
      %s43 = sphi 0, %s42
      %s59 = sphi 0, %s43
      %s65 = sphi 0, %s67
      %s68 = sphi 0, %s65
      %s69 = sphi 0, %s68
      %s85 = sphi 0, %s69
    $region4: #{vgg_decode_forward.9} parent=1 // loop_header_branch
      %11 = sbr.rel (%p9) target = $region8
    $region5: #{vgg_decode_forward.9} parent=1 // loop_body
      %s13 = ssub.s32 %s8, 1
      %s14 = ssub.s32 %s8, 2
      %s15 = sadd.s32 %s8, 1
      %s17 = sadd.s32 %s16, 1
      %p20 = scmp.eq.s32.totalorder %s8, 1
      %p21 = scmp.ne.s32.totalorder %s16, %s18
      %p22 = scmp.eq.s32.totalorder %s8, 0
      %p23 = por %p21, %p22
      %p24 = scmp.ne.s32.totalorder %s16, %s18
      %p25 = scmp.eq.s32.totalorder %s13, 1
      %p26 = por %p24, %p25
      %p27 = scmp.ne.s32.totalorder %s18, %s19
      %p28 = scmp.eq.s32.totalorder %s13, 0
      %p29 = por %p27, %p28
      %p30 = scmp.ne.s32.totalorder %s18, %s19
      %p31 = scmp.eq.s32.totalorder %s14, 1
      %p32 = por %p30, %p31
      %p34 = scmp.ne.s32.totalorder %s19, %s33
      %p35 = scmp.eq.s32.totalorder %s14, 0
      %p36 = por %p34, %p35
      %s37 = ssub.s32 %s8, %s15
      %p38 = scmp.eq.s32.totalorder %s37, 0
      %s40 = sadd.s32 %s39, 1
      %s41 = scalar_select %p38, %s39, %s40
      %p44 = pneg %p38
      %p45 = scmp.eq.s32.totalorder %s8, 1
      %p46 = por %p44, %p45
      %p47 = scmp.ne.s32.totalorder %s39, %s42
      %p48 = scmp.eq.s32.totalorder %s8, 0
      %p49 = por %p47, %p48
      %p50 = scmp.ne.s32.totalorder %s39, %s42
      %p51 = scmp.eq.s32.totalorder %s13, 1
      %p52 = por %p50, %p51
      %p53 = scmp.ne.s32.totalorder %s42, %s43
      %p54 = scmp.eq.s32.totalorder %s13, 0
      %p55 = por %p53, %p54
      %p56 = scmp.ne.s32.totalorder %s42, %s43
      %p57 = scmp.eq.s32.totalorder %s14, 1
      %p58 = por %p56, %p57
      %p60 = scmp.ne.s32.totalorder %s43, %s59
      %p61 = scmp.eq.s32.totalorder %s14, 0
      %p62 = por %p60, %p61
      %s63 = ssub.s32 %s8, %s15
      %p64 = scmp.eq.s32.totalorder %s63, 0
      %s66 = sadd.s32 %s65, 1
      %s67 = scalar_select %p64, %s65, %s66
      %p70 = pneg %p64
      %p71 = scmp.eq.s32.totalorder %s8, 1
      %p72 = por %p70, %p71
      %p73 = scmp.ne.s32.totalorder %s65, %s68
      %p74 = scmp.eq.s32.totalorder %s8, 0
      %p75 = por %p73, %p74
      %p76 = scmp.ne.s32.totalorder %s65, %s68
      %p77 = scmp.eq.s32.totalorder %s13, 1
      %p78 = por %p76, %p77
      %p79 = scmp.ne.s32.totalorder %s68, %s69
      %p80 = scmp.eq.s32.totalorder %s13, 0
      %p81 = por %p79, %p80
      %p82 = scmp.ne.s32.totalorder %s68, %s69
      %p83 = scmp.eq.s32.totalorder %s14, 1
      %p84 = por %p82, %p83
      %p86 = scmp.ne.s32.totalorder %s69, %s85
      %p87 = scmp.eq.s32.totalorder %s14, 0
      %p88 = por %p86, %p87
      %p89 = scmp.le.s32.totalorder 1, %s8
      %p90 = scmp.lt.s32.totalorder %s8, 3
      %p91 = pnand %p89, %p90
      %p92 = pneg %p91
      // Predicated region
      $region9: #{vgg_decode_forward.9} parent=5 // pred_check
        _
      $region10: #{vgg_decode_forward.9} parent=5 // pred_check_branch
        %94 = sbr.rel (%p91) target = $region12
      $region11: #{vgg_decode_forward.9} parent=5 // pred_region
        %s95 = ssub.s32 %s8, 1
        // Predicated region
        $region13: #{vgg_decode_forward.9} parent=11 // pred_check
          %p96 = pneg %p29
        $region14: #{vgg_decode_forward.9} parent=11 // pred_check_branch
          %98 = sbr.rel (%p96) target = $region16
        $region15: #{vgg_decode_forward.9} parent=11 // pred_region
          _
        $region16: #{vgg_decode_forward.9} parent=11 // pred_fallthru
          _
      $region12: #{vgg_decode_forward.9} parent=5 // pred_fallthru
        _
      %p99 = scmp.lt.s32.totalorder %s8, 2
      // Predicated region
      $region17: #{vgg_decode_forward.9} parent=5 // pred_check
        %p100 = pneg %p99
      $region18: #{vgg_decode_forward.9} parent=5 // pred_check_branch
        %102 = sbr.rel (%p100) target = $region20
      $region19: #{vgg_decode_forward.9} parent=5 // pred_region
        // Predicated region
        $region21: #{vgg_decode_forward.9} parent=19 // pred_check
          %p103 = pneg %p49
        $region22: #{vgg_decode_forward.9} parent=19 // pred_check_branch
          %105 = sbr.rel (%p103) target = $region24
        $region23: #{vgg_decode_forward.9} parent=19 // pred_region
          %p106 = scmp.lt.s32.totalorder %s8, 1
          %s107 = scalar_select %p106, %s8, 1
          %s108 = smul.addr %s107, 4
          %s109 = smul.addr %s108, 8
          %s110 = scalar_lea.vmem %s1, %s109
        $region24: #{vgg_decode_forward.9} parent=19 // pred_fallthru
          _
      $region20: #{vgg_decode_forward.9} parent=5 // pred_fallthru
        _
      %p111 = scmp.le.s32.totalorder 1, %s8
      %p112 = scmp.lt.s32.totalorder %s8, 3
      %p113 = pnand %p111, %p112
      %p114 = pneg %p113
      // Predicated region
      $region25: #{vgg_decode_forward.9} parent=5 // pred_check
        _
      $region26: #{vgg_decode_forward.9} parent=5 // pred_check_branch
        %116 = sbr.rel (%p113) target = $region28
      $region27: #{vgg_decode_forward.9} parent=5 // pred_region
        %s117 = ssub.s32 %s8, 1
        %p118 = pneg %p29
        %p119 = pneg %p26
        %p120 = scmp.lt.s32.totalorder %s13, 1
        %s121 = scalar_select %p120, %s13, 1
        %s122 = smul.addr %s121, 4
        %s123 = smul.addr %s122, 8
        %s124 = scalar_lea.vmem %s1, %s123
        %p125 = pneg %p55
        %p126 = pneg %p52
        %p127 = pneg %p81
        %p128 = pneg %p78
        %s129 = sand.u32 %s68, 1
        %s130 = sand.u32 %s68, 1
        %s131 = smul.addr %s130, 2048
        %s132 = scalar_lea.vmem [#allocation2], %s131
        %p133 = scmp.lt.s32.totalorder %s13, 1
        %s134 = scalar_select %p133, %s13, 1
        %s135 = smul.addr %s134, 4
        %s136 = smul.addr %s135, 8
        %s137 = scalar_lea.vmem %s1, %s136
        %v138 = vld [vmem:[%s0] sm:$0xff]
        %v139 = vld [vmem:[%s0 + $0x8] sm:$0xff]
        %v140 = vld [vmem:[%s0 + $0x10] sm:$0xff]
        %v141 = vld [vmem:[%s0 + $0x18] sm:$0xff]
        %v142 = vld [vmem:[%s0 + $0x20] sm:$0xff]
        %v143 = vld [vmem:[%s0 + $0x28] sm:$0xff]
        %v144 = vld [vmem:[%s0 + $0x30] sm:$0xff]
        %v145 = vld [vmem:[%s0 + $0x38] sm:$0xff]
        %v146 = vld [vmem:[%s0 + $0x40] sm:$0xff]
        %v147 = vld [vmem:[%s0 + $0x48] sm:$0xff]
        %v148 = vld [vmem:[%s0 + $0x50] sm:$0xff]
        %v149 = vld [vmem:[%s0 + $0x58] sm:$0xff]
        %v150 = vld [vmem:[%s0 + $0x60] sm:$0xff]
        %v151 = vld [vmem:[%s0 + $0x68] sm:$0xff]
        %v152 = vld [vmem:[%s0 + $0x70] sm:$0xff]
        %v153 = vld [vmem:[%s0 + $0x78] sm:$0xff]
        %v154 = vld [vmem:[%s0 + $0x80] sm:$0xff]
        %v155 = vld [vmem:[%s0 + $0x88] sm:$0xff]
        %v156 = vld [vmem:[%s0 + $0x90] sm:$0xff]
        %v157 = vld [vmem:[%s0 + $0x98] sm:$0xff]
        %v158 = vld [vmem:[%s0 + $0xa0] sm:$0xff]
        %v159 = vld [vmem:[%s0 + $0xa8] sm:$0xff]
        %v160 = vld [vmem:[%s0 + $0xb0] sm:$0xff]
        %v161 = vld [vmem:[%s0 + $0xb8] sm:$0xff]
        %v162 = vld [vmem:[%s0 + $0xc0] sm:$0xff]
        %v163 = vld [vmem:[%s0 + $0xc8] sm:$0xff]
        %v164 = vld [vmem:[%s0 + $0xd0] sm:$0xff]
        %v165 = vld [vmem:[%s0 + $0xd8] sm:$0xff]
        %v166 = vld [vmem:[%s0 + $0xe0] sm:$0xff]
        %v167 = vld [vmem:[%s0 + $0xe8] sm:$0xff]
        %v168 = vld [vmem:[%s0 + $0xf0] sm:$0xff]
        %v169 = vld [vmem:[%s0 + $0xf8] sm:$0xff]
        %v170 = vld [vmem:[%s0 + $0x100] sm:$0xff]
        %v171 = vld [vmem:[%s0 + $0x108] sm:$0xff]
        %v172 = vld [vmem:[%s0 + $0x110] sm:$0xff]
        %v173 = vld [vmem:[%s0 + $0x118] sm:$0xff]
        %v174 = vld [vmem:[%s0 + $0x120] sm:$0xff]
        %v175 = vld [vmem:[%s0 + $0x128] sm:$0xff]
        %v176 = vld [vmem:[%s0 + $0x130] sm:$0xff]
        %v177 = vld [vmem:[%s0 + $0x138] sm:$0xff]
        %v178 = vld [vmem:[%s0 + $0x140] sm:$0xff]
        %v179 = vld [vmem:[%s0 + $0x148] sm:$0xff]
        %v180 = vld [vmem:[%s0 + $0x150] sm:$0xff]
        %v181 = vld [vmem:[%s0 + $0x158] sm:$0xff]
        %v182 = vld [vmem:[%s0 + $0x160] sm:$0xff]
        %v183 = vld [vmem:[%s0 + $0x168] sm:$0xff]
        %v184 = vld [vmem:[%s0 + $0x170] sm:$0xff]
        %v185 = vld [vmem:[%s0 + $0x178] sm:$0xff]
        %v186 = vld [vmem:[%s0 + $0x180] sm:$0xff]
        %v187 = vld [vmem:[%s0 + $0x188] sm:$0xff]
        %v188 = vld [vmem:[%s0 + $0x190] sm:$0xff]
        %v189 = vld [vmem:[%s0 + $0x198] sm:$0xff]
        %v190 = vld [vmem:[%s0 + $0x1a0] sm:$0xff]
        %v191 = vld [vmem:[%s0 + $0x1a8] sm:$0xff]
        %v192 = vld [vmem:[%s0 + $0x1b0] sm:$0xff]
        %v193 = vld [vmem:[%s0 + $0x1b8] sm:$0xff]
        %v194 = vld [vmem:[%s0 + $0x1c0] sm:$0xff]
        %v195 = vld [vmem:[%s0 + $0x1c8] sm:$0xff]
        %v196 = vld [vmem:[%s0 + $0x1d0] sm:$0xff]
        %v197 = vld [vmem:[%s0 + $0x1d8] sm:$0xff]
        %v198 = vld [vmem:[%s0 + $0x1e0] sm:$0xff]
        %v199 = vld [vmem:[%s0 + $0x1e8] sm:$0xff]
        %v200 = vld [vmem:[%s0 + $0x1f0] sm:$0xff]
        %v201 = vld [vmem:[%s0 + $0x1f8] sm:$0xff]
        %v202 = vld [vmem:[%s0 + $0x200] sm:$0xff]
        %v203 = vld [vmem:[%s0 + $0x208] sm:$0xff]
        %v204 = vld [vmem:[%s0 + $0x210] sm:$0xff]
        %v205 = vld [vmem:[%s0 + $0x218] sm:$0xff]
        %v206 = vld [vmem:[%s0 + $0x220] sm:$0xff]
        %v207 = vld [vmem:[%s0 + $0x228] sm:$0xff]
        %v208 = vld [vmem:[%s0 + $0x230] sm:$0xff]
        %v209 = vld [vmem:[%s0 + $0x238] sm:$0xff]
        %v210 = vld [vmem:[%s0 + $0x240] sm:$0xff]
        %v211 = vld [vmem:[%s0 + $0x248] sm:$0xff]
        %v212 = vld [vmem:[%s0 + $0x250] sm:$0xff]
        %v213 = vld [vmem:[%s0 + $0x258] sm:$0xff]
        %v214 = vld [vmem:[%s0 + $0x260] sm:$0xff]
        %v215 = vld [vmem:[%s0 + $0x268] sm:$0xff]
        %v216 = vld [vmem:[%s0 + $0x270] sm:$0xff]
        %v217 = vld [vmem:[%s0 + $0x278] sm:$0xff]
        %v218 = vld [vmem:[%s0 + $0x280] sm:$0xff]
        %v219 = vld [vmem:[%s0 + $0x288] sm:$0xff]
        %v220 = vld [vmem:[%s0 + $0x290] sm:$0xff]
        %v221 = vld [vmem:[%s0 + $0x298] sm:$0xff]
        %v222 = vld [vmem:[%s0 + $0x2a0] sm:$0xff]
        %v223 = vld [vmem:[%s0 + $0x2a8] sm:$0xff]
        %v224 = vld [vmem:[%s0 + $0x2b0] sm:$0xff]
        %v225 = vld [vmem:[%s0 + $0x2b8] sm:$0xff]
        %v226 = vld [vmem:[%s0 + $0x2c0] sm:$0xff]
        %v227 = vld [vmem:[%s0 + $0x2c8] sm:$0xff]
        %v228 = vld [vmem:[%s0 + $0x2d0] sm:$0xff]
        %v229 = vld [vmem:[%s0 + $0x2d8] sm:$0xff]
        %v230 = vld [vmem:[%s0 + $0x2e0] sm:$0xff]
        %v231 = vld [vmem:[%s0 + $0x2e8] sm:$0xff]
        %v232 = vld [vmem:[%s0 + $0x2f0] sm:$0xff]
        %v233 = vld [vmem:[%s0 + $0x2f8] sm:$0xff]
        %v234 = vld [vmem:[%s0 + $0x300] sm:$0xff]
        %v235 = vld [vmem:[%s0 + $0x308] sm:$0xff]
        %v236 = vld [vmem:[%s0 + $0x310] sm:$0xff]
        %v237 = vld [vmem:[%s0 + $0x318] sm:$0xff]
        %v238 = vld [vmem:[%s0 + $0x320] sm:$0xff]
        %v239 = vld [vmem:[%s0 + $0x328] sm:$0xff]
        %v240 = vld [vmem:[%s0 + $0x330] sm:$0xff]
        %v241 = vld [vmem:[%s0 + $0x338] sm:$0xff]
        %v242 = vld [vmem:[%s0 + $0x340] sm:$0xff]
        %v243 = vld [vmem:[%s0 + $0x348] sm:$0xff]
        %v244 = vld [vmem:[%s0 + $0x350] sm:$0xff]
        %v245 = vld [vmem:[%s0 + $0x358] sm:$0xff]
        %v246 = vld [vmem:[%s0 + $0x360] sm:$0xff]
        %v247 = vld [vmem:[%s0 + $0x368] sm:$0xff]
        %v248 = vld [vmem:[%s0 + $0x370] sm:$0xff]
        %v249 = vld [vmem:[%s0 + $0x378] sm:$0xff]
        %v250 = vld [vmem:[%s0 + $0x380] sm:$0xff]
        %v251 = vld [vmem:[%s0 + $0x388] sm:$0xff]
        %v252 = vld [vmem:[%s0 + $0x390] sm:$0xff]
        %v253 = vld [vmem:[%s0 + $0x398] sm:$0xff]
        %v254 = vld [vmem:[%s0 + $0x3a0] sm:$0xff]
        %v255 = vld [vmem:[%s0 + $0x3a8] sm:$0xff]
        %v256 = vld [vmem:[%s0 + $0x3b0] sm:$0xff]
        %v257 = vld [vmem:[%s0 + $0x3b8] sm:$0xff]
        %v258 = vld [vmem:[%s0 + $0x3c0] sm:$0xff]
        %v259 = vld [vmem:[%s0 + $0x3c8] sm:$0xff]
        %v260 = vld [vmem:[%s0 + $0x3d0] sm:$0xff]
        %v261 = vld [vmem:[%s0 + $0x3d8] sm:$0xff]
        %v262 = vld [vmem:[%s0 + $0x3e0] sm:$0xff]
        %v263 = vld [vmem:[%s0 + $0x3e8] sm:$0xff]
        %v264 = vld [vmem:[%s0 + $0x3f0] sm:$0xff]
        %v265 = vld [vmem:[%s0 + $0x3f8] sm:$0xff]
        %v266 = vld [vmem:[%s0 + $0x400] sm:$0xff]
        %v267 = vld [vmem:[%s0 + $0x408] sm:$0xff]
        %v268 = vld [vmem:[%s0 + $0x410] sm:$0xff]
        %v269 = vld [vmem:[%s0 + $0x418] sm:$0xff]
        %v270 = vld [vmem:[%s0 + $0x420] sm:$0xff]
        %v271 = vld [vmem:[%s0 + $0x428] sm:$0xff]
        %v272 = vld [vmem:[%s0 + $0x430] sm:$0xff]
        %v273 = vld [vmem:[%s0 + $0x438] sm:$0xff]
        %v274 = vld [vmem:[%s0 + $0x440] sm:$0xff]
        %v275 = vld [vmem:[%s0 + $0x448] sm:$0xff]
        %v276 = vld [vmem:[%s0 + $0x450] sm:$0xff]
        %v277 = vld [vmem:[%s0 + $0x458] sm:$0xff]
        %v278 = vld [vmem:[%s0 + $0x460] sm:$0xff]
        %v279 = vld [vmem:[%s0 + $0x468] sm:$0xff]
        %v280 = vld [vmem:[%s0 + $0x470] sm:$0xff]
        %v281 = vld [vmem:[%s0 + $0x478] sm:$0xff]
        %v282 = vld [vmem:[%s0 + $0x480] sm:$0xff]
        %v283 = vld [vmem:[%s0 + $0x488] sm:$0xff]
        %v284 = vld [vmem:[%s0 + $0x490] sm:$0xff]
        %v285 = vld [vmem:[%s0 + $0x498] sm:$0xff]
        %v286 = vld [vmem:[%s0 + $0x4a0] sm:$0xff]
        %v287 = vld [vmem:[%s0 + $0x4a8] sm:$0xff]
        %v288 = vld [vmem:[%s0 + $0x4b0] sm:$0xff]
        %v289 = vld [vmem:[%s0 + $0x4b8] sm:$0xff]
        %v290 = vld [vmem:[%s0 + $0x4c0] sm:$0xff]
        %v291 = vld [vmem:[%s0 + $0x4c8] sm:$0xff]
        %v292 = vld [vmem:[%s0 + $0x4d0] sm:$0xff]
        %v293 = vld [vmem:[%s0 + $0x4d8] sm:$0xff]
        %v294 = vld [vmem:[%s0 + $0x4e0] sm:$0xff]
        %v295 = vld [vmem:[%s0 + $0x4e8] sm:$0xff]
        %v296 = vld [vmem:[%s0 + $0x4f0] sm:$0xff]
        %v297 = vld [vmem:[%s0 + $0x4f8] sm:$0xff]
        %v298 = vld [vmem:[%s0 + $0x500] sm:$0xff]
        %v299 = vld [vmem:[%s0 + $0x508] sm:$0xff]
        %v300 = vld [vmem:[%s0 + $0x510] sm:$0xff]
        %v301 = vld [vmem:[%s0 + $0x518] sm:$0xff]
        %v302 = vld [vmem:[%s0 + $0x520] sm:$0xff]
        %v303 = vld [vmem:[%s0 + $0x528] sm:$0xff]
        %v304 = vld [vmem:[%s0 + $0x530] sm:$0xff]
        %v305 = vld [vmem:[%s0 + $0x538] sm:$0xff]
        %v306 = vld [vmem:[%s0 + $0x540] sm:$0xff]
        %v307 = vld [vmem:[%s0 + $0x548] sm:$0xff]
        %v308 = vld [vmem:[%s0 + $0x550] sm:$0xff]
        %v309 = vld [vmem:[%s0 + $0x558] sm:$0xff]
        %v310 = vld [vmem:[%s0 + $0x560] sm:$0xff]
        %v311 = vld [vmem:[%s0 + $0x568] sm:$0xff]
        %v312 = vld [vmem:[%s0 + $0x570] sm:$0xff]
        %v313 = vld [vmem:[%s0 + $0x578] sm:$0xff]
        %v314 = vld [vmem:[%s0 + $0x580] sm:$0xff]
        %v315 = vld [vmem:[%s0 + $0x588] sm:$0xff]
        %v316 = vld [vmem:[%s0 + $0x590] sm:$0xff]
        %v317 = vld [vmem:[%s0 + $0x598] sm:$0xff]
        %v318 = vld [vmem:[%s0 + $0x5a0] sm:$0xff]
        %v319 = vld [vmem:[%s0 + $0x5a8] sm:$0xff]
        %v320 = vld [vmem:[%s0 + $0x5b0] sm:$0xff]
        %v321 = vld [vmem:[%s0 + $0x5b8] sm:$0xff]
        %v322 = vld [vmem:[%s0 + $0x5c0] sm:$0xff]
        %v323 = vld [vmem:[%s0 + $0x5c8] sm:$0xff]
        %v324 = vld [vmem:[%s0 + $0x5d0] sm:$0xff]
        %v325 = vld [vmem:[%s0 + $0x5d8] sm:$0xff]
        %v326 = vld [vmem:[%s0 + $0x5e0] sm:$0xff]
        %v327 = vld [vmem:[%s0 + $0x5e8] sm:$0xff]
        %v328 = vld [vmem:[%s0 + $0x5f0] sm:$0xff]
        %v329 = vld [vmem:[%s0 + $0x5f8] sm:$0xff]
        %v330 = vld [vmem:[%s0 + $0x600] sm:$0xff]
        %v331 = vld [vmem:[%s0 + $0x608] sm:$0xff]
        %v332 = vld [vmem:[%s0 + $0x610] sm:$0xff]
        %v333 = vld [vmem:[%s0 + $0x618] sm:$0xff]
        %v334 = vld [vmem:[%s0 + $0x620] sm:$0xff]
        %v335 = vld [vmem:[%s0 + $0x628] sm:$0xff]
        %v336 = vld [vmem:[%s0 + $0x630] sm:$0xff]
        %v337 = vld [vmem:[%s0 + $0x638] sm:$0xff]
        %v338 = vld [vmem:[%s0 + $0x640] sm:$0xff]
        %v339 = vld [vmem:[%s0 + $0x648] sm:$0xff]
        %v340 = vld [vmem:[%s0 + $0x650] sm:$0xff]
        %v341 = vld [vmem:[%s0 + $0x658] sm:$0xff]
        %v342 = vld [vmem:[%s0 + $0x660] sm:$0xff]
        %v343 = vld [vmem:[%s0 + $0x668] sm:$0xff]
        %v344 = vld [vmem:[%s0 + $0x670] sm:$0xff]
        %v345 = vld [vmem:[%s0 + $0x678] sm:$0xff]
        %v346 = vld [vmem:[%s0 + $0x680] sm:$0xff]
        %v347 = vld [vmem:[%s0 + $0x688] sm:$0xff]
        %v348 = vld [vmem:[%s0 + $0x690] sm:$0xff]
        %v349 = vld [vmem:[%s0 + $0x698] sm:$0xff]
        %v350 = vld [vmem:[%s0 + $0x6a0] sm:$0xff]
        %v351 = vld [vmem:[%s0 + $0x6a8] sm:$0xff]
        %v352 = vld [vmem:[%s0 + $0x6b0] sm:$0xff]
        %v353 = vld [vmem:[%s0 + $0x6b8] sm:$0xff]
        %v354 = vld [vmem:[%s0 + $0x6c0] sm:$0xff]
        %v355 = vld [vmem:[%s0 + $0x6c8] sm:$0xff]
        %v356 = vld [vmem:[%s0 + $0x6d0] sm:$0xff]
        %v357 = vld [vmem:[%s0 + $0x6d8] sm:$0xff]
        %v358 = vld [vmem:[%s0 + $0x6e0] sm:$0xff]
        %v359 = vld [vmem:[%s0 + $0x6e8] sm:$0xff]
        %v360 = vld [vmem:[%s0 + $0x6f0] sm:$0xff]
        %v361 = vld [vmem:[%s0 + $0x6f8] sm:$0xff]
        %v362 = vld [vmem:[%s0 + $0x700] sm:$0xff]
        %v363 = vld [vmem:[%s0 + $0x708] sm:$0xff]
        %v364 = vld [vmem:[%s0 + $0x710] sm:$0xff]
        %v365 = vld [vmem:[%s0 + $0x718] sm:$0xff]
        %v366 = vld [vmem:[%s0 + $0x720] sm:$0xff]
        %v367 = vld [vmem:[%s0 + $0x728] sm:$0xff]
        %v368 = vld [vmem:[%s0 + $0x730] sm:$0xff]
        %v369 = vld [vmem:[%s0 + $0x738] sm:$0xff]
        %v370 = vld [vmem:[%s0 + $0x740] sm:$0xff]
        %v371 = vld [vmem:[%s0 + $0x748] sm:$0xff]
        %v372 = vld [vmem:[%s0 + $0x750] sm:$0xff]
        %v373 = vld [vmem:[%s0 + $0x758] sm:$0xff]
        %v374 = vld [vmem:[%s0 + $0x760] sm:$0xff]
        %v375 = vld [vmem:[%s0 + $0x768] sm:$0xff]
        %v376 = vld [vmem:[%s0 + $0x770] sm:$0xff]
        %v377 = vld [vmem:[%s0 + $0x778] sm:$0xff]
        %v378 = vld [vmem:[%s0 + $0x780] sm:$0xff]
        %v379 = vld [vmem:[%s0 + $0x788] sm:$0xff]
        %v380 = vld [vmem:[%s0 + $0x790] sm:$0xff]
        %v381 = vld [vmem:[%s0 + $0x798] sm:$0xff]
        %v382 = vld [vmem:[%s0 + $0x7a0] sm:$0xff]
        %v383 = vld [vmem:[%s0 + $0x7a8] sm:$0xff]
        %v384 = vld [vmem:[%s0 + $0x7b0] sm:$0xff]
        %v385 = vld [vmem:[%s0 + $0x7b8] sm:$0xff]
        %v386 = vld [vmem:[%s0 + $0x7c0] sm:$0xff]
        %v387 = vld [vmem:[%s0 + $0x7c8] sm:$0xff]
        %v388 = vld [vmem:[%s0 + $0x7d0] sm:$0xff]
        %v389 = vld [vmem:[%s0 + $0x7d8] sm:$0xff]
        %v390 = vld [vmem:[%s0 + $0x7e0] sm:$0xff]
        %v391 = vld [vmem:[%s0 + $0x7e8] sm:$0xff]
        %v392 = vld [vmem:[%s0 + $0x7f0] sm:$0xff]
        %v393 = vld [vmem:[%s0 + $0x7f8] sm:$0xff]
        %v394 = vld [vmem:[%s137] sm:$0xff]
        %v395 = vld [vmem:[%s137 + $0x8] sm:$0xff]
        %v396 = vld [vmem:[%s137 + $0x10] sm:$0xff]
        %v397 = vld [vmem:[%s137 + $0x18] sm:$0xff]
        %vm398 = vcmask 261120
        %v400 = vsel %vm398, %v138, 0
        %v403 = vsel %vm398, %v139, 0
        %v406 = vsel %vm398, %v140, 0
        %v409 = vsel %vm398, %v141, 0
        %v412 = vsel %vm398, %v142, 0
        %v415 = vsel %vm398, %v143, 0
        %v418 = vsel %vm398, %v144, 0
        %v421 = vsel %vm398, %v145, 0
        %v424 = vsel %vm398, %v146, 0
        %v427 = vsel %vm398, %v147, 0
        %v430 = vsel %vm398, %v148, 0
        %v433 = vsel %vm398, %v149, 0
        %v436 = vsel %vm398, %v150, 0
        %v439 = vsel %vm398, %v151, 0
        %v442 = vsel %vm398, %v152, 0
        %v445 = vsel %vm398, %v153, 0
        %v448 = vsel %vm398, %v154, 0
        %v451 = vsel %vm398, %v155, 0
        %v454 = vsel %vm398, %v156, 0
        %v457 = vsel %vm398, %v157, 0
        %v460 = vsel %vm398, %v158, 0
        %v463 = vsel %vm398, %v159, 0
        %v466 = vsel %vm398, %v160, 0
        %v469 = vsel %vm398, %v161, 0
        %v472 = vsel %vm398, %v162, 0
        %v475 = vsel %vm398, %v163, 0
        %v478 = vsel %vm398, %v164, 0
        %v481 = vsel %vm398, %v165, 0
        %v484 = vsel %vm398, %v166, 0
        %v487 = vsel %vm398, %v167, 0
        %v490 = vsel %vm398, %v168, 0
        %v493 = vsel %vm398, %v169, 0
        %v496 = vsel %vm398, %v170, 0
        %v499 = vsel %vm398, %v171, 0
        %v502 = vsel %vm398, %v172, 0
        %v505 = vsel %vm398, %v173, 0
        %v508 = vsel %vm398, %v174, 0
        %v511 = vsel %vm398, %v175, 0
        %v514 = vsel %vm398, %v176, 0
        %v517 = vsel %vm398, %v177, 0
        %v520 = vsel %vm398, %v178, 0
        %v523 = vsel %vm398, %v179, 0
        %v526 = vsel %vm398, %v180, 0
        %v529 = vsel %vm398, %v181, 0
        %v532 = vsel %vm398, %v182, 0
        %v535 = vsel %vm398, %v183, 0
        %v538 = vsel %vm398, %v184, 0
        %v541 = vsel %vm398, %v185, 0
        %v544 = vsel %vm398, %v186, 0
        %v547 = vsel %vm398, %v187, 0
        %v550 = vsel %vm398, %v188, 0
        %v553 = vsel %vm398, %v189, 0
        %v556 = vsel %vm398, %v190, 0
        %v559 = vsel %vm398, %v191, 0
        %v562 = vsel %vm398, %v192, 0
        %v565 = vsel %vm398, %v193, 0
        %v568 = vsel %vm398, %v194, 0
        %v571 = vsel %vm398, %v195, 0
        %v574 = vsel %vm398, %v196, 0
        %v577 = vsel %vm398, %v197, 0
        %v580 = vsel %vm398, %v198, 0
        %v583 = vsel %vm398, %v199, 0
        %v586 = vsel %vm398, %v200, 0
        %v589 = vsel %vm398, %v201, 0
        %v592 = vsel %vm398, %v202, 0
        %v595 = vsel %vm398, %v203, 0
        %v598 = vsel %vm398, %v204, 0
        %v601 = vsel %vm398, %v205, 0
        %v604 = vsel %vm398, %v206, 0
        %v607 = vsel %vm398, %v207, 0
        %v610 = vsel %vm398, %v208, 0
        %v613 = vsel %vm398, %v209, 0
        %v616 = vsel %vm398, %v210, 0
        %v619 = vsel %vm398, %v211, 0
        %v622 = vsel %vm398, %v212, 0
        %v625 = vsel %vm398, %v213, 0
        %v628 = vsel %vm398, %v214, 0
        %v631 = vsel %vm398, %v215, 0
        %v634 = vsel %vm398, %v216, 0
        %v637 = vsel %vm398, %v217, 0
        %v640 = vsel %vm398, %v218, 0
        %v643 = vsel %vm398, %v219, 0
        %v646 = vsel %vm398, %v220, 0
        %v649 = vsel %vm398, %v221, 0
        %v652 = vsel %vm398, %v222, 0
        %v655 = vsel %vm398, %v223, 0
        %v658 = vsel %vm398, %v224, 0
        %v661 = vsel %vm398, %v225, 0
        %v664 = vsel %vm398, %v226, 0
        %v667 = vsel %vm398, %v227, 0
        %v670 = vsel %vm398, %v228, 0
        %v673 = vsel %vm398, %v229, 0
        %v676 = vsel %vm398, %v230, 0
        %v679 = vsel %vm398, %v231, 0
        %v682 = vsel %vm398, %v232, 0
        %v685 = vsel %vm398, %v233, 0
        %v688 = vsel %vm398, %v234, 0
        %v691 = vsel %vm398, %v235, 0
        %v694 = vsel %vm398, %v236, 0
        %v697 = vsel %vm398, %v237, 0
        %v700 = vsel %vm398, %v238, 0
        %v703 = vsel %vm398, %v239, 0
        %v706 = vsel %vm398, %v240, 0
        %v709 = vsel %vm398, %v241, 0
        %v712 = vsel %vm398, %v242, 0
        %v715 = vsel %vm398, %v243, 0
        %v718 = vsel %vm398, %v244, 0
        %v721 = vsel %vm398, %v245, 0
        %v724 = vsel %vm398, %v246, 0
        %v727 = vsel %vm398, %v247, 0
        %v730 = vsel %vm398, %v248, 0
        %v733 = vsel %vm398, %v249, 0
        %v736 = vsel %vm398, %v250, 0
        %v739 = vsel %vm398, %v251, 0
        %v742 = vsel %vm398, %v252, 0
        %v745 = vsel %vm398, %v253, 0
        %v748 = vsel %vm398, %v254, 0
        %v751 = vsel %vm398, %v255, 0
        %v754 = vsel %vm398, %v256, 0
        %v757 = vsel %vm398, %v257, 0
        %v760 = vsel %vm398, %v258, 0
        %v763 = vsel %vm398, %v259, 0
        %v766 = vsel %vm398, %v260, 0
        %v769 = vsel %vm398, %v261, 0
        %v772 = vsel %vm398, %v262, 0
        %v775 = vsel %vm398, %v263, 0
        %v778 = vsel %vm398, %v264, 0
        %v781 = vsel %vm398, %v265, 0
        %v784 = vsel %vm398, %v266, 0
        %v787 = vsel %vm398, %v267, 0
        %v790 = vsel %vm398, %v268, 0
        %v793 = vsel %vm398, %v269, 0
        %v796 = vsel %vm398, %v270, 0
        %v799 = vsel %vm398, %v271, 0
        %v802 = vsel %vm398, %v272, 0
        %v805 = vsel %vm398, %v273, 0
        %v808 = vsel %vm398, %v274, 0
        %v811 = vsel %vm398, %v275, 0
        %v814 = vsel %vm398, %v276, 0
        %v817 = vsel %vm398, %v277, 0
        %v820 = vsel %vm398, %v278, 0
        %v823 = vsel %vm398, %v279, 0
        %v826 = vsel %vm398, %v280, 0
        %v829 = vsel %vm398, %v281, 0
        %v832 = vsel %vm398, %v282, 0
        %v835 = vsel %vm398, %v283, 0
        %v838 = vsel %vm398, %v284, 0
        %v841 = vsel %vm398, %v285, 0
        %v844 = vsel %vm398, %v286, 0
        %v847 = vsel %vm398, %v287, 0
        %v850 = vsel %vm398, %v288, 0
        %v853 = vsel %vm398, %v289, 0
        %v856 = vsel %vm398, %v290, 0
        %v859 = vsel %vm398, %v291, 0
        %v862 = vsel %vm398, %v292, 0
        %v865 = vsel %vm398, %v293, 0
        %v868 = vsel %vm398, %v294, 0
        %v871 = vsel %vm398, %v295, 0
        %v874 = vsel %vm398, %v296, 0
        %v877 = vsel %vm398, %v297, 0
        %v880 = vsel %vm398, %v298, 0
        %v883 = vsel %vm398, %v299, 0
        %v886 = vsel %vm398, %v300, 0
        %v889 = vsel %vm398, %v301, 0
        %v892 = vsel %vm398, %v302, 0
        %v895 = vsel %vm398, %v303, 0
        %v898 = vsel %vm398, %v304, 0
        %v901 = vsel %vm398, %v305, 0
        %v904 = vsel %vm398, %v306, 0
        %v907 = vsel %vm398, %v307, 0
        %v910 = vsel %vm398, %v308, 0
        %v913 = vsel %vm398, %v309, 0
        %v916 = vsel %vm398, %v310, 0
        %v919 = vsel %vm398, %v311, 0
        %v922 = vsel %vm398, %v312, 0
        %v925 = vsel %vm398, %v313, 0
        %v928 = vsel %vm398, %v314, 0
        %v931 = vsel %vm398, %v315, 0
        %v934 = vsel %vm398, %v316, 0
        %v937 = vsel %vm398, %v317, 0
        %v940 = vsel %vm398, %v318, 0
        %v943 = vsel %vm398, %v319, 0
        %v946 = vsel %vm398, %v320, 0
        %v949 = vsel %vm398, %v321, 0
        %v952 = vsel %vm398, %v322, 0
        %v955 = vsel %vm398, %v323, 0
        %v958 = vsel %vm398, %v324, 0
        %v961 = vsel %vm398, %v325, 0
        %v964 = vsel %vm398, %v326, 0
        %v967 = vsel %vm398, %v327, 0
        %v970 = vsel %vm398, %v328, 0
        %v973 = vsel %vm398, %v329, 0
        %v976 = vsel %vm398, %v330, 0
        %v979 = vsel %vm398, %v331, 0
        %v982 = vsel %vm398, %v332, 0
        %v985 = vsel %vm398, %v333, 0
        %v988 = vsel %vm398, %v334, 0
        %v991 = vsel %vm398, %v335, 0
        %v994 = vsel %vm398, %v336, 0
        %v997 = vsel %vm398, %v337, 0
        %v1000 = vsel %vm398, %v338, 0
        %v1003 = vsel %vm398, %v339, 0
        %v1006 = vsel %vm398, %v340, 0
        %v1009 = vsel %vm398, %v341, 0
        %v1012 = vsel %vm398, %v342, 0
        %v1015 = vsel %vm398, %v343, 0
        %v1018 = vsel %vm398, %v344, 0
        %v1021 = vsel %vm398, %v345, 0
        %v1024 = vsel %vm398, %v346, 0
        %v1027 = vsel %vm398, %v347, 0
        %v1030 = vsel %vm398, %v348, 0
        %v1033 = vsel %vm398, %v349, 0
        %v1036 = vsel %vm398, %v350, 0
        %v1039 = vsel %vm398, %v351, 0
        %v1042 = vsel %vm398, %v352, 0
        %v1045 = vsel %vm398, %v353, 0
        %v1048 = vsel %vm398, %v354, 0
        %v1051 = vsel %vm398, %v355, 0
        %v1054 = vsel %vm398, %v356, 0
        %v1057 = vsel %vm398, %v357, 0
        %v1060 = vsel %vm398, %v358, 0
        %v1063 = vsel %vm398, %v359, 0
        %v1066 = vsel %vm398, %v360, 0
        %v1069 = vsel %vm398, %v361, 0
        %v1072 = vsel %vm398, %v362, 0
        %v1075 = vsel %vm398, %v363, 0
        %v1078 = vsel %vm398, %v364, 0
        %v1081 = vsel %vm398, %v365, 0
        %v1084 = vsel %vm398, %v366, 0
        %v1087 = vsel %vm398, %v367, 0
        %v1090 = vsel %vm398, %v368, 0
        %v1093 = vsel %vm398, %v369, 0
        %v1096 = vsel %vm398, %v370, 0
        %v1099 = vsel %vm398, %v371, 0
        %v1102 = vsel %vm398, %v372, 0
        %v1105 = vsel %vm398, %v373, 0
        %v1108 = vsel %vm398, %v374, 0
        %v1111 = vsel %vm398, %v375, 0
        %v1114 = vsel %vm398, %v376, 0
        %v1117 = vsel %vm398, %v377, 0
        %v1120 = vsel %vm398, %v378, 0
        %v1123 = vsel %vm398, %v379, 0
        %v1126 = vsel %vm398, %v380, 0
        %v1129 = vsel %vm398, %v381, 0
        %v1132 = vsel %vm398, %v382, 0
        %v1135 = vsel %vm398, %v383, 0
        %v1138 = vsel %vm398, %v384, 0
        %v1141 = vsel %vm398, %v385, 0
        %v1144 = vsel %vm398, %v386, 0
        %v1147 = vsel %vm398, %v387, 0
        %v1150 = vsel %vm398, %v388, 0
        %v1153 = vsel %vm398, %v389, 0
        %v1156 = vsel %vm398, %v390, 0
        %v1159 = vsel %vm398, %v391, 0
        %v1162 = vsel %vm398, %v392, 0
        %v1165 = vsel %vm398, %v393, 0
        %1167 = vmatprep.subr.mxu0 0.0
        %1168 = vmatpush1.msra.mxu0 %v394
        %1169 = vmatprep.subr.mxu0 0.0
        %1170 = vmatpush1.msra.mxu0 %v395
        %1171 = vmatprep.subr.mxu0 0.0
        %1172 = vmatpush1.msra.mxu0 %v396
        %1173 = vmatprep.subr.mxu0 0.0
        %1174 = vmatpush1.msra.mxu0 %v397
        %1175 = vmatprep.subr.mxu0 0.0
        %1176 = vmatpush1.msra.mxu0 0.0
        %1177 = vmatprep.subr.mxu0 0.0
        %1178 = vmatpush1.msra.mxu0 0.0
        %1179 = vmatprep.subr.mxu0 0.0
        %1180 = vmatpush1.msra.mxu0 0.0
        %1181 = vmatprep.subr.mxu0 0.0
        %1182 = vmatpush1.msra.mxu0 0.0
        %1183 = vmatprep.subr.mxu0 0.0
        %1184 = vmatpush1.msra.mxu0 0.0
        %1185 = vmatprep.subr.mxu0 0.0
        %1186 = vmatpush1.msra.mxu0 0.0
        %1187 = vmatprep.subr.mxu0 0.0
        %1188 = vmatpush1.msra.mxu0 0.0
        %1189 = vmatprep.subr.mxu0 0.0
        %1190 = vmatpush1.msra.mxu0 0.0
        %1191 = vmatprep.subr.mxu0 0.0
        %1192 = vmatpush1.msra.mxu0 0.0
        %1193 = vmatprep.subr.mxu0 0.0
        %1194 = vmatpush1.msra.mxu0 0.0
        %1195 = vmatprep.subr.mxu0 0.0
        %1196 = vmatpush1.msra.mxu0 0.0
        %1197 = vmatprep.subr.mxu0 0.0
        %1198 = vmatpush1.msra.mxu0 0.0
        %1199 = vmatprep.subr.mxu0 0.0
        %1200 = vmatpush1.msra.mxu0 0.0
        %1201 = vmatprep.subr.mxu0 0.0
        %1202 = vmatpush1.msra.mxu0 0.0
        %1203 = vmatprep.subr.mxu0 0.0
        %1204 = vmatpush1.msra.mxu0 0.0
        %1205 = vmatprep.subr.mxu0 0.0
        %1206 = vmatpush1.msra.mxu0 0.0
        %1207 = vmatprep.subr.mxu0 0.0
        %1208 = vmatpush1.msra.mxu0 0.0
        %1209 = vmatprep.subr.mxu0 0.0
        %1210 = vmatpush1.msra.mxu0 0.0
        %1211 = vmatprep.subr.mxu0 0.0
        %1212 = vmatpush1.msra.mxu0 0.0
        %1213 = vmatprep.subr.mxu0 0.0
        %1214 = vmatpush1.msra.mxu0 0.0
        %1215 = vmatprep.subr.mxu0 0.0
        %1216 = vmatpush1.msra.mxu0 0.0
        %1217 = vmatprep.subr.mxu0 0.0
        %1218 = vmatpush1.msra.mxu0 0.0
        %1219 = vmatprep.subr.mxu0 0.0
        %1220 = vmatpush1.msra.mxu0 0.0
        %1221 = vmatprep.subr.mxu0 0.0
        %1222 = vmatpush1.msra.mxu0 0.0
        %1223 = vmatprep.subr.mxu0 0.0
        %1224 = vmatpush1.msra.mxu0 0.0
        %1225 = vmatprep.subr.mxu0 0.0
        %1226 = vmatpush1.msra.mxu0 0.0
        %1227 = vmatprep.subr.mxu0 0.0
        %1228 = vmatpush1.msra.mxu0 0.0
        %1229 = vmatprep.subr.mxu0 0.0
        %1230 = vmatpush1.msra.mxu0 0.0
        %1231 = vmatprep.mubr.f32.mxu0 0.0
        %1232 = vmatmul.mubr.f32.gmra.mrb[0].mxu0 %v400
        %v1233 = vpop.f32.mrb[0].mxu0
        %v1234 = vadd.f32 0.0, %v1233
        %v1235 = vpop.f32.mrb[0].mxu0
        %1236 = vmatprep.mubr.f32.mxu0 0.0
        %1237 = vmatmul.mubr.f32.gmra.mrb[0].mxu0 %v403
        %v1238 = vpop.f32.mrb[0].mxu0
        %v1239 = vadd.f32 0.0, %v1238
        %v1240 = vpop.f32.mrb[0].mxu0
        %1241 = vmatprep.mubr.f32.mxu0 0.0
        %1242 = vmatmul.mubr.f32.gmra.mrb[0].mxu0 %v406
        %v1243 = vpop.f32.mrb[0].mxu0
        %v1244 = vadd.f32 0.0, %v1243
        %v1245 = vpop.f32.mrb[0].mxu0
        %1246 = vmatprep.mubr.f32.mxu0 0.0
        %1247 = vmatmul.mubr.f32.gmra.mrb[0].mxu0 %v409
        %v1248 = vpop.f32.mrb[0].mxu0
        %v1249 = vadd.f32 0.0, %v1248
        %v1250 = vpop.f32.mrb[0].mxu0
        %1251 = vmatprep.mubr.f32.mxu0 0.0
        %1252 = vmatmul.mubr.f32.gmra.mrb[0].mxu0 %v412
        %v1253 = vpop.f32.mrb[0].mxu0
        %v1254 = vadd.f32 0.0, %v1253
        %v1255 = vpop.f32.mrb[0].mxu0
        %1256 = vmatprep.mubr.f32.mxu0 0.0
        %1257 = vmatmul.mubr.f32.gmra.mrb[0].mxu0 %v415
        %v1258 = vpop.f32.mrb[0].mxu0
        %v1259 = vadd.f32 0.0, %v1258
        %v1260 = vpop.f32.mrb[0].mxu0
        %1261 = vmatprep.mubr.f32.mxu0 0.0
        %1262 = vmatmul.mubr.f32.gmra.mrb[0].mxu0 %v418
        %v1263 = vpop.f32.mrb[0].mxu0
        %v1264 = vadd.f32 0.0, %v1263
        %v1265 = vpop.f32.mrb[0].mxu0
        %1266 = vmatprep.mubr.f32.mxu0 0.0
        %1267 = vmatmul.mubr.f32.gmra.mrb[0].mxu0 %v421
        %v1268 = vpop.f32.mrb[0].mxu0
        %v1269 = vadd.f32 0.0, %v1268
        %v1270 = vpop.f32.mrb[0].mxu0
        %1271 = vmatprep.mubr.f32.mxu0 0.0
        %1272 = vmatmul.mubr.f32.gmra.mrb[0].mxu0 %v424
        %v1273 = vpop.f32.mrb[0].mxu0
        %v1274 = vadd.f32 0.0, %v1273
        %v1275 = vpop.f32.mrb[0].mxu0
        %1276 = vmatprep.mubr.f32.mxu0 0.0
        %1277 = vmatmul.mubr.f32.gmra.mrb[0].mxu0 %v427
        %v1278 = vpop.f32.mrb[0].mxu0
        %v1279 = vadd.f32 0.0, %v1278
        %v1280 = vpop.f32.mrb[0].mxu0
        %1281 = vmatprep.mubr.f32.mxu0 0.0
        %1282 = vmatmul.mubr.f32.gmra.mrb[0].mxu0 %v430
        %v1283 = vpop.f32.mrb[0].mxu0
        %v1284 = vadd.f32 0.0, %v1283
        %v1285 = vpop.f32.mrb[0].mxu0
        %1286 = vmatprep.mubr.f32.mxu0 0.0
        %1287 = vmatmul.mubr.f32.gmra.mrb[0].mxu0 %v433
        %v1288 = vpop.f32.mrb[0].mxu0
        %v1289 = vadd.f32 0.0, %v1288
        %v1290 = vpop.f32.mrb[0].mxu0
        %1291 = vmatprep.mubr.f32.mxu0 0.0
        %1292 = vmatmul.mubr.f32.gmra.mrb[0].mxu0 %v436
        %v1293 = vpop.f32.mrb[0].mxu0
        %v1294 = vadd.f32 0.0, %v1293
        %v1295 = vpop.f32.mrb[0].mxu0
        %1296 = vmatprep.mubr.f32.mxu0 0.0
        %1297 = vmatmul.mubr.f32.gmra.mrb[0].mxu0 %v439
        %v1298 = vpop.f32.mrb[0].mxu0
        %v1299 = vadd.f32 0.0, %v1298
        %v1300 = vpop.f32.mrb[0].mxu0
        %1301 = vmatprep.mubr.f32.mxu0 0.0
        %1302 = vmatmul.mubr.f32.gmra.mrb[0].mxu0 %v442
        %v1303 = vpop.f32.mrb[0].mxu0
        %v1304 = vadd.f32 0.0, %v1303
        %v1305 = vpop.f32.mrb[0].mxu0
        %1306 = vmatprep.mubr.f32.mxu0 0.0
        %1307 = vmatmul.mubr.f32.gmra.mrb[0].mxu0 %v445
        %v1308 = vpop.f32.mrb[0].mxu0
        %v1309 = vadd.f32 0.0, %v1308
        %v1310 = vpop.f32.mrb[0].mxu0
        %1311 = vmatprep.mubr.f32.mxu0 0.0
        %1312 = vmatmul.mubr.f32.gmra.mrb[0].mxu0 %v448
        %v1313 = vpop.f32.mrb[0].mxu0
        %v1314 = vadd.f32 0.0, %v1313
        %v1315 = vpop.f32.mrb[0].mxu0
        %1316 = vmatprep.mubr.f32.mxu0 0.0
        %1317 = vmatmul.mubr.f32.gmra.mrb[0].mxu0 %v451
        %v1318 = vpop.f32.mrb[0].mxu0
        %v1319 = vadd.f32 0.0, %v1318
        %v1320 = vpop.f32.mrb[0].mxu0
        %1321 = vmatprep.mubr.f32.mxu0 0.0
        %1322 = vmatmul.mubr.f32.gmra.mrb[0].mxu0 %v454
        %v1323 = vpop.f32.mrb[0].mxu0
        %v1324 = vadd.f32 0.0, %v1323
        %v1325 = vpop.f32.mrb[0].mxu0
        %1326 = vmatprep.mubr.f32.mxu0 0.0
        %1327 = vmatmul.mubr.f32.gmra.mrb[0].mxu0 %v457
        %v1328 = vpop.f32.mrb[0].mxu0
        %v1329 = vadd.f32 0.0, %v1328
        %v1330 = vpop.f32.mrb[0].mxu0
        %1331 = vmatprep.mubr.f32.mxu0 0.0
        %1332 = vmatmul.mubr.f32.gmra.mrb[0].mxu0 %v460
        %v1333 = vpop.f32.mrb[0].mxu0
        %v1334 = vadd.f32 0.0, %v1333
        %v1335 = vpop.f32.mrb[0].mxu0
        %1336 = vmatprep.mubr.f32.mxu0 0.0
        %1337 = vmatmul.mubr.f32.gmra.mrb[0].mxu0 %v463
        %v1338 = vpop.f32.mrb[0].mxu0
        %v1339 = vadd.f32 0.0, %v1338
        %v1340 = vpop.f32.mrb[0].mxu0
        %1341 = vmatprep.mubr.f32.mxu0 0.0
        %1342 = vmatmul.mubr.f32.gmra.mrb[0].mxu0 %v466
        %v1343 = vpop.f32.mrb[0].mxu0
        %v1344 = vadd.f32 0.0, %v1343
        %v1345 = vpop.f32.mrb[0].mxu0
        %1346 = vmatprep.mubr.f32.mxu0 0.0
        %1347 = vmatmul.mubr.f32.gmra.mrb[0].mxu0 %v469
        %v1348 = vpop.f32.mrb[0].mxu0
        %v1349 = vadd.f32 0.0, %v1348
        %v1350 = vpop.f32.mrb[0].mxu0
        %1351 = vmatprep.mubr.f32.mxu0 0.0
        %1352 = vmatmul.mubr.f32.gmra.mrb[0].mxu0 %v472
        %v1353 = vpop.f32.mrb[0].mxu0
        %v1354 = vadd.f32 0.0, %v1353
        %v1355 = vpop.f32.mrb[0].mxu0
        %1356 = vmatprep.mubr.f32.mxu0 0.0
        %1357 = vmatmul.mubr.f32.gmra.mrb[0].mxu0 %v475
        %v1358 = vpop.f32.mrb[0].mxu0
        %v1359 = vadd.f32 0.0, %v1358
        %v1360 = vpop.f32.mrb[0].mxu0
        %1361 = vmatprep.mubr.f32.mxu0 0.0
        %1362 = vmatmul.mubr.f32.gmra.mrb[0].mxu0 %v478
        %v1363 = vpop.f32.mrb[0].mxu0
        %v1364 = vadd.f32 0.0, %v1363
        %v1365 = vpop.f32.mrb[0].mxu0
        %1366 = vmatprep.mubr.f32.mxu0 0.0
        %1367 = vmatmul.mubr.f32.gmra.mrb[0].mxu0 %v481
        %v1368 = vpop.f32.mrb[0].mxu0
        %v1369 = vadd.f32 0.0, %v1368
        %v1370 = vpop.f32.mrb[0].mxu0
        %1371 = vmatprep.mubr.f32.mxu0 0.0
        %1372 = vmatmul.mubr.f32.gmra.mrb[0].mxu0 %v484
        %v1373 = vpop.f32.mrb[0].mxu0
        %v1374 = vadd.f32 0.0, %v1373
        %v1375 = vpop.f32.mrb[0].mxu0
        %1376 = vmatprep.mubr.f32.mxu0 0.0
        %1377 = vmatmul.mubr.f32.gmra.mrb[0].mxu0 %v487
        %v1378 = vpop.f32.mrb[0].mxu0
        %v1379 = vadd.f32 0.0, %v1378
        %v1380 = vpop.f32.mrb[0].mxu0
        %1381 = vmatprep.mubr.f32.mxu0 0.0
        %1382 = vmatmul.mubr.f32.gmra.mrb[0].mxu0 %v490
        %v1383 = vpop.f32.mrb[0].mxu0
        %v1384 = vadd.f32 0.0, %v1383
        %v1385 = vpop.f32.mrb[0].mxu0
        %1386 = vmatprep.mubr.f32.mxu0 0.0
        %1387 = vmatmul.mubr.f32.gmra.mrb[0].mxu0 %v493
        %v1388 = vpop.f32.mrb[0].mxu0
        %v1389 = vadd.f32 0.0, %v1388
        %v1390 = vpop.f32.mrb[0].mxu0
        %1391 = vmatprep.mubr.f32.mxu0 0.0
        %1392 = vmatmul.mubr.f32.gmra.mrb[0].mxu0 %v496
        %v1393 = vpop.f32.mrb[0].mxu0
        %v1394 = vadd.f32 0.0, %v1393
        %v1395 = vpop.f32.mrb[0].mxu0
        %1396 = vmatprep.mubr.f32.mxu0 0.0
        %1397 = vmatmul.mubr.f32.gmra.mrb[0].mxu0 %v499
        %v1398 = vpop.f32.mrb[0].mxu0
        %v1399 = vadd.f32 0.0, %v1398
        %v1400 = vpop.f32.mrb[0].mxu0
        %1401 = vmatprep.mubr.f32.mxu0 0.0
        %1402 = vmatmul.mubr.f32.gmra.mrb[0].mxu0 %v502
        %v1403 = vpop.f32.mrb[0].mxu0
        %v1404 = vadd.f32 0.0, %v1403
        %v1405 = vpop.f32.mrb[0].mxu0
        %1406 = vmatprep.mubr.f32.mxu0 0.0
        %1407 = vmatmul.mubr.f32.gmra.mrb[0].mxu0 %v505
        %v1408 = vpop.f32.mrb[0].mxu0
        %v1409 = vadd.f32 0.0, %v1408
        %v1410 = vpop.f32.mrb[0].mxu0
        %1411 = vmatprep.mubr.f32.mxu0 0.0
        %1412 = vmatmul.mubr.f32.gmra.mrb[0].mxu0 %v508
        %v1413 = vpop.f32.mrb[0].mxu0
        %v1414 = vadd.f32 0.0, %v1413
        %v1415 = vpop.f32.mrb[0].mxu0
        %1416 = vmatprep.mubr.f32.mxu0 0.0
        %1417 = vmatmul.mubr.f32.gmra.mrb[0].mxu0 %v511
        %v1418 = vpop.f32.mrb[0].mxu0
        %v1419 = vadd.f32 0.0, %v1418
        %v1420 = vpop.f32.mrb[0].mxu0
        %1421 = vmatprep.mubr.f32.mxu0 0.0
        %1422 = vmatmul.mubr.f32.gmra.mrb[0].mxu0 %v514
        %v1423 = vpop.f32.mrb[0].mxu0
        %v1424 = vadd.f32 0.0, %v1423
        %v1425 = vpop.f32.mrb[0].mxu0
        %1426 = vmatprep.mubr.f32.mxu0 0.0
        %1427 = vmatmul.mubr.f32.gmra.mrb[0].mxu0 %v517
        %v1428 = vpop.f32.mrb[0].mxu0
        %v1429 = vadd.f32 0.0, %v1428
        %v1430 = vpop.f32.mrb[0].mxu0
        %1431 = vmatprep.mubr.f32.mxu0 0.0
        %1432 = vmatmul.mubr.f32.gmra.mrb[0].mxu0 %v520
        %v1433 = vpop.f32.mrb[0].mxu0
        %v1434 = vadd.f32 0.0, %v1433
        %v1435 = vpop.f32.mrb[0].mxu0
        %1436 = vmatprep.mubr.f32.mxu0 0.0
        %1437 = vmatmul.mubr.f32.gmra.mrb[0].mxu0 %v523
        %v1438 = vpop.f32.mrb[0].mxu0
        %v1439 = vadd.f32 0.0, %v1438
        %v1440 = vpop.f32.mrb[0].mxu0
        %1441 = vmatprep.mubr.f32.mxu0 0.0
        %1442 = vmatmul.mubr.f32.gmra.mrb[0].mxu0 %v526
        %v1443 = vpop.f32.mrb[0].mxu0
        %v1444 = vadd.f32 0.0, %v1443
        %v1445 = vpop.f32.mrb[0].mxu0
        %1446 = vmatprep.mubr.f32.mxu0 0.0
        %1447 = vmatmul.mubr.f32.gmra.mrb[0].mxu0 %v529
        %v1448 = vpop.f32.mrb[0].mxu0
        %v1449 = vadd.f32 0.0, %v1448
        %v1450 = vpop.f32.mrb[0].mxu0
        %1451 = vmatprep.mubr.f32.mxu0 0.0
        %1452 = vmatmul.mubr.f32.gmra.mrb[0].mxu0 %v532
        %v1453 = vpop.f32.mrb[0].mxu0
        %v1454 = vadd.f32 0.0, %v1453
        %v1455 = vpop.f32.mrb[0].mxu0
        %1456 = vmatprep.mubr.f32.mxu0 0.0
        %1457 = vmatmul.mubr.f32.gmra.mrb[0].mxu0 %v535
        %v1458 = vpop.f32.mrb[0].mxu0
        %v1459 = vadd.f32 0.0, %v1458
        %v1460 = vpop.f32.mrb[0].mxu0
        %1461 = vmatprep.mubr.f32.mxu0 0.0
        %1462 = vmatmul.mubr.f32.gmra.mrb[0].mxu0 %v538
        %v1463 = vpop.f32.mrb[0].mxu0
        %v1464 = vadd.f32 0.0, %v1463
        %v1465 = vpop.f32.mrb[0].mxu0
        %1466 = vmatprep.mubr.f32.mxu0 0.0
        %1467 = vmatmul.mubr.f32.gmra.mrb[0].mxu0 %v541
        %v1468 = vpop.f32.mrb[0].mxu0
        %v1469 = vadd.f32 0.0, %v1468
        %v1470 = vpop.f32.mrb[0].mxu0
        %1471 = vmatprep.mubr.f32.mxu0 0.0
        %1472 = vmatmul.mubr.f32.gmra.mrb[0].mxu0 %v544
        %v1473 = vpop.f32.mrb[0].mxu0
        %v1474 = vadd.f32 0.0, %v1473
        %v1475 = vpop.f32.mrb[0].mxu0
        %1476 = vmatprep.mubr.f32.mxu0 0.0
        %1477 = vmatmul.mubr.f32.gmra.mrb[0].mxu0 %v547
        %v1478 = vpop.f32.mrb[0].mxu0
        %v1479 = vadd.f32 0.0, %v1478
        %v1480 = vpop.f32.mrb[0].mxu0
        %1481 = vmatprep.mubr.f32.mxu0 0.0
        %1482 = vmatmul.mubr.f32.gmra.mrb[0].mxu0 %v550
        %v1483 = vpop.f32.mrb[0].mxu0
        %v1484 = vadd.f32 0.0, %v1483
        %v1485 = vpop.f32.mrb[0].mxu0
        %1486 = vmatprep.mubr.f32.mxu0 0.0
        %1487 = vmatmul.mubr.f32.gmra.mrb[0].mxu0 %v553
        %v1488 = vpop.f32.mrb[0].mxu0
        %v1489 = vadd.f32 0.0, %v1488
        %v1490 = vpop.f32.mrb[0].mxu0
        %1491 = vmatprep.mubr.f32.mxu0 0.0
        %1492 = vmatmul.mubr.f32.gmra.mrb[0].mxu0 %v556
        %v1493 = vpop.f32.mrb[0].mxu0
        %v1494 = vadd.f32 0.0, %v1493
        %v1495 = vpop.f32.mrb[0].mxu0
        %1496 = vmatprep.mubr.f32.mxu0 0.0
        %1497 = vmatmul.mubr.f32.gmra.mrb[0].mxu0 %v559
        %v1498 = vpop.f32.mrb[0].mxu0
        %v1499 = vadd.f32 0.0, %v1498
        %v1500 = vpop.f32.mrb[0].mxu0
        %1501 = vmatprep.mubr.f32.mxu0 0.0
        %1502 = vmatmul.mubr.f32.gmra.mrb[0].mxu0 %v562
        %v1503 = vpop.f32.mrb[0].mxu0
        %v1504 = vadd.f32 0.0, %v1503
        %v1505 = vpop.f32.mrb[0].mxu0
        %1506 = vmatprep.mubr.f32.mxu0 0.0
        %1507 = vmatmul.mubr.f32.gmra.mrb[0].mxu0 %v565
        %v1508 = vpop.f32.mrb[0].mxu0
        %v1509 = vadd.f32 0.0, %v1508
        %v1510 = vpop.f32.mrb[0].mxu0
        %1511 = vmatprep.mubr.f32.mxu0 0.0
        %1512 = vmatmul.mubr.f32.gmra.mrb[0].mxu0 %v568
        %v1513 = vpop.f32.mrb[0].mxu0
        %v1514 = vadd.f32 0.0, %v1513
        %v1515 = vpop.f32.mrb[0].mxu0
        %1516 = vmatprep.mubr.f32.mxu0 0.0
        %1517 = vmatmul.mubr.f32.gmra.mrb[0].mxu0 %v571
        %v1518 = vpop.f32.mrb[0].mxu0
        %v1519 = vadd.f32 0.0, %v1518
        %v1520 = vpop.f32.mrb[0].mxu0
        %1521 = vmatprep.mubr.f32.mxu0 0.0
        %1522 = vmatmul.mubr.f32.gmra.mrb[0].mxu0 %v574
        %v1523 = vpop.f32.mrb[0].mxu0
        %v1524 = vadd.f32 0.0, %v1523
        %v1525 = vpop.f32.mrb[0].mxu0
        %1526 = vmatprep.mubr.f32.mxu0 0.0
        %1527 = vmatmul.mubr.f32.gmra.mrb[0].mxu0 %v577
        %v1528 = vpop.f32.mrb[0].mxu0
        %v1529 = vadd.f32 0.0, %v1528
        %v1530 = vpop.f32.mrb[0].mxu0
        %1531 = vmatprep.mubr.f32.mxu0 0.0
        %1532 = vmatmul.mubr.f32.gmra.mrb[0].mxu0 %v580
        %v1533 = vpop.f32.mrb[0].mxu0
        %v1534 = vadd.f32 0.0, %v1533
        %v1535 = vpop.f32.mrb[0].mxu0
        %1536 = vmatprep.mubr.f32.mxu0 0.0
        %1537 = vmatmul.mubr.f32.gmra.mrb[0].mxu0 %v583
        %v1538 = vpop.f32.mrb[0].mxu0
        %v1539 = vadd.f32 0.0, %v1538
        %v1540 = vpop.f32.mrb[0].mxu0
        %1541 = vmatprep.mubr.f32.mxu0 0.0
        %1542 = vmatmul.mubr.f32.gmra.mrb[0].mxu0 %v586
        %v1543 = vpop.f32.mrb[0].mxu0
        %v1544 = vadd.f32 0.0, %v1543
        %v1545 = vpop.f32.mrb[0].mxu0
        %1546 = vmatprep.mubr.f32.mxu0 0.0
        %1547 = vmatmul.mubr.f32.gmra.mrb[0].mxu0 %v589
        %v1548 = vpop.f32.mrb[0].mxu0
        %v1549 = vadd.f32 0.0, %v1548
        %v1550 = vpop.f32.mrb[0].mxu0
        %1551 = vmatprep.mubr.f32.mxu0 0.0
        %1552 = vmatmul.mubr.f32.gmra.mrb[0].mxu0 %v592
        %v1553 = vpop.f32.mrb[0].mxu0
        %v1554 = vadd.f32 0.0, %v1553
        %v1555 = vpop.f32.mrb[0].mxu0
        %1556 = vmatprep.mubr.f32.mxu0 0.0
        %1557 = vmatmul.mubr.f32.gmra.mrb[0].mxu0 %v595
        %v1558 = vpop.f32.mrb[0].mxu0
        %v1559 = vadd.f32 0.0, %v1558
        %v1560 = vpop.f32.mrb[0].mxu0
        %1561 = vmatprep.mubr.f32.mxu0 0.0
        %1562 = vmatmul.mubr.f32.gmra.mrb[0].mxu0 %v598
        %v1563 = vpop.f32.mrb[0].mxu0
        %v1564 = vadd.f32 0.0, %v1563
        %v1565 = vpop.f32.mrb[0].mxu0
        %1566 = vmatprep.mubr.f32.mxu0 0.0
        %1567 = vmatmul.mubr.f32.gmra.mrb[0].mxu0 %v601
        %v1568 = vpop.f32.mrb[0].mxu0
        %v1569 = vadd.f32 0.0, %v1568
        %v1570 = vpop.f32.mrb[0].mxu0
        %1571 = vmatprep.mubr.f32.mxu0 0.0
        %1572 = vmatmul.mubr.f32.gmra.mrb[0].mxu0 %v604
        %v1573 = vpop.f32.mrb[0].mxu0
        %v1574 = vadd.f32 0.0, %v1573
        %v1575 = vpop.f32.mrb[0].mxu0
        %1576 = vmatprep.mubr.f32.mxu0 0.0
        %1577 = vmatmul.mubr.f32.gmra.mrb[0].mxu0 %v607
        %v1578 = vpop.f32.mrb[0].mxu0
        %v1579 = vadd.f32 0.0, %v1578
        %v1580 = vpop.f32.mrb[0].mxu0
        %1581 = vmatprep.mubr.f32.mxu0 0.0
        %1582 = vmatmul.mubr.f32.gmra.mrb[0].mxu0 %v610
        %v1583 = vpop.f32.mrb[0].mxu0
        %v1584 = vadd.f32 0.0, %v1583
        %v1585 = vpop.f32.mrb[0].mxu0
        %1586 = vmatprep.mubr.f32.mxu0 0.0
        %1587 = vmatmul.mubr.f32.gmra.mrb[0].mxu0 %v613
        %v1588 = vpop.f32.mrb[0].mxu0
        %v1589 = vadd.f32 0.0, %v1588
        %v1590 = vpop.f32.mrb[0].mxu0
        %1591 = vmatprep.mubr.f32.mxu0 0.0
        %1592 = vmatmul.mubr.f32.gmra.mrb[0].mxu0 %v616
        %v1593 = vpop.f32.mrb[0].mxu0
        %v1594 = vadd.f32 0.0, %v1593
        %v1595 = vpop.f32.mrb[0].mxu0
        %1596 = vmatprep.mubr.f32.mxu0 0.0
        %1597 = vmatmul.mubr.f32.gmra.mrb[0].mxu0 %v619
        %v1598 = vpop.f32.mrb[0].mxu0
        %v1599 = vadd.f32 0.0, %v1598
        %v1600 = vpop.f32.mrb[0].mxu0
        %1601 = vmatprep.mubr.f32.mxu0 0.0
        %1602 = vmatmul.mubr.f32.gmra.mrb[0].mxu0 %v622
        %v1603 = vpop.f32.mrb[0].mxu0
        %v1604 = vadd.f32 0.0, %v1603
        %v1605 = vpop.f32.mrb[0].mxu0
        %1606 = vmatprep.mubr.f32.mxu0 0.0
        %1607 = vmatmul.mubr.f32.gmra.mrb[0].mxu0 %v625
        %v1608 = vpop.f32.mrb[0].mxu0
        %v1609 = vadd.f32 0.0, %v1608
        %v1610 = vpop.f32.mrb[0].mxu0
        %1611 = vmatprep.mubr.f32.mxu0 0.0
        %1612 = vmatmul.mubr.f32.gmra.mrb[0].mxu0 %v628
        %v1613 = vpop.f32.mrb[0].mxu0
        %v1614 = vadd.f32 0.0, %v1613
        %v1615 = vpop.f32.mrb[0].mxu0
        %1616 = vmatprep.mubr.f32.mxu0 0.0
        %1617 = vmatmul.mubr.f32.gmra.mrb[0].mxu0 %v631
        %v1618 = vpop.f32.mrb[0].mxu0
        %v1619 = vadd.f32 0.0, %v1618
        %v1620 = vpop.f32.mrb[0].mxu0
        %1621 = vmatprep.mubr.f32.mxu0 0.0
        %1622 = vmatmul.mubr.f32.gmra.mrb[0].mxu0 %v634
        %v1623 = vpop.f32.mrb[0].mxu0
        %v1624 = vadd.f32 0.0, %v1623
        %v1625 = vpop.f32.mrb[0].mxu0
        %1626 = vmatprep.mubr.f32.mxu0 0.0
        %1627 = vmatmul.mubr.f32.gmra.mrb[0].mxu0 %v637
        %v1628 = vpop.f32.mrb[0].mxu0
        %v1629 = vadd.f32 0.0, %v1628
        %v1630 = vpop.f32.mrb[0].mxu0
        %1631 = vmatprep.mubr.f32.mxu0 0.0
        %1632 = vmatmul.mubr.f32.gmra.mrb[0].mxu0 %v640
        %v1633 = vpop.f32.mrb[0].mxu0
        %v1634 = vadd.f32 0.0, %v1633
        %v1635 = vpop.f32.mrb[0].mxu0
        %1636 = vmatprep.mubr.f32.mxu0 0.0
        %1637 = vmatmul.mubr.f32.gmra.mrb[0].mxu0 %v643
        %v1638 = vpop.f32.mrb[0].mxu0
        %v1639 = vadd.f32 0.0, %v1638
        %v1640 = vpop.f32.mrb[0].mxu0
        %1641 = vmatprep.mubr.f32.mxu0 0.0
        %1642 = vmatmul.mubr.f32.gmra.mrb[0].mxu0 %v646
        %v1643 = vpop.f32.mrb[0].mxu0
        %v1644 = vadd.f32 0.0, %v1643
        %v1645 = vpop.f32.mrb[0].mxu0
        %1646 = vmatprep.mubr.f32.mxu0 0.0
        %1647 = vmatmul.mubr.f32.gmra.mrb[0].mxu0 %v649
        %v1648 = vpop.f32.mrb[0].mxu0
        %v1649 = vadd.f32 0.0, %v1648
        %v1650 = vpop.f32.mrb[0].mxu0
        %1651 = vmatprep.mubr.f32.mxu0 0.0
        %1652 = vmatmul.mubr.f32.gmra.mrb[0].mxu0 %v652
        %v1653 = vpop.f32.mrb[0].mxu0
        %v1654 = vadd.f32 0.0, %v1653
        %v1655 = vpop.f32.mrb[0].mxu0
        %1656 = vmatprep.mubr.f32.mxu0 0.0
        %1657 = vmatmul.mubr.f32.gmra.mrb[0].mxu0 %v655
        %v1658 = vpop.f32.mrb[0].mxu0
        %v1659 = vadd.f32 0.0, %v1658
        %v1660 = vpop.f32.mrb[0].mxu0
        %1661 = vmatprep.mubr.f32.mxu0 0.0
        %1662 = vmatmul.mubr.f32.gmra.mrb[0].mxu0 %v658
        %v1663 = vpop.f32.mrb[0].mxu0
        %v1664 = vadd.f32 0.0, %v1663
        %v1665 = vpop.f32.mrb[0].mxu0
        %1666 = vmatprep.mubr.f32.mxu0 0.0
        %1667 = vmatmul.mubr.f32.gmra.mrb[0].mxu0 %v661
        %v1668 = vpop.f32.mrb[0].mxu0
        %v1669 = vadd.f32 0.0, %v1668
        %v1670 = vpop.f32.mrb[0].mxu0
        %1671 = vmatprep.mubr.f32.mxu0 0.0
        %1672 = vmatmul.mubr.f32.gmra.mrb[0].mxu0 %v664
        %v1673 = vpop.f32.mrb[0].mxu0
        %v1674 = vadd.f32 0.0, %v1673
        %v1675 = vpop.f32.mrb[0].mxu0
        %1676 = vmatprep.mubr.f32.mxu0 0.0
        %1677 = vmatmul.mubr.f32.gmra.mrb[0].mxu0 %v667
        %v1678 = vpop.f32.mrb[0].mxu0
        %v1679 = vadd.f32 0.0, %v1678
        %v1680 = vpop.f32.mrb[0].mxu0
        %1681 = vmatprep.mubr.f32.mxu0 0.0
        %1682 = vmatmul.mubr.f32.gmra.mrb[0].mxu0 %v670
        %v1683 = vpop.f32.mrb[0].mxu0
        %v1684 = vadd.f32 0.0, %v1683
        %v1685 = vpop.f32.mrb[0].mxu0
        %1686 = vmatprep.mubr.f32.mxu0 0.0
        %1687 = vmatmul.mubr.f32.gmra.mrb[0].mxu0 %v673
        %v1688 = vpop.f32.mrb[0].mxu0
        %v1689 = vadd.f32 0.0, %v1688
        %v1690 = vpop.f32.mrb[0].mxu0
        %1691 = vmatprep.mubr.f32.mxu0 0.0
        %1692 = vmatmul.mubr.f32.gmra.mrb[0].mxu0 %v676
        %v1693 = vpop.f32.mrb[0].mxu0
        %v1694 = vadd.f32 0.0, %v1693
        %v1695 = vpop.f32.mrb[0].mxu0
        %1696 = vmatprep.mubr.f32.mxu0 0.0
        %1697 = vmatmul.mubr.f32.gmra.mrb[0].mxu0 %v679
        %v1698 = vpop.f32.mrb[0].mxu0
        %v1699 = vadd.f32 0.0, %v1698
        %v1700 = vpop.f32.mrb[0].mxu0
        %1701 = vmatprep.mubr.f32.mxu0 0.0
        %1702 = vmatmul.mubr.f32.gmra.mrb[0].mxu0 %v682
        %v1703 = vpop.f32.mrb[0].mxu0
        %v1704 = vadd.f32 0.0, %v1703
        %v1705 = vpop.f32.mrb[0].mxu0
        %1706 = vmatprep.mubr.f32.mxu0 0.0
        %1707 = vmatmul.mubr.f32.gmra.mrb[0].mxu0 %v685
        %v1708 = vpop.f32.mrb[0].mxu0
        %v1709 = vadd.f32 0.0, %v1708
        %v1710 = vpop.f32.mrb[0].mxu0
        %1711 = vmatprep.mubr.f32.mxu0 0.0
        %1712 = vmatmul.mubr.f32.gmra.mrb[0].mxu0 %v688
        %v1713 = vpop.f32.mrb[0].mxu0
        %v1714 = vadd.f32 0.0, %v1713
        %v1715 = vpop.f32.mrb[0].mxu0
        %1716 = vmatprep.mubr.f32.mxu0 0.0
        %1717 = vmatmul.mubr.f32.gmra.mrb[0].mxu0 %v691
        %v1718 = vpop.f32.mrb[0].mxu0
        %v1719 = vadd.f32 0.0, %v1718
        %v1720 = vpop.f32.mrb[0].mxu0
        %1721 = vmatprep.mubr.f32.mxu0 0.0
        %1722 = vmatmul.mubr.f32.gmra.mrb[0].mxu0 %v694
        %v1723 = vpop.f32.mrb[0].mxu0
        %v1724 = vadd.f32 0.0, %v1723
        %v1725 = vpop.f32.mrb[0].mxu0
        %1726 = vmatprep.mubr.f32.mxu0 0.0
        %1727 = vmatmul.mubr.f32.gmra.mrb[0].mxu0 %v697
        %v1728 = vpop.f32.mrb[0].mxu0
        %v1729 = vadd.f32 0.0, %v1728
        %v1730 = vpop.f32.mrb[0].mxu0
        %1731 = vmatprep.mubr.f32.mxu0 0.0
        %1732 = vmatmul.mubr.f32.gmra.mrb[0].mxu0 %v700
        %v1733 = vpop.f32.mrb[0].mxu0
        %v1734 = vadd.f32 0.0, %v1733
        %v1735 = vpop.f32.mrb[0].mxu0
        %1736 = vmatprep.mubr.f32.mxu0 0.0
        %1737 = vmatmul.mubr.f32.gmra.mrb[0].mxu0 %v703
        %v1738 = vpop.f32.mrb[0].mxu0
        %v1739 = vadd.f32 0.0, %v1738
        %v1740 = vpop.f32.mrb[0].mxu0
        %1741 = vmatprep.mubr.f32.mxu0 0.0
        %1742 = vmatmul.mubr.f32.gmra.mrb[0].mxu0 %v706
        %v1743 = vpop.f32.mrb[0].mxu0
        %v1744 = vadd.f32 0.0, %v1743
        %v1745 = vpop.f32.mrb[0].mxu0
        %1746 = vmatprep.mubr.f32.mxu0 0.0
        %1747 = vmatmul.mubr.f32.gmra.mrb[0].mxu0 %v709
        %v1748 = vpop.f32.mrb[0].mxu0
        %v1749 = vadd.f32 0.0, %v1748
        %v1750 = vpop.f32.mrb[0].mxu0
        %1751 = vmatprep.mubr.f32.mxu0 0.0
        %1752 = vmatmul.mubr.f32.gmra.mrb[0].mxu0 %v712
        %v1753 = vpop.f32.mrb[0].mxu0
        %v1754 = vadd.f32 0.0, %v1753
        %v1755 = vpop.f32.mrb[0].mxu0
        %1756 = vmatprep.mubr.f32.mxu0 0.0
        %1757 = vmatmul.mubr.f32.gmra.mrb[0].mxu0 %v715
        %v1758 = vpop.f32.mrb[0].mxu0
        %v1759 = vadd.f32 0.0, %v1758
        %v1760 = vpop.f32.mrb[0].mxu0
        %1761 = vmatprep.mubr.f32.mxu0 0.0
        %1762 = vmatmul.mubr.f32.gmra.mrb[0].mxu0 %v718
        %v1763 = vpop.f32.mrb[0].mxu0
        %v1764 = vadd.f32 0.0, %v1763
        %v1765 = vpop.f32.mrb[0].mxu0
        %1766 = vmatprep.mubr.f32.mxu0 0.0
        %1767 = vmatmul.mubr.f32.gmra.mrb[0].mxu0 %v721
        %v1768 = vpop.f32.mrb[0].mxu0
        %v1769 = vadd.f32 0.0, %v1768
        %v1770 = vpop.f32.mrb[0].mxu0
        %1771 = vmatprep.mubr.f32.mxu0 0.0
        %1772 = vmatmul.mubr.f32.gmra.mrb[0].mxu0 %v724
        %v1773 = vpop.f32.mrb[0].mxu0
        %v1774 = vadd.f32 0.0, %v1773
        %v1775 = vpop.f32.mrb[0].mxu0
        %1776 = vmatprep.mubr.f32.mxu0 0.0
        %1777 = vmatmul.mubr.f32.gmra.mrb[0].mxu0 %v727
        %v1778 = vpop.f32.mrb[0].mxu0
        %v1779 = vadd.f32 0.0, %v1778
        %v1780 = vpop.f32.mrb[0].mxu0
        %1781 = vmatprep.mubr.f32.mxu0 0.0
        %1782 = vmatmul.mubr.f32.gmra.mrb[0].mxu0 %v730
        %v1783 = vpop.f32.mrb[0].mxu0
        %v1784 = vadd.f32 0.0, %v1783
        %v1785 = vpop.f32.mrb[0].mxu0
        %1786 = vmatprep.mubr.f32.mxu0 0.0
        %1787 = vmatmul.mubr.f32.gmra.mrb[0].mxu0 %v733
        %v1788 = vpop.f32.mrb[0].mxu0
        %v1789 = vadd.f32 0.0, %v1788
        %v1790 = vpop.f32.mrb[0].mxu0
        %1791 = vmatprep.mubr.f32.mxu0 0.0
        %1792 = vmatmul.mubr.f32.gmra.mrb[0].mxu0 %v736
        %v1793 = vpop.f32.mrb[0].mxu0
        %v1794 = vadd.f32 0.0, %v1793
        %v1795 = vpop.f32.mrb[0].mxu0
        %1796 = vmatprep.mubr.f32.mxu0 0.0
        %1797 = vmatmul.mubr.f32.gmra.mrb[0].mxu0 %v739
        %v1798 = vpop.f32.mrb[0].mxu0
        %v1799 = vadd.f32 0.0, %v1798
        %v1800 = vpop.f32.mrb[0].mxu0
        %1801 = vmatprep.mubr.f32.mxu0 0.0
        %1802 = vmatmul.mubr.f32.gmra.mrb[0].mxu0 %v742
        %v1803 = vpop.f32.mrb[0].mxu0
        %v1804 = vadd.f32 0.0, %v1803
        %v1805 = vpop.f32.mrb[0].mxu0
        %1806 = vmatprep.mubr.f32.mxu0 0.0
        %1807 = vmatmul.mubr.f32.gmra.mrb[0].mxu0 %v745
        %v1808 = vpop.f32.mrb[0].mxu0
        %v1809 = vadd.f32 0.0, %v1808
        %v1810 = vpop.f32.mrb[0].mxu0
        %1811 = vmatprep.mubr.f32.mxu0 0.0
        %1812 = vmatmul.mubr.f32.gmra.mrb[0].mxu0 %v748
        %v1813 = vpop.f32.mrb[0].mxu0
        %v1814 = vadd.f32 0.0, %v1813
        %v1815 = vpop.f32.mrb[0].mxu0
        %1816 = vmatprep.mubr.f32.mxu0 0.0
        %1817 = vmatmul.mubr.f32.gmra.mrb[0].mxu0 %v751
        %v1818 = vpop.f32.mrb[0].mxu0
        %v1819 = vadd.f32 0.0, %v1818
        %v1820 = vpop.f32.mrb[0].mxu0
        %1821 = vmatprep.mubr.f32.mxu0 0.0
        %1822 = vmatmul.mubr.f32.gmra.mrb[0].mxu0 %v754
        %v1823 = vpop.f32.mrb[0].mxu0
        %v1824 = vadd.f32 0.0, %v1823
        %v1825 = vpop.f32.mrb[0].mxu0
        %1826 = vmatprep.mubr.f32.mxu0 0.0
        %1827 = vmatmul.mubr.f32.gmra.mrb[0].mxu0 %v757
        %v1828 = vpop.f32.mrb[0].mxu0
        %v1829 = vadd.f32 0.0, %v1828
        %v1830 = vpop.f32.mrb[0].mxu0
        %1831 = vmatprep.mubr.f32.mxu0 0.0
        %1832 = vmatmul.mubr.f32.gmra.mrb[0].mxu0 %v760
        %v1833 = vpop.f32.mrb[0].mxu0
        %v1834 = vadd.f32 0.0, %v1833
        %v1835 = vpop.f32.mrb[0].mxu0
        %1836 = vmatprep.mubr.f32.mxu0 0.0
        %1837 = vmatmul.mubr.f32.gmra.mrb[0].mxu0 %v763
        %v1838 = vpop.f32.mrb[0].mxu0
        %v1839 = vadd.f32 0.0, %v1838
        %v1840 = vpop.f32.mrb[0].mxu0
        %1841 = vmatprep.mubr.f32.mxu0 0.0
        %1842 = vmatmul.mubr.f32.gmra.mrb[0].mxu0 %v766
        %v1843 = vpop.f32.mrb[0].mxu0
        %v1844 = vadd.f32 0.0, %v1843
        %v1845 = vpop.f32.mrb[0].mxu0
        %1846 = vmatprep.mubr.f32.mxu0 0.0
        %1847 = vmatmul.mubr.f32.gmra.mrb[0].mxu0 %v769
        %v1848 = vpop.f32.mrb[0].mxu0
        %v1849 = vadd.f32 0.0, %v1848
        %v1850 = vpop.f32.mrb[0].mxu0
        %1851 = vmatprep.mubr.f32.mxu0 0.0
        %1852 = vmatmul.mubr.f32.gmra.mrb[0].mxu0 %v772
        %v1853 = vpop.f32.mrb[0].mxu0
        %v1854 = vadd.f32 0.0, %v1853
        %v1855 = vpop.f32.mrb[0].mxu0
        %1856 = vmatprep.mubr.f32.mxu0 0.0
        %1857 = vmatmul.mubr.f32.gmra.mrb[0].mxu0 %v775
        %v1858 = vpop.f32.mrb[0].mxu0
        %v1859 = vadd.f32 0.0, %v1858
        %v1860 = vpop.f32.mrb[0].mxu0
        %1861 = vmatprep.mubr.f32.mxu0 0.0
        %1862 = vmatmul.mubr.f32.gmra.mrb[0].mxu0 %v778
        %v1863 = vpop.f32.mrb[0].mxu0
        %v1864 = vadd.f32 0.0, %v1863
        %v1865 = vpop.f32.mrb[0].mxu0
        %1866 = vmatprep.mubr.f32.mxu0 0.0
        %1867 = vmatmul.mubr.f32.gmra.mrb[0].mxu0 %v781
        %v1868 = vpop.f32.mrb[0].mxu0
        %v1869 = vadd.f32 0.0, %v1868
        %v1870 = vpop.f32.mrb[0].mxu0
        %1871 = vmatprep.mubr.f32.mxu0 0.0
        %1872 = vmatmul.mubr.f32.gmra.mrb[0].mxu0 %v784
        %v1873 = vpop.f32.mrb[0].mxu0
        %v1874 = vadd.f32 0.0, %v1873
        %v1875 = vpop.f32.mrb[0].mxu0
        %1876 = vmatprep.mubr.f32.mxu0 0.0
        %1877 = vmatmul.mubr.f32.gmra.mrb[0].mxu0 %v787
        %v1878 = vpop.f32.mrb[0].mxu0
        %v1879 = vadd.f32 0.0, %v1878
        %v1880 = vpop.f32.mrb[0].mxu0
        %1881 = vmatprep.mubr.f32.mxu0 0.0
        %1882 = vmatmul.mubr.f32.gmra.mrb[0].mxu0 %v790
        %v1883 = vpop.f32.mrb[0].mxu0
        %v1884 = vadd.f32 0.0, %v1883
        %v1885 = vpop.f32.mrb[0].mxu0
        %1886 = vmatprep.mubr.f32.mxu0 0.0
        %1887 = vmatmul.mubr.f32.gmra.mrb[0].mxu0 %v793
        %v1888 = vpop.f32.mrb[0].mxu0
        %v1889 = vadd.f32 0.0, %v1888
        %v1890 = vpop.f32.mrb[0].mxu0
        %1891 = vmatprep.mubr.f32.mxu0 0.0
        %1892 = vmatmul.mubr.f32.gmra.mrb[0].mxu0 %v796
        %v1893 = vpop.f32.mrb[0].mxu0
        %v1894 = vadd.f32 0.0, %v1893
        %v1895 = vpop.f32.mrb[0].mxu0
        %1896 = vmatprep.mubr.f32.mxu0 0.0
        %1897 = vmatmul.mubr.f32.gmra.mrb[0].mxu0 %v799
        %v1898 = vpop.f32.mrb[0].mxu0
        %v1899 = vadd.f32 0.0, %v1898
        %v1900 = vpop.f32.mrb[0].mxu0
        %1901 = vmatprep.mubr.f32.mxu0 0.0
        %1902 = vmatmul.mubr.f32.gmra.mrb[0].mxu0 %v802
        %v1903 = vpop.f32.mrb[0].mxu0
        %v1904 = vadd.f32 0.0, %v1903
        %v1905 = vpop.f32.mrb[0].mxu0
        %1906 = vmatprep.mubr.f32.mxu0 0.0
        %1907 = vmatmul.mubr.f32.gmra.mrb[0].mxu0 %v805
        %v1908 = vpop.f32.mrb[0].mxu0
        %v1909 = vadd.f32 0.0, %v1908
        %v1910 = vpop.f32.mrb[0].mxu0
        %1911 = vmatprep.mubr.f32.mxu0 0.0
        %1912 = vmatmul.mubr.f32.gmra.mrb[0].mxu0 %v808
        %v1913 = vpop.f32.mrb[0].mxu0
        %v1914 = vadd.f32 0.0, %v1913
        %v1915 = vpop.f32.mrb[0].mxu0
        %1916 = vmatprep.mubr.f32.mxu0 0.0
        %1917 = vmatmul.mubr.f32.gmra.mrb[0].mxu0 %v811
        %v1918 = vpop.f32.mrb[0].mxu0
        %v1919 = vadd.f32 0.0, %v1918
        %v1920 = vpop.f32.mrb[0].mxu0
        %1921 = vmatprep.mubr.f32.mxu0 0.0
        %1922 = vmatmul.mubr.f32.gmra.mrb[0].mxu0 %v814
        %v1923 = vpop.f32.mrb[0].mxu0
        %v1924 = vadd.f32 0.0, %v1923
        %v1925 = vpop.f32.mrb[0].mxu0
        %1926 = vmatprep.mubr.f32.mxu0 0.0
        %1927 = vmatmul.mubr.f32.gmra.mrb[0].mxu0 %v817
        %v1928 = vpop.f32.mrb[0].mxu0
        %v1929 = vadd.f32 0.0, %v1928
        %v1930 = vpop.f32.mrb[0].mxu0
        %1931 = vmatprep.mubr.f32.mxu0 0.0
        %1932 = vmatmul.mubr.f32.gmra.mrb[0].mxu0 %v820
        %v1933 = vpop.f32.mrb[0].mxu0
        %v1934 = vadd.f32 0.0, %v1933
        %v1935 = vpop.f32.mrb[0].mxu0
        %1936 = vmatprep.mubr.f32.mxu0 0.0
        %1937 = vmatmul.mubr.f32.gmra.mrb[0].mxu0 %v823
        %v1938 = vpop.f32.mrb[0].mxu0
        %v1939 = vadd.f32 0.0, %v1938
        %v1940 = vpop.f32.mrb[0].mxu0
        %1941 = vmatprep.mubr.f32.mxu0 0.0
        %1942 = vmatmul.mubr.f32.gmra.mrb[0].mxu0 %v826
        %v1943 = vpop.f32.mrb[0].mxu0
        %v1944 = vadd.f32 0.0, %v1943
        %v1945 = vpop.f32.mrb[0].mxu0
        %1946 = vmatprep.mubr.f32.mxu0 0.0
        %1947 = vmatmul.mubr.f32.gmra.mrb[0].mxu0 %v829
        %v1948 = vpop.f32.mrb[0].mxu0
        %v1949 = vadd.f32 0.0, %v1948
        %v1950 = vpop.f32.mrb[0].mxu0
        %1951 = vmatprep.mubr.f32.mxu0 0.0
        %1952 = vmatmul.mubr.f32.gmra.mrb[0].mxu0 %v832
        %v1953 = vpop.f32.mrb[0].mxu0
        %v1954 = vadd.f32 0.0, %v1953
        %v1955 = vpop.f32.mrb[0].mxu0
        %1956 = vmatprep.mubr.f32.mxu0 0.0
        %1957 = vmatmul.mubr.f32.gmra.mrb[0].mxu0 %v835
        %v1958 = vpop.f32.mrb[0].mxu0
        %v1959 = vadd.f32 0.0, %v1958
        %v1960 = vpop.f32.mrb[0].mxu0
        %1961 = vmatprep.mubr.f32.mxu0 0.0
        %1962 = vmatmul.mubr.f32.gmra.mrb[0].mxu0 %v838
        %v1963 = vpop.f32.mrb[0].mxu0
        %v1964 = vadd.f32 0.0, %v1963
        %v1965 = vpop.f32.mrb[0].mxu0
        %1966 = vmatprep.mubr.f32.mxu0 0.0
        %1967 = vmatmul.mubr.f32.gmra.mrb[0].mxu0 %v841
        %v1968 = vpop.f32.mrb[0].mxu0
        %v1969 = vadd.f32 0.0, %v1968
        %v1970 = vpop.f32.mrb[0].mxu0
        %1971 = vmatprep.mubr.f32.mxu0 0.0
        %1972 = vmatmul.mubr.f32.gmra.mrb[0].mxu0 %v844
        %v1973 = vpop.f32.mrb[0].mxu0
        %v1974 = vadd.f32 0.0, %v1973
        %v1975 = vpop.f32.mrb[0].mxu0
        %1976 = vmatprep.mubr.f32.mxu0 0.0
        %1977 = vmatmul.mubr.f32.gmra.mrb[0].mxu0 %v847
        %v1978 = vpop.f32.mrb[0].mxu0
        %v1979 = vadd.f32 0.0, %v1978
        %v1980 = vpop.f32.mrb[0].mxu0
        %1981 = vmatprep.mubr.f32.mxu0 0.0
        %1982 = vmatmul.mubr.f32.gmra.mrb[0].mxu0 %v850
        %v1983 = vpop.f32.mrb[0].mxu0
        %v1984 = vadd.f32 0.0, %v1983
        %v1985 = vpop.f32.mrb[0].mxu0
        %1986 = vmatprep.mubr.f32.mxu0 0.0
        %1987 = vmatmul.mubr.f32.gmra.mrb[0].mxu0 %v853
        %v1988 = vpop.f32.mrb[0].mxu0
        %v1989 = vadd.f32 0.0, %v1988
        %v1990 = vpop.f32.mrb[0].mxu0
        %1991 = vmatprep.mubr.f32.mxu0 0.0
        %1992 = vmatmul.mubr.f32.gmra.mrb[0].mxu0 %v856
        %v1993 = vpop.f32.mrb[0].mxu0
        %v1994 = vadd.f32 0.0, %v1993
        %v1995 = vpop.f32.mrb[0].mxu0
        %1996 = vmatprep.mubr.f32.mxu0 0.0
        %1997 = vmatmul.mubr.f32.gmra.mrb[0].mxu0 %v859
        %v1998 = vpop.f32.mrb[0].mxu0
        %v1999 = vadd.f32 0.0, %v1998
        %v2000 = vpop.f32.mrb[0].mxu0
        %2001 = vmatprep.mubr.f32.mxu0 0.0
        %2002 = vmatmul.mubr.f32.gmra.mrb[0].mxu0 %v862
        %v2003 = vpop.f32.mrb[0].mxu0
        %v2004 = vadd.f32 0.0, %v2003
        %v2005 = vpop.f32.mrb[0].mxu0
        %2006 = vmatprep.mubr.f32.mxu0 0.0
        %2007 = vmatmul.mubr.f32.gmra.mrb[0].mxu0 %v865
        %v2008 = vpop.f32.mrb[0].mxu0
        %v2009 = vadd.f32 0.0, %v2008
        %v2010 = vpop.f32.mrb[0].mxu0
        %2011 = vmatprep.mubr.f32.mxu0 0.0
        %2012 = vmatmul.mubr.f32.gmra.mrb[0].mxu0 %v868
        %v2013 = vpop.f32.mrb[0].mxu0
        %v2014 = vadd.f32 0.0, %v2013
        %v2015 = vpop.f32.mrb[0].mxu0
        %2016 = vmatprep.mubr.f32.mxu0 0.0
        %2017 = vmatmul.mubr.f32.gmra.mrb[0].mxu0 %v871
        %v2018 = vpop.f32.mrb[0].mxu0
        %v2019 = vadd.f32 0.0, %v2018
        %v2020 = vpop.f32.mrb[0].mxu0
        %2021 = vmatprep.mubr.f32.mxu0 0.0
        %2022 = vmatmul.mubr.f32.gmra.mrb[0].mxu0 %v874
        %v2023 = vpop.f32.mrb[0].mxu0
        %v2024 = vadd.f32 0.0, %v2023
        %v2025 = vpop.f32.mrb[0].mxu0
        %2026 = vmatprep.mubr.f32.mxu0 0.0
        %2027 = vmatmul.mubr.f32.gmra.mrb[0].mxu0 %v877
        %v2028 = vpop.f32.mrb[0].mxu0
        %v2029 = vadd.f32 0.0, %v2028
        %v2030 = vpop.f32.mrb[0].mxu0
        %2031 = vmatprep.mubr.f32.mxu0 0.0
        %2032 = vmatmul.mubr.f32.gmra.mrb[0].mxu0 %v880
        %v2033 = vpop.f32.mrb[0].mxu0
        %v2034 = vadd.f32 0.0, %v2033
        %v2035 = vpop.f32.mrb[0].mxu0
        %2036 = vmatprep.mubr.f32.mxu0 0.0
        %2037 = vmatmul.mubr.f32.gmra.mrb[0].mxu0 %v883
        %v2038 = vpop.f32.mrb[0].mxu0
        %v2039 = vadd.f32 0.0, %v2038
        %v2040 = vpop.f32.mrb[0].mxu0
        %2041 = vmatprep.mubr.f32.mxu0 0.0
        %2042 = vmatmul.mubr.f32.gmra.mrb[0].mxu0 %v886
        %v2043 = vpop.f32.mrb[0].mxu0
        %v2044 = vadd.f32 0.0, %v2043
        %v2045 = vpop.f32.mrb[0].mxu0
        %2046 = vmatprep.mubr.f32.mxu0 0.0
        %2047 = vmatmul.mubr.f32.gmra.mrb[0].mxu0 %v889
        %v2048 = vpop.f32.mrb[0].mxu0
        %v2049 = vadd.f32 0.0, %v2048
        %v2050 = vpop.f32.mrb[0].mxu0
        %2051 = vmatprep.mubr.f32.mxu0 0.0
        %2052 = vmatmul.mubr.f32.gmra.mrb[0].mxu0 %v892
        %v2053 = vpop.f32.mrb[0].mxu0
        %v2054 = vadd.f32 0.0, %v2053
        %v2055 = vpop.f32.mrb[0].mxu0
        %2056 = vmatprep.mubr.f32.mxu0 0.0
        %2057 = vmatmul.mubr.f32.gmra.mrb[0].mxu0 %v895
        %v2058 = vpop.f32.mrb[0].mxu0
        %v2059 = vadd.f32 0.0, %v2058
        %v2060 = vpop.f32.mrb[0].mxu0
        %2061 = vmatprep.mubr.f32.mxu0 0.0
        %2062 = vmatmul.mubr.f32.gmra.mrb[0].mxu0 %v898
        %v2063 = vpop.f32.mrb[0].mxu0
        %v2064 = vadd.f32 0.0, %v2063
        %v2065 = vpop.f32.mrb[0].mxu0
        %2066 = vmatprep.mubr.f32.mxu0 0.0
        %2067 = vmatmul.mubr.f32.gmra.mrb[0].mxu0 %v901
        %v2068 = vpop.f32.mrb[0].mxu0
        %v2069 = vadd.f32 0.0, %v2068
        %v2070 = vpop.f32.mrb[0].mxu0
        %2071 = vmatprep.mubr.f32.mxu0 0.0
        %2072 = vmatmul.mubr.f32.gmra.mrb[0].mxu0 %v904
        %v2073 = vpop.f32.mrb[0].mxu0
        %v2074 = vadd.f32 0.0, %v2073
        %v2075 = vpop.f32.mrb[0].mxu0
        %2076 = vmatprep.mubr.f32.mxu0 0.0
        %2077 = vmatmul.mubr.f32.gmra.mrb[0].mxu0 %v907
        %v2078 = vpop.f32.mrb[0].mxu0
        %v2079 = vadd.f32 0.0, %v2078
        %v2080 = vpop.f32.mrb[0].mxu0
        %2081 = vmatprep.mubr.f32.mxu0 0.0
        %2082 = vmatmul.mubr.f32.gmra.mrb[0].mxu0 %v910
        %v2083 = vpop.f32.mrb[0].mxu0
        %v2084 = vadd.f32 0.0, %v2083
        %v2085 = vpop.f32.mrb[0].mxu0
        %2086 = vmatprep.mubr.f32.mxu0 0.0
        %2087 = vmatmul.mubr.f32.gmra.mrb[0].mxu0 %v913
        %v2088 = vpop.f32.mrb[0].mxu0
        %v2089 = vadd.f32 0.0, %v2088
        %v2090 = vpop.f32.mrb[0].mxu0
        %2091 = vmatprep.mubr.f32.mxu0 0.0
        %2092 = vmatmul.mubr.f32.gmra.mrb[0].mxu0 %v916
        %v2093 = vpop.f32.mrb[0].mxu0
        %v2094 = vadd.f32 0.0, %v2093
        %v2095 = vpop.f32.mrb[0].mxu0
        %2096 = vmatprep.mubr.f32.mxu0 0.0
        %2097 = vmatmul.mubr.f32.gmra.mrb[0].mxu0 %v919
        %v2098 = vpop.f32.mrb[0].mxu0
        %v2099 = vadd.f32 0.0, %v2098
        %v2100 = vpop.f32.mrb[0].mxu0
        %2101 = vmatprep.mubr.f32.mxu0 0.0
        %2102 = vmatmul.mubr.f32.gmra.mrb[0].mxu0 %v922
        %v2103 = vpop.f32.mrb[0].mxu0
        %v2104 = vadd.f32 0.0, %v2103
        %v2105 = vpop.f32.mrb[0].mxu0
        %2106 = vmatprep.mubr.f32.mxu0 0.0
        %2107 = vmatmul.mubr.f32.gmra.mrb[0].mxu0 %v925
        %v2108 = vpop.f32.mrb[0].mxu0
        %v2109 = vadd.f32 0.0, %v2108
        %v2110 = vpop.f32.mrb[0].mxu0
        %2111 = vmatprep.mubr.f32.mxu0 0.0
        %2112 = vmatmul.mubr.f32.gmra.mrb[0].mxu0 %v928
        %v2113 = vpop.f32.mrb[0].mxu0
        %v2114 = vadd.f32 0.0, %v2113
        %v2115 = vpop.f32.mrb[0].mxu0
        %2116 = vmatprep.mubr.f32.mxu0 0.0
        %2117 = vmatmul.mubr.f32.gmra.mrb[0].mxu0 %v931
        %v2118 = vpop.f32.mrb[0].mxu0
        %v2119 = vadd.f32 0.0, %v2118
        %v2120 = vpop.f32.mrb[0].mxu0
        %2121 = vmatprep.mubr.f32.mxu0 0.0
        %2122 = vmatmul.mubr.f32.gmra.mrb[0].mxu0 %v934
        %v2123 = vpop.f32.mrb[0].mxu0
        %v2124 = vadd.f32 0.0, %v2123
        %v2125 = vpop.f32.mrb[0].mxu0
        %2126 = vmatprep.mubr.f32.mxu0 0.0
        %2127 = vmatmul.mubr.f32.gmra.mrb[0].mxu0 %v937
        %v2128 = vpop.f32.mrb[0].mxu0
        %v2129 = vadd.f32 0.0, %v2128
        %v2130 = vpop.f32.mrb[0].mxu0
        %2131 = vmatprep.mubr.f32.mxu0 0.0
        %2132 = vmatmul.mubr.f32.gmra.mrb[0].mxu0 %v940
        %v2133 = vpop.f32.mrb[0].mxu0
        %v2134 = vadd.f32 0.0, %v2133
        %v2135 = vpop.f32.mrb[0].mxu0
        %2136 = vmatprep.mubr.f32.mxu0 0.0
        %2137 = vmatmul.mubr.f32.gmra.mrb[0].mxu0 %v943
        %v2138 = vpop.f32.mrb[0].mxu0
        %v2139 = vadd.f32 0.0, %v2138
        %v2140 = vpop.f32.mrb[0].mxu0
        %2141 = vmatprep.mubr.f32.mxu0 0.0
        %2142 = vmatmul.mubr.f32.gmra.mrb[0].mxu0 %v946
        %v2143 = vpop.f32.mrb[0].mxu0
        %v2144 = vadd.f32 0.0, %v2143
        %v2145 = vpop.f32.mrb[0].mxu0
        %2146 = vmatprep.mubr.f32.mxu0 0.0
        %2147 = vmatmul.mubr.f32.gmra.mrb[0].mxu0 %v949
        %v2148 = vpop.f32.mrb[0].mxu0
        %v2149 = vadd.f32 0.0, %v2148
        %v2150 = vpop.f32.mrb[0].mxu0
        %2151 = vmatprep.mubr.f32.mxu0 0.0
        %2152 = vmatmul.mubr.f32.gmra.mrb[0].mxu0 %v952
        %v2153 = vpop.f32.mrb[0].mxu0
        %v2154 = vadd.f32 0.0, %v2153
        %v2155 = vpop.f32.mrb[0].mxu0
        %2156 = vmatprep.mubr.f32.mxu0 0.0
        %2157 = vmatmul.mubr.f32.gmra.mrb[0].mxu0 %v955
        %v2158 = vpop.f32.mrb[0].mxu0
        %v2159 = vadd.f32 0.0, %v2158
        %v2160 = vpop.f32.mrb[0].mxu0
        %2161 = vmatprep.mubr.f32.mxu0 0.0
        %2162 = vmatmul.mubr.f32.gmra.mrb[0].mxu0 %v958
        %v2163 = vpop.f32.mrb[0].mxu0
        %v2164 = vadd.f32 0.0, %v2163
        %v2165 = vpop.f32.mrb[0].mxu0
        %2166 = vmatprep.mubr.f32.mxu0 0.0
        %2167 = vmatmul.mubr.f32.gmra.mrb[0].mxu0 %v961
        %v2168 = vpop.f32.mrb[0].mxu0
        %v2169 = vadd.f32 0.0, %v2168
        %v2170 = vpop.f32.mrb[0].mxu0
        %2171 = vmatprep.mubr.f32.mxu0 0.0
        %2172 = vmatmul.mubr.f32.gmra.mrb[0].mxu0 %v964
        %v2173 = vpop.f32.mrb[0].mxu0
        %v2174 = vadd.f32 0.0, %v2173
        %v2175 = vpop.f32.mrb[0].mxu0
        %2176 = vmatprep.mubr.f32.mxu0 0.0
        %2177 = vmatmul.mubr.f32.gmra.mrb[0].mxu0 %v967
        %v2178 = vpop.f32.mrb[0].mxu0
        %v2179 = vadd.f32 0.0, %v2178
        %v2180 = vpop.f32.mrb[0].mxu0
        %2181 = vmatprep.mubr.f32.mxu0 0.0
        %2182 = vmatmul.mubr.f32.gmra.mrb[0].mxu0 %v970
        %v2183 = vpop.f32.mrb[0].mxu0
        %v2184 = vadd.f32 0.0, %v2183
        %v2185 = vpop.f32.mrb[0].mxu0
        %2186 = vmatprep.mubr.f32.mxu0 0.0
        %2187 = vmatmul.mubr.f32.gmra.mrb[0].mxu0 %v973
        %v2188 = vpop.f32.mrb[0].mxu0
        %v2189 = vadd.f32 0.0, %v2188
        %v2190 = vpop.f32.mrb[0].mxu0
        %2191 = vmatprep.mubr.f32.mxu0 0.0
        %2192 = vmatmul.mubr.f32.gmra.mrb[0].mxu0 %v976
        %v2193 = vpop.f32.mrb[0].mxu0
        %v2194 = vadd.f32 0.0, %v2193
        %v2195 = vpop.f32.mrb[0].mxu0
        %2196 = vmatprep.mubr.f32.mxu0 0.0
        %2197 = vmatmul.mubr.f32.gmra.mrb[0].mxu0 %v979
        %v2198 = vpop.f32.mrb[0].mxu0
        %v2199 = vadd.f32 0.0, %v2198
        %v2200 = vpop.f32.mrb[0].mxu0
        %2201 = vmatprep.mubr.f32.mxu0 0.0
        %2202 = vmatmul.mubr.f32.gmra.mrb[0].mxu0 %v982
        %v2203 = vpop.f32.mrb[0].mxu0
        %v2204 = vadd.f32 0.0, %v2203
        %v2205 = vpop.f32.mrb[0].mxu0
        %2206 = vmatprep.mubr.f32.mxu0 0.0
        %2207 = vmatmul.mubr.f32.gmra.mrb[0].mxu0 %v985
        %v2208 = vpop.f32.mrb[0].mxu0
        %v2209 = vadd.f32 0.0, %v2208
        %v2210 = vpop.f32.mrb[0].mxu0
        %2211 = vmatprep.mubr.f32.mxu0 0.0
        %2212 = vmatmul.mubr.f32.gmra.mrb[0].mxu0 %v988
        %v2213 = vpop.f32.mrb[0].mxu0
        %v2214 = vadd.f32 0.0, %v2213
        %v2215 = vpop.f32.mrb[0].mxu0
        %2216 = vmatprep.mubr.f32.mxu0 0.0
        %2217 = vmatmul.mubr.f32.gmra.mrb[0].mxu0 %v991
        %v2218 = vpop.f32.mrb[0].mxu0
        %v2219 = vadd.f32 0.0, %v2218
        %v2220 = vpop.f32.mrb[0].mxu0
        %2221 = vmatprep.mubr.f32.mxu0 0.0
        %2222 = vmatmul.mubr.f32.gmra.mrb[0].mxu0 %v994
        %v2223 = vpop.f32.mrb[0].mxu0
        %v2224 = vadd.f32 0.0, %v2223
        %v2225 = vpop.f32.mrb[0].mxu0
        %2226 = vmatprep.mubr.f32.mxu0 0.0
        %2227 = vmatmul.mubr.f32.gmra.mrb[0].mxu0 %v997
        %v2228 = vpop.f32.mrb[0].mxu0
        %v2229 = vadd.f32 0.0, %v2228
        %v2230 = vpop.f32.mrb[0].mxu0
        %2231 = vmatprep.mubr.f32.mxu0 0.0
        %2232 = vmatmul.mubr.f32.gmra.mrb[0].mxu0 %v1000
        %v2233 = vpop.f32.mrb[0].mxu0
        %v2234 = vadd.f32 0.0, %v2233
        %v2235 = vpop.f32.mrb[0].mxu0
        %2236 = vmatprep.mubr.f32.mxu0 0.0
        %2237 = vmatmul.mubr.f32.gmra.mrb[0].mxu0 %v1003
        %v2238 = vpop.f32.mrb[0].mxu0
        %v2239 = vadd.f32 0.0, %v2238
        %v2240 = vpop.f32.mrb[0].mxu0
        %2241 = vmatprep.mubr.f32.mxu0 0.0
        %2242 = vmatmul.mubr.f32.gmra.mrb[0].mxu0 %v1006
        %v2243 = vpop.f32.mrb[0].mxu0
        %v2244 = vadd.f32 0.0, %v2243
        %v2245 = vpop.f32.mrb[0].mxu0
        %2246 = vmatprep.mubr.f32.mxu0 0.0
        %2247 = vmatmul.mubr.f32.gmra.mrb[0].mxu0 %v1009
        %v2248 = vpop.f32.mrb[0].mxu0
        %v2249 = vadd.f32 0.0, %v2248
        %v2250 = vpop.f32.mrb[0].mxu0
        %2251 = vmatprep.mubr.f32.mxu0 0.0
        %2252 = vmatmul.mubr.f32.gmra.mrb[0].mxu0 %v1012
        %v2253 = vpop.f32.mrb[0].mxu0
        %v2254 = vadd.f32 0.0, %v2253
        %v2255 = vpop.f32.mrb[0].mxu0
        %2256 = vmatprep.mubr.f32.mxu0 0.0
        %2257 = vmatmul.mubr.f32.gmra.mrb[0].mxu0 %v1015
        %v2258 = vpop.f32.mrb[0].mxu0
        %v2259 = vadd.f32 0.0, %v2258
        %v2260 = vpop.f32.mrb[0].mxu0
        %2261 = vmatprep.mubr.f32.mxu0 0.0
        %2262 = vmatmul.mubr.f32.gmra.mrb[0].mxu0 %v1018
        %v2263 = vpop.f32.mrb[0].mxu0
        %v2264 = vadd.f32 0.0, %v2263
        %v2265 = vpop.f32.mrb[0].mxu0
        %2266 = vmatprep.mubr.f32.mxu0 0.0
        %2267 = vmatmul.mubr.f32.gmra.mrb[0].mxu0 %v1021
        %v2268 = vpop.f32.mrb[0].mxu0
        %v2269 = vadd.f32 0.0, %v2268
        %v2270 = vpop.f32.mrb[0].mxu0
        %2271 = vmatprep.mubr.f32.mxu0 0.0
        %2272 = vmatmul.mubr.f32.gmra.mrb[0].mxu0 %v1024
        %v2273 = vpop.f32.mrb[0].mxu0
        %v2274 = vadd.f32 0.0, %v2273
        %v2275 = vpop.f32.mrb[0].mxu0
        %2276 = vmatprep.mubr.f32.mxu0 0.0
        %2277 = vmatmul.mubr.f32.gmra.mrb[0].mxu0 %v1027
        %v2278 = vpop.f32.mrb[0].mxu0
        %v2279 = vadd.f32 0.0, %v2278
        %v2280 = vpop.f32.mrb[0].mxu0
        %2281 = vmatprep.mubr.f32.mxu0 0.0
        %2282 = vmatmul.mubr.f32.gmra.mrb[0].mxu0 %v1030
        %v2283 = vpop.f32.mrb[0].mxu0
        %v2284 = vadd.f32 0.0, %v2283
        %v2285 = vpop.f32.mrb[0].mxu0
        %2286 = vmatprep.mubr.f32.mxu0 0.0
        %2287 = vmatmul.mubr.f32.gmra.mrb[0].mxu0 %v1033
        %v2288 = vpop.f32.mrb[0].mxu0
        %v2289 = vadd.f32 0.0, %v2288
        %v2290 = vpop.f32.mrb[0].mxu0
        %2291 = vmatprep.mubr.f32.mxu0 0.0
        %2292 = vmatmul.mubr.f32.gmra.mrb[0].mxu0 %v1036
        %v2293 = vpop.f32.mrb[0].mxu0
        %v2294 = vadd.f32 0.0, %v2293
        %v2295 = vpop.f32.mrb[0].mxu0
        %2296 = vmatprep.mubr.f32.mxu0 0.0
        %2297 = vmatmul.mubr.f32.gmra.mrb[0].mxu0 %v1039
        %v2298 = vpop.f32.mrb[0].mxu0
        %v2299 = vadd.f32 0.0, %v2298
        %v2300 = vpop.f32.mrb[0].mxu0
        %2301 = vmatprep.mubr.f32.mxu0 0.0
        %2302 = vmatmul.mubr.f32.gmra.mrb[0].mxu0 %v1042
        %v2303 = vpop.f32.mrb[0].mxu0
        %v2304 = vadd.f32 0.0, %v2303
        %v2305 = vpop.f32.mrb[0].mxu0
        %2306 = vmatprep.mubr.f32.mxu0 0.0
        %2307 = vmatmul.mubr.f32.gmra.mrb[0].mxu0 %v1045
        %v2308 = vpop.f32.mrb[0].mxu0
        %v2309 = vadd.f32 0.0, %v2308
        %v2310 = vpop.f32.mrb[0].mxu0
        %2311 = vmatprep.mubr.f32.mxu0 0.0
        %2312 = vmatmul.mubr.f32.gmra.mrb[0].mxu0 %v1048
        %v2313 = vpop.f32.mrb[0].mxu0
        %v2314 = vadd.f32 0.0, %v2313
        %v2315 = vpop.f32.mrb[0].mxu0
        %2316 = vmatprep.mubr.f32.mxu0 0.0
        %2317 = vmatmul.mubr.f32.gmra.mrb[0].mxu0 %v1051
        %v2318 = vpop.f32.mrb[0].mxu0
        %v2319 = vadd.f32 0.0, %v2318
        %v2320 = vpop.f32.mrb[0].mxu0
        %2321 = vmatprep.mubr.f32.mxu0 0.0
        %2322 = vmatmul.mubr.f32.gmra.mrb[0].mxu0 %v1054
        %v2323 = vpop.f32.mrb[0].mxu0
        %v2324 = vadd.f32 0.0, %v2323
        %v2325 = vpop.f32.mrb[0].mxu0
        %2326 = vmatprep.mubr.f32.mxu0 0.0
        %2327 = vmatmul.mubr.f32.gmra.mrb[0].mxu0 %v1057
        %v2328 = vpop.f32.mrb[0].mxu0
        %v2329 = vadd.f32 0.0, %v2328
        %v2330 = vpop.f32.mrb[0].mxu0
        %2331 = vmatprep.mubr.f32.mxu0 0.0
        %2332 = vmatmul.mubr.f32.gmra.mrb[0].mxu0 %v1060
        %v2333 = vpop.f32.mrb[0].mxu0
        %v2334 = vadd.f32 0.0, %v2333
        %v2335 = vpop.f32.mrb[0].mxu0
        %2336 = vmatprep.mubr.f32.mxu0 0.0
        %2337 = vmatmul.mubr.f32.gmra.mrb[0].mxu0 %v1063
        %v2338 = vpop.f32.mrb[0].mxu0
        %v2339 = vadd.f32 0.0, %v2338
        %v2340 = vpop.f32.mrb[0].mxu0
        %2341 = vmatprep.mubr.f32.mxu0 0.0
        %2342 = vmatmul.mubr.f32.gmra.mrb[0].mxu0 %v1066
        %v2343 = vpop.f32.mrb[0].mxu0
        %v2344 = vadd.f32 0.0, %v2343
        %v2345 = vpop.f32.mrb[0].mxu0
        %2346 = vmatprep.mubr.f32.mxu0 0.0
        %2347 = vmatmul.mubr.f32.gmra.mrb[0].mxu0 %v1069
        %v2348 = vpop.f32.mrb[0].mxu0
        %v2349 = vadd.f32 0.0, %v2348
        %v2350 = vpop.f32.mrb[0].mxu0
        %2351 = vmatprep.mubr.f32.mxu0 0.0
        %2352 = vmatmul.mubr.f32.gmra.mrb[0].mxu0 %v1072
        %v2353 = vpop.f32.mrb[0].mxu0
        %v2354 = vadd.f32 0.0, %v2353
        %v2355 = vpop.f32.mrb[0].mxu0
        %2356 = vmatprep.mubr.f32.mxu0 0.0
        %2357 = vmatmul.mubr.f32.gmra.mrb[0].mxu0 %v1075
        %v2358 = vpop.f32.mrb[0].mxu0
        %v2359 = vadd.f32 0.0, %v2358
        %v2360 = vpop.f32.mrb[0].mxu0
        %2361 = vmatprep.mubr.f32.mxu0 0.0
        %2362 = vmatmul.mubr.f32.gmra.mrb[0].mxu0 %v1078
        %v2363 = vpop.f32.mrb[0].mxu0
        %v2364 = vadd.f32 0.0, %v2363
        %v2365 = vpop.f32.mrb[0].mxu0
        %2366 = vmatprep.mubr.f32.mxu0 0.0
        %2367 = vmatmul.mubr.f32.gmra.mrb[0].mxu0 %v1081
        %v2368 = vpop.f32.mrb[0].mxu0
        %v2369 = vadd.f32 0.0, %v2368
        %v2370 = vpop.f32.mrb[0].mxu0
        %2371 = vmatprep.mubr.f32.mxu0 0.0
        %2372 = vmatmul.mubr.f32.gmra.mrb[0].mxu0 %v1084
        %v2373 = vpop.f32.mrb[0].mxu0
        %v2374 = vadd.f32 0.0, %v2373
        %v2375 = vpop.f32.mrb[0].mxu0
        %2376 = vmatprep.mubr.f32.mxu0 0.0
        %2377 = vmatmul.mubr.f32.gmra.mrb[0].mxu0 %v1087
        %v2378 = vpop.f32.mrb[0].mxu0
        %v2379 = vadd.f32 0.0, %v2378
        %v2380 = vpop.f32.mrb[0].mxu0
        %2381 = vmatprep.mubr.f32.mxu0 0.0
        %2382 = vmatmul.mubr.f32.gmra.mrb[0].mxu0 %v1090
        %v2383 = vpop.f32.mrb[0].mxu0
        %v2384 = vadd.f32 0.0, %v2383
        %v2385 = vpop.f32.mrb[0].mxu0
        %2386 = vmatprep.mubr.f32.mxu0 0.0
        %2387 = vmatmul.mubr.f32.gmra.mrb[0].mxu0 %v1093
        %v2388 = vpop.f32.mrb[0].mxu0
        %v2389 = vadd.f32 0.0, %v2388
        %v2390 = vpop.f32.mrb[0].mxu0
        %2391 = vmatprep.mubr.f32.mxu0 0.0
        %2392 = vmatmul.mubr.f32.gmra.mrb[0].mxu0 %v1096
        %v2393 = vpop.f32.mrb[0].mxu0
        %v2394 = vadd.f32 0.0, %v2393
        %v2395 = vpop.f32.mrb[0].mxu0
        %2396 = vmatprep.mubr.f32.mxu0 0.0
        %2397 = vmatmul.mubr.f32.gmra.mrb[0].mxu0 %v1099
        %v2398 = vpop.f32.mrb[0].mxu0
        %v2399 = vadd.f32 0.0, %v2398
        %v2400 = vpop.f32.mrb[0].mxu0
        %2401 = vmatprep.mubr.f32.mxu0 0.0
        %2402 = vmatmul.mubr.f32.gmra.mrb[0].mxu0 %v1102
        %v2403 = vpop.f32.mrb[0].mxu0
        %v2404 = vadd.f32 0.0, %v2403
        %v2405 = vpop.f32.mrb[0].mxu0
        %2406 = vmatprep.mubr.f32.mxu0 0.0
        %2407 = vmatmul.mubr.f32.gmra.mrb[0].mxu0 %v1105
        %v2408 = vpop.f32.mrb[0].mxu0
        %v2409 = vadd.f32 0.0, %v2408
        %v2410 = vpop.f32.mrb[0].mxu0
        %2411 = vmatprep.mubr.f32.mxu0 0.0
        %2412 = vmatmul.mubr.f32.gmra.mrb[0].mxu0 %v1108
        %v2413 = vpop.f32.mrb[0].mxu0
        %v2414 = vadd.f32 0.0, %v2413
        %v2415 = vpop.f32.mrb[0].mxu0
        %2416 = vmatprep.mubr.f32.mxu0 0.0
        %2417 = vmatmul.mubr.f32.gmra.mrb[0].mxu0 %v1111
        %v2418 = vpop.f32.mrb[0].mxu0
        %v2419 = vadd.f32 0.0, %v2418
        %v2420 = vpop.f32.mrb[0].mxu0
        %2421 = vmatprep.mubr.f32.mxu0 0.0
        %2422 = vmatmul.mubr.f32.gmra.mrb[0].mxu0 %v1114
        %v2423 = vpop.f32.mrb[0].mxu0
        %v2424 = vadd.f32 0.0, %v2423
        %v2425 = vpop.f32.mrb[0].mxu0
        %2426 = vmatprep.mubr.f32.mxu0 0.0
        %2427 = vmatmul.mubr.f32.gmra.mrb[0].mxu0 %v1117
        %v2428 = vpop.f32.mrb[0].mxu0
        %v2429 = vadd.f32 0.0, %v2428
        %v2430 = vpop.f32.mrb[0].mxu0
        %2431 = vmatprep.mubr.f32.mxu0 0.0
        %2432 = vmatmul.mubr.f32.gmra.mrb[0].mxu0 %v1120
        %v2433 = vpop.f32.mrb[0].mxu0
        %v2434 = vadd.f32 0.0, %v2433
        %v2435 = vpop.f32.mrb[0].mxu0
        %2436 = vmatprep.mubr.f32.mxu0 0.0
        %2437 = vmatmul.mubr.f32.gmra.mrb[0].mxu0 %v1123
        %v2438 = vpop.f32.mrb[0].mxu0
        %v2439 = vadd.f32 0.0, %v2438
        %v2440 = vpop.f32.mrb[0].mxu0
        %2441 = vmatprep.mubr.f32.mxu0 0.0
        %2442 = vmatmul.mubr.f32.gmra.mrb[0].mxu0 %v1126
        %v2443 = vpop.f32.mrb[0].mxu0
        %v2444 = vadd.f32 0.0, %v2443
        %v2445 = vpop.f32.mrb[0].mxu0
        %2446 = vmatprep.mubr.f32.mxu0 0.0
        %2447 = vmatmul.mubr.f32.gmra.mrb[0].mxu0 %v1129
        %v2448 = vpop.f32.mrb[0].mxu0
        %v2449 = vadd.f32 0.0, %v2448
        %v2450 = vpop.f32.mrb[0].mxu0
        %2451 = vmatprep.mubr.f32.mxu0 0.0
        %2452 = vmatmul.mubr.f32.gmra.mrb[0].mxu0 %v1132
        %v2453 = vpop.f32.mrb[0].mxu0
        %v2454 = vadd.f32 0.0, %v2453
        %v2455 = vpop.f32.mrb[0].mxu0
        %2456 = vmatprep.mubr.f32.mxu0 0.0
        %2457 = vmatmul.mubr.f32.gmra.mrb[0].mxu0 %v1135
        %v2458 = vpop.f32.mrb[0].mxu0
        %v2459 = vadd.f32 0.0, %v2458
        %v2460 = vpop.f32.mrb[0].mxu0
        %2461 = vmatprep.mubr.f32.mxu0 0.0
        %2462 = vmatmul.mubr.f32.gmra.mrb[0].mxu0 %v1138
        %v2463 = vpop.f32.mrb[0].mxu0
        %v2464 = vadd.f32 0.0, %v2463
        %v2465 = vpop.f32.mrb[0].mxu0
        %2466 = vmatprep.mubr.f32.mxu0 0.0
        %2467 = vmatmul.mubr.f32.gmra.mrb[0].mxu0 %v1141
        %v2468 = vpop.f32.mrb[0].mxu0
        %v2469 = vadd.f32 0.0, %v2468
        %v2470 = vpop.f32.mrb[0].mxu0
        %2471 = vmatprep.mubr.f32.mxu0 0.0
        %2472 = vmatmul.mubr.f32.gmra.mrb[0].mxu0 %v1144
        %v2473 = vpop.f32.mrb[0].mxu0
        %v2474 = vadd.f32 0.0, %v2473
        %v2475 = vpop.f32.mrb[0].mxu0
        %2476 = vmatprep.mubr.f32.mxu0 0.0
        %2477 = vmatmul.mubr.f32.gmra.mrb[0].mxu0 %v1147
        %v2478 = vpop.f32.mrb[0].mxu0
        %v2479 = vadd.f32 0.0, %v2478
        %v2480 = vpop.f32.mrb[0].mxu0
        %2481 = vmatprep.mubr.f32.mxu0 0.0
        %2482 = vmatmul.mubr.f32.gmra.mrb[0].mxu0 %v1150
        %v2483 = vpop.f32.mrb[0].mxu0
        %v2484 = vadd.f32 0.0, %v2483
        %v2485 = vpop.f32.mrb[0].mxu0
        %2486 = vmatprep.mubr.f32.mxu0 0.0
        %2487 = vmatmul.mubr.f32.gmra.mrb[0].mxu0 %v1153
        %v2488 = vpop.f32.mrb[0].mxu0
        %v2489 = vadd.f32 0.0, %v2488
        %v2490 = vpop.f32.mrb[0].mxu0
        %2491 = vmatprep.mubr.f32.mxu0 0.0
        %2492 = vmatmul.mubr.f32.gmra.mrb[0].mxu0 %v1156
        %v2493 = vpop.f32.mrb[0].mxu0
        %v2494 = vadd.f32 0.0, %v2493
        %v2495 = vpop.f32.mrb[0].mxu0
        %2496 = vmatprep.mubr.f32.mxu0 0.0
        %2497 = vmatmul.mubr.f32.gmra.mrb[0].mxu0 %v1159
        %v2498 = vpop.f32.mrb[0].mxu0
        %v2499 = vadd.f32 0.0, %v2498
        %v2500 = vpop.f32.mrb[0].mxu0
        %2501 = vmatprep.mubr.f32.mxu0 0.0
        %2502 = vmatmul.mubr.f32.gmra.mrb[0].mxu0 %v1162
        %v2503 = vpop.f32.mrb[0].mxu0
        %v2504 = vadd.f32 0.0, %v2503
        %v2505 = vpop.f32.mrb[0].mxu0
        %2506 = vmatprep.mubr.f32.mxu0 0.0
        %2507 = vmatmul.mubr.f32.gmra.mrb[0].mxu0 %v1165
        %v2508 = vpop.f32.mrb[0].mxu0
        %v2509 = vadd.f32 0.0, %v2508
        %v2510 = vpop.f32.mrb[0].mxu0
        %2511 = vdwg.mxu0
        %v2512 = vmax.f32 %v1234, 0.0
        %v2513 = vmax.f32 %v1239, 0.0
        %v2514 = vmax.f32 %v1244, 0.0
        %v2515 = vmax.f32 %v1249, 0.0
        %v2516 = vmax.f32 %v1254, 0.0
        %v2517 = vmax.f32 %v1259, 0.0
        %v2518 = vmax.f32 %v1264, 0.0
        %v2519 = vmax.f32 %v1269, 0.0
        %v2520 = vmax.f32 %v1274, 0.0
        %v2521 = vmax.f32 %v1279, 0.0
        %v2522 = vmax.f32 %v1284, 0.0
        %v2523 = vmax.f32 %v1289, 0.0
        %v2524 = vmax.f32 %v1294, 0.0
        %v2525 = vmax.f32 %v1299, 0.0
        %v2526 = vmax.f32 %v1304, 0.0
        %v2527 = vmax.f32 %v1309, 0.0
        %v2528 = vmax.f32 %v1314, 0.0
        %v2529 = vmax.f32 %v1319, 0.0
        %v2530 = vmax.f32 %v1324, 0.0
        %v2531 = vmax.f32 %v1329, 0.0
        %v2532 = vmax.f32 %v1334, 0.0
        %v2533 = vmax.f32 %v1339, 0.0
        %v2534 = vmax.f32 %v1344, 0.0
        %v2535 = vmax.f32 %v1349, 0.0
        %v2536 = vmax.f32 %v1354, 0.0
        %v2537 = vmax.f32 %v1359, 0.0
        %v2538 = vmax.f32 %v1364, 0.0
        %v2539 = vmax.f32 %v1369, 0.0
        %v2540 = vmax.f32 %v1374, 0.0
        %v2541 = vmax.f32 %v1379, 0.0
        %v2542 = vmax.f32 %v1384, 0.0
        %v2543 = vmax.f32 %v1389, 0.0
        %v2544 = vmax.f32 %v1394, 0.0
        %v2545 = vmax.f32 %v1399, 0.0
        %v2546 = vmax.f32 %v1404, 0.0
        %v2547 = vmax.f32 %v1409, 0.0
        %v2548 = vmax.f32 %v1414, 0.0
        %v2549 = vmax.f32 %v1419, 0.0
        %v2550 = vmax.f32 %v1424, 0.0
        %v2551 = vmax.f32 %v1429, 0.0
        %v2552 = vmax.f32 %v1434, 0.0
        %v2553 = vmax.f32 %v1439, 0.0
        %v2554 = vmax.f32 %v1444, 0.0
        %v2555 = vmax.f32 %v1449, 0.0
        %v2556 = vmax.f32 %v1454, 0.0
        %v2557 = vmax.f32 %v1459, 0.0
        %v2558 = vmax.f32 %v1464, 0.0
        %v2559 = vmax.f32 %v1469, 0.0
        %v2560 = vmax.f32 %v1474, 0.0
        %v2561 = vmax.f32 %v1479, 0.0
        %v2562 = vmax.f32 %v1484, 0.0
        %v2563 = vmax.f32 %v1489, 0.0
        %v2564 = vmax.f32 %v1494, 0.0
        %v2565 = vmax.f32 %v1499, 0.0
        %v2566 = vmax.f32 %v1504, 0.0
        %v2567 = vmax.f32 %v1509, 0.0
        %v2568 = vmax.f32 %v1514, 0.0
        %v2569 = vmax.f32 %v1519, 0.0
        %v2570 = vmax.f32 %v1524, 0.0
        %v2571 = vmax.f32 %v1529, 0.0
        %v2572 = vmax.f32 %v1534, 0.0
        %v2573 = vmax.f32 %v1539, 0.0
        %v2574 = vmax.f32 %v1544, 0.0
        %v2575 = vmax.f32 %v1549, 0.0
        %v2576 = vmax.f32 %v1554, 0.0
        %v2577 = vmax.f32 %v1559, 0.0
        %v2578 = vmax.f32 %v1564, 0.0
        %v2579 = vmax.f32 %v1569, 0.0
        %v2580 = vmax.f32 %v1574, 0.0
        %v2581 = vmax.f32 %v1579, 0.0
        %v2582 = vmax.f32 %v1584, 0.0
        %v2583 = vmax.f32 %v1589, 0.0
        %v2584 = vmax.f32 %v1594, 0.0
        %v2585 = vmax.f32 %v1599, 0.0
        %v2586 = vmax.f32 %v1604, 0.0
        %v2587 = vmax.f32 %v1609, 0.0
        %v2588 = vmax.f32 %v1614, 0.0
        %v2589 = vmax.f32 %v1619, 0.0
        %v2590 = vmax.f32 %v1624, 0.0
        %v2591 = vmax.f32 %v1629, 0.0
        %v2592 = vmax.f32 %v1634, 0.0
        %v2593 = vmax.f32 %v1639, 0.0
        %v2594 = vmax.f32 %v1644, 0.0
        %v2595 = vmax.f32 %v1649, 0.0
        %v2596 = vmax.f32 %v1654, 0.0
        %v2597 = vmax.f32 %v1659, 0.0
        %v2598 = vmax.f32 %v1664, 0.0
        %v2599 = vmax.f32 %v1669, 0.0
        %v2600 = vmax.f32 %v1674, 0.0
        %v2601 = vmax.f32 %v1679, 0.0
        %v2602 = vmax.f32 %v1684, 0.0
        %v2603 = vmax.f32 %v1689, 0.0
        %v2604 = vmax.f32 %v1694, 0.0
        %v2605 = vmax.f32 %v1699, 0.0
        %v2606 = vmax.f32 %v1704, 0.0
        %v2607 = vmax.f32 %v1709, 0.0
        %v2608 = vmax.f32 %v1714, 0.0
        %v2609 = vmax.f32 %v1719, 0.0
        %v2610 = vmax.f32 %v1724, 0.0
        %v2611 = vmax.f32 %v1729, 0.0
        %v2612 = vmax.f32 %v1734, 0.0
        %v2613 = vmax.f32 %v1739, 0.0
        %v2614 = vmax.f32 %v1744, 0.0
        %v2615 = vmax.f32 %v1749, 0.0
        %v2616 = vmax.f32 %v1754, 0.0
        %v2617 = vmax.f32 %v1759, 0.0
        %v2618 = vmax.f32 %v1764, 0.0
        %v2619 = vmax.f32 %v1769, 0.0
        %v2620 = vmax.f32 %v1774, 0.0
        %v2621 = vmax.f32 %v1779, 0.0
        %v2622 = vmax.f32 %v1784, 0.0
        %v2623 = vmax.f32 %v1789, 0.0
        %v2624 = vmax.f32 %v1794, 0.0
        %v2625 = vmax.f32 %v1799, 0.0
        %v2626 = vmax.f32 %v1804, 0.0
        %v2627 = vmax.f32 %v1809, 0.0
        %v2628 = vmax.f32 %v1814, 0.0
        %v2629 = vmax.f32 %v1819, 0.0
        %v2630 = vmax.f32 %v1824, 0.0
        %v2631 = vmax.f32 %v1829, 0.0
        %v2632 = vmax.f32 %v1834, 0.0
        %v2633 = vmax.f32 %v1839, 0.0
        %v2634 = vmax.f32 %v1844, 0.0
        %v2635 = vmax.f32 %v1849, 0.0
        %v2636 = vmax.f32 %v1854, 0.0
        %v2637 = vmax.f32 %v1859, 0.0
        %v2638 = vmax.f32 %v1864, 0.0
        %v2639 = vmax.f32 %v1869, 0.0
        %v2640 = vmax.f32 %v1874, 0.0
        %v2641 = vmax.f32 %v1879, 0.0
        %v2642 = vmax.f32 %v1884, 0.0
        %v2643 = vmax.f32 %v1889, 0.0
        %v2644 = vmax.f32 %v1894, 0.0
        %v2645 = vmax.f32 %v1899, 0.0
        %v2646 = vmax.f32 %v1904, 0.0
        %v2647 = vmax.f32 %v1909, 0.0
        %v2648 = vmax.f32 %v1914, 0.0
        %v2649 = vmax.f32 %v1919, 0.0
        %v2650 = vmax.f32 %v1924, 0.0
        %v2651 = vmax.f32 %v1929, 0.0
        %v2652 = vmax.f32 %v1934, 0.0
        %v2653 = vmax.f32 %v1939, 0.0
        %v2654 = vmax.f32 %v1944, 0.0
        %v2655 = vmax.f32 %v1949, 0.0
        %v2656 = vmax.f32 %v1954, 0.0
        %v2657 = vmax.f32 %v1959, 0.0
        %v2658 = vmax.f32 %v1964, 0.0
        %v2659 = vmax.f32 %v1969, 0.0
        %v2660 = vmax.f32 %v1974, 0.0
        %v2661 = vmax.f32 %v1979, 0.0
        %v2662 = vmax.f32 %v1984, 0.0
        %v2663 = vmax.f32 %v1989, 0.0
        %v2664 = vmax.f32 %v1994, 0.0
        %v2665 = vmax.f32 %v1999, 0.0
        %v2666 = vmax.f32 %v2004, 0.0
        %v2667 = vmax.f32 %v2009, 0.0
        %v2668 = vmax.f32 %v2014, 0.0
        %v2669 = vmax.f32 %v2019, 0.0
        %v2670 = vmax.f32 %v2024, 0.0
        %v2671 = vmax.f32 %v2029, 0.0
        %v2672 = vmax.f32 %v2034, 0.0
        %v2673 = vmax.f32 %v2039, 0.0
        %v2674 = vmax.f32 %v2044, 0.0
        %v2675 = vmax.f32 %v2049, 0.0
        %v2676 = vmax.f32 %v2054, 0.0
        %v2677 = vmax.f32 %v2059, 0.0
        %v2678 = vmax.f32 %v2064, 0.0
        %v2679 = vmax.f32 %v2069, 0.0
        %v2680 = vmax.f32 %v2074, 0.0
        %v2681 = vmax.f32 %v2079, 0.0
        %v2682 = vmax.f32 %v2084, 0.0
        %v2683 = vmax.f32 %v2089, 0.0
        %v2684 = vmax.f32 %v2094, 0.0
        %v2685 = vmax.f32 %v2099, 0.0
        %v2686 = vmax.f32 %v2104, 0.0
        %v2687 = vmax.f32 %v2109, 0.0
        %v2688 = vmax.f32 %v2114, 0.0
        %v2689 = vmax.f32 %v2119, 0.0
        %v2690 = vmax.f32 %v2124, 0.0
        %v2691 = vmax.f32 %v2129, 0.0
        %v2692 = vmax.f32 %v2134, 0.0
        %v2693 = vmax.f32 %v2139, 0.0
        %v2694 = vmax.f32 %v2144, 0.0
        %v2695 = vmax.f32 %v2149, 0.0
        %v2696 = vmax.f32 %v2154, 0.0
        %v2697 = vmax.f32 %v2159, 0.0
        %v2698 = vmax.f32 %v2164, 0.0
        %v2699 = vmax.f32 %v2169, 0.0
        %v2700 = vmax.f32 %v2174, 0.0
        %v2701 = vmax.f32 %v2179, 0.0
        %v2702 = vmax.f32 %v2184, 0.0
        %v2703 = vmax.f32 %v2189, 0.0
        %v2704 = vmax.f32 %v2194, 0.0
        %v2705 = vmax.f32 %v2199, 0.0
        %v2706 = vmax.f32 %v2204, 0.0
        %v2707 = vmax.f32 %v2209, 0.0
        %v2708 = vmax.f32 %v2214, 0.0
        %v2709 = vmax.f32 %v2219, 0.0
        %v2710 = vmax.f32 %v2224, 0.0
        %v2711 = vmax.f32 %v2229, 0.0
        %v2712 = vmax.f32 %v2234, 0.0
        %v2713 = vmax.f32 %v2239, 0.0
        %v2714 = vmax.f32 %v2244, 0.0
        %v2715 = vmax.f32 %v2249, 0.0
        %v2716 = vmax.f32 %v2254, 0.0
        %v2717 = vmax.f32 %v2259, 0.0
        %v2718 = vmax.f32 %v2264, 0.0
        %v2719 = vmax.f32 %v2269, 0.0
        %v2720 = vmax.f32 %v2274, 0.0
        %v2721 = vmax.f32 %v2279, 0.0
        %v2722 = vmax.f32 %v2284, 0.0
        %v2723 = vmax.f32 %v2289, 0.0
        %v2724 = vmax.f32 %v2294, 0.0
        %v2725 = vmax.f32 %v2299, 0.0
        %v2726 = vmax.f32 %v2304, 0.0
        %v2727 = vmax.f32 %v2309, 0.0
        %v2728 = vmax.f32 %v2314, 0.0
        %v2729 = vmax.f32 %v2319, 0.0
        %v2730 = vmax.f32 %v2324, 0.0
        %v2731 = vmax.f32 %v2329, 0.0
        %v2732 = vmax.f32 %v2334, 0.0
        %v2733 = vmax.f32 %v2339, 0.0
        %v2734 = vmax.f32 %v2344, 0.0
        %v2735 = vmax.f32 %v2349, 0.0
        %v2736 = vmax.f32 %v2354, 0.0
        %v2737 = vmax.f32 %v2359, 0.0
        %v2738 = vmax.f32 %v2364, 0.0
        %v2739 = vmax.f32 %v2369, 0.0
        %v2740 = vmax.f32 %v2374, 0.0
        %v2741 = vmax.f32 %v2379, 0.0
        %v2742 = vmax.f32 %v2384, 0.0
        %v2743 = vmax.f32 %v2389, 0.0
        %v2744 = vmax.f32 %v2394, 0.0
        %v2745 = vmax.f32 %v2399, 0.0
        %v2746 = vmax.f32 %v2404, 0.0
        %v2747 = vmax.f32 %v2409, 0.0
        %v2748 = vmax.f32 %v2414, 0.0
        %v2749 = vmax.f32 %v2419, 0.0
        %v2750 = vmax.f32 %v2424, 0.0
        %v2751 = vmax.f32 %v2429, 0.0
        %v2752 = vmax.f32 %v2434, 0.0
        %v2753 = vmax.f32 %v2439, 0.0
        %v2754 = vmax.f32 %v2444, 0.0
        %v2755 = vmax.f32 %v2449, 0.0
        %v2756 = vmax.f32 %v2454, 0.0
        %v2757 = vmax.f32 %v2459, 0.0
        %v2758 = vmax.f32 %v2464, 0.0
        %v2759 = vmax.f32 %v2469, 0.0
        %v2760 = vmax.f32 %v2474, 0.0
        %v2761 = vmax.f32 %v2479, 0.0
        %v2762 = vmax.f32 %v2484, 0.0
        %v2763 = vmax.f32 %v2489, 0.0
        %v2764 = vmax.f32 %v2494, 0.0
        %v2765 = vmax.f32 %v2499, 0.0
        %v2766 = vmax.f32 %v2504, 0.0
        %v2767 = vmax.f32 %v2509, 0.0
        %2768 = vst.msk [vmem:[%s132] sm:$0xff] %vm398, %v2512
        %2769 = vst.msk [vmem:[%s132 + $0x8] sm:$0xff] %vm398, %v2513
        %2770 = vst.msk [vmem:[%s132 + $0x10] sm:$0xff] %vm398, %v2514
        %2771 = vst.msk [vmem:[%s132 + $0x18] sm:$0xff] %vm398, %v2515
        %2772 = vst.msk [vmem:[%s132 + $0x20] sm:$0xff] %vm398, %v2516
        %2773 = vst.msk [vmem:[%s132 + $0x28] sm:$0xff] %vm398, %v2517
        %2774 = vst.msk [vmem:[%s132 + $0x30] sm:$0xff] %vm398, %v2518
        %2775 = vst.msk [vmem:[%s132 + $0x38] sm:$0xff] %vm398, %v2519
        %2776 = vst.msk [vmem:[%s132 + $0x40] sm:$0xff] %vm398, %v2520
        %2777 = vst.msk [vmem:[%s132 + $0x48] sm:$0xff] %vm398, %v2521
        %2778 = vst.msk [vmem:[%s132 + $0x50] sm:$0xff] %vm398, %v2522
        %2779 = vst.msk [vmem:[%s132 + $0x58] sm:$0xff] %vm398, %v2523
        %2780 = vst.msk [vmem:[%s132 + $0x60] sm:$0xff] %vm398, %v2524
        %2781 = vst.msk [vmem:[%s132 + $0x68] sm:$0xff] %vm398, %v2525
        %2782 = vst.msk [vmem:[%s132 + $0x70] sm:$0xff] %vm398, %v2526
        %2783 = vst.msk [vmem:[%s132 + $0x78] sm:$0xff] %vm398, %v2527
        %2784 = vst.msk [vmem:[%s132 + $0x80] sm:$0xff] %vm398, %v2528
        %2785 = vst.msk [vmem:[%s132 + $0x88] sm:$0xff] %vm398, %v2529
        %2786 = vst.msk [vmem:[%s132 + $0x90] sm:$0xff] %vm398, %v2530
        %2787 = vst.msk [vmem:[%s132 + $0x98] sm:$0xff] %vm398, %v2531
        %2788 = vst.msk [vmem:[%s132 + $0xa0] sm:$0xff] %vm398, %v2532
        %2789 = vst.msk [vmem:[%s132 + $0xa8] sm:$0xff] %vm398, %v2533
        %2790 = vst.msk [vmem:[%s132 + $0xb0] sm:$0xff] %vm398, %v2534
        %2791 = vst.msk [vmem:[%s132 + $0xb8] sm:$0xff] %vm398, %v2535
        %2792 = vst.msk [vmem:[%s132 + $0xc0] sm:$0xff] %vm398, %v2536
        %2793 = vst.msk [vmem:[%s132 + $0xc8] sm:$0xff] %vm398, %v2537
        %2794 = vst.msk [vmem:[%s132 + $0xd0] sm:$0xff] %vm398, %v2538
        %2795 = vst.msk [vmem:[%s132 + $0xd8] sm:$0xff] %vm398, %v2539
        %2796 = vst.msk [vmem:[%s132 + $0xe0] sm:$0xff] %vm398, %v2540
        %2797 = vst.msk [vmem:[%s132 + $0xe8] sm:$0xff] %vm398, %v2541
        %2798 = vst.msk [vmem:[%s132 + $0xf0] sm:$0xff] %vm398, %v2542
        %2799 = vst.msk [vmem:[%s132 + $0xf8] sm:$0xff] %vm398, %v2543
        %2800 = vst.msk [vmem:[%s132 + $0x100] sm:$0xff] %vm398, %v2544
        %2801 = vst.msk [vmem:[%s132 + $0x108] sm:$0xff] %vm398, %v2545
        %2802 = vst.msk [vmem:[%s132 + $0x110] sm:$0xff] %vm398, %v2546
        %2803 = vst.msk [vmem:[%s132 + $0x118] sm:$0xff] %vm398, %v2547
        %2804 = vst.msk [vmem:[%s132 + $0x120] sm:$0xff] %vm398, %v2548
        %2805 = vst.msk [vmem:[%s132 + $0x128] sm:$0xff] %vm398, %v2549
        %2806 = vst.msk [vmem:[%s132 + $0x130] sm:$0xff] %vm398, %v2550
        %2807 = vst.msk [vmem:[%s132 + $0x138] sm:$0xff] %vm398, %v2551
        %2808 = vst.msk [vmem:[%s132 + $0x140] sm:$0xff] %vm398, %v2552
        %2809 = vst.msk [vmem:[%s132 + $0x148] sm:$0xff] %vm398, %v2553
        %2810 = vst.msk [vmem:[%s132 + $0x150] sm:$0xff] %vm398, %v2554
        %2811 = vst.msk [vmem:[%s132 + $0x158] sm:$0xff] %vm398, %v2555
        %2812 = vst.msk [vmem:[%s132 + $0x160] sm:$0xff] %vm398, %v2556
        %2813 = vst.msk [vmem:[%s132 + $0x168] sm:$0xff] %vm398, %v2557
        %2814 = vst.msk [vmem:[%s132 + $0x170] sm:$0xff] %vm398, %v2558
        %2815 = vst.msk [vmem:[%s132 + $0x178] sm:$0xff] %vm398, %v2559
        %2816 = vst.msk [vmem:[%s132 + $0x180] sm:$0xff] %vm398, %v2560
        %2817 = vst.msk [vmem:[%s132 + $0x188] sm:$0xff] %vm398, %v2561
        %2818 = vst.msk [vmem:[%s132 + $0x190] sm:$0xff] %vm398, %v2562
        %2819 = vst.msk [vmem:[%s132 + $0x198] sm:$0xff] %vm398, %v2563
        %2820 = vst.msk [vmem:[%s132 + $0x1a0] sm:$0xff] %vm398, %v2564
        %2821 = vst.msk [vmem:[%s132 + $0x1a8] sm:$0xff] %vm398, %v2565
        %2822 = vst.msk [vmem:[%s132 + $0x1b0] sm:$0xff] %vm398, %v2566
        %2823 = vst.msk [vmem:[%s132 + $0x1b8] sm:$0xff] %vm398, %v2567
        %2824 = vst.msk [vmem:[%s132 + $0x1c0] sm:$0xff] %vm398, %v2568
        %2825 = vst.msk [vmem:[%s132 + $0x1c8] sm:$0xff] %vm398, %v2569
        %2826 = vst.msk [vmem:[%s132 + $0x1d0] sm:$0xff] %vm398, %v2570
        %2827 = vst.msk [vmem:[%s132 + $0x1d8] sm:$0xff] %vm398, %v2571
        %2828 = vst.msk [vmem:[%s132 + $0x1e0] sm:$0xff] %vm398, %v2572
        %2829 = vst.msk [vmem:[%s132 + $0x1e8] sm:$0xff] %vm398, %v2573
        %2830 = vst.msk [vmem:[%s132 + $0x1f0] sm:$0xff] %vm398, %v2574
        %2831 = vst.msk [vmem:[%s132 + $0x1f8] sm:$0xff] %vm398, %v2575
        %2832 = vst.msk [vmem:[%s132 + $0x200] sm:$0xff] %vm398, %v2576
        %2833 = vst.msk [vmem:[%s132 + $0x208] sm:$0xff] %vm398, %v2577
        %2834 = vst.msk [vmem:[%s132 + $0x210] sm:$0xff] %vm398, %v2578
        %2835 = vst.msk [vmem:[%s132 + $0x218] sm:$0xff] %vm398, %v2579
        %2836 = vst.msk [vmem:[%s132 + $0x220] sm:$0xff] %vm398, %v2580
        %2837 = vst.msk [vmem:[%s132 + $0x228] sm:$0xff] %vm398, %v2581
        %2838 = vst.msk [vmem:[%s132 + $0x230] sm:$0xff] %vm398, %v2582
        %2839 = vst.msk [vmem:[%s132 + $0x238] sm:$0xff] %vm398, %v2583
        %2840 = vst.msk [vmem:[%s132 + $0x240] sm:$0xff] %vm398, %v2584
        %2841 = vst.msk [vmem:[%s132 + $0x248] sm:$0xff] %vm398, %v2585
        %2842 = vst.msk [vmem:[%s132 + $0x250] sm:$0xff] %vm398, %v2586
        %2843 = vst.msk [vmem:[%s132 + $0x258] sm:$0xff] %vm398, %v2587
        %2844 = vst.msk [vmem:[%s132 + $0x260] sm:$0xff] %vm398, %v2588
        %2845 = vst.msk [vmem:[%s132 + $0x268] sm:$0xff] %vm398, %v2589
        %2846 = vst.msk [vmem:[%s132 + $0x270] sm:$0xff] %vm398, %v2590
        %2847 = vst.msk [vmem:[%s132 + $0x278] sm:$0xff] %vm398, %v2591
        %2848 = vst.msk [vmem:[%s132 + $0x280] sm:$0xff] %vm398, %v2592
        %2849 = vst.msk [vmem:[%s132 + $0x288] sm:$0xff] %vm398, %v2593
        %2850 = vst.msk [vmem:[%s132 + $0x290] sm:$0xff] %vm398, %v2594
        %2851 = vst.msk [vmem:[%s132 + $0x298] sm:$0xff] %vm398, %v2595
        %2852 = vst.msk [vmem:[%s132 + $0x2a0] sm:$0xff] %vm398, %v2596
        %2853 = vst.msk [vmem:[%s132 + $0x2a8] sm:$0xff] %vm398, %v2597
        %2854 = vst.msk [vmem:[%s132 + $0x2b0] sm:$0xff] %vm398, %v2598
        %2855 = vst.msk [vmem:[%s132 + $0x2b8] sm:$0xff] %vm398, %v2599
        %2856 = vst.msk [vmem:[%s132 + $0x2c0] sm:$0xff] %vm398, %v2600
        %2857 = vst.msk [vmem:[%s132 + $0x2c8] sm:$0xff] %vm398, %v2601
        %2858 = vst.msk [vmem:[%s132 + $0x2d0] sm:$0xff] %vm398, %v2602
        %2859 = vst.msk [vmem:[%s132 + $0x2d8] sm:$0xff] %vm398, %v2603
        %2860 = vst.msk [vmem:[%s132 + $0x2e0] sm:$0xff] %vm398, %v2604
        %2861 = vst.msk [vmem:[%s132 + $0x2e8] sm:$0xff] %vm398, %v2605
        %2862 = vst.msk [vmem:[%s132 + $0x2f0] sm:$0xff] %vm398, %v2606
        %2863 = vst.msk [vmem:[%s132 + $0x2f8] sm:$0xff] %vm398, %v2607
        %2864 = vst.msk [vmem:[%s132 + $0x300] sm:$0xff] %vm398, %v2608
        %2865 = vst.msk [vmem:[%s132 + $0x308] sm:$0xff] %vm398, %v2609
        %2866 = vst.msk [vmem:[%s132 + $0x310] sm:$0xff] %vm398, %v2610
        %2867 = vst.msk [vmem:[%s132 + $0x318] sm:$0xff] %vm398, %v2611
        %2868 = vst.msk [vmem:[%s132 + $0x320] sm:$0xff] %vm398, %v2612
        %2869 = vst.msk [vmem:[%s132 + $0x328] sm:$0xff] %vm398, %v2613
        %2870 = vst.msk [vmem:[%s132 + $0x330] sm:$0xff] %vm398, %v2614
        %2871 = vst.msk [vmem:[%s132 + $0x338] sm:$0xff] %vm398, %v2615
        %2872 = vst.msk [vmem:[%s132 + $0x340] sm:$0xff] %vm398, %v2616
        %2873 = vst.msk [vmem:[%s132 + $0x348] sm:$0xff] %vm398, %v2617
        %2874 = vst.msk [vmem:[%s132 + $0x350] sm:$0xff] %vm398, %v2618
        %2875 = vst.msk [vmem:[%s132 + $0x358] sm:$0xff] %vm398, %v2619
        %2876 = vst.msk [vmem:[%s132 + $0x360] sm:$0xff] %vm398, %v2620
        %2877 = vst.msk [vmem:[%s132 + $0x368] sm:$0xff] %vm398, %v2621
        %2878 = vst.msk [vmem:[%s132 + $0x370] sm:$0xff] %vm398, %v2622
        %2879 = vst.msk [vmem:[%s132 + $0x378] sm:$0xff] %vm398, %v2623
        %2880 = vst.msk [vmem:[%s132 + $0x380] sm:$0xff] %vm398, %v2624
        %2881 = vst.msk [vmem:[%s132 + $0x388] sm:$0xff] %vm398, %v2625
        %2882 = vst.msk [vmem:[%s132 + $0x390] sm:$0xff] %vm398, %v2626
        %2883 = vst.msk [vmem:[%s132 + $0x398] sm:$0xff] %vm398, %v2627
        %2884 = vst.msk [vmem:[%s132 + $0x3a0] sm:$0xff] %vm398, %v2628
        %2885 = vst.msk [vmem:[%s132 + $0x3a8] sm:$0xff] %vm398, %v2629
        %2886 = vst.msk [vmem:[%s132 + $0x3b0] sm:$0xff] %vm398, %v2630
        %2887 = vst.msk [vmem:[%s132 + $0x3b8] sm:$0xff] %vm398, %v2631
        %2888 = vst.msk [vmem:[%s132 + $0x3c0] sm:$0xff] %vm398, %v2632
        %2889 = vst.msk [vmem:[%s132 + $0x3c8] sm:$0xff] %vm398, %v2633
        %2890 = vst.msk [vmem:[%s132 + $0x3d0] sm:$0xff] %vm398, %v2634
        %2891 = vst.msk [vmem:[%s132 + $0x3d8] sm:$0xff] %vm398, %v2635
        %2892 = vst.msk [vmem:[%s132 + $0x3e0] sm:$0xff] %vm398, %v2636
        %2893 = vst.msk [vmem:[%s132 + $0x3e8] sm:$0xff] %vm398, %v2637
        %2894 = vst.msk [vmem:[%s132 + $0x3f0] sm:$0xff] %vm398, %v2638
        %2895 = vst.msk [vmem:[%s132 + $0x3f8] sm:$0xff] %vm398, %v2639
        %2896 = vst.msk [vmem:[%s132 + $0x400] sm:$0xff] %vm398, %v2640
        %2897 = vst.msk [vmem:[%s132 + $0x408] sm:$0xff] %vm398, %v2641
        %2898 = vst.msk [vmem:[%s132 + $0x410] sm:$0xff] %vm398, %v2642
        %2899 = vst.msk [vmem:[%s132 + $0x418] sm:$0xff] %vm398, %v2643
        %2900 = vst.msk [vmem:[%s132 + $0x420] sm:$0xff] %vm398, %v2644
        %2901 = vst.msk [vmem:[%s132 + $0x428] sm:$0xff] %vm398, %v2645
        %2902 = vst.msk [vmem:[%s132 + $0x430] sm:$0xff] %vm398, %v2646
        %2903 = vst.msk [vmem:[%s132 + $0x438] sm:$0xff] %vm398, %v2647
        %2904 = vst.msk [vmem:[%s132 + $0x440] sm:$0xff] %vm398, %v2648
        %2905 = vst.msk [vmem:[%s132 + $0x448] sm:$0xff] %vm398, %v2649
        %2906 = vst.msk [vmem:[%s132 + $0x450] sm:$0xff] %vm398, %v2650
        %2907 = vst.msk [vmem:[%s132 + $0x458] sm:$0xff] %vm398, %v2651
        %2908 = vst.msk [vmem:[%s132 + $0x460] sm:$0xff] %vm398, %v2652
        %2909 = vst.msk [vmem:[%s132 + $0x468] sm:$0xff] %vm398, %v2653
        %2910 = vst.msk [vmem:[%s132 + $0x470] sm:$0xff] %vm398, %v2654
        %2911 = vst.msk [vmem:[%s132 + $0x478] sm:$0xff] %vm398, %v2655
        %2912 = vst.msk [vmem:[%s132 + $0x480] sm:$0xff] %vm398, %v2656
        %2913 = vst.msk [vmem:[%s132 + $0x488] sm:$0xff] %vm398, %v2657
        %2914 = vst.msk [vmem:[%s132 + $0x490] sm:$0xff] %vm398, %v2658
        %2915 = vst.msk [vmem:[%s132 + $0x498] sm:$0xff] %vm398, %v2659
        %2916 = vst.msk [vmem:[%s132 + $0x4a0] sm:$0xff] %vm398, %v2660
        %2917 = vst.msk [vmem:[%s132 + $0x4a8] sm:$0xff] %vm398, %v2661
        %2918 = vst.msk [vmem:[%s132 + $0x4b0] sm:$0xff] %vm398, %v2662
        %2919 = vst.msk [vmem:[%s132 + $0x4b8] sm:$0xff] %vm398, %v2663
        %2920 = vst.msk [vmem:[%s132 + $0x4c0] sm:$0xff] %vm398, %v2664
        %2921 = vst.msk [vmem:[%s132 + $0x4c8] sm:$0xff] %vm398, %v2665
        %2922 = vst.msk [vmem:[%s132 + $0x4d0] sm:$0xff] %vm398, %v2666
        %2923 = vst.msk [vmem:[%s132 + $0x4d8] sm:$0xff] %vm398, %v2667
        %2924 = vst.msk [vmem:[%s132 + $0x4e0] sm:$0xff] %vm398, %v2668
        %2925 = vst.msk [vmem:[%s132 + $0x4e8] sm:$0xff] %vm398, %v2669
        %2926 = vst.msk [vmem:[%s132 + $0x4f0] sm:$0xff] %vm398, %v2670
        %2927 = vst.msk [vmem:[%s132 + $0x4f8] sm:$0xff] %vm398, %v2671
        %2928 = vst.msk [vmem:[%s132 + $0x500] sm:$0xff] %vm398, %v2672
        %2929 = vst.msk [vmem:[%s132 + $0x508] sm:$0xff] %vm398, %v2673
        %2930 = vst.msk [vmem:[%s132 + $0x510] sm:$0xff] %vm398, %v2674
        %2931 = vst.msk [vmem:[%s132 + $0x518] sm:$0xff] %vm398, %v2675
        %2932 = vst.msk [vmem:[%s132 + $0x520] sm:$0xff] %vm398, %v2676
        %2933 = vst.msk [vmem:[%s132 + $0x528] sm:$0xff] %vm398, %v2677
        %2934 = vst.msk [vmem:[%s132 + $0x530] sm:$0xff] %vm398, %v2678
        %2935 = vst.msk [vmem:[%s132 + $0x538] sm:$0xff] %vm398, %v2679
        %2936 = vst.msk [vmem:[%s132 + $0x540] sm:$0xff] %vm398, %v2680
        %2937 = vst.msk [vmem:[%s132 + $0x548] sm:$0xff] %vm398, %v2681
        %2938 = vst.msk [vmem:[%s132 + $0x550] sm:$0xff] %vm398, %v2682
        %2939 = vst.msk [vmem:[%s132 + $0x558] sm:$0xff] %vm398, %v2683
        %2940 = vst.msk [vmem:[%s132 + $0x560] sm:$0xff] %vm398, %v2684
        %2941 = vst.msk [vmem:[%s132 + $0x568] sm:$0xff] %vm398, %v2685
        %2942 = vst.msk [vmem:[%s132 + $0x570] sm:$0xff] %vm398, %v2686
        %2943 = vst.msk [vmem:[%s132 + $0x578] sm:$0xff] %vm398, %v2687
        %2944 = vst.msk [vmem:[%s132 + $0x580] sm:$0xff] %vm398, %v2688
        %2945 = vst.msk [vmem:[%s132 + $0x588] sm:$0xff] %vm398, %v2689
        %2946 = vst.msk [vmem:[%s132 + $0x590] sm:$0xff] %vm398, %v2690
        %2947 = vst.msk [vmem:[%s132 + $0x598] sm:$0xff] %vm398, %v2691
        %2948 = vst.msk [vmem:[%s132 + $0x5a0] sm:$0xff] %vm398, %v2692
        %2949 = vst.msk [vmem:[%s132 + $0x5a8] sm:$0xff] %vm398, %v2693
        %2950 = vst.msk [vmem:[%s132 + $0x5b0] sm:$0xff] %vm398, %v2694
        %2951 = vst.msk [vmem:[%s132 + $0x5b8] sm:$0xff] %vm398, %v2695
        %2952 = vst.msk [vmem:[%s132 + $0x5c0] sm:$0xff] %vm398, %v2696
        %2953 = vst.msk [vmem:[%s132 + $0x5c8] sm:$0xff] %vm398, %v2697
        %2954 = vst.msk [vmem:[%s132 + $0x5d0] sm:$0xff] %vm398, %v2698
        %2955 = vst.msk [vmem:[%s132 + $0x5d8] sm:$0xff] %vm398, %v2699
        %2956 = vst.msk [vmem:[%s132 + $0x5e0] sm:$0xff] %vm398, %v2700
        %2957 = vst.msk [vmem:[%s132 + $0x5e8] sm:$0xff] %vm398, %v2701
        %2958 = vst.msk [vmem:[%s132 + $0x5f0] sm:$0xff] %vm398, %v2702
        %2959 = vst.msk [vmem:[%s132 + $0x5f8] sm:$0xff] %vm398, %v2703
        %2960 = vst.msk [vmem:[%s132 + $0x600] sm:$0xff] %vm398, %v2704
        %2961 = vst.msk [vmem:[%s132 + $0x608] sm:$0xff] %vm398, %v2705
        %2962 = vst.msk [vmem:[%s132 + $0x610] sm:$0xff] %vm398, %v2706
        %2963 = vst.msk [vmem:[%s132 + $0x618] sm:$0xff] %vm398, %v2707
        %2964 = vst.msk [vmem:[%s132 + $0x620] sm:$0xff] %vm398, %v2708
        %2965 = vst.msk [vmem:[%s132 + $0x628] sm:$0xff] %vm398, %v2709
        %2966 = vst.msk [vmem:[%s132 + $0x630] sm:$0xff] %vm398, %v2710
        %2967 = vst.msk [vmem:[%s132 + $0x638] sm:$0xff] %vm398, %v2711
        %2968 = vst.msk [vmem:[%s132 + $0x640] sm:$0xff] %vm398, %v2712
        %2969 = vst.msk [vmem:[%s132 + $0x648] sm:$0xff] %vm398, %v2713
        %2970 = vst.msk [vmem:[%s132 + $0x650] sm:$0xff] %vm398, %v2714
        %2971 = vst.msk [vmem:[%s132 + $0x658] sm:$0xff] %vm398, %v2715
        %2972 = vst.msk [vmem:[%s132 + $0x660] sm:$0xff] %vm398, %v2716
        %2973 = vst.msk [vmem:[%s132 + $0x668] sm:$0xff] %vm398, %v2717
        %2974 = vst.msk [vmem:[%s132 + $0x670] sm:$0xff] %vm398, %v2718
        %2975 = vst.msk [vmem:[%s132 + $0x678] sm:$0xff] %vm398, %v2719
        %2976 = vst.msk [vmem:[%s132 + $0x680] sm:$0xff] %vm398, %v2720
        %2977 = vst.msk [vmem:[%s132 + $0x688] sm:$0xff] %vm398, %v2721
        %2978 = vst.msk [vmem:[%s132 + $0x690] sm:$0xff] %vm398, %v2722
        %2979 = vst.msk [vmem:[%s132 + $0x698] sm:$0xff] %vm398, %v2723
        %2980 = vst.msk [vmem:[%s132 + $0x6a0] sm:$0xff] %vm398, %v2724
        %2981 = vst.msk [vmem:[%s132 + $0x6a8] sm:$0xff] %vm398, %v2725
        %2982 = vst.msk [vmem:[%s132 + $0x6b0] sm:$0xff] %vm398, %v2726
        %2983 = vst.msk [vmem:[%s132 + $0x6b8] sm:$0xff] %vm398, %v2727
        %2984 = vst.msk [vmem:[%s132 + $0x6c0] sm:$0xff] %vm398, %v2728
        %2985 = vst.msk [vmem:[%s132 + $0x6c8] sm:$0xff] %vm398, %v2729
        %2986 = vst.msk [vmem:[%s132 + $0x6d0] sm:$0xff] %vm398, %v2730
        %2987 = vst.msk [vmem:[%s132 + $0x6d8] sm:$0xff] %vm398, %v2731
        %2988 = vst.msk [vmem:[%s132 + $0x6e0] sm:$0xff] %vm398, %v2732
        %2989 = vst.msk [vmem:[%s132 + $0x6e8] sm:$0xff] %vm398, %v2733
        %2990 = vst.msk [vmem:[%s132 + $0x6f0] sm:$0xff] %vm398, %v2734
        %2991 = vst.msk [vmem:[%s132 + $0x6f8] sm:$0xff] %vm398, %v2735
        %2992 = vst.msk [vmem:[%s132 + $0x700] sm:$0xff] %vm398, %v2736
        %2993 = vst.msk [vmem:[%s132 + $0x708] sm:$0xff] %vm398, %v2737
        %2994 = vst.msk [vmem:[%s132 + $0x710] sm:$0xff] %vm398, %v2738
        %2995 = vst.msk [vmem:[%s132 + $0x718] sm:$0xff] %vm398, %v2739
        %2996 = vst.msk [vmem:[%s132 + $0x720] sm:$0xff] %vm398, %v2740
        %2997 = vst.msk [vmem:[%s132 + $0x728] sm:$0xff] %vm398, %v2741
        %2998 = vst.msk [vmem:[%s132 + $0x730] sm:$0xff] %vm398, %v2742
        %2999 = vst.msk [vmem:[%s132 + $0x738] sm:$0xff] %vm398, %v2743
        %3000 = vst.msk [vmem:[%s132 + $0x740] sm:$0xff] %vm398, %v2744
        %3001 = vst.msk [vmem:[%s132 + $0x748] sm:$0xff] %vm398, %v2745
        %3002 = vst.msk [vmem:[%s132 + $0x750] sm:$0xff] %vm398, %v2746
        %3003 = vst.msk [vmem:[%s132 + $0x758] sm:$0xff] %vm398, %v2747
        %3004 = vst.msk [vmem:[%s132 + $0x760] sm:$0xff] %vm398, %v2748
        %3005 = vst.msk [vmem:[%s132 + $0x768] sm:$0xff] %vm398, %v2749
        %3006 = vst.msk [vmem:[%s132 + $0x770] sm:$0xff] %vm398, %v2750
        %3007 = vst.msk [vmem:[%s132 + $0x778] sm:$0xff] %vm398, %v2751
        %3008 = vst.msk [vmem:[%s132 + $0x780] sm:$0xff] %vm398, %v2752
        %3009 = vst.msk [vmem:[%s132 + $0x788] sm:$0xff] %vm398, %v2753
        %3010 = vst.msk [vmem:[%s132 + $0x790] sm:$0xff] %vm398, %v2754
        %3011 = vst.msk [vmem:[%s132 + $0x798] sm:$0xff] %vm398, %v2755
        %3012 = vst.msk [vmem:[%s132 + $0x7a0] sm:$0xff] %vm398, %v2756
        %3013 = vst.msk [vmem:[%s132 + $0x7a8] sm:$0xff] %vm398, %v2757
        %3014 = vst.msk [vmem:[%s132 + $0x7b0] sm:$0xff] %vm398, %v2758
        %3015 = vst.msk [vmem:[%s132 + $0x7b8] sm:$0xff] %vm398, %v2759
        %3016 = vst.msk [vmem:[%s132 + $0x7c0] sm:$0xff] %vm398, %v2760
        %3017 = vst.msk [vmem:[%s132 + $0x7c8] sm:$0xff] %vm398, %v2761
        %3018 = vst.msk [vmem:[%s132 + $0x7d0] sm:$0xff] %vm398, %v2762
        %3019 = vst.msk [vmem:[%s132 + $0x7d8] sm:$0xff] %vm398, %v2763
        %3020 = vst.msk [vmem:[%s132 + $0x7e0] sm:$0xff] %vm398, %v2764
        %3021 = vst.msk [vmem:[%s132 + $0x7e8] sm:$0xff] %vm398, %v2765
        %3022 = vst.msk [vmem:[%s132 + $0x7f0] sm:$0xff] %vm398, %v2766
        %3023 = vst.msk [vmem:[%s132 + $0x7f8] sm:$0xff] %vm398, %v2767
        %s3024 = sand.u32 %s68, 1
        %s3025 = sand.u32 %s68, 1
        %s3026 = smul.addr %s3025, 2048
        %s3027 = scalar_lea.vmem [#allocation2], %s3026
        // Predicated region
        $region29: #{vgg_decode_forward.9} parent=27 // pred_check
          %p3028 = pneg %p78
        $region30: #{vgg_decode_forward.9} parent=27 // pred_check_branch
          %3030 = sbr.rel (%p3028) target = $region32
        $region31: #{vgg_decode_forward.9} parent=27 // pred_region
          %s3031 = smul.addr %s13, 4
          %s3032 = smul.addr %s3031, 8
          %s3033 = scalar_lea.vmem %s2, %s3032
          // Predicated region
          $region33: #{vgg_decode_forward.9} parent=31 // pred_check
            _
          $region34: #{vgg_decode_forward.9} parent=31 // pred_check_branch
            %3035 = sbr.rel (0) target = $region36
          $region35: #{vgg_decode_forward.9} parent=31 // pred_region
            // Predicated region
            $region37: #{vgg_decode_forward.9} parent=35 // pred_check
              _
            $region38: #{vgg_decode_forward.9} parent=35 // pred_check_branch
              %3037 = sbr.rel (0) target = $region40
            $region39: #{vgg_decode_forward.9} parent=35 // pred_region
              // Predicated region
              $region52: #{vgg_decode_forward.9} parent=39 // pred_check
                _
              $region53: #{vgg_decode_forward.9} parent=39 // pred_check_branch
                %3562 = sbr.rel (0) target = $region55
              $region54: #{vgg_decode_forward.9} parent=39 // pred_region
                loop: start=0, step=1, limit=1
                $region56: #{vgg_decode_forward.9} parent=54 // loop_pre_header
                  _
                $region57: #{vgg_decode_forward.9} parent=54 // loop_header
                  %s3564 = sphi 0, %s3568
                  %p3565 = scmp.ge.s32.totalorder %s3564, 1
                  %s3569 = sphi %s3027, %s3027
                  %s3570 = sphi %s3033, %s3033
                $region58: #{vgg_decode_forward.9} parent=54 // loop_header_branch
                  %3567 = sbr.rel (%p3565) target = $region62
                $region59: #{vgg_decode_forward.9} parent=54 // loop_body
                  %v3571 = vld [vmem:[%s3569] sm:$0xff]
                  %3572 = vst [vmem:[%s3570] sm:$0xff] %v3571
                  %v3573 = vld [vmem:[%s3569 + $0x8] sm:$0xff]
                  %3574 = vst [vmem:[%s3570 + $0x8] sm:$0xff] %v3573
                  %v3575 = vld [vmem:[%s3569 + $0x10] sm:$0xff]
                  %3576 = vst [vmem:[%s3570 + $0x10] sm:$0xff] %v3575
                  %v3577 = vld [vmem:[%s3569 + $0x18] sm:$0xff]
                  %3578 = vst [vmem:[%s3570 + $0x18] sm:$0xff] %v3577
                  %v3579 = vld [vmem:[%s3569 + $0x20] sm:$0xff]
                  %3580 = vst [vmem:[%s3570 + $0x40] sm:$0xff] %v3579
                  %v3581 = vld [vmem:[%s3569 + $0x28] sm:$0xff]
                  %3582 = vst [vmem:[%s3570 + $0x48] sm:$0xff] %v3581
                  %v3583 = vld [vmem:[%s3569 + $0x30] sm:$0xff]
                  %3584 = vst [vmem:[%s3570 + $0x50] sm:$0xff] %v3583
                  %v3585 = vld [vmem:[%s3569 + $0x38] sm:$0xff]
                  %3586 = vst [vmem:[%s3570 + $0x58] sm:$0xff] %v3585
                  %v3587 = vld [vmem:[%s3569 + $0x40] sm:$0xff]
                  %3588 = vst [vmem:[%s3570 + $0x80] sm:$0xff] %v3587
                  %v3589 = vld [vmem:[%s3569 + $0x48] sm:$0xff]
                  %3590 = vst [vmem:[%s3570 + $0x88] sm:$0xff] %v3589
                  %v3591 = vld [vmem:[%s3569 + $0x50] sm:$0xff]
                  %3592 = vst [vmem:[%s3570 + $0x90] sm:$0xff] %v3591
                  %v3593 = vld [vmem:[%s3569 + $0x58] sm:$0xff]
                  %3594 = vst [vmem:[%s3570 + $0x98] sm:$0xff] %v3593
                  %v3595 = vld [vmem:[%s3569 + $0x60] sm:$0xff]
                  %3596 = vst [vmem:[%s3570 + $0xc0] sm:$0xff] %v3595
                  %v3597 = vld [vmem:[%s3569 + $0x68] sm:$0xff]
                  %3598 = vst [vmem:[%s3570 + $0xc8] sm:$0xff] %v3597
                  %v3599 = vld [vmem:[%s3569 + $0x70] sm:$0xff]
                  %3600 = vst [vmem:[%s3570 + $0xd0] sm:$0xff] %v3599
                  %v3601 = vld [vmem:[%s3569 + $0x78] sm:$0xff]
                  %3602 = vst [vmem:[%s3570 + $0xd8] sm:$0xff] %v3601
                  %v3603 = vld [vmem:[%s3569 + $0x80] sm:$0xff]
                  %3604 = vst [vmem:[%s3570 + $0x100] sm:$0xff] %v3603
                  %v3605 = vld [vmem:[%s3569 + $0x88] sm:$0xff]
                  %3606 = vst [vmem:[%s3570 + $0x108] sm:$0xff] %v3605
                  %v3607 = vld [vmem:[%s3569 + $0x90] sm:$0xff]
                  %3608 = vst [vmem:[%s3570 + $0x110] sm:$0xff] %v3607
                  %v3609 = vld [vmem:[%s3569 + $0x98] sm:$0xff]
                  %3610 = vst [vmem:[%s3570 + $0x118] sm:$0xff] %v3609
                  %v3611 = vld [vmem:[%s3569 + $0xa0] sm:$0xff]
                  %3612 = vst [vmem:[%s3570 + $0x140] sm:$0xff] %v3611
                  %v3613 = vld [vmem:[%s3569 + $0xa8] sm:$0xff]
                  %3614 = vst [vmem:[%s3570 + $0x148] sm:$0xff] %v3613
                  %v3615 = vld [vmem:[%s3569 + $0xb0] sm:$0xff]
                  %3616 = vst [vmem:[%s3570 + $0x150] sm:$0xff] %v3615
                  %v3617 = vld [vmem:[%s3569 + $0xb8] sm:$0xff]
                  %3618 = vst [vmem:[%s3570 + $0x158] sm:$0xff] %v3617
                  %v3619 = vld [vmem:[%s3569 + $0xc0] sm:$0xff]
                  %3620 = vst [vmem:[%s3570 + $0x180] sm:$0xff] %v3619
                  %v3621 = vld [vmem:[%s3569 + $0xc8] sm:$0xff]
                  %3622 = vst [vmem:[%s3570 + $0x188] sm:$0xff] %v3621
                  %v3623 = vld [vmem:[%s3569 + $0xd0] sm:$0xff]
                  %3624 = vst [vmem:[%s3570 + $0x190] sm:$0xff] %v3623
                  %v3625 = vld [vmem:[%s3569 + $0xd8] sm:$0xff]
                  %3626 = vst [vmem:[%s3570 + $0x198] sm:$0xff] %v3625
                  %v3627 = vld [vmem:[%s3569 + $0xe0] sm:$0xff]
                  %3628 = vst [vmem:[%s3570 + $0x1c0] sm:$0xff] %v3627
                  %v3629 = vld [vmem:[%s3569 + $0xe8] sm:$0xff]
                  %3630 = vst [vmem:[%s3570 + $0x1c8] sm:$0xff] %v3629
                  %v3631 = vld [vmem:[%s3569 + $0xf0] sm:$0xff]
                  %3632 = vst [vmem:[%s3570 + $0x1d0] sm:$0xff] %v3631
                  %v3633 = vld [vmem:[%s3569 + $0xf8] sm:$0xff]
                  %3634 = vst [vmem:[%s3570 + $0x1d8] sm:$0xff] %v3633
                  %v3635 = vld [vmem:[%s3569 + $0x100] sm:$0xff]
                  %3636 = vst [vmem:[%s3570 + $0x200] sm:$0xff] %v3635
                  %v3637 = vld [vmem:[%s3569 + $0x108] sm:$0xff]
                  %3638 = vst [vmem:[%s3570 + $0x208] sm:$0xff] %v3637
                  %v3639 = vld [vmem:[%s3569 + $0x110] sm:$0xff]
                  %3640 = vst [vmem:[%s3570 + $0x210] sm:$0xff] %v3639
                  %v3641 = vld [vmem:[%s3569 + $0x118] sm:$0xff]
                  %3642 = vst [vmem:[%s3570 + $0x218] sm:$0xff] %v3641
                  %v3643 = vld [vmem:[%s3569 + $0x120] sm:$0xff]
                  %3644 = vst [vmem:[%s3570 + $0x240] sm:$0xff] %v3643
                  %v3645 = vld [vmem:[%s3569 + $0x128] sm:$0xff]
                  %3646 = vst [vmem:[%s3570 + $0x248] sm:$0xff] %v3645
                  %v3647 = vld [vmem:[%s3569 + $0x130] sm:$0xff]
                  %3648 = vst [vmem:[%s3570 + $0x250] sm:$0xff] %v3647
                  %v3649 = vld [vmem:[%s3569 + $0x138] sm:$0xff]
                  %3650 = vst [vmem:[%s3570 + $0x258] sm:$0xff] %v3649
                  %v3651 = vld [vmem:[%s3569 + $0x140] sm:$0xff]
                  %3652 = vst [vmem:[%s3570 + $0x280] sm:$0xff] %v3651
                  %v3653 = vld [vmem:[%s3569 + $0x148] sm:$0xff]
                  %3654 = vst [vmem:[%s3570 + $0x288] sm:$0xff] %v3653
                  %v3655 = vld [vmem:[%s3569 + $0x150] sm:$0xff]
                  %3656 = vst [vmem:[%s3570 + $0x290] sm:$0xff] %v3655
                  %v3657 = vld [vmem:[%s3569 + $0x158] sm:$0xff]
                  %3658 = vst [vmem:[%s3570 + $0x298] sm:$0xff] %v3657
                  %v3659 = vld [vmem:[%s3569 + $0x160] sm:$0xff]
                  %3660 = vst [vmem:[%s3570 + $0x2c0] sm:$0xff] %v3659
                  %v3661 = vld [vmem:[%s3569 + $0x168] sm:$0xff]
                  %3662 = vst [vmem:[%s3570 + $0x2c8] sm:$0xff] %v3661
                  %v3663 = vld [vmem:[%s3569 + $0x170] sm:$0xff]
                  %3664 = vst [vmem:[%s3570 + $0x2d0] sm:$0xff] %v3663
                  %v3665 = vld [vmem:[%s3569 + $0x178] sm:$0xff]
                  %3666 = vst [vmem:[%s3570 + $0x2d8] sm:$0xff] %v3665
                  %v3667 = vld [vmem:[%s3569 + $0x180] sm:$0xff]
                  %3668 = vst [vmem:[%s3570 + $0x300] sm:$0xff] %v3667
                  %v3669 = vld [vmem:[%s3569 + $0x188] sm:$0xff]
                  %3670 = vst [vmem:[%s3570 + $0x308] sm:$0xff] %v3669
                  %v3671 = vld [vmem:[%s3569 + $0x190] sm:$0xff]
                  %3672 = vst [vmem:[%s3570 + $0x310] sm:$0xff] %v3671
                  %v3673 = vld [vmem:[%s3569 + $0x198] sm:$0xff]
                  %3674 = vst [vmem:[%s3570 + $0x318] sm:$0xff] %v3673
                  %v3675 = vld [vmem:[%s3569 + $0x1a0] sm:$0xff]
                  %3676 = vst [vmem:[%s3570 + $0x340] sm:$0xff] %v3675
                  %v3677 = vld [vmem:[%s3569 + $0x1a8] sm:$0xff]
                  %3678 = vst [vmem:[%s3570 + $0x348] sm:$0xff] %v3677
                  %v3679 = vld [vmem:[%s3569 + $0x1b0] sm:$0xff]
                  %3680 = vst [vmem:[%s3570 + $0x350] sm:$0xff] %v3679
                  %v3681 = vld [vmem:[%s3569 + $0x1b8] sm:$0xff]
                  %3682 = vst [vmem:[%s3570 + $0x358] sm:$0xff] %v3681
                  %v3683 = vld [vmem:[%s3569 + $0x1c0] sm:$0xff]
                  %3684 = vst [vmem:[%s3570 + $0x380] sm:$0xff] %v3683
                  %v3685 = vld [vmem:[%s3569 + $0x1c8] sm:$0xff]
                  %3686 = vst [vmem:[%s3570 + $0x388] sm:$0xff] %v3685
                  %v3687 = vld [vmem:[%s3569 + $0x1d0] sm:$0xff]
                  %3688 = vst [vmem:[%s3570 + $0x390] sm:$0xff] %v3687
                  %v3689 = vld [vmem:[%s3569 + $0x1d8] sm:$0xff]
                  %3690 = vst [vmem:[%s3570 + $0x398] sm:$0xff] %v3689
                  %v3691 = vld [vmem:[%s3569 + $0x1e0] sm:$0xff]
                  %3692 = vst [vmem:[%s3570 + $0x3c0] sm:$0xff] %v3691
                  %v3693 = vld [vmem:[%s3569 + $0x1e8] sm:$0xff]
                  %3694 = vst [vmem:[%s3570 + $0x3c8] sm:$0xff] %v3693
                  %v3695 = vld [vmem:[%s3569 + $0x1f0] sm:$0xff]
                  %3696 = vst [vmem:[%s3570 + $0x3d0] sm:$0xff] %v3695
                  %v3697 = vld [vmem:[%s3569 + $0x1f8] sm:$0xff]
                  %3698 = vst [vmem:[%s3570 + $0x3d8] sm:$0xff] %v3697
                  %v3699 = vld [vmem:[%s3569 + $0x200] sm:$0xff]
                  %3700 = vst [vmem:[%s3570 + $0x400] sm:$0xff] %v3699
                  %v3701 = vld [vmem:[%s3569 + $0x208] sm:$0xff]
                  %3702 = vst [vmem:[%s3570 + $0x408] sm:$0xff] %v3701
                  %v3703 = vld [vmem:[%s3569 + $0x210] sm:$0xff]
                  %3704 = vst [vmem:[%s3570 + $0x410] sm:$0xff] %v3703
                  %v3705 = vld [vmem:[%s3569 + $0x218] sm:$0xff]
                  %3706 = vst [vmem:[%s3570 + $0x418] sm:$0xff] %v3705
                  %v3707 = vld [vmem:[%s3569 + $0x220] sm:$0xff]
                  %3708 = vst [vmem:[%s3570 + $0x440] sm:$0xff] %v3707
                  %v3709 = vld [vmem:[%s3569 + $0x228] sm:$0xff]
                  %3710 = vst [vmem:[%s3570 + $0x448] sm:$0xff] %v3709
                  %v3711 = vld [vmem:[%s3569 + $0x230] sm:$0xff]
                  %3712 = vst [vmem:[%s3570 + $0x450] sm:$0xff] %v3711
                  %v3713 = vld [vmem:[%s3569 + $0x238] sm:$0xff]
                  %3714 = vst [vmem:[%s3570 + $0x458] sm:$0xff] %v3713
                  %v3715 = vld [vmem:[%s3569 + $0x240] sm:$0xff]
                  %3716 = vst [vmem:[%s3570 + $0x480] sm:$0xff] %v3715
                  %v3717 = vld [vmem:[%s3569 + $0x248] sm:$0xff]
                  %3718 = vst [vmem:[%s3570 + $0x488] sm:$0xff] %v3717
                  %v3719 = vld [vmem:[%s3569 + $0x250] sm:$0xff]
                  %3720 = vst [vmem:[%s3570 + $0x490] sm:$0xff] %v3719
                  %v3721 = vld [vmem:[%s3569 + $0x258] sm:$0xff]
                  %3722 = vst [vmem:[%s3570 + $0x498] sm:$0xff] %v3721
                  %v3723 = vld [vmem:[%s3569 + $0x260] sm:$0xff]
                  %3724 = vst [vmem:[%s3570 + $0x4c0] sm:$0xff] %v3723
                  %v3725 = vld [vmem:[%s3569 + $0x268] sm:$0xff]
                  %3726 = vst [vmem:[%s3570 + $0x4c8] sm:$0xff] %v3725
                  %v3727 = vld [vmem:[%s3569 + $0x270] sm:$0xff]
                  %3728 = vst [vmem:[%s3570 + $0x4d0] sm:$0xff] %v3727
                  %v3729 = vld [vmem:[%s3569 + $0x278] sm:$0xff]
                  %3730 = vst [vmem:[%s3570 + $0x4d8] sm:$0xff] %v3729
                  %v3731 = vld [vmem:[%s3569 + $0x280] sm:$0xff]
                  %3732 = vst [vmem:[%s3570 + $0x500] sm:$0xff] %v3731
                  %v3733 = vld [vmem:[%s3569 + $0x288] sm:$0xff]
                  %3734 = vst [vmem:[%s3570 + $0x508] sm:$0xff] %v3733
                  %v3735 = vld [vmem:[%s3569 + $0x290] sm:$0xff]
                  %3736 = vst [vmem:[%s3570 + $0x510] sm:$0xff] %v3735
                  %v3737 = vld [vmem:[%s3569 + $0x298] sm:$0xff]
                  %3738 = vst [vmem:[%s3570 + $0x518] sm:$0xff] %v3737
                  %v3739 = vld [vmem:[%s3569 + $0x2a0] sm:$0xff]
                  %3740 = vst [vmem:[%s3570 + $0x540] sm:$0xff] %v3739
                  %v3741 = vld [vmem:[%s3569 + $0x2a8] sm:$0xff]
                  %3742 = vst [vmem:[%s3570 + $0x548] sm:$0xff] %v3741
                  %v3743 = vld [vmem:[%s3569 + $0x2b0] sm:$0xff]
                  %3744 = vst [vmem:[%s3570 + $0x550] sm:$0xff] %v3743
                  %v3745 = vld [vmem:[%s3569 + $0x2b8] sm:$0xff]
                  %3746 = vst [vmem:[%s3570 + $0x558] sm:$0xff] %v3745
                  %v3747 = vld [vmem:[%s3569 + $0x2c0] sm:$0xff]
                  %3748 = vst [vmem:[%s3570 + $0x580] sm:$0xff] %v3747
                  %v3749 = vld [vmem:[%s3569 + $0x2c8] sm:$0xff]
                  %3750 = vst [vmem:[%s3570 + $0x588] sm:$0xff] %v3749
                  %v3751 = vld [vmem:[%s3569 + $0x2d0] sm:$0xff]
                  %3752 = vst [vmem:[%s3570 + $0x590] sm:$0xff] %v3751
                  %v3753 = vld [vmem:[%s3569 + $0x2d8] sm:$0xff]
                  %3754 = vst [vmem:[%s3570 + $0x598] sm:$0xff] %v3753
                  %v3755 = vld [vmem:[%s3569 + $0x2e0] sm:$0xff]
                  %3756 = vst [vmem:[%s3570 + $0x5c0] sm:$0xff] %v3755
                  %v3757 = vld [vmem:[%s3569 + $0x2e8] sm:$0xff]
                  %3758 = vst [vmem:[%s3570 + $0x5c8] sm:$0xff] %v3757
                  %v3759 = vld [vmem:[%s3569 + $0x2f0] sm:$0xff]
                  %3760 = vst [vmem:[%s3570 + $0x5d0] sm:$0xff] %v3759
                  %v3761 = vld [vmem:[%s3569 + $0x2f8] sm:$0xff]
                  %3762 = vst [vmem:[%s3570 + $0x5d8] sm:$0xff] %v3761
                  %v3763 = vld [vmem:[%s3569 + $0x300] sm:$0xff]
                  %3764 = vst [vmem:[%s3570 + $0x600] sm:$0xff] %v3763
                  %v3765 = vld [vmem:[%s3569 + $0x308] sm:$0xff]
                  %3766 = vst [vmem:[%s3570 + $0x608] sm:$0xff] %v3765
                  %v3767 = vld [vmem:[%s3569 + $0x310] sm:$0xff]
                  %3768 = vst [vmem:[%s3570 + $0x610] sm:$0xff] %v3767
                  %v3769 = vld [vmem:[%s3569 + $0x318] sm:$0xff]
                  %3770 = vst [vmem:[%s3570 + $0x618] sm:$0xff] %v3769
                  %v3771 = vld [vmem:[%s3569 + $0x320] sm:$0xff]
                  %3772 = vst [vmem:[%s3570 + $0x640] sm:$0xff] %v3771
                  %v3773 = vld [vmem:[%s3569 + $0x328] sm:$0xff]
                  %3774 = vst [vmem:[%s3570 + $0x648] sm:$0xff] %v3773
                  %v3775 = vld [vmem:[%s3569 + $0x330] sm:$0xff]
                  %3776 = vst [vmem:[%s3570 + $0x650] sm:$0xff] %v3775
                  %v3777 = vld [vmem:[%s3569 + $0x338] sm:$0xff]
                  %3778 = vst [vmem:[%s3570 + $0x658] sm:$0xff] %v3777
                  %v3779 = vld [vmem:[%s3569 + $0x340] sm:$0xff]
                  %3780 = vst [vmem:[%s3570 + $0x680] sm:$0xff] %v3779
                  %v3781 = vld [vmem:[%s3569 + $0x348] sm:$0xff]
                  %3782 = vst [vmem:[%s3570 + $0x688] sm:$0xff] %v3781
                  %v3783 = vld [vmem:[%s3569 + $0x350] sm:$0xff]
                  %3784 = vst [vmem:[%s3570 + $0x690] sm:$0xff] %v3783
                  %v3785 = vld [vmem:[%s3569 + $0x358] sm:$0xff]
                  %3786 = vst [vmem:[%s3570 + $0x698] sm:$0xff] %v3785
                  %v3787 = vld [vmem:[%s3569 + $0x360] sm:$0xff]
                  %3788 = vst [vmem:[%s3570 + $0x6c0] sm:$0xff] %v3787
                  %v3789 = vld [vmem:[%s3569 + $0x368] sm:$0xff]
                  %3790 = vst [vmem:[%s3570 + $0x6c8] sm:$0xff] %v3789
                  %v3791 = vld [vmem:[%s3569 + $0x370] sm:$0xff]
                  %3792 = vst [vmem:[%s3570 + $0x6d0] sm:$0xff] %v3791
                  %v3793 = vld [vmem:[%s3569 + $0x378] sm:$0xff]
                  %3794 = vst [vmem:[%s3570 + $0x6d8] sm:$0xff] %v3793
                  %v3795 = vld [vmem:[%s3569 + $0x380] sm:$0xff]
                  %3796 = vst [vmem:[%s3570 + $0x700] sm:$0xff] %v3795
                  %v3797 = vld [vmem:[%s3569 + $0x388] sm:$0xff]
                  %3798 = vst [vmem:[%s3570 + $0x708] sm:$0xff] %v3797
                  %v3799 = vld [vmem:[%s3569 + $0x390] sm:$0xff]
                  %3800 = vst [vmem:[%s3570 + $0x710] sm:$0xff] %v3799
                  %v3801 = vld [vmem:[%s3569 + $0x398] sm:$0xff]
                  %3802 = vst [vmem:[%s3570 + $0x718] sm:$0xff] %v3801
                  %v3803 = vld [vmem:[%s3569 + $0x3a0] sm:$0xff]
                  %3804 = vst [vmem:[%s3570 + $0x740] sm:$0xff] %v3803
                  %v3805 = vld [vmem:[%s3569 + $0x3a8] sm:$0xff]
                  %3806 = vst [vmem:[%s3570 + $0x748] sm:$0xff] %v3805
                  %v3807 = vld [vmem:[%s3569 + $0x3b0] sm:$0xff]
                  %3808 = vst [vmem:[%s3570 + $0x750] sm:$0xff] %v3807
                  %v3809 = vld [vmem:[%s3569 + $0x3b8] sm:$0xff]
                  %3810 = vst [vmem:[%s3570 + $0x758] sm:$0xff] %v3809
                  %v3811 = vld [vmem:[%s3569 + $0x3c0] sm:$0xff]
                  %3812 = vst [vmem:[%s3570 + $0x780] sm:$0xff] %v3811
                  %v3813 = vld [vmem:[%s3569 + $0x3c8] sm:$0xff]
                  %3814 = vst [vmem:[%s3570 + $0x788] sm:$0xff] %v3813
                  %v3815 = vld [vmem:[%s3569 + $0x3d0] sm:$0xff]
                  %3816 = vst [vmem:[%s3570 + $0x790] sm:$0xff] %v3815
                  %v3817 = vld [vmem:[%s3569 + $0x3d8] sm:$0xff]
                  %3818 = vst [vmem:[%s3570 + $0x798] sm:$0xff] %v3817
                  %v3819 = vld [vmem:[%s3569 + $0x3e0] sm:$0xff]
                  %3820 = vst [vmem:[%s3570 + $0x7c0] sm:$0xff] %v3819
                  %v3821 = vld [vmem:[%s3569 + $0x3e8] sm:$0xff]
                  %3822 = vst [vmem:[%s3570 + $0x7c8] sm:$0xff] %v3821
                  %v3823 = vld [vmem:[%s3569 + $0x3f0] sm:$0xff]
                  %3824 = vst [vmem:[%s3570 + $0x7d0] sm:$0xff] %v3823
                  %v3825 = vld [vmem:[%s3569 + $0x3f8] sm:$0xff]
                  %3826 = vst [vmem:[%s3570 + $0x7d8] sm:$0xff] %v3825
                  %v3827 = vld [vmem:[%s3569 + $0x400] sm:$0xff]
                  %3828 = vst [vmem:[%s3570 + $0x800] sm:$0xff] %v3827
                  %v3829 = vld [vmem:[%s3569 + $0x408] sm:$0xff]
                  %3830 = vst [vmem:[%s3570 + $0x808] sm:$0xff] %v3829
                  %v3831 = vld [vmem:[%s3569 + $0x410] sm:$0xff]
                  %3832 = vst [vmem:[%s3570 + $0x810] sm:$0xff] %v3831
                  %v3833 = vld [vmem:[%s3569 + $0x418] sm:$0xff]
                  %3834 = vst [vmem:[%s3570 + $0x818] sm:$0xff] %v3833
                  %v3835 = vld [vmem:[%s3569 + $0x420] sm:$0xff]
                  %3836 = vst [vmem:[%s3570 + $0x840] sm:$0xff] %v3835
                  %v3837 = vld [vmem:[%s3569 + $0x428] sm:$0xff]
                  %3838 = vst [vmem:[%s3570 + $0x848] sm:$0xff] %v3837
                  %v3839 = vld [vmem:[%s3569 + $0x430] sm:$0xff]
                  %3840 = vst [vmem:[%s3570 + $0x850] sm:$0xff] %v3839
                  %v3841 = vld [vmem:[%s3569 + $0x438] sm:$0xff]
                  %3842 = vst [vmem:[%s3570 + $0x858] sm:$0xff] %v3841
                  %v3843 = vld [vmem:[%s3569 + $0x440] sm:$0xff]
                  %3844 = vst [vmem:[%s3570 + $0x880] sm:$0xff] %v3843
                  %v3845 = vld [vmem:[%s3569 + $0x448] sm:$0xff]
                  %3846 = vst [vmem:[%s3570 + $0x888] sm:$0xff] %v3845
                  %v3847 = vld [vmem:[%s3569 + $0x450] sm:$0xff]
                  %3848 = vst [vmem:[%s3570 + $0x890] sm:$0xff] %v3847
                  %v3849 = vld [vmem:[%s3569 + $0x458] sm:$0xff]
                  %3850 = vst [vmem:[%s3570 + $0x898] sm:$0xff] %v3849
                  %v3851 = vld [vmem:[%s3569 + $0x460] sm:$0xff]
                  %3852 = vst [vmem:[%s3570 + $0x8c0] sm:$0xff] %v3851
                  %v3853 = vld [vmem:[%s3569 + $0x468] sm:$0xff]
                  %3854 = vst [vmem:[%s3570 + $0x8c8] sm:$0xff] %v3853
                  %v3855 = vld [vmem:[%s3569 + $0x470] sm:$0xff]
                  %3856 = vst [vmem:[%s3570 + $0x8d0] sm:$0xff] %v3855
                  %v3857 = vld [vmem:[%s3569 + $0x478] sm:$0xff]
                  %3858 = vst [vmem:[%s3570 + $0x8d8] sm:$0xff] %v3857
                  %v3859 = vld [vmem:[%s3569 + $0x480] sm:$0xff]
                  %3860 = vst [vmem:[%s3570 + $0x900] sm:$0xff] %v3859
                  %v3861 = vld [vmem:[%s3569 + $0x488] sm:$0xff]
                  %3862 = vst [vmem:[%s3570 + $0x908] sm:$0xff] %v3861
                  %v3863 = vld [vmem:[%s3569 + $0x490] sm:$0xff]
                  %3864 = vst [vmem:[%s3570 + $0x910] sm:$0xff] %v3863
                  %v3865 = vld [vmem:[%s3569 + $0x498] sm:$0xff]
                  %3866 = vst [vmem:[%s3570 + $0x918] sm:$0xff] %v3865
                  %v3867 = vld [vmem:[%s3569 + $0x4a0] sm:$0xff]
                  %3868 = vst [vmem:[%s3570 + $0x940] sm:$0xff] %v3867
                  %v3869 = vld [vmem:[%s3569 + $0x4a8] sm:$0xff]
                  %3870 = vst [vmem:[%s3570 + $0x948] sm:$0xff] %v3869
                  %v3871 = vld [vmem:[%s3569 + $0x4b0] sm:$0xff]
                  %3872 = vst [vmem:[%s3570 + $0x950] sm:$0xff] %v3871
                  %v3873 = vld [vmem:[%s3569 + $0x4b8] sm:$0xff]
                  %3874 = vst [vmem:[%s3570 + $0x958] sm:$0xff] %v3873
                  %v3875 = vld [vmem:[%s3569 + $0x4c0] sm:$0xff]
                  %3876 = vst [vmem:[%s3570 + $0x980] sm:$0xff] %v3875
                  %v3877 = vld [vmem:[%s3569 + $0x4c8] sm:$0xff]
                  %3878 = vst [vmem:[%s3570 + $0x988] sm:$0xff] %v3877
                  %v3879 = vld [vmem:[%s3569 + $0x4d0] sm:$0xff]
                  %3880 = vst [vmem:[%s3570 + $0x990] sm:$0xff] %v3879
                  %v3881 = vld [vmem:[%s3569 + $0x4d8] sm:$0xff]
                  %3882 = vst [vmem:[%s3570 + $0x998] sm:$0xff] %v3881
                  %v3883 = vld [vmem:[%s3569 + $0x4e0] sm:$0xff]
                  %3884 = vst [vmem:[%s3570 + $0x9c0] sm:$0xff] %v3883
                  %v3885 = vld [vmem:[%s3569 + $0x4e8] sm:$0xff]
                  %3886 = vst [vmem:[%s3570 + $0x9c8] sm:$0xff] %v3885
                  %v3887 = vld [vmem:[%s3569 + $0x4f0] sm:$0xff]
                  %3888 = vst [vmem:[%s3570 + $0x9d0] sm:$0xff] %v3887
                  %v3889 = vld [vmem:[%s3569 + $0x4f8] sm:$0xff]
                  %3890 = vst [vmem:[%s3570 + $0x9d8] sm:$0xff] %v3889
                  %v3891 = vld [vmem:[%s3569 + $0x500] sm:$0xff]
                  %3892 = vst [vmem:[%s3570 + $0xa00] sm:$0xff] %v3891
                  %v3893 = vld [vmem:[%s3569 + $0x508] sm:$0xff]
                  %3894 = vst [vmem:[%s3570 + $0xa08] sm:$0xff] %v3893
                  %v3895 = vld [vmem:[%s3569 + $0x510] sm:$0xff]
                  %3896 = vst [vmem:[%s3570 + $0xa10] sm:$0xff] %v3895
                  %v3897 = vld [vmem:[%s3569 + $0x518] sm:$0xff]
                  %3898 = vst [vmem:[%s3570 + $0xa18] sm:$0xff] %v3897
                  %v3899 = vld [vmem:[%s3569 + $0x520] sm:$0xff]
                  %3900 = vst [vmem:[%s3570 + $0xa40] sm:$0xff] %v3899
                  %v3901 = vld [vmem:[%s3569 + $0x528] sm:$0xff]
                  %3902 = vst [vmem:[%s3570 + $0xa48] sm:$0xff] %v3901
                  %v3903 = vld [vmem:[%s3569 + $0x530] sm:$0xff]
                  %3904 = vst [vmem:[%s3570 + $0xa50] sm:$0xff] %v3903
                  %v3905 = vld [vmem:[%s3569 + $0x538] sm:$0xff]
                  %3906 = vst [vmem:[%s3570 + $0xa58] sm:$0xff] %v3905
                  %v3907 = vld [vmem:[%s3569 + $0x540] sm:$0xff]
                  %3908 = vst [vmem:[%s3570 + $0xa80] sm:$0xff] %v3907
                  %v3909 = vld [vmem:[%s3569 + $0x548] sm:$0xff]
                  %3910 = vst [vmem:[%s3570 + $0xa88] sm:$0xff] %v3909
                  %v3911 = vld [vmem:[%s3569 + $0x550] sm:$0xff]
                  %3912 = vst [vmem:[%s3570 + $0xa90] sm:$0xff] %v3911
                  %v3913 = vld [vmem:[%s3569 + $0x558] sm:$0xff]
                  %3914 = vst [vmem:[%s3570 + $0xa98] sm:$0xff] %v3913
                  %v3915 = vld [vmem:[%s3569 + $0x560] sm:$0xff]
                  %3916 = vst [vmem:[%s3570 + $0xac0] sm:$0xff] %v3915
                  %v3917 = vld [vmem:[%s3569 + $0x568] sm:$0xff]
                  %3918 = vst [vmem:[%s3570 + $0xac8] sm:$0xff] %v3917
                  %v3919 = vld [vmem:[%s3569 + $0x570] sm:$0xff]
                  %3920 = vst [vmem:[%s3570 + $0xad0] sm:$0xff] %v3919
                  %v3921 = vld [vmem:[%s3569 + $0x578] sm:$0xff]
                  %3922 = vst [vmem:[%s3570 + $0xad8] sm:$0xff] %v3921
                  %v3923 = vld [vmem:[%s3569 + $0x580] sm:$0xff]
                  %3924 = vst [vmem:[%s3570 + $0xb00] sm:$0xff] %v3923
                  %v3925 = vld [vmem:[%s3569 + $0x588] sm:$0xff]
                  %3926 = vst [vmem:[%s3570 + $0xb08] sm:$0xff] %v3925
                  %v3927 = vld [vmem:[%s3569 + $0x590] sm:$0xff]
                  %3928 = vst [vmem:[%s3570 + $0xb10] sm:$0xff] %v3927
                  %v3929 = vld [vmem:[%s3569 + $0x598] sm:$0xff]
                  %3930 = vst [vmem:[%s3570 + $0xb18] sm:$0xff] %v3929
                  %v3931 = vld [vmem:[%s3569 + $0x5a0] sm:$0xff]
                  %3932 = vst [vmem:[%s3570 + $0xb40] sm:$0xff] %v3931
                  %v3933 = vld [vmem:[%s3569 + $0x5a8] sm:$0xff]
                  %3934 = vst [vmem:[%s3570 + $0xb48] sm:$0xff] %v3933
                  %v3935 = vld [vmem:[%s3569 + $0x5b0] sm:$0xff]
                  %3936 = vst [vmem:[%s3570 + $0xb50] sm:$0xff] %v3935
                  %v3937 = vld [vmem:[%s3569 + $0x5b8] sm:$0xff]
                  %3938 = vst [vmem:[%s3570 + $0xb58] sm:$0xff] %v3937
                  %v3939 = vld [vmem:[%s3569 + $0x5c0] sm:$0xff]
                  %3940 = vst [vmem:[%s3570 + $0xb80] sm:$0xff] %v3939
                  %v3941 = vld [vmem:[%s3569 + $0x5c8] sm:$0xff]
                  %3942 = vst [vmem:[%s3570 + $0xb88] sm:$0xff] %v3941
                  %v3943 = vld [vmem:[%s3569 + $0x5d0] sm:$0xff]
                  %3944 = vst [vmem:[%s3570 + $0xb90] sm:$0xff] %v3943
                  %v3945 = vld [vmem:[%s3569 + $0x5d8] sm:$0xff]
                  %3946 = vst [vmem:[%s3570 + $0xb98] sm:$0xff] %v3945
                  %v3947 = vld [vmem:[%s3569 + $0x5e0] sm:$0xff]
                  %3948 = vst [vmem:[%s3570 + $0xbc0] sm:$0xff] %v3947
                  %v3949 = vld [vmem:[%s3569 + $0x5e8] sm:$0xff]
                  %3950 = vst [vmem:[%s3570 + $0xbc8] sm:$0xff] %v3949
                  %v3951 = vld [vmem:[%s3569 + $0x5f0] sm:$0xff]
                  %3952 = vst [vmem:[%s3570 + $0xbd0] sm:$0xff] %v3951
                  %v3953 = vld [vmem:[%s3569 + $0x5f8] sm:$0xff]
                  %3954 = vst [vmem:[%s3570 + $0xbd8] sm:$0xff] %v3953
                  %v3955 = vld [vmem:[%s3569 + $0x600] sm:$0xff]
                  %3956 = vst [vmem:[%s3570 + $0xc00] sm:$0xff] %v3955
                  %v3957 = vld [vmem:[%s3569 + $0x608] sm:$0xff]
                  %3958 = vst [vmem:[%s3570 + $0xc08] sm:$0xff] %v3957
                  %v3959 = vld [vmem:[%s3569 + $0x610] sm:$0xff]
                  %3960 = vst [vmem:[%s3570 + $0xc10] sm:$0xff] %v3959
                  %v3961 = vld [vmem:[%s3569 + $0x618] sm:$0xff]
                  %3962 = vst [vmem:[%s3570 + $0xc18] sm:$0xff] %v3961
                  %v3963 = vld [vmem:[%s3569 + $0x620] sm:$0xff]
                  %3964 = vst [vmem:[%s3570 + $0xc40] sm:$0xff] %v3963
                  %v3965 = vld [vmem:[%s3569 + $0x628] sm:$0xff]
                  %3966 = vst [vmem:[%s3570 + $0xc48] sm:$0xff] %v3965
                  %v3967 = vld [vmem:[%s3569 + $0x630] sm:$0xff]
                  %3968 = vst [vmem:[%s3570 + $0xc50] sm:$0xff] %v3967
                  %v3969 = vld [vmem:[%s3569 + $0x638] sm:$0xff]
                  %3970 = vst [vmem:[%s3570 + $0xc58] sm:$0xff] %v3969
                  %v3971 = vld [vmem:[%s3569 + $0x640] sm:$0xff]
                  %3972 = vst [vmem:[%s3570 + $0xc80] sm:$0xff] %v3971
                  %v3973 = vld [vmem:[%s3569 + $0x648] sm:$0xff]
                  %3974 = vst [vmem:[%s3570 + $0xc88] sm:$0xff] %v3973
                  %v3975 = vld [vmem:[%s3569 + $0x650] sm:$0xff]
                  %3976 = vst [vmem:[%s3570 + $0xc90] sm:$0xff] %v3975
                  %v3977 = vld [vmem:[%s3569 + $0x658] sm:$0xff]
                  %3978 = vst [vmem:[%s3570 + $0xc98] sm:$0xff] %v3977
                  %v3979 = vld [vmem:[%s3569 + $0x660] sm:$0xff]
                  %3980 = vst [vmem:[%s3570 + $0xcc0] sm:$0xff] %v3979
                  %v3981 = vld [vmem:[%s3569 + $0x668] sm:$0xff]
                  %3982 = vst [vmem:[%s3570 + $0xcc8] sm:$0xff] %v3981
                  %v3983 = vld [vmem:[%s3569 + $0x670] sm:$0xff]
                  %3984 = vst [vmem:[%s3570 + $0xcd0] sm:$0xff] %v3983
                  %v3985 = vld [vmem:[%s3569 + $0x678] sm:$0xff]
                  %3986 = vst [vmem:[%s3570 + $0xcd8] sm:$0xff] %v3985
                  %v3987 = vld [vmem:[%s3569 + $0x680] sm:$0xff]
                  %3988 = vst [vmem:[%s3570 + $0xd00] sm:$0xff] %v3987
                  %v3989 = vld [vmem:[%s3569 + $0x688] sm:$0xff]
                  %3990 = vst [vmem:[%s3570 + $0xd08] sm:$0xff] %v3989
                  %v3991 = vld [vmem:[%s3569 + $0x690] sm:$0xff]
                  %3992 = vst [vmem:[%s3570 + $0xd10] sm:$0xff] %v3991
                  %v3993 = vld [vmem:[%s3569 + $0x698] sm:$0xff]
                  %3994 = vst [vmem:[%s3570 + $0xd18] sm:$0xff] %v3993
                  %v3995 = vld [vmem:[%s3569 + $0x6a0] sm:$0xff]
                  %3996 = vst [vmem:[%s3570 + $0xd40] sm:$0xff] %v3995
                  %v3997 = vld [vmem:[%s3569 + $0x6a8] sm:$0xff]
                  %3998 = vst [vmem:[%s3570 + $0xd48] sm:$0xff] %v3997
                  %v3999 = vld [vmem:[%s3569 + $0x6b0] sm:$0xff]
                  %4000 = vst [vmem:[%s3570 + $0xd50] sm:$0xff] %v3999
                  %v4001 = vld [vmem:[%s3569 + $0x6b8] sm:$0xff]
                  %4002 = vst [vmem:[%s3570 + $0xd58] sm:$0xff] %v4001
                  %v4003 = vld [vmem:[%s3569 + $0x6c0] sm:$0xff]
                  %4004 = vst [vmem:[%s3570 + $0xd80] sm:$0xff] %v4003
                  %v4005 = vld [vmem:[%s3569 + $0x6c8] sm:$0xff]
                  %4006 = vst [vmem:[%s3570 + $0xd88] sm:$0xff] %v4005
                  %v4007 = vld [vmem:[%s3569 + $0x6d0] sm:$0xff]
                  %4008 = vst [vmem:[%s3570 + $0xd90] sm:$0xff] %v4007
                  %v4009 = vld [vmem:[%s3569 + $0x6d8] sm:$0xff]
                  %4010 = vst [vmem:[%s3570 + $0xd98] sm:$0xff] %v4009
                  %v4011 = vld [vmem:[%s3569 + $0x6e0] sm:$0xff]
                  %4012 = vst [vmem:[%s3570 + $0xdc0] sm:$0xff] %v4011
                  %v4013 = vld [vmem:[%s3569 + $0x6e8] sm:$0xff]
                  %4014 = vst [vmem:[%s3570 + $0xdc8] sm:$0xff] %v4013
                  %v4015 = vld [vmem:[%s3569 + $0x6f0] sm:$0xff]
                  %4016 = vst [vmem:[%s3570 + $0xdd0] sm:$0xff] %v4015
                  %v4017 = vld [vmem:[%s3569 + $0x6f8] sm:$0xff]
                  %4018 = vst [vmem:[%s3570 + $0xdd8] sm:$0xff] %v4017
                  %v4019 = vld [vmem:[%s3569 + $0x700] sm:$0xff]
                  %4020 = vst [vmem:[%s3570 + $0xe00] sm:$0xff] %v4019
                  %v4021 = vld [vmem:[%s3569 + $0x708] sm:$0xff]
                  %4022 = vst [vmem:[%s3570 + $0xe08] sm:$0xff] %v4021
                  %v4023 = vld [vmem:[%s3569 + $0x710] sm:$0xff]
                  %4024 = vst [vmem:[%s3570 + $0xe10] sm:$0xff] %v4023
                  %v4025 = vld [vmem:[%s3569 + $0x718] sm:$0xff]
                  %4026 = vst [vmem:[%s3570 + $0xe18] sm:$0xff] %v4025
                  %v4027 = vld [vmem:[%s3569 + $0x720] sm:$0xff]
                  %4028 = vst [vmem:[%s3570 + $0xe40] sm:$0xff] %v4027
                  %v4029 = vld [vmem:[%s3569 + $0x728] sm:$0xff]
                  %4030 = vst [vmem:[%s3570 + $0xe48] sm:$0xff] %v4029
                  %v4031 = vld [vmem:[%s3569 + $0x730] sm:$0xff]
                  %4032 = vst [vmem:[%s3570 + $0xe50] sm:$0xff] %v4031
                  %v4033 = vld [vmem:[%s3569 + $0x738] sm:$0xff]
                  %4034 = vst [vmem:[%s3570 + $0xe58] sm:$0xff] %v4033
                  %v4035 = vld [vmem:[%s3569 + $0x740] sm:$0xff]
                  %4036 = vst [vmem:[%s3570 + $0xe80] sm:$0xff] %v4035
                  %v4037 = vld [vmem:[%s3569 + $0x748] sm:$0xff]
                  %4038 = vst [vmem:[%s3570 + $0xe88] sm:$0xff] %v4037
                  %v4039 = vld [vmem:[%s3569 + $0x750] sm:$0xff]
                  %4040 = vst [vmem:[%s3570 + $0xe90] sm:$0xff] %v4039
                  %v4041 = vld [vmem:[%s3569 + $0x758] sm:$0xff]
                  %4042 = vst [vmem:[%s3570 + $0xe98] sm:$0xff] %v4041
                  %v4043 = vld [vmem:[%s3569 + $0x760] sm:$0xff]
                  %4044 = vst [vmem:[%s3570 + $0xec0] sm:$0xff] %v4043
                  %v4045 = vld [vmem:[%s3569 + $0x768] sm:$0xff]
                  %4046 = vst [vmem:[%s3570 + $0xec8] sm:$0xff] %v4045
                  %v4047 = vld [vmem:[%s3569 + $0x770] sm:$0xff]
                  %4048 = vst [vmem:[%s3570 + $0xed0] sm:$0xff] %v4047
                  %v4049 = vld [vmem:[%s3569 + $0x778] sm:$0xff]
                  %4050 = vst [vmem:[%s3570 + $0xed8] sm:$0xff] %v4049
                  %v4051 = vld [vmem:[%s3569 + $0x780] sm:$0xff]
                  %4052 = vst [vmem:[%s3570 + $0xf00] sm:$0xff] %v4051
                  %v4053 = vld [vmem:[%s3569 + $0x788] sm:$0xff]
                  %4054 = vst [vmem:[%s3570 + $0xf08] sm:$0xff] %v4053
                  %v4055 = vld [vmem:[%s3569 + $0x790] sm:$0xff]
                  %4056 = vst [vmem:[%s3570 + $0xf10] sm:$0xff] %v4055
                  %v4057 = vld [vmem:[%s3569 + $0x798] sm:$0xff]
                  %4058 = vst [vmem:[%s3570 + $0xf18] sm:$0xff] %v4057
                  %v4059 = vld [vmem:[%s3569 + $0x7a0] sm:$0xff]
                  %4060 = vst [vmem:[%s3570 + $0xf40] sm:$0xff] %v4059
                  %v4061 = vld [vmem:[%s3569 + $0x7a8] sm:$0xff]
                  %4062 = vst [vmem:[%s3570 + $0xf48] sm:$0xff] %v4061
                  %v4063 = vld [vmem:[%s3569 + $0x7b0] sm:$0xff]
                  %4064 = vst [vmem:[%s3570 + $0xf50] sm:$0xff] %v4063
                  %v4065 = vld [vmem:[%s3569 + $0x7b8] sm:$0xff]
                  %4066 = vst [vmem:[%s3570 + $0xf58] sm:$0xff] %v4065
                  %v4067 = vld [vmem:[%s3569 + $0x7c0] sm:$0xff]
                  %4068 = vst [vmem:[%s3570 + $0xf80] sm:$0xff] %v4067
                  %v4069 = vld [vmem:[%s3569 + $0x7c8] sm:$0xff]
                  %4070 = vst [vmem:[%s3570 + $0xf88] sm:$0xff] %v4069
                  %v4071 = vld [vmem:[%s3569 + $0x7d0] sm:$0xff]
                  %4072 = vst [vmem:[%s3570 + $0xf90] sm:$0xff] %v4071
                  %v4073 = vld [vmem:[%s3569 + $0x7d8] sm:$0xff]
                  %4074 = vst [vmem:[%s3570 + $0xf98] sm:$0xff] %v4073
                  %v4075 = vld [vmem:[%s3569 + $0x7e0] sm:$0xff]
                  %4076 = vst [vmem:[%s3570 + $0xfc0] sm:$0xff] %v4075
                  %v4077 = vld [vmem:[%s3569 + $0x7e8] sm:$0xff]
                  %4078 = vst [vmem:[%s3570 + $0xfc8] sm:$0xff] %v4077
                  %v4079 = vld [vmem:[%s3569 + $0x7f0] sm:$0xff]
                  %4080 = vst [vmem:[%s3570 + $0xfd0] sm:$0xff] %v4079
                  %v4081 = vld [vmem:[%s3569 + $0x7f8] sm:$0xff]
                  %4082 = vst [vmem:[%s3570 + $0xfd8] sm:$0xff] %v4081
                $region60: #{vgg_decode_forward.9} parent=54 // loop_footer
                  %s3568 = sadd.s32 1, %s3564
                $region61: #{vgg_decode_forward.9} parent=54 // loop_footer_branch
                  %3563 = sbr.rel target = $region57
                $region62: #{vgg_decode_forward.9} parent=54 // loop_exit
                  _
              $region55: #{vgg_decode_forward.9} parent=39 // pred_fallthru
                _
              // Predicated region
              $region63: #{vgg_decode_forward.9} parent=39 // pred_check
                _
              $region64: #{vgg_decode_forward.9} parent=39 // pred_check_branch
                %4084 = sbr.rel target = $region66
              $region65: #{vgg_decode_forward.9} parent=39 // pred_region
                _
              $region66: #{vgg_decode_forward.9} parent=39 // pred_fallthru
                _
            $region40: #{vgg_decode_forward.9} parent=35 // pred_fallthru
              _
            // Predicated region
            $region41: #{vgg_decode_forward.9} parent=35 // pred_check
              _
            $region42: #{vgg_decode_forward.9} parent=35 // pred_check_branch
              %3039 = sbr.rel target = $region44
            $region43: #{vgg_decode_forward.9} parent=35 // pred_region
              loop: start=0, step=1, limit=1
              $region45: #{vgg_decode_forward.9} parent=43 // loop_pre_header
                _
              $region46: #{vgg_decode_forward.9} parent=43 // loop_header
                %s3042 = sphi 0, %s3046
                %p3043 = scmp.ge.s32.totalorder %s3042, 1
                %s3047 = sphi %s3027, %s3027
                %s3048 = sphi %s3033, %s3033
              $region47: #{vgg_decode_forward.9} parent=43 // loop_header_branch
                %3045 = sbr.rel (%p3043) target = $region51
              $region48: #{vgg_decode_forward.9} parent=43 // loop_body
                %v3049 = vld [vmem:[%s3047] sm:$0xff]
                %3050 = vst [vmem:[%s3048] sm:$0xff] %v3049
                %v3051 = vld [vmem:[%s3047 + $0x8] sm:$0xff]
                %3052 = vst [vmem:[%s3048 + $0x8] sm:$0xff] %v3051
                %v3053 = vld [vmem:[%s3047 + $0x10] sm:$0xff]
                %3054 = vst [vmem:[%s3048 + $0x10] sm:$0xff] %v3053
                %v3055 = vld [vmem:[%s3047 + $0x18] sm:$0xff]
                %3056 = vst [vmem:[%s3048 + $0x18] sm:$0xff] %v3055
                %v3057 = vld [vmem:[%s3047 + $0x20] sm:$0xff]
                %3058 = vst [vmem:[%s3048 + $0x40] sm:$0xff] %v3057
                %v3059 = vld [vmem:[%s3047 + $0x28] sm:$0xff]
                %3060 = vst [vmem:[%s3048 + $0x48] sm:$0xff] %v3059
                %v3061 = vld [vmem:[%s3047 + $0x30] sm:$0xff]
                %3062 = vst [vmem:[%s3048 + $0x50] sm:$0xff] %v3061
                %v3063 = vld [vmem:[%s3047 + $0x38] sm:$0xff]
                %3064 = vst [vmem:[%s3048 + $0x58] sm:$0xff] %v3063
                %v3065 = vld [vmem:[%s3047 + $0x40] sm:$0xff]
                %3066 = vst [vmem:[%s3048 + $0x80] sm:$0xff] %v3065
                %v3067 = vld [vmem:[%s3047 + $0x48] sm:$0xff]
                %3068 = vst [vmem:[%s3048 + $0x88] sm:$0xff] %v3067
                %v3069 = vld [vmem:[%s3047 + $0x50] sm:$0xff]
                %3070 = vst [vmem:[%s3048 + $0x90] sm:$0xff] %v3069
                %v3071 = vld [vmem:[%s3047 + $0x58] sm:$0xff]
                %3072 = vst [vmem:[%s3048 + $0x98] sm:$0xff] %v3071
                %v3073 = vld [vmem:[%s3047 + $0x60] sm:$0xff]
                %3074 = vst [vmem:[%s3048 + $0xc0] sm:$0xff] %v3073
                %v3075 = vld [vmem:[%s3047 + $0x68] sm:$0xff]
                %3076 = vst [vmem:[%s3048 + $0xc8] sm:$0xff] %v3075
                %v3077 = vld [vmem:[%s3047 + $0x70] sm:$0xff]
                %3078 = vst [vmem:[%s3048 + $0xd0] sm:$0xff] %v3077
                %v3079 = vld [vmem:[%s3047 + $0x78] sm:$0xff]
                %3080 = vst [vmem:[%s3048 + $0xd8] sm:$0xff] %v3079
                %v3081 = vld [vmem:[%s3047 + $0x80] sm:$0xff]
                %3082 = vst [vmem:[%s3048 + $0x100] sm:$0xff] %v3081
                %v3083 = vld [vmem:[%s3047 + $0x88] sm:$0xff]
                %3084 = vst [vmem:[%s3048 + $0x108] sm:$0xff] %v3083
                %v3085 = vld [vmem:[%s3047 + $0x90] sm:$0xff]
                %3086 = vst [vmem:[%s3048 + $0x110] sm:$0xff] %v3085
                %v3087 = vld [vmem:[%s3047 + $0x98] sm:$0xff]
                %3088 = vst [vmem:[%s3048 + $0x118] sm:$0xff] %v3087
                %v3089 = vld [vmem:[%s3047 + $0xa0] sm:$0xff]
                %3090 = vst [vmem:[%s3048 + $0x140] sm:$0xff] %v3089
                %v3091 = vld [vmem:[%s3047 + $0xa8] sm:$0xff]
                %3092 = vst [vmem:[%s3048 + $0x148] sm:$0xff] %v3091
                %v3093 = vld [vmem:[%s3047 + $0xb0] sm:$0xff]
                %3094 = vst [vmem:[%s3048 + $0x150] sm:$0xff] %v3093
                %v3095 = vld [vmem:[%s3047 + $0xb8] sm:$0xff]
                %3096 = vst [vmem:[%s3048 + $0x158] sm:$0xff] %v3095
                %v3097 = vld [vmem:[%s3047 + $0xc0] sm:$0xff]
                %3098 = vst [vmem:[%s3048 + $0x180] sm:$0xff] %v3097
                %v3099 = vld [vmem:[%s3047 + $0xc8] sm:$0xff]
                %3100 = vst [vmem:[%s3048 + $0x188] sm:$0xff] %v3099
                %v3101 = vld [vmem:[%s3047 + $0xd0] sm:$0xff]
                %3102 = vst [vmem:[%s3048 + $0x190] sm:$0xff] %v3101
                %v3103 = vld [vmem:[%s3047 + $0xd8] sm:$0xff]
                %3104 = vst [vmem:[%s3048 + $0x198] sm:$0xff] %v3103
                %v3105 = vld [vmem:[%s3047 + $0xe0] sm:$0xff]
                %3106 = vst [vmem:[%s3048 + $0x1c0] sm:$0xff] %v3105
                %v3107 = vld [vmem:[%s3047 + $0xe8] sm:$0xff]
                %3108 = vst [vmem:[%s3048 + $0x1c8] sm:$0xff] %v3107
                %v3109 = vld [vmem:[%s3047 + $0xf0] sm:$0xff]
                %3110 = vst [vmem:[%s3048 + $0x1d0] sm:$0xff] %v3109
                %v3111 = vld [vmem:[%s3047 + $0xf8] sm:$0xff]
                %3112 = vst [vmem:[%s3048 + $0x1d8] sm:$0xff] %v3111
                %v3113 = vld [vmem:[%s3047 + $0x100] sm:$0xff]
                %3114 = vst [vmem:[%s3048 + $0x200] sm:$0xff] %v3113
                %v3115 = vld [vmem:[%s3047 + $0x108] sm:$0xff]
                %3116 = vst [vmem:[%s3048 + $0x208] sm:$0xff] %v3115
                %v3117 = vld [vmem:[%s3047 + $0x110] sm:$0xff]
                %3118 = vst [vmem:[%s3048 + $0x210] sm:$0xff] %v3117
                %v3119 = vld [vmem:[%s3047 + $0x118] sm:$0xff]
                %3120 = vst [vmem:[%s3048 + $0x218] sm:$0xff] %v3119
                %v3121 = vld [vmem:[%s3047 + $0x120] sm:$0xff]
                %3122 = vst [vmem:[%s3048 + $0x240] sm:$0xff] %v3121
                %v3123 = vld [vmem:[%s3047 + $0x128] sm:$0xff]
                %3124 = vst [vmem:[%s3048 + $0x248] sm:$0xff] %v3123
                %v3125 = vld [vmem:[%s3047 + $0x130] sm:$0xff]
                %3126 = vst [vmem:[%s3048 + $0x250] sm:$0xff] %v3125
                %v3127 = vld [vmem:[%s3047 + $0x138] sm:$0xff]
                %3128 = vst [vmem:[%s3048 + $0x258] sm:$0xff] %v3127
                %v3129 = vld [vmem:[%s3047 + $0x140] sm:$0xff]
                %3130 = vst [vmem:[%s3048 + $0x280] sm:$0xff] %v3129
                %v3131 = vld [vmem:[%s3047 + $0x148] sm:$0xff]
                %3132 = vst [vmem:[%s3048 + $0x288] sm:$0xff] %v3131
                %v3133 = vld [vmem:[%s3047 + $0x150] sm:$0xff]
                %3134 = vst [vmem:[%s3048 + $0x290] sm:$0xff] %v3133
                %v3135 = vld [vmem:[%s3047 + $0x158] sm:$0xff]
                %3136 = vst [vmem:[%s3048 + $0x298] sm:$0xff] %v3135
                %v3137 = vld [vmem:[%s3047 + $0x160] sm:$0xff]
                %3138 = vst [vmem:[%s3048 + $0x2c0] sm:$0xff] %v3137
                %v3139 = vld [vmem:[%s3047 + $0x168] sm:$0xff]
                %3140 = vst [vmem:[%s3048 + $0x2c8] sm:$0xff] %v3139
                %v3141 = vld [vmem:[%s3047 + $0x170] sm:$0xff]
                %3142 = vst [vmem:[%s3048 + $0x2d0] sm:$0xff] %v3141
                %v3143 = vld [vmem:[%s3047 + $0x178] sm:$0xff]
                %3144 = vst [vmem:[%s3048 + $0x2d8] sm:$0xff] %v3143
                %v3145 = vld [vmem:[%s3047 + $0x180] sm:$0xff]
                %3146 = vst [vmem:[%s3048 + $0x300] sm:$0xff] %v3145
                %v3147 = vld [vmem:[%s3047 + $0x188] sm:$0xff]
                %3148 = vst [vmem:[%s3048 + $0x308] sm:$0xff] %v3147
                %v3149 = vld [vmem:[%s3047 + $0x190] sm:$0xff]
                %3150 = vst [vmem:[%s3048 + $0x310] sm:$0xff] %v3149
                %v3151 = vld [vmem:[%s3047 + $0x198] sm:$0xff]
                %3152 = vst [vmem:[%s3048 + $0x318] sm:$0xff] %v3151
                %v3153 = vld [vmem:[%s3047 + $0x1a0] sm:$0xff]
                %3154 = vst [vmem:[%s3048 + $0x340] sm:$0xff] %v3153
                %v3155 = vld [vmem:[%s3047 + $0x1a8] sm:$0xff]
                %3156 = vst [vmem:[%s3048 + $0x348] sm:$0xff] %v3155
                %v3157 = vld [vmem:[%s3047 + $0x1b0] sm:$0xff]
                %3158 = vst [vmem:[%s3048 + $0x350] sm:$0xff] %v3157
                %v3159 = vld [vmem:[%s3047 + $0x1b8] sm:$0xff]
                %3160 = vst [vmem:[%s3048 + $0x358] sm:$0xff] %v3159
                %v3161 = vld [vmem:[%s3047 + $0x1c0] sm:$0xff]
                %3162 = vst [vmem:[%s3048 + $0x380] sm:$0xff] %v3161
                %v3163 = vld [vmem:[%s3047 + $0x1c8] sm:$0xff]
                %3164 = vst [vmem:[%s3048 + $0x388] sm:$0xff] %v3163
                %v3165 = vld [vmem:[%s3047 + $0x1d0] sm:$0xff]
                %3166 = vst [vmem:[%s3048 + $0x390] sm:$0xff] %v3165
                %v3167 = vld [vmem:[%s3047 + $0x1d8] sm:$0xff]
                %3168 = vst [vmem:[%s3048 + $0x398] sm:$0xff] %v3167
                %v3169 = vld [vmem:[%s3047 + $0x1e0] sm:$0xff]
                %3170 = vst [vmem:[%s3048 + $0x3c0] sm:$0xff] %v3169
                %v3171 = vld [vmem:[%s3047 + $0x1e8] sm:$0xff]
                %3172 = vst [vmem:[%s3048 + $0x3c8] sm:$0xff] %v3171
                %v3173 = vld [vmem:[%s3047 + $0x1f0] sm:$0xff]
                %3174 = vst [vmem:[%s3048 + $0x3d0] sm:$0xff] %v3173
                %v3175 = vld [vmem:[%s3047 + $0x1f8] sm:$0xff]
                %3176 = vst [vmem:[%s3048 + $0x3d8] sm:$0xff] %v3175
                %v3177 = vld [vmem:[%s3047 + $0x200] sm:$0xff]
                %3178 = vst [vmem:[%s3048 + $0x400] sm:$0xff] %v3177
                %v3179 = vld [vmem:[%s3047 + $0x208] sm:$0xff]
                %3180 = vst [vmem:[%s3048 + $0x408] sm:$0xff] %v3179
                %v3181 = vld [vmem:[%s3047 + $0x210] sm:$0xff]
                %3182 = vst [vmem:[%s3048 + $0x410] sm:$0xff] %v3181
                %v3183 = vld [vmem:[%s3047 + $0x218] sm:$0xff]
                %3184 = vst [vmem:[%s3048 + $0x418] sm:$0xff] %v3183
                %v3185 = vld [vmem:[%s3047 + $0x220] sm:$0xff]
                %3186 = vst [vmem:[%s3048 + $0x440] sm:$0xff] %v3185
                %v3187 = vld [vmem:[%s3047 + $0x228] sm:$0xff]
                %3188 = vst [vmem:[%s3048 + $0x448] sm:$0xff] %v3187
                %v3189 = vld [vmem:[%s3047 + $0x230] sm:$0xff]
                %3190 = vst [vmem:[%s3048 + $0x450] sm:$0xff] %v3189
                %v3191 = vld [vmem:[%s3047 + $0x238] sm:$0xff]
                %3192 = vst [vmem:[%s3048 + $0x458] sm:$0xff] %v3191
                %v3193 = vld [vmem:[%s3047 + $0x240] sm:$0xff]
                %3194 = vst [vmem:[%s3048 + $0x480] sm:$0xff] %v3193
                %v3195 = vld [vmem:[%s3047 + $0x248] sm:$0xff]
                %3196 = vst [vmem:[%s3048 + $0x488] sm:$0xff] %v3195
                %v3197 = vld [vmem:[%s3047 + $0x250] sm:$0xff]
                %3198 = vst [vmem:[%s3048 + $0x490] sm:$0xff] %v3197
                %v3199 = vld [vmem:[%s3047 + $0x258] sm:$0xff]
                %3200 = vst [vmem:[%s3048 + $0x498] sm:$0xff] %v3199
                %v3201 = vld [vmem:[%s3047 + $0x260] sm:$0xff]
                %3202 = vst [vmem:[%s3048 + $0x4c0] sm:$0xff] %v3201
                %v3203 = vld [vmem:[%s3047 + $0x268] sm:$0xff]
                %3204 = vst [vmem:[%s3048 + $0x4c8] sm:$0xff] %v3203
                %v3205 = vld [vmem:[%s3047 + $0x270] sm:$0xff]
                %3206 = vst [vmem:[%s3048 + $0x4d0] sm:$0xff] %v3205
                %v3207 = vld [vmem:[%s3047 + $0x278] sm:$0xff]
                %3208 = vst [vmem:[%s3048 + $0x4d8] sm:$0xff] %v3207
                %v3209 = vld [vmem:[%s3047 + $0x280] sm:$0xff]
                %3210 = vst [vmem:[%s3048 + $0x500] sm:$0xff] %v3209
                %v3211 = vld [vmem:[%s3047 + $0x288] sm:$0xff]
                %3212 = vst [vmem:[%s3048 + $0x508] sm:$0xff] %v3211
                %v3213 = vld [vmem:[%s3047 + $0x290] sm:$0xff]
                %3214 = vst [vmem:[%s3048 + $0x510] sm:$0xff] %v3213
                %v3215 = vld [vmem:[%s3047 + $0x298] sm:$0xff]
                %3216 = vst [vmem:[%s3048 + $0x518] sm:$0xff] %v3215
                %v3217 = vld [vmem:[%s3047 + $0x2a0] sm:$0xff]
                %3218 = vst [vmem:[%s3048 + $0x540] sm:$0xff] %v3217
                %v3219 = vld [vmem:[%s3047 + $0x2a8] sm:$0xff]
                %3220 = vst [vmem:[%s3048 + $0x548] sm:$0xff] %v3219
                %v3221 = vld [vmem:[%s3047 + $0x2b0] sm:$0xff]
                %3222 = vst [vmem:[%s3048 + $0x550] sm:$0xff] %v3221
                %v3223 = vld [vmem:[%s3047 + $0x2b8] sm:$0xff]
                %3224 = vst [vmem:[%s3048 + $0x558] sm:$0xff] %v3223
                %v3225 = vld [vmem:[%s3047 + $0x2c0] sm:$0xff]
                %3226 = vst [vmem:[%s3048 + $0x580] sm:$0xff] %v3225
                %v3227 = vld [vmem:[%s3047 + $0x2c8] sm:$0xff]
                %3228 = vst [vmem:[%s3048 + $0x588] sm:$0xff] %v3227
                %v3229 = vld [vmem:[%s3047 + $0x2d0] sm:$0xff]
                %3230 = vst [vmem:[%s3048 + $0x590] sm:$0xff] %v3229
                %v3231 = vld [vmem:[%s3047 + $0x2d8] sm:$0xff]
                %3232 = vst [vmem:[%s3048 + $0x598] sm:$0xff] %v3231
                %v3233 = vld [vmem:[%s3047 + $0x2e0] sm:$0xff]
                %3234 = vst [vmem:[%s3048 + $0x5c0] sm:$0xff] %v3233
                %v3235 = vld [vmem:[%s3047 + $0x2e8] sm:$0xff]
                %3236 = vst [vmem:[%s3048 + $0x5c8] sm:$0xff] %v3235
                %v3237 = vld [vmem:[%s3047 + $0x2f0] sm:$0xff]
                %3238 = vst [vmem:[%s3048 + $0x5d0] sm:$0xff] %v3237
                %v3239 = vld [vmem:[%s3047 + $0x2f8] sm:$0xff]
                %3240 = vst [vmem:[%s3048 + $0x5d8] sm:$0xff] %v3239
                %v3241 = vld [vmem:[%s3047 + $0x300] sm:$0xff]
                %3242 = vst [vmem:[%s3048 + $0x600] sm:$0xff] %v3241
                %v3243 = vld [vmem:[%s3047 + $0x308] sm:$0xff]
                %3244 = vst [vmem:[%s3048 + $0x608] sm:$0xff] %v3243
                %v3245 = vld [vmem:[%s3047 + $0x310] sm:$0xff]
                %3246 = vst [vmem:[%s3048 + $0x610] sm:$0xff] %v3245
                %v3247 = vld [vmem:[%s3047 + $0x318] sm:$0xff]
                %3248 = vst [vmem:[%s3048 + $0x618] sm:$0xff] %v3247
                %v3249 = vld [vmem:[%s3047 + $0x320] sm:$0xff]
                %3250 = vst [vmem:[%s3048 + $0x640] sm:$0xff] %v3249
                %v3251 = vld [vmem:[%s3047 + $0x328] sm:$0xff]
                %3252 = vst [vmem:[%s3048 + $0x648] sm:$0xff] %v3251
                %v3253 = vld [vmem:[%s3047 + $0x330] sm:$0xff]
                %3254 = vst [vmem:[%s3048 + $0x650] sm:$0xff] %v3253
                %v3255 = vld [vmem:[%s3047 + $0x338] sm:$0xff]
                %3256 = vst [vmem:[%s3048 + $0x658] sm:$0xff] %v3255
                %v3257 = vld [vmem:[%s3047 + $0x340] sm:$0xff]
                %3258 = vst [vmem:[%s3048 + $0x680] sm:$0xff] %v3257
                %v3259 = vld [vmem:[%s3047 + $0x348] sm:$0xff]
                %3260 = vst [vmem:[%s3048 + $0x688] sm:$0xff] %v3259
                %v3261 = vld [vmem:[%s3047 + $0x350] sm:$0xff]
                %3262 = vst [vmem:[%s3048 + $0x690] sm:$0xff] %v3261
                %v3263 = vld [vmem:[%s3047 + $0x358] sm:$0xff]
                %3264 = vst [vmem:[%s3048 + $0x698] sm:$0xff] %v3263
                %v3265 = vld [vmem:[%s3047 + $0x360] sm:$0xff]
                %3266 = vst [vmem:[%s3048 + $0x6c0] sm:$0xff] %v3265
                %v3267 = vld [vmem:[%s3047 + $0x368] sm:$0xff]
                %3268 = vst [vmem:[%s3048 + $0x6c8] sm:$0xff] %v3267
                %v3269 = vld [vmem:[%s3047 + $0x370] sm:$0xff]
                %3270 = vst [vmem:[%s3048 + $0x6d0] sm:$0xff] %v3269
                %v3271 = vld [vmem:[%s3047 + $0x378] sm:$0xff]
                %3272 = vst [vmem:[%s3048 + $0x6d8] sm:$0xff] %v3271
                %v3273 = vld [vmem:[%s3047 + $0x380] sm:$0xff]
                %3274 = vst [vmem:[%s3048 + $0x700] sm:$0xff] %v3273
                %v3275 = vld [vmem:[%s3047 + $0x388] sm:$0xff]
                %3276 = vst [vmem:[%s3048 + $0x708] sm:$0xff] %v3275
                %v3277 = vld [vmem:[%s3047 + $0x390] sm:$0xff]
                %3278 = vst [vmem:[%s3048 + $0x710] sm:$0xff] %v3277
                %v3279 = vld [vmem:[%s3047 + $0x398] sm:$0xff]
                %3280 = vst [vmem:[%s3048 + $0x718] sm:$0xff] %v3279
                %v3281 = vld [vmem:[%s3047 + $0x3a0] sm:$0xff]
                %3282 = vst [vmem:[%s3048 + $0x740] sm:$0xff] %v3281
                %v3283 = vld [vmem:[%s3047 + $0x3a8] sm:$0xff]
                %3284 = vst [vmem:[%s3048 + $0x748] sm:$0xff] %v3283
                %v3285 = vld [vmem:[%s3047 + $0x3b0] sm:$0xff]
                %3286 = vst [vmem:[%s3048 + $0x750] sm:$0xff] %v3285
                %v3287 = vld [vmem:[%s3047 + $0x3b8] sm:$0xff]
                %3288 = vst [vmem:[%s3048 + $0x758] sm:$0xff] %v3287
                %v3289 = vld [vmem:[%s3047 + $0x3c0] sm:$0xff]
                %3290 = vst [vmem:[%s3048 + $0x780] sm:$0xff] %v3289
                %v3291 = vld [vmem:[%s3047 + $0x3c8] sm:$0xff]
                %3292 = vst [vmem:[%s3048 + $0x788] sm:$0xff] %v3291
                %v3293 = vld [vmem:[%s3047 + $0x3d0] sm:$0xff]
                %3294 = vst [vmem:[%s3048 + $0x790] sm:$0xff] %v3293
                %v3295 = vld [vmem:[%s3047 + $0x3d8] sm:$0xff]
                %3296 = vst [vmem:[%s3048 + $0x798] sm:$0xff] %v3295
                %v3297 = vld [vmem:[%s3047 + $0x3e0] sm:$0xff]
                %3298 = vst [vmem:[%s3048 + $0x7c0] sm:$0xff] %v3297
                %v3299 = vld [vmem:[%s3047 + $0x3e8] sm:$0xff]
                %3300 = vst [vmem:[%s3048 + $0x7c8] sm:$0xff] %v3299
                %v3301 = vld [vmem:[%s3047 + $0x3f0] sm:$0xff]
                %3302 = vst [vmem:[%s3048 + $0x7d0] sm:$0xff] %v3301
                %v3303 = vld [vmem:[%s3047 + $0x3f8] sm:$0xff]
                %3304 = vst [vmem:[%s3048 + $0x7d8] sm:$0xff] %v3303
                %v3305 = vld [vmem:[%s3047 + $0x400] sm:$0xff]
                %3306 = vst [vmem:[%s3048 + $0x800] sm:$0xff] %v3305
                %v3307 = vld [vmem:[%s3047 + $0x408] sm:$0xff]
                %3308 = vst [vmem:[%s3048 + $0x808] sm:$0xff] %v3307
                %v3309 = vld [vmem:[%s3047 + $0x410] sm:$0xff]
                %3310 = vst [vmem:[%s3048 + $0x810] sm:$0xff] %v3309
                %v3311 = vld [vmem:[%s3047 + $0x418] sm:$0xff]
                %3312 = vst [vmem:[%s3048 + $0x818] sm:$0xff] %v3311
                %v3313 = vld [vmem:[%s3047 + $0x420] sm:$0xff]
                %3314 = vst [vmem:[%s3048 + $0x840] sm:$0xff] %v3313
                %v3315 = vld [vmem:[%s3047 + $0x428] sm:$0xff]
                %3316 = vst [vmem:[%s3048 + $0x848] sm:$0xff] %v3315
                %v3317 = vld [vmem:[%s3047 + $0x430] sm:$0xff]
                %3318 = vst [vmem:[%s3048 + $0x850] sm:$0xff] %v3317
                %v3319 = vld [vmem:[%s3047 + $0x438] sm:$0xff]
                %3320 = vst [vmem:[%s3048 + $0x858] sm:$0xff] %v3319
                %v3321 = vld [vmem:[%s3047 + $0x440] sm:$0xff]
                %3322 = vst [vmem:[%s3048 + $0x880] sm:$0xff] %v3321
                %v3323 = vld [vmem:[%s3047 + $0x448] sm:$0xff]
                %3324 = vst [vmem:[%s3048 + $0x888] sm:$0xff] %v3323
                %v3325 = vld [vmem:[%s3047 + $0x450] sm:$0xff]
                %3326 = vst [vmem:[%s3048 + $0x890] sm:$0xff] %v3325
                %v3327 = vld [vmem:[%s3047 + $0x458] sm:$0xff]
                %3328 = vst [vmem:[%s3048 + $0x898] sm:$0xff] %v3327
                %v3329 = vld [vmem:[%s3047 + $0x460] sm:$0xff]
                %3330 = vst [vmem:[%s3048 + $0x8c0] sm:$0xff] %v3329
                %v3331 = vld [vmem:[%s3047 + $0x468] sm:$0xff]
                %3332 = vst [vmem:[%s3048 + $0x8c8] sm:$0xff] %v3331
                %v3333 = vld [vmem:[%s3047 + $0x470] sm:$0xff]
                %3334 = vst [vmem:[%s3048 + $0x8d0] sm:$0xff] %v3333
                %v3335 = vld [vmem:[%s3047 + $0x478] sm:$0xff]
                %3336 = vst [vmem:[%s3048 + $0x8d8] sm:$0xff] %v3335
                %v3337 = vld [vmem:[%s3047 + $0x480] sm:$0xff]
                %3338 = vst [vmem:[%s3048 + $0x900] sm:$0xff] %v3337
                %v3339 = vld [vmem:[%s3047 + $0x488] sm:$0xff]
                %3340 = vst [vmem:[%s3048 + $0x908] sm:$0xff] %v3339
                %v3341 = vld [vmem:[%s3047 + $0x490] sm:$0xff]
                %3342 = vst [vmem:[%s3048 + $0x910] sm:$0xff] %v3341
                %v3343 = vld [vmem:[%s3047 + $0x498] sm:$0xff]
                %3344 = vst [vmem:[%s3048 + $0x918] sm:$0xff] %v3343
                %v3345 = vld [vmem:[%s3047 + $0x4a0] sm:$0xff]
                %3346 = vst [vmem:[%s3048 + $0x940] sm:$0xff] %v3345
                %v3347 = vld [vmem:[%s3047 + $0x4a8] sm:$0xff]
                %3348 = vst [vmem:[%s3048 + $0x948] sm:$0xff] %v3347
                %v3349 = vld [vmem:[%s3047 + $0x4b0] sm:$0xff]
                %3350 = vst [vmem:[%s3048 + $0x950] sm:$0xff] %v3349
                %v3351 = vld [vmem:[%s3047 + $0x4b8] sm:$0xff]
                %3352 = vst [vmem:[%s3048 + $0x958] sm:$0xff] %v3351
                %v3353 = vld [vmem:[%s3047 + $0x4c0] sm:$0xff]
                %3354 = vst [vmem:[%s3048 + $0x980] sm:$0xff] %v3353
                %v3355 = vld [vmem:[%s3047 + $0x4c8] sm:$0xff]
                %3356 = vst [vmem:[%s3048 + $0x988] sm:$0xff] %v3355
                %v3357 = vld [vmem:[%s3047 + $0x4d0] sm:$0xff]
                %3358 = vst [vmem:[%s3048 + $0x990] sm:$0xff] %v3357
                %v3359 = vld [vmem:[%s3047 + $0x4d8] sm:$0xff]
                %3360 = vst [vmem:[%s3048 + $0x998] sm:$0xff] %v3359
                %v3361 = vld [vmem:[%s3047 + $0x4e0] sm:$0xff]
                %3362 = vst [vmem:[%s3048 + $0x9c0] sm:$0xff] %v3361
                %v3363 = vld [vmem:[%s3047 + $0x4e8] sm:$0xff]
                %3364 = vst [vmem:[%s3048 + $0x9c8] sm:$0xff] %v3363
                %v3365 = vld [vmem:[%s3047 + $0x4f0] sm:$0xff]
                %3366 = vst [vmem:[%s3048 + $0x9d0] sm:$0xff] %v3365
                %v3367 = vld [vmem:[%s3047 + $0x4f8] sm:$0xff]
                %3368 = vst [vmem:[%s3048 + $0x9d8] sm:$0xff] %v3367
                %v3369 = vld [vmem:[%s3047 + $0x500] sm:$0xff]
                %3370 = vst [vmem:[%s3048 + $0xa00] sm:$0xff] %v3369
                %v3371 = vld [vmem:[%s3047 + $0x508] sm:$0xff]
                %3372 = vst [vmem:[%s3048 + $0xa08] sm:$0xff] %v3371
                %v3373 = vld [vmem:[%s3047 + $0x510] sm:$0xff]
                %3374 = vst [vmem:[%s3048 + $0xa10] sm:$0xff] %v3373
                %v3375 = vld [vmem:[%s3047 + $0x518] sm:$0xff]
                %3376 = vst [vmem:[%s3048 + $0xa18] sm:$0xff] %v3375
                %v3377 = vld [vmem:[%s3047 + $0x520] sm:$0xff]
                %3378 = vst [vmem:[%s3048 + $0xa40] sm:$0xff] %v3377
                %v3379 = vld [vmem:[%s3047 + $0x528] sm:$0xff]
                %3380 = vst [vmem:[%s3048 + $0xa48] sm:$0xff] %v3379
                %v3381 = vld [vmem:[%s3047 + $0x530] sm:$0xff]
                %3382 = vst [vmem:[%s3048 + $0xa50] sm:$0xff] %v3381
                %v3383 = vld [vmem:[%s3047 + $0x538] sm:$0xff]
                %3384 = vst [vmem:[%s3048 + $0xa58] sm:$0xff] %v3383
                %v3385 = vld [vmem:[%s3047 + $0x540] sm:$0xff]
                %3386 = vst [vmem:[%s3048 + $0xa80] sm:$0xff] %v3385
                %v3387 = vld [vmem:[%s3047 + $0x548] sm:$0xff]
                %3388 = vst [vmem:[%s3048 + $0xa88] sm:$0xff] %v3387
                %v3389 = vld [vmem:[%s3047 + $0x550] sm:$0xff]
                %3390 = vst [vmem:[%s3048 + $0xa90] sm:$0xff] %v3389
                %v3391 = vld [vmem:[%s3047 + $0x558] sm:$0xff]
                %3392 = vst [vmem:[%s3048 + $0xa98] sm:$0xff] %v3391
                %v3393 = vld [vmem:[%s3047 + $0x560] sm:$0xff]
                %3394 = vst [vmem:[%s3048 + $0xac0] sm:$0xff] %v3393
                %v3395 = vld [vmem:[%s3047 + $0x568] sm:$0xff]
                %3396 = vst [vmem:[%s3048 + $0xac8] sm:$0xff] %v3395
                %v3397 = vld [vmem:[%s3047 + $0x570] sm:$0xff]
                %3398 = vst [vmem:[%s3048 + $0xad0] sm:$0xff] %v3397
                %v3399 = vld [vmem:[%s3047 + $0x578] sm:$0xff]
                %3400 = vst [vmem:[%s3048 + $0xad8] sm:$0xff] %v3399
                %v3401 = vld [vmem:[%s3047 + $0x580] sm:$0xff]
                %3402 = vst [vmem:[%s3048 + $0xb00] sm:$0xff] %v3401
                %v3403 = vld [vmem:[%s3047 + $0x588] sm:$0xff]
                %3404 = vst [vmem:[%s3048 + $0xb08] sm:$0xff] %v3403
                %v3405 = vld [vmem:[%s3047 + $0x590] sm:$0xff]
                %3406 = vst [vmem:[%s3048 + $0xb10] sm:$0xff] %v3405
                %v3407 = vld [vmem:[%s3047 + $0x598] sm:$0xff]
                %3408 = vst [vmem:[%s3048 + $0xb18] sm:$0xff] %v3407
                %v3409 = vld [vmem:[%s3047 + $0x5a0] sm:$0xff]
                %3410 = vst [vmem:[%s3048 + $0xb40] sm:$0xff] %v3409
                %v3411 = vld [vmem:[%s3047 + $0x5a8] sm:$0xff]
                %3412 = vst [vmem:[%s3048 + $0xb48] sm:$0xff] %v3411
                %v3413 = vld [vmem:[%s3047 + $0x5b0] sm:$0xff]
                %3414 = vst [vmem:[%s3048 + $0xb50] sm:$0xff] %v3413
                %v3415 = vld [vmem:[%s3047 + $0x5b8] sm:$0xff]
                %3416 = vst [vmem:[%s3048 + $0xb58] sm:$0xff] %v3415
                %v3417 = vld [vmem:[%s3047 + $0x5c0] sm:$0xff]
                %3418 = vst [vmem:[%s3048 + $0xb80] sm:$0xff] %v3417
                %v3419 = vld [vmem:[%s3047 + $0x5c8] sm:$0xff]
                %3420 = vst [vmem:[%s3048 + $0xb88] sm:$0xff] %v3419
                %v3421 = vld [vmem:[%s3047 + $0x5d0] sm:$0xff]
                %3422 = vst [vmem:[%s3048 + $0xb90] sm:$0xff] %v3421
                %v3423 = vld [vmem:[%s3047 + $0x5d8] sm:$0xff]
                %3424 = vst [vmem:[%s3048 + $0xb98] sm:$0xff] %v3423
                %v3425 = vld [vmem:[%s3047 + $0x5e0] sm:$0xff]
                %3426 = vst [vmem:[%s3048 + $0xbc0] sm:$0xff] %v3425
                %v3427 = vld [vmem:[%s3047 + $0x5e8] sm:$0xff]
                %3428 = vst [vmem:[%s3048 + $0xbc8] sm:$0xff] %v3427
                %v3429 = vld [vmem:[%s3047 + $0x5f0] sm:$0xff]
                %3430 = vst [vmem:[%s3048 + $0xbd0] sm:$0xff] %v3429
                %v3431 = vld [vmem:[%s3047 + $0x5f8] sm:$0xff]
                %3432 = vst [vmem:[%s3048 + $0xbd8] sm:$0xff] %v3431
                %v3433 = vld [vmem:[%s3047 + $0x600] sm:$0xff]
                %3434 = vst [vmem:[%s3048 + $0xc00] sm:$0xff] %v3433
                %v3435 = vld [vmem:[%s3047 + $0x608] sm:$0xff]
                %3436 = vst [vmem:[%s3048 + $0xc08] sm:$0xff] %v3435
                %v3437 = vld [vmem:[%s3047 + $0x610] sm:$0xff]
                %3438 = vst [vmem:[%s3048 + $0xc10] sm:$0xff] %v3437
                %v3439 = vld [vmem:[%s3047 + $0x618] sm:$0xff]
                %3440 = vst [vmem:[%s3048 + $0xc18] sm:$0xff] %v3439
                %v3441 = vld [vmem:[%s3047 + $0x620] sm:$0xff]
                %3442 = vst [vmem:[%s3048 + $0xc40] sm:$0xff] %v3441
                %v3443 = vld [vmem:[%s3047 + $0x628] sm:$0xff]
                %3444 = vst [vmem:[%s3048 + $0xc48] sm:$0xff] %v3443
                %v3445 = vld [vmem:[%s3047 + $0x630] sm:$0xff]
                %3446 = vst [vmem:[%s3048 + $0xc50] sm:$0xff] %v3445
                %v3447 = vld [vmem:[%s3047 + $0x638] sm:$0xff]
                %3448 = vst [vmem:[%s3048 + $0xc58] sm:$0xff] %v3447
                %v3449 = vld [vmem:[%s3047 + $0x640] sm:$0xff]
                %3450 = vst [vmem:[%s3048 + $0xc80] sm:$0xff] %v3449
                %v3451 = vld [vmem:[%s3047 + $0x648] sm:$0xff]
                %3452 = vst [vmem:[%s3048 + $0xc88] sm:$0xff] %v3451
                %v3453 = vld [vmem:[%s3047 + $0x650] sm:$0xff]
                %3454 = vst [vmem:[%s3048 + $0xc90] sm:$0xff] %v3453
                %v3455 = vld [vmem:[%s3047 + $0x658] sm:$0xff]
                %3456 = vst [vmem:[%s3048 + $0xc98] sm:$0xff] %v3455
                %v3457 = vld [vmem:[%s3047 + $0x660] sm:$0xff]
                %3458 = vst [vmem:[%s3048 + $0xcc0] sm:$0xff] %v3457
                %v3459 = vld [vmem:[%s3047 + $0x668] sm:$0xff]
                %3460 = vst [vmem:[%s3048 + $0xcc8] sm:$0xff] %v3459
                %v3461 = vld [vmem:[%s3047 + $0x670] sm:$0xff]
                %3462 = vst [vmem:[%s3048 + $0xcd0] sm:$0xff] %v3461
                %v3463 = vld [vmem:[%s3047 + $0x678] sm:$0xff]
                %3464 = vst [vmem:[%s3048 + $0xcd8] sm:$0xff] %v3463
                %v3465 = vld [vmem:[%s3047 + $0x680] sm:$0xff]
                %3466 = vst [vmem:[%s3048 + $0xd00] sm:$0xff] %v3465
                %v3467 = vld [vmem:[%s3047 + $0x688] sm:$0xff]
                %3468 = vst [vmem:[%s3048 + $0xd08] sm:$0xff] %v3467
                %v3469 = vld [vmem:[%s3047 + $0x690] sm:$0xff]
                %3470 = vst [vmem:[%s3048 + $0xd10] sm:$0xff] %v3469
                %v3471 = vld [vmem:[%s3047 + $0x698] sm:$0xff]
                %3472 = vst [vmem:[%s3048 + $0xd18] sm:$0xff] %v3471
                %v3473 = vld [vmem:[%s3047 + $0x6a0] sm:$0xff]
                %3474 = vst [vmem:[%s3048 + $0xd40] sm:$0xff] %v3473
                %v3475 = vld [vmem:[%s3047 + $0x6a8] sm:$0xff]
                %3476 = vst [vmem:[%s3048 + $0xd48] sm:$0xff] %v3475
                %v3477 = vld [vmem:[%s3047 + $0x6b0] sm:$0xff]
                %3478 = vst [vmem:[%s3048 + $0xd50] sm:$0xff] %v3477
                %v3479 = vld [vmem:[%s3047 + $0x6b8] sm:$0xff]
                %3480 = vst [vmem:[%s3048 + $0xd58] sm:$0xff] %v3479
                %v3481 = vld [vmem:[%s3047 + $0x6c0] sm:$0xff]
                %3482 = vst [vmem:[%s3048 + $0xd80] sm:$0xff] %v3481
                %v3483 = vld [vmem:[%s3047 + $0x6c8] sm:$0xff]
                %3484 = vst [vmem:[%s3048 + $0xd88] sm:$0xff] %v3483
                %v3485 = vld [vmem:[%s3047 + $0x6d0] sm:$0xff]
                %3486 = vst [vmem:[%s3048 + $0xd90] sm:$0xff] %v3485
                %v3487 = vld [vmem:[%s3047 + $0x6d8] sm:$0xff]
                %3488 = vst [vmem:[%s3048 + $0xd98] sm:$0xff] %v3487
                %v3489 = vld [vmem:[%s3047 + $0x6e0] sm:$0xff]
                %3490 = vst [vmem:[%s3048 + $0xdc0] sm:$0xff] %v3489
                %v3491 = vld [vmem:[%s3047 + $0x6e8] sm:$0xff]
                %3492 = vst [vmem:[%s3048 + $0xdc8] sm:$0xff] %v3491
                %v3493 = vld [vmem:[%s3047 + $0x6f0] sm:$0xff]
                %3494 = vst [vmem:[%s3048 + $0xdd0] sm:$0xff] %v3493
                %v3495 = vld [vmem:[%s3047 + $0x6f8] sm:$0xff]
                %3496 = vst [vmem:[%s3048 + $0xdd8] sm:$0xff] %v3495
                %v3497 = vld [vmem:[%s3047 + $0x700] sm:$0xff]
                %3498 = vst [vmem:[%s3048 + $0xe00] sm:$0xff] %v3497
                %v3499 = vld [vmem:[%s3047 + $0x708] sm:$0xff]
                %3500 = vst [vmem:[%s3048 + $0xe08] sm:$0xff] %v3499
                %v3501 = vld [vmem:[%s3047 + $0x710] sm:$0xff]
                %3502 = vst [vmem:[%s3048 + $0xe10] sm:$0xff] %v3501
                %v3503 = vld [vmem:[%s3047 + $0x718] sm:$0xff]
                %3504 = vst [vmem:[%s3048 + $0xe18] sm:$0xff] %v3503
                %v3505 = vld [vmem:[%s3047 + $0x720] sm:$0xff]
                %3506 = vst [vmem:[%s3048 + $0xe40] sm:$0xff] %v3505
                %v3507 = vld [vmem:[%s3047 + $0x728] sm:$0xff]
                %3508 = vst [vmem:[%s3048 + $0xe48] sm:$0xff] %v3507
                %v3509 = vld [vmem:[%s3047 + $0x730] sm:$0xff]
                %3510 = vst [vmem:[%s3048 + $0xe50] sm:$0xff] %v3509
                %v3511 = vld [vmem:[%s3047 + $0x738] sm:$0xff]
                %3512 = vst [vmem:[%s3048 + $0xe58] sm:$0xff] %v3511
                %v3513 = vld [vmem:[%s3047 + $0x740] sm:$0xff]
                %3514 = vst [vmem:[%s3048 + $0xe80] sm:$0xff] %v3513
                %v3515 = vld [vmem:[%s3047 + $0x748] sm:$0xff]
                %3516 = vst [vmem:[%s3048 + $0xe88] sm:$0xff] %v3515
                %v3517 = vld [vmem:[%s3047 + $0x750] sm:$0xff]
                %3518 = vst [vmem:[%s3048 + $0xe90] sm:$0xff] %v3517
                %v3519 = vld [vmem:[%s3047 + $0x758] sm:$0xff]
                %3520 = vst [vmem:[%s3048 + $0xe98] sm:$0xff] %v3519
                %v3521 = vld [vmem:[%s3047 + $0x760] sm:$0xff]
                %3522 = vst [vmem:[%s3048 + $0xec0] sm:$0xff] %v3521
                %v3523 = vld [vmem:[%s3047 + $0x768] sm:$0xff]
                %3524 = vst [vmem:[%s3048 + $0xec8] sm:$0xff] %v3523
                %v3525 = vld [vmem:[%s3047 + $0x770] sm:$0xff]
                %3526 = vst [vmem:[%s3048 + $0xed0] sm:$0xff] %v3525
                %v3527 = vld [vmem:[%s3047 + $0x778] sm:$0xff]
                %3528 = vst [vmem:[%s3048 + $0xed8] sm:$0xff] %v3527
                %v3529 = vld [vmem:[%s3047 + $0x780] sm:$0xff]
                %3530 = vst [vmem:[%s3048 + $0xf00] sm:$0xff] %v3529
                %v3531 = vld [vmem:[%s3047 + $0x788] sm:$0xff]
                %3532 = vst [vmem:[%s3048 + $0xf08] sm:$0xff] %v3531
                %v3533 = vld [vmem:[%s3047 + $0x790] sm:$0xff]
                %3534 = vst [vmem:[%s3048 + $0xf10] sm:$0xff] %v3533
                %v3535 = vld [vmem:[%s3047 + $0x798] sm:$0xff]
                %3536 = vst [vmem:[%s3048 + $0xf18] sm:$0xff] %v3535
                %v3537 = vld [vmem:[%s3047 + $0x7a0] sm:$0xff]
                %3538 = vst [vmem:[%s3048 + $0xf40] sm:$0xff] %v3537
                %v3539 = vld [vmem:[%s3047 + $0x7a8] sm:$0xff]
                %3540 = vst [vmem:[%s3048 + $0xf48] sm:$0xff] %v3539
                %v3541 = vld [vmem:[%s3047 + $0x7b0] sm:$0xff]
                %3542 = vst [vmem:[%s3048 + $0xf50] sm:$0xff] %v3541
                %v3543 = vld [vmem:[%s3047 + $0x7b8] sm:$0xff]
                %3544 = vst [vmem:[%s3048 + $0xf58] sm:$0xff] %v3543
                %v3545 = vld [vmem:[%s3047 + $0x7c0] sm:$0xff]
                %3546 = vst [vmem:[%s3048 + $0xf80] sm:$0xff] %v3545
                %v3547 = vld [vmem:[%s3047 + $0x7c8] sm:$0xff]
                %3548 = vst [vmem:[%s3048 + $0xf88] sm:$0xff] %v3547
                %v3549 = vld [vmem:[%s3047 + $0x7d0] sm:$0xff]
                %3550 = vst [vmem:[%s3048 + $0xf90] sm:$0xff] %v3549
                %v3551 = vld [vmem:[%s3047 + $0x7d8] sm:$0xff]
                %3552 = vst [vmem:[%s3048 + $0xf98] sm:$0xff] %v3551
                %v3553 = vld [vmem:[%s3047 + $0x7e0] sm:$0xff]
                %3554 = vst [vmem:[%s3048 + $0xfc0] sm:$0xff] %v3553
                %v3555 = vld [vmem:[%s3047 + $0x7e8] sm:$0xff]
                %3556 = vst [vmem:[%s3048 + $0xfc8] sm:$0xff] %v3555
                %v3557 = vld [vmem:[%s3047 + $0x7f0] sm:$0xff]
                %3558 = vst [vmem:[%s3048 + $0xfd0] sm:$0xff] %v3557
                %v3559 = vld [vmem:[%s3047 + $0x7f8] sm:$0xff]
                %3560 = vst [vmem:[%s3048 + $0xfd8] sm:$0xff] %v3559
              $region49: #{vgg_decode_forward.9} parent=43 // loop_footer
                %s3046 = sadd.s32 1, %s3042
              $region50: #{vgg_decode_forward.9} parent=43 // loop_footer_branch
                %3041 = sbr.rel target = $region46
              $region51: #{vgg_decode_forward.9} parent=43 // loop_exit
                _
            $region44: #{vgg_decode_forward.9} parent=35 // pred_fallthru
              _
          $region36: #{vgg_decode_forward.9} parent=31 // pred_fallthru
            _
          %4085 = vnop
        $region32: #{vgg_decode_forward.9} parent=27 // pred_fallthru
          _
      $region28: #{vgg_decode_forward.9} parent=5 // pred_fallthru
        _
      %p4086 = scmp.le.s32.totalorder 2, %s8
      // Predicated region
      $region67: #{vgg_decode_forward.9} parent=5 // pred_check
        %p4087 = pneg %p4086
      $region68: #{vgg_decode_forward.9} parent=5 // pred_check_branch
        %4089 = sbr.rel (%p4087) target = $region70
      $region69: #{vgg_decode_forward.9} parent=5 // pred_region
        %s4090 = ssub.s32 %s8, 2
        // Predicated region
        $region71: #{vgg_decode_forward.9} parent=69 // pred_check
          %p4091 = pneg %p84
        $region72: #{vgg_decode_forward.9} parent=69 // pred_check_branch
          %4093 = sbr.rel (%p4091) target = $region74
        $region73: #{vgg_decode_forward.9} parent=69 // pred_region
          %s4094 = sand.u32 %s69, 1
          %s4095 = sand.u32 %s69, 1
          %s4096 = smul.addr %s4095, 2048
          %s4097 = scalar_lea.vmem [#allocation2], %s4096
        $region74: #{vgg_decode_forward.9} parent=69 // pred_fallthru
          _
      $region70: #{vgg_decode_forward.9} parent=5 // pred_fallthru
        _
    $region6: #{vgg_decode_forward.9} parent=1 // loop_footer
      %s12 = sadd.s32 1, %s8
    $region7: #{vgg_decode_forward.9} parent=1 // loop_footer_branch
      %7 = sbr.rel target = $region3
    $region8: #{vgg_decode_forward.9} parent=1 // loop_exit
      _

</llo_original>
